<compile_context>
chip_gen: v7x
topology: tpu7x:2x2x1
jax: 0.10.0
libtpu: 0.0.40
codegen_flags: <defaults>
</compile_context>

<pallas_src>
import functools

import jax
import jax.numpy as jnp
from jax.experimental import pallas as pl
from jax.experimental.pallas import tpu as pltpu

START_CH = 7                 # forbid_var=True forces 7 input channels
INTER_CH = 200
PAD_CH = 256                 # 200 padded up to a full lane multiple
FINAL_CH = 3
N_RESBLOCKS = 12 // 2 - 1    # n_layers=12, is_resnet=True -> 5 residual blocks
LEAKY_SLOPE = 0.01


def _leaky_relu(x):
    # leaky_relu(x) == max(x, slope*x) for 0 < slope < 1: 2 VPU ops, not 3.
    return jnp.maximum(x, LEAKY_SLOPE * x)


def _round_up(x, m):
    return (x + m - 1) // m * m


def _pixmlp_kernel(x_ref, w0_ref, b0_ref, w1_ref, b1_ref, w2_ref, b2_ref,
                   wf_ref, bf_ref, o_ref):
    # Pixels map to lanes: x_ref is (7, TM), activations are (PAD_CH, TM).
    xb = x_ref[...].astype(jnp.bfloat16)
    h = jnp.dot(w0_ref[...], xb,
                preferred_element_type=jnp.float32) + b0_ref[...]      # f32

    # Residual blocks (static unroll, N_RESBLOCKS is compile-time constant).
    for l in range(N_RESBLOCKS):
        t = jnp.dot(w1_ref[l], h.astype(jnp.bfloat16),
                    preferred_element_type=jnp.float32) + b1_ref[l]
        t = _leaky_relu(t)
        t = jnp.dot(w2_ref[l], t.astype(jnp.bfloat16),
                    preferred_element_type=jnp.float32) + b2_ref[l]
        h = _leaky_relu(h + t)                                         # f32

    out = jnp.dot(wf_ref[...], h.astype(jnp.bfloat16),
                  preferred_element_type=jnp.float32) + bf_ref[...]
    o_ref[...] = out.astype(o_ref.dtype)


@functools.partial(jax.jit, static_argnames=("tile_m",))
def fg_pixtransform_v1(x_nchw, params, tile_m=2048):
    """x_nchw: (N, C>=7, H, W) float32 -> (N, 3, H, W) float32.

    `params` must come from prepare_params() (transposed / padded / bf16).
    """
    w0t, b0, w1t, b1, w2t, b2, wft, bf = params

    # forbid_var: take only the first 7 channels; stay in NCHW (no transpose).
    x7 = x_nchw[:, :START_CH, :, :].astype(jnp.float32)
    n, c, h, w = x7.shape
    hw = h * w
    x_flat = x7.reshape(n, c, hw)                       # (N, 7, HW)

    # Tile over pixels (lanes). Balance tile size across tiles so padding
    # never exceeds ~(num_tiles * 128) pixels, then pad if needed.
    n_tiles = max(1, pl.cdiv(hw, tile_m))
    tm = max(128, _round_up(pl.cdiv(hw, n_tiles), 128))
    hw_pad = n_tiles * tm
    if hw_pad != hw:
        x_flat = jnp.pad(x_flat, ((0, 0), (0, 0), (0, hw_pad - hw)))

    grid = (n, n_tiles)
    const2 = lambda b, i: (0, 0)
    const3 = lambda b, i: (0, 0, 0)

    flops = 2 * n * hw * (START_CH * INTER_CH
                          + N_RESBLOCKS * 2 * INTER_CH * INTER_CH
                          + INTER_CH * FINAL_CH)
    weight_bytes = sum(int(p.size) * p.dtype.itemsize for p in params)
    bytes_accessed = 4 * n * hw_pad * (START_CH + FINAL_CH) + weight_bytes

    out_flat = pl.pallas_call(
        _pixmlp_kernel,
        out_shape=jax.ShapeDtypeStruct((n, FINAL_CH, hw_pad), jnp.float32),
        grid_spec=pltpu.PrefetchScalarGridSpec(
            num_scalar_prefetch=0,
            grid=grid,
            in_specs=[
                pl.BlockSpec((None, START_CH, tm), lambda b, i: (b, 0, i)),  # x
                pl.BlockSpec((PAD_CH, START_CH), const2),                    # w0^T
                pl.BlockSpec((PAD_CH, 1), const2),                           # b0
                pl.BlockSpec((N_RESBLOCKS, PAD_CH, PAD_CH), const3),         # w1^T
                pl.BlockSpec((N_RESBLOCKS, PAD_CH, 1), const3),              # b1
                pl.BlockSpec((N_RESBLOCKS, PAD_CH, PAD_CH), const3),         # w2^T
                pl.BlockSpec((N_RESBLOCKS, PAD_CH, 1), const3),              # b2
                pl.BlockSpec((FINAL_CH, PAD_CH), const2),                    # wf^T
                pl.BlockSpec((FINAL_CH, 1), const2),                         # bf
            ],
            out_specs=pl.BlockSpec((None, FINAL_CH, tm), lambda b, i: (b, 0, i)),
        ),
        compiler_params=pltpu.CompilerParams(
            dimension_semantics=("parallel", "parallel"),
            vmem_limit_bytes=48 * 1024 * 1024),
        cost_estimate=pl.CostEstimate(flops=flops, transcendentals=0,
                                      bytes_accessed=bytes_accessed),
    )(x_flat, w0t, b0, w1t, b1, w2t, b2, wft, bf)

    # (N, 3, HW_pad) -> (N, 3, H, W)  (pure slice + reshape, no transpose)
    return out_flat[:, :, :hw].reshape(n, FINAL_CH, h, w)


def init_params(key):
    """Deterministic raw parameters (Kaiming-uniform-ish, 1x1 convs), f32."""
    ks = jax.random.split(key, 8)

    def unif(k, shape, fan_in):
        bound = 1.0 / jnp.sqrt(fan_in)
        return jax.random.uniform(k, shape, jnp.float32, -bound, bound)

    w0 = unif(ks[0], (START_CH, INTER_CH), START_CH)
    b0 = unif(ks[1], (INTER_CH,), START_CH)
    w1 = unif(ks[2], (N_RESBLOCKS, INTER_CH, INTER_CH), INTER_CH)
    b1 = unif(ks[3], (N_RESBLOCKS, INTER_CH), INTER_CH)
    w2 = unif(ks[4], (N_RESBLOCKS, INTER_CH, INTER_CH), INTER_CH)
    b2 = unif(ks[5], (N_RESBLOCKS, INTER_CH), INTER_CH)
    wf = unif(ks[6], (INTER_CH, FINAL_CH), INTER_CH)
    bf = unif(ks[7], (FINAL_CH,), INTER_CH)
    return (w0, b0, w1, b1, w2, b2, wf, bf)


def prepare_params(raw):
    """Transpose (output-major), zero-pad 200->256, cast weights to bf16."""
    w0, b0, w1, b1, w2, b2, wf, bf = raw
    pad = PAD_CH - INTER_CH
    w0t = jnp.pad(w0.T, ((0, pad), (0, 0))).astype(jnp.bfloat16)            # (256, 7)
    b0p = jnp.pad(b0, (0, pad)).reshape(PAD_CH, 1).astype(jnp.float32)
    w1t = jnp.pad(jnp.transpose(w1, (0, 2, 1)),
                  ((0, 0), (0, pad), (0, pad))).astype(jnp.bfloat16)        # (5,256,256)
    b1p = jnp.pad(b1, ((0, 0), (0, pad))).reshape(
        N_RESBLOCKS, PAD_CH, 1).astype(jnp.float32)
    w2t = jnp.pad(jnp.transpose(w2, (0, 2, 1)),
                  ((0, 0), (0, pad), (0, pad))).astype(jnp.bfloat16)        # (5,256,256)
    b2p = jnp.pad(b2, ((0, 0), (0, pad))).reshape(
        N_RESBLOCKS, PAD_CH, 1).astype(jnp.float32)
    wft = jnp.pad(wf.T, ((0, 0), (0, pad))).astype(jnp.bfloat16)            # (3, 256)
    bfp = bf.reshape(FINAL_CH, 1).astype(jnp.float32)
    return (w0t, b0p, w1t, b1p, w2t, b2p, wft, bfp)


def reference_forward(x_nchw, raw_params):
    """Pure-JAX f32 reference of the same per-pixel MLP (sanity check)."""
    w0, b0, w1, b1, w2, b2, wf, bf = raw_params
    x7 = x_nchw[:, :START_CH, :, :]
    n, c, h, w = x7.shape
    x = jnp.transpose(x7, (0, 2, 3, 1)).reshape(-1, c)
    hdd = x @ w0 + b0
    for l in range(N_RESBLOCKS):
        t = jnp.where(hdd @ w1[l] + b1[l] >= 0,
                      hdd @ w1[l] + b1[l],
                      LEAKY_SLOPE * (hdd @ w1[l] + b1[l]))
        t = t @ w2[l] + b2[l]
        s = hdd + t
        hdd = jnp.where(s >= 0, s, LEAKY_SLOPE * s)
    out = hdd @ wf + bf
    out = out.reshape(n, h, w, FINAL_CH)
    return jnp.transpose(out, (0, 3, 1, 2))


if __name__ == "__main__":
    key = jax.random.PRNGKey(0)
    k_x, k_p = jax.random.split(key)

    # Small example: batch=2, channels=8 (>=7, forward slices :7), 16x16.
    x = jax.random.normal(k_x, (2, 8, 16, 16), jnp.float32)
    raw = init_params(k_p)
    params = prepare_params(raw)

    out = fg_pixtransform_v1(x, params)
    out = jax.block_until_ready(out)

    ref = reference_forward(x, raw)
    assert out.shape == (2, 3, 16, 16), out.shape
    max_err = float(jnp.max(jnp.abs(out - ref)))
    # bf16 matmuls with f32 accumulation: loose but safe tolerance.
    assert jnp.allclose(out, ref, atol=5e-2, rtol=5e-2), (
        f"mismatch vs reference, max abs err = {max_err}")

    print("KERNEL_OK")
</pallas_src>

<mosaic_0001>
module attributes {stable_mosaic.version = 11 : i64} {
  func.func @_pixmlp_kernel(%arg0: i32, %arg1: i32, %arg2: memref<1x7x256xf32, #tpu.memory_space<vmem>>, %arg3: memref<256x7xbf16, #tpu.memory_space<vmem>>, %arg4: memref<256x1xf32, #tpu.memory_space<vmem>>, %arg5: memref<5x256x256xbf16, #tpu.memory_space<vmem>>, %arg6: memref<5x256x1xf32, #tpu.memory_space<vmem>>, %arg7: memref<5x256x256xbf16, #tpu.memory_space<vmem>>, %arg8: memref<5x256x1xf32, #tpu.memory_space<vmem>>, %arg9: memref<3x256xbf16, #tpu.memory_space<vmem>>, %arg10: memref<3x1xf32, #tpu.memory_space<vmem>>, %arg11: memref<1x3x256xf32, #tpu.memory_space<vmem>>) attributes {dimension_semantics = [#tpu.dimension_semantics<parallel>, #tpu.dimension_semantics<parallel>], iteration_bounds = array<i64: 2, 1>, scalar_prefetch = 0 : i64, scratch_operands = 0 : i64, tpu.core_type = #tpu.core_type<tc>, window_params = [{transform_indices = @transform_0, window_bounds = array<i64: 1, 7, 256>}, {pipeline_mode = #tpu.pipeline_mode<synchronous>, transform_indices = @transform_1, window_bounds = array<i64: 256, 7>}, {pipeline_mode = #tpu.pipeline_mode<synchronous>, transform_indices = @transform_2, window_bounds = array<i64: 256, 1>}, {pipeline_mode = #tpu.pipeline_mode<synchronous>, transform_indices = @transform_3, window_bounds = array<i64: 5, 256, 256>}, {pipeline_mode = #tpu.pipeline_mode<synchronous>, transform_indices = @transform_4, window_bounds = array<i64: 5, 256, 1>}, {pipeline_mode = #tpu.pipeline_mode<synchronous>, transform_indices = @transform_5, window_bounds = array<i64: 5, 256, 256>}, {pipeline_mode = #tpu.pipeline_mode<synchronous>, transform_indices = @transform_6, window_bounds = array<i64: 5, 256, 1>}, {pipeline_mode = #tpu.pipeline_mode<synchronous>, transform_indices = @transform_7, window_bounds = array<i64: 3, 256>}, {pipeline_mode = #tpu.pipeline_mode<synchronous>, transform_indices = @transform_8, window_bounds = array<i64: 3, 1>}, {transform_indices = @transform_9, window_bounds = array<i64: 1, 3, 256>}]} {
    %c0 = arith.constant 0 : index
    %c0_0 = arith.constant 0 : index
    %c0_1 = arith.constant 0 : index
    %0 = vector.load %arg2[%c0, %c0_0, %c0_1] : memref<1x7x256xf32, #tpu.memory_space<vmem>>, vector<1x7x256xf32>
    %1 = vector.shape_cast %0 : vector<1x7x256xf32> to vector<7x256xf32>
    %2 = arith.truncf %1 : vector<7x256xf32> to vector<7x256xbf16>
    %c0_2 = arith.constant 0 : index
    %c0_3 = arith.constant 0 : index
    %3 = vector.load %arg3[%c0_2, %c0_3] : memref<256x7xbf16, #tpu.memory_space<vmem>>, vector<256x7xbf16>
    %cst = arith.constant dense<0.000000e+00> : vector<256x256xf32>
    %4 = tpu.matmul %3, %2, %cst {dimension_numbers = #tpu.dot_dimension_numbers<[1], [0], [0], [1], [0, 0, 1, 1], [], []>} : vector<256x7xbf16>, vector<7x256xbf16>, vector<256x256xf32> -> vector<256x256xf32>
    %c0_4 = arith.constant 0 : index
    %c0_5 = arith.constant 0 : index
    %5 = vector.load %arg4[%c0_4, %c0_5] : memref<256x1xf32, #tpu.memory_space<vmem>>, vector<256x1xf32>
    %6 = vector.broadcast %5 : vector<256x1xf32> to vector<256x256xf32>
    %7 = arith.addf %4, %6 : vector<256x256xf32>
    %c0_6 = arith.constant 0 : index
    %c0_7 = arith.constant 0 : index
    %c0_8 = arith.constant 0 : index
    %8 = vector.load %arg5[%c0_6, %c0_7, %c0_8] : memref<5x256x256xbf16, #tpu.memory_space<vmem>>, vector<1x256x256xbf16>
    %9 = vector.shape_cast %8 : vector<1x256x256xbf16> to vector<256x256xbf16>
    %10 = arith.truncf %7 : vector<256x256xf32> to vector<256x256xbf16>
    %cst_9 = arith.constant dense<0.000000e+00> : vector<256x256xf32>
    %11 = tpu.matmul %9, %10, %cst_9 {dimension_numbers = #tpu.dot_dimension_numbers<[1], [0], [0], [1], [0, 0, 1, 1], [], []>} : vector<256x256xbf16>, vector<256x256xbf16>, vector<256x256xf32> -> vector<256x256xf32>
    %c0_10 = arith.constant 0 : index
    %c0_11 = arith.constant 0 : index
    %c0_12 = arith.constant 0 : index
    %12 = vector.load %arg6[%c0_10, %c0_11, %c0_12] : memref<5x256x1xf32, #tpu.memory_space<vmem>>, vector<1x256x1xf32>
    %13 = vector.shape_cast %12 : vector<1x256x1xf32> to vector<256x1xf32>
    %14 = vector.broadcast %13 : vector<256x1xf32> to vector<256x256xf32>
    %15 = arith.addf %11, %14 : vector<256x256xf32>
    %cst_13 = arith.constant 0.00999999977 : f32
    %16 = vector.broadcast %cst_13 : f32 to vector<256x256xf32>
    %17 = arith.mulf %16, %15 : vector<256x256xf32>
    %18 = arith.maximumf %15, %17 : vector<256x256xf32>
    %c0_14 = arith.constant 0 : index
    %c0_15 = arith.constant 0 : index
    %c0_16 = arith.constant 0 : index
    %19 = vector.load %arg7[%c0_14, %c0_15, %c0_16] : memref<5x256x256xbf16, #tpu.memory_space<vmem>>, vector<1x256x256xbf16>
    %20 = vector.shape_cast %19 : vector<1x256x256xbf16> to vector<256x256xbf16>
    %21 = arith.truncf %18 : vector<256x256xf32> to vector<256x256xbf16>
    %cst_17 = arith.constant dense<0.000000e+00> : vector<256x256xf32>
    %22 = tpu.matmul %20, %21, %cst_17 {dimension_numbers = #tpu.dot_dimension_numbers<[1], [0], [0], [1], [0, 0, 1, 1], [], []>} : vector<256x256xbf16>, vector<256x256xbf16>, vector<256x256xf32> -> vector<256x256xf32>
    %c0_18 = arith.constant 0 : index
    %c0_19 = arith.constant 0 : index
    %c0_20 = arith.constant 0 : index
    %23 = vector.load %arg8[%c0_18, %c0_19, %c0_20] : memref<5x256x1xf32, #tpu.memory_space<vmem>>, vector<1x256x1xf32>
    %24 = vector.shape_cast %23 : vector<1x256x1xf32> to vector<256x1xf32>
    %25 = vector.broadcast %24 : vector<256x1xf32> to vector<256x256xf32>
    %26 = arith.addf %22, %25 : vector<256x256xf32>
    %27 = arith.addf %7, %26 : vector<256x256xf32>
    %cst_21 = arith.constant 0.00999999977 : f32
    %28 = vector.broadcast %cst_21 : f32 to vector<256x256xf32>
    %29 = arith.mulf %28, %27 : vector<256x256xf32>
    %30 = arith.maximumf %27, %29 : vector<256x256xf32>
    %c1 = arith.constant 1 : index
    %c0_22 = arith.constant 0 : index
    %c0_23 = arith.constant 0 : index
    %31 = vector.load %arg5[%c1, %c0_22, %c0_23] : memref<5x256x256xbf16, #tpu.memory_space<vmem>>, vector<1x256x256xbf16>
    %32 = vector.shape_cast %31 : vector<1x256x256xbf16> to vector<256x256xbf16>
    %33 = arith.truncf %30 : vector<256x256xf32> to vector<256x256xbf16>
    %cst_24 = arith.constant dense<0.000000e+00> : vector<256x256xf32>
    %34 = tpu.matmul %32, %33, %cst_24 {dimension_numbers = #tpu.dot_dimension_numbers<[1], [0], [0], [1], [0, 0, 1, 1], [], []>} : vector<256x256xbf16>, vector<256x256xbf16>, vector<256x256xf32> -> vector<256x256xf32>
    %c1_25 = arith.constant 1 : index
    %c0_26 = arith.constant 0 : index
    %c0_27 = arith.constant 0 : index
    %35 = vector.load %arg6[%c1_25, %c0_26, %c0_27] : memref<5x256x1xf32, #tpu.memory_space<vmem>>, vector<1x256x1xf32>
    %36 = vector.shape_cast %35 : vector<1x256x1xf32> to vector<256x1xf32>
    %37 = vector.broadcast %36 : vector<256x1xf32> to vector<256x256xf32>
    %38 = arith.addf %34, %37 : vector<256x256xf32>
    %cst_28 = arith.constant 0.00999999977 : f32
    %39 = vector.broadcast %cst_28 : f32 to vector<256x256xf32>
    %40 = arith.mulf %39, %38 : vector<256x256xf32>
    %41 = arith.maximumf %38, %40 : vector<256x256xf32>
    %c1_29 = arith.constant 1 : index
    %c0_30 = arith.constant 0 : index
    %c0_31 = arith.constant 0 : index
    %42 = vector.load %arg7[%c1_29, %c0_30, %c0_31] : memref<5x256x256xbf16, #tpu.memory_space<vmem>>, vector<1x256x256xbf16>
    %43 = vector.shape_cast %42 : vector<1x256x256xbf16> to vector<256x256xbf16>
    %44 = arith.truncf %41 : vector<256x256xf32> to vector<256x256xbf16>
    %cst_32 = arith.constant dense<0.000000e+00> : vector<256x256xf32>
    %45 = tpu.matmul %43, %44, %cst_32 {dimension_numbers = #tpu.dot_dimension_numbers<[1], [0], [0], [1], [0, 0, 1, 1], [], []>} : vector<256x256xbf16>, vector<256x256xbf16>, vector<256x256xf32> -> vector<256x256xf32>
    %c1_33 = arith.constant 1 : index
    %c0_34 = arith.constant 0 : index
    %c0_35 = arith.constant 0 : index
    %46 = vector.load %arg8[%c1_33, %c0_34, %c0_35] : memref<5x256x1xf32, #tpu.memory_space<vmem>>, vector<1x256x1xf32>
    %47 = vector.shape_cast %46 : vector<1x256x1xf32> to vector<256x1xf32>
    %48 = vector.broadcast %47 : vector<256x1xf32> to vector<256x256xf32>
    %49 = arith.addf %45, %48 : vector<256x256xf32>
    %50 = arith.addf %30, %49 : vector<256x256xf32>
    %cst_36 = arith.constant 0.00999999977 : f32
    %51 = vector.broadcast %cst_36 : f32 to vector<256x256xf32>
    %52 = arith.mulf %51, %50 : vector<256x256xf32>
    %53 = arith.maximumf %50, %52 : vector<256x256xf32>
    %c2 = arith.constant 2 : index
    %c0_37 = arith.constant 0 : index
    %c0_38 = arith.constant 0 : index
    %54 = vector.load %arg5[%c2, %c0_37, %c0_38] : memref<5x256x256xbf16, #tpu.memory_space<vmem>>, vector<1x256x256xbf16>
    %55 = vector.shape_cast %54 : vector<1x256x256xbf16> to vector<256x256xbf16>
    %56 = arith.truncf %53 : vector<256x256xf32> to vector<256x256xbf16>
    %cst_39 = arith.constant dense<0.000000e+00> : vector<256x256xf32>
    %57 = tpu.matmul %55, %56, %cst_39 {dimension_numbers = #tpu.dot_dimension_numbers<[1], [0], [0], [1], [0, 0, 1, 1], [], []>} : vector<256x256xbf16>, vector<256x256xbf16>, vector<256x256xf32> -> vector<256x256xf32>
    %c2_40 = arith.constant 2 : index
    %c0_41 = arith.constant 0 : index
    %c0_42 = arith.constant 0 : index
    %58 = vector.load %arg6[%c2_40, %c0_41, %c0_42] : memref<5x256x1xf32, #tpu.memory_space<vmem>>, vector<1x256x1xf32>
    %59 = vector.shape_cast %58 : vector<1x256x1xf32> to vector<256x1xf32>
    %60 = vector.broadcast %59 : vector<256x1xf32> to vector<256x256xf32>
    %61 = arith.addf %57, %60 : vector<256x256xf32>
    %cst_43 = arith.constant 0.00999999977 : f32
    %62 = vector.broadcast %cst_43 : f32 to vector<256x256xf32>
    %63 = arith.mulf %62, %61 : vector<256x256xf32>
    %64 = arith.maximumf %61, %63 : vector<256x256xf32>
    %c2_44 = arith.constant 2 : index
    %c0_45 = arith.constant 0 : index
    %c0_46 = arith.constant 0 : index
    %65 = vector.load %arg7[%c2_44, %c0_45, %c0_46] : memref<5x256x256xbf16, #tpu.memory_space<vmem>>, vector<1x256x256xbf16>
    %66 = vector.shape_cast %65 : vector<1x256x256xbf16> to vector<256x256xbf16>
    %67 = arith.truncf %64 : vector<256x256xf32> to vector<256x256xbf16>
    %cst_47 = arith.constant dense<0.000000e+00> : vector<256x256xf32>
    %68 = tpu.matmul %66, %67, %cst_47 {dimension_numbers = #tpu.dot_dimension_numbers<[1], [0], [0], [1], [0, 0, 1, 1], [], []>} : vector<256x256xbf16>, vector<256x256xbf16>, vector<256x256xf32> -> vector<256x256xf32>
    %c2_48 = arith.constant 2 : index
    %c0_49 = arith.constant 0 : index
    %c0_50 = arith.constant 0 : index
    %69 = vector.load %arg8[%c2_48, %c0_49, %c0_50] : memref<5x256x1xf32, #tpu.memory_space<vmem>>, vector<1x256x1xf32>
    %70 = vector.shape_cast %69 : vector<1x256x1xf32> to vector<256x1xf32>
    %71 = vector.broadcast %70 : vector<256x1xf32> to vector<256x256xf32>
    %72 = arith.addf %68, %71 : vector<256x256xf32>
    %73 = arith.addf %53, %72 : vector<256x256xf32>
    %cst_51 = arith.constant 0.00999999977 : f32
    %74 = vector.broadcast %cst_51 : f32 to vector<256x256xf32>
    %75 = arith.mulf %74, %73 : vector<256x256xf32>
    %76 = arith.maximumf %73, %75 : vector<256x256xf32>
    %c3 = arith.constant 3 : index
    %c0_52 = arith.constant 0 : index
    %c0_53 = arith.constant 0 : index
    %77 = vector.load %arg5[%c3, %c0_52, %c0_53] : memref<5x256x256xbf16, #tpu.memory_space<vmem>>, vector<1x256x256xbf16>
    %78 = vector.shape_cast %77 : vector<1x256x256xbf16> to vector<256x256xbf16>
    %79 = arith.truncf %76 : vector<256x256xf32> to vector<256x256xbf16>
    %cst_54 = arith.constant dense<0.000000e+00> : vector<256x256xf32>
    %80 = tpu.matmul %78, %79, %cst_54 {dimension_numbers = #tpu.dot_dimension_numbers<[1], [0], [0], [1], [0, 0, 1, 1], [], []>} : vector<256x256xbf16>, vector<256x256xbf16>, vector<256x256xf32> -> vector<256x256xf32>
    %c3_55 = arith.constant 3 : index
    %c0_56 = arith.constant 0 : index
    %c0_57 = arith.constant 0 : index
    %81 = vector.load %arg6[%c3_55, %c0_56, %c0_57] : memref<5x256x1xf32, #tpu.memory_space<vmem>>, vector<1x256x1xf32>
    %82 = vector.shape_cast %81 : vector<1x256x1xf32> to vector<256x1xf32>
    %83 = vector.broadcast %82 : vector<256x1xf32> to vector<256x256xf32>
    %84 = arith.addf %80, %83 : vector<256x256xf32>
    %cst_58 = arith.constant 0.00999999977 : f32
    %85 = vector.broadcast %cst_58 : f32 to vector<256x256xf32>
    %86 = arith.mulf %85, %84 : vector<256x256xf32>
    %87 = arith.maximumf %84, %86 : vector<256x256xf32>
    %c3_59 = arith.constant 3 : index
    %c0_60 = arith.constant 0 : index
    %c0_61 = arith.constant 0 : index
    %88 = vector.load %arg7[%c3_59, %c0_60, %c0_61] : memref<5x256x256xbf16, #tpu.memory_space<vmem>>, vector<1x256x256xbf16>
    %89 = vector.shape_cast %88 : vector<1x256x256xbf16> to vector<256x256xbf16>
    %90 = arith.truncf %87 : vector<256x256xf32> to vector<256x256xbf16>
    %cst_62 = arith.constant dense<0.000000e+00> : vector<256x256xf32>
    %91 = tpu.matmul %89, %90, %cst_62 {dimension_numbers = #tpu.dot_dimension_numbers<[1], [0], [0], [1], [0, 0, 1, 1], [], []>} : vector<256x256xbf16>, vector<256x256xbf16>, vector<256x256xf32> -> vector<256x256xf32>
    %c3_63 = arith.constant 3 : index
    %c0_64 = arith.constant 0 : index
    %c0_65 = arith.constant 0 : index
    %92 = vector.load %arg8[%c3_63, %c0_64, %c0_65] : memref<5x256x1xf32, #tpu.memory_space<vmem>>, vector<1x256x1xf32>
    %93 = vector.shape_cast %92 : vector<1x256x1xf32> to vector<256x1xf32>
    %94 = vector.broadcast %93 : vector<256x1xf32> to vector<256x256xf32>
    %95 = arith.addf %91, %94 : vector<256x256xf32>
    %96 = arith.addf %76, %95 : vector<256x256xf32>
    %cst_66 = arith.constant 0.00999999977 : f32
    %97 = vector.broadcast %cst_66 : f32 to vector<256x256xf32>
    %98 = arith.mulf %97, %96 : vector<256x256xf32>
    %99 = arith.maximumf %96, %98 : vector<256x256xf32>
    %c4 = arith.constant 4 : index
    %c0_67 = arith.constant 0 : index
    %c0_68 = arith.constant 0 : index
    %100 = vector.load %arg5[%c4, %c0_67, %c0_68] : memref<5x256x256xbf16, #tpu.memory_space<vmem>>, vector<1x256x256xbf16>
    %101 = vector.shape_cast %100 : vector<1x256x256xbf16> to vector<256x256xbf16>
    %102 = arith.truncf %99 : vector<256x256xf32> to vector<256x256xbf16>
    %cst_69 = arith.constant dense<0.000000e+00> : vector<256x256xf32>
    %103 = tpu.matmul %101, %102, %cst_69 {dimension_numbers = #tpu.dot_dimension_numbers<[1], [0], [0], [1], [0, 0, 1, 1], [], []>} : vector<256x256xbf16>, vector<256x256xbf16>, vector<256x256xf32> -> vector<256x256xf32>
    %c4_70 = arith.constant 4 : index
    %c0_71 = arith.constant 0 : index
    %c0_72 = arith.constant 0 : index
    %104 = vector.load %arg6[%c4_70, %c0_71, %c0_72] : memref<5x256x1xf32, #tpu.memory_space<vmem>>, vector<1x256x1xf32>
    %105 = vector.shape_cast %104 : vector<1x256x1xf32> to vector<256x1xf32>
    %106 = vector.broadcast %105 : vector<256x1xf32> to vector<256x256xf32>
    %107 = arith.addf %103, %106 : vector<256x256xf32>
    %cst_73 = arith.constant 0.00999999977 : f32
    %108 = vector.broadcast %cst_73 : f32 to vector<256x256xf32>
    %109 = arith.mulf %108, %107 : vector<256x256xf32>
    %110 = arith.maximumf %107, %109 : vector<256x256xf32>
    %c4_74 = arith.constant 4 : index
    %c0_75 = arith.constant 0 : index
    %c0_76 = arith.constant 0 : index
    %111 = vector.load %arg7[%c4_74, %c0_75, %c0_76] : memref<5x256x256xbf16, #tpu.memory_space<vmem>>, vector<1x256x256xbf16>
    %112 = vector.shape_cast %111 : vector<1x256x256xbf16> to vector<256x256xbf16>
    %113 = arith.truncf %110 : vector<256x256xf32> to vector<256x256xbf16>
    %cst_77 = arith.constant dense<0.000000e+00> : vector<256x256xf32>
    %114 = tpu.matmul %112, %113, %cst_77 {dimension_numbers = #tpu.dot_dimension_numbers<[1], [0], [0], [1], [0, 0, 1, 1], [], []>} : vector<256x256xbf16>, vector<256x256xbf16>, vector<256x256xf32> -> vector<256x256xf32>
    %c4_78 = arith.constant 4 : index
    %c0_79 = arith.constant 0 : index
    %c0_80 = arith.constant 0 : index
    %115 = vector.load %arg8[%c4_78, %c0_79, %c0_80] : memref<5x256x1xf32, #tpu.memory_space<vmem>>, vector<1x256x1xf32>
    %116 = vector.shape_cast %115 : vector<1x256x1xf32> to vector<256x1xf32>
    %117 = vector.broadcast %116 : vector<256x1xf32> to vector<256x256xf32>
    %118 = arith.addf %114, %117 : vector<256x256xf32>
    %119 = arith.addf %99, %118 : vector<256x256xf32>
    %cst_81 = arith.constant 0.00999999977 : f32
    %120 = vector.broadcast %cst_81 : f32 to vector<256x256xf32>
    %121 = arith.mulf %120, %119 : vector<256x256xf32>
    %122 = arith.maximumf %119, %121 : vector<256x256xf32>
    %c0_82 = arith.constant 0 : index
    %c0_83 = arith.constant 0 : index
    %123 = vector.load %arg9[%c0_82, %c0_83] : memref<3x256xbf16, #tpu.memory_space<vmem>>, vector<3x256xbf16>
    %124 = arith.truncf %122 : vector<256x256xf32> to vector<256x256xbf16>
    %cst_84 = arith.constant dense<0.000000e+00> : vector<3x256xf32>
    %125 = tpu.matmul %123, %124, %cst_84 {dimension_numbers = #tpu.dot_dimension_numbers<[1], [0], [0], [1], [0, 0, 1, 1], [], []>} : vector<3x256xbf16>, vector<256x256xbf16>, vector<3x256xf32> -> vector<3x256xf32>
    %c0_85 = arith.constant 0 : index
    %c0_86 = arith.constant 0 : index
    %126 = vector.load %arg10[%c0_85, %c0_86] : memref<3x1xf32, #tpu.memory_space<vmem>>, vector<3x1xf32>
    %127 = vector.broadcast %126 : vector<3x1xf32> to vector<3x256xf32>
    %128 = arith.addf %125, %127 : vector<3x256xf32>
    %c0_87 = arith.constant 0 : index
    %c0_88 = arith.constant 0 : index
    %c0_89 = arith.constant 0 : index
    %129 = vector.load %arg11[%c0_87, %c0_88, %c0_89] : memref<1x3x256xf32, #tpu.memory_space<vmem>>, vector<1x3x256xf32>
    %130 = vector.shape_cast %129 : vector<1x3x256xf32> to vector<3x256xf32>
    %131 = vector.shape_cast %128 : vector<3x256xf32> to vector<1x3x256xf32>
    tpu.vector_store %arg11[%c0_87, %c0_88, %c0_89], %131 {strides = array<i32>} : memref<1x3x256xf32, #tpu.memory_space<vmem>>, vector<1x3x256xf32>,
    return
  }
  func.func @transform_0(%arg0: i32, %arg1: i32) -> (i32, i32, i32) {
    %c0_i32 = arith.constant 0 : i32
    %c0_i32_0 = arith.constant 0 : i32
    return %arg0, %c0_i32, %arg1 : i32, i32, i32
  }
  func.func @transform_1(%arg0: i32, %arg1: i32) -> (i32, i32) {
    %c0_i32 = arith.constant 0 : i32
    %c0_i32_0 = arith.constant 0 : i32
    %c0_i32_1 = arith.constant 0 : i32
    return %c0_i32, %c0_i32_0 : i32, i32
  }
  func.func @transform_2(%arg0: i32, %arg1: i32) -> (i32, i32) {
    %c0_i32 = arith.constant 0 : i32
    %c0_i32_0 = arith.constant 0 : i32
    %c0_i32_1 = arith.constant 0 : i32
    return %c0_i32, %c0_i32_0 : i32, i32
  }
  func.func @transform_3(%arg0: i32, %arg1: i32) -> (i32, i32, i32) {
    %c0_i32 = arith.constant 0 : i32
    %c0_i32_0 = arith.constant 0 : i32
    %c0_i32_1 = arith.constant 0 : i32
    %c0_i32_2 = arith.constant 0 : i32
    return %c0_i32, %c0_i32_0, %c0_i32_1 : i32, i32, i32
  }
  func.func @transform_4(%arg0: i32, %arg1: i32) -> (i32, i32, i32) {
    %c0_i32 = arith.constant 0 : i32
    %c0_i32_0 = arith.constant 0 : i32
    %c0_i32_1 = arith.constant 0 : i32
    %c0_i32_2 = arith.constant 0 : i32
    return %c0_i32, %c0_i32_0, %c0_i32_1 : i32, i32, i32
  }
  func.func @transform_5(%arg0: i32, %arg1: i32) -> (i32, i32, i32) {
    %c0_i32 = arith.constant 0 : i32
    %c0_i32_0 = arith.constant 0 : i32
    %c0_i32_1 = arith.constant 0 : i32
    %c0_i32_2 = arith.constant 0 : i32
    return %c0_i32, %c0_i32_0, %c0_i32_1 : i32, i32, i32
  }
  func.func @transform_6(%arg0: i32, %arg1: i32) -> (i32, i32, i32) {
    %c0_i32 = arith.constant 0 : i32
    %c0_i32_0 = arith.constant 0 : i32
    %c0_i32_1 = arith.constant 0 : i32
    %c0_i32_2 = arith.constant 0 : i32
    return %c0_i32, %c0_i32_0, %c0_i32_1 : i32, i32, i32
  }
  func.func @transform_7(%arg0: i32, %arg1: i32) -> (i32, i32) {
    %c0_i32 = arith.constant 0 : i32
    %c0_i32_0 = arith.constant 0 : i32
    %c0_i32_1 = arith.constant 0 : i32
    return %c0_i32, %c0_i32_0 : i32, i32
  }
  func.func @transform_8(%arg0: i32, %arg1: i32) -> (i32, i32) {
    %c0_i32 = arith.constant 0 : i32
    %c0_i32_0 = arith.constant 0 : i32
    %c0_i32_1 = arith.constant 0 : i32
    return %c0_i32, %c0_i32_0 : i32, i32
  }
  func.func @transform_9(%arg0: i32, %arg1: i32) -> (i32, i32, i32) {
    %c0_i32 = arith.constant 0 : i32
    %c0_i32_0 = arith.constant 0 : i32
    return %arg0, %c0_i32, %arg1 : i32, i32, i32
  }
}

</mosaic_0001>

<llo_original>
// kernel: fg_pixtransform_v1.1
$region0: #{fg_pixtransform_v1.1}
  #allocation0 [shape = 'u32[]', space=smem, size = 0x4, offset = 0x4, fixed_abs, tag = 'smem constant byte address 0x4 - core index']
  #allocation1 [shape = 'u32[144,128]{1,0:T(1,128)}', space=vmem, size = 0x12000, scoped, tag = 'internal scratch']
  %s0 = inlined_call_operand.vmem [shape: f32[2,7,256], index: 0, kind: input, shape index: {}]
  %s1 = inlined_call_operand.vmem [shape: bf16[256,7], index: 1, kind: input, shape index: {}]
  %s2 = inlined_call_operand.vmem [shape: f32[256,1], index: 2, kind: input, shape index: {}]
  %s3 = inlined_call_operand.vmem [shape: bf16[5,256,256], index: 3, kind: input, shape index: {}]
  %s4 = inlined_call_operand.vmem [shape: f32[5,256,1], index: 4, kind: input, shape index: {}]
  %s5 = inlined_call_operand.vmem [shape: bf16[5,256,256], index: 5, kind: input, shape index: {}]
  %s6 = inlined_call_operand.vmem [shape: f32[5,256,1], index: 6, kind: input, shape index: {}]
  %s7 = inlined_call_operand.vmem [shape: bf16[3,256], index: 7, kind: input, shape index: {}]
  %s8 = inlined_call_operand.vmem [shape: f32[3,1], index: 8, kind: input, shape index: {}]
  %s9 = inlined_call_operand.vmem [shape: f32[2,3,256], index: 9, kind: output, shape index: {}]
  %s10 = sld [smem:[#allocation0]]
  $region69: #{fg_pixtransform_v1.1} parent=0
    _
  %s12 = ssub.s32 1, %s10
  %s13 = scalar_select 0, %s12, %s10
  loop: start=0, step=1, limit=4
  $region2: #{fg_pixtransform_v1.1} parent=0 // loop_pre_header
    _
  $region3: #{fg_pixtransform_v1.1} parent=0 // loop_header
    %s15 = sphi 0, %s19
    %p16 = scmp.ge.s32.totalorder %s15, 4
    %s22 = sphi 0, %s34
    %s23 = sphi 0, %s30
    %s24 = sphi 0, %s22
    %s25 = sphi 0, %s23
    %s26 = sphi 0, %s24
    %s27 = sphi 0, %s25
    %s39 = sphi 0, %s41
    %s42 = sphi 0, %s39
    %s43 = sphi 0, %s42
    %s59 = sphi 0, %s43
    %s63 = sphi 0, %s63
    %s65 = sphi 0, %s63
    %s66 = sphi 0, %s65
    %s80 = sphi 0, %s66
    %s84 = sphi 0, %s84
    %s86 = sphi 0, %s84
    %s87 = sphi 0, %s86
    %s101 = sphi 0, %s87
    %s105 = sphi 0, %s105
    %s107 = sphi 0, %s105
    %s108 = sphi 0, %s107
    %s122 = sphi 0, %s108
    %s126 = sphi 0, %s126
    %s128 = sphi 0, %s126
    %s129 = sphi 0, %s128
    %s143 = sphi 0, %s129
    %s147 = sphi 0, %s147
    %s149 = sphi 0, %s147
    %s150 = sphi 0, %s149
    %s164 = sphi 0, %s150
    %s168 = sphi 0, %s168
    %s170 = sphi 0, %s168
    %s171 = sphi 0, %s170
    %s185 = sphi 0, %s171
    %s189 = sphi 0, %s189
    %s191 = sphi 0, %s189
    %s192 = sphi 0, %s191
    %s206 = sphi 0, %s192
    %s210 = sphi 0, %s210
    %s212 = sphi 0, %s210
    %s213 = sphi 0, %s212
    %s227 = sphi 0, %s213
    %s235 = sphi 0, %s237
    %s238 = sphi 0, %s235
    %s239 = sphi 0, %s238
    %s255 = sphi 0, %s239
  $region4: #{fg_pixtransform_v1.1} parent=0 // loop_header_branch
    %18 = sbr.rel (%p16) target = $region8
  $region5: #{fg_pixtransform_v1.1} parent=0 // loop_body
    %s20 = ssub.s32 %s15, 1
    %s21 = ssub.s32 %s15, 2
    %s28 = sadd.s32 1, %s23
    %p29 = scmp.ge.s32.totalorder %s28, 1
    %s30 = scalar_select %p29, 0, %s28
    %s31 = sadd.s32 1, %s22
    %s32 = scalar_select %p29, %s31, %s22
    %p33 = scmp.ge.s32.totalorder %s32, 2
    %s34 = scalar_select %p33, 0, %s32
    %s35 = ssub.s32 %s22, %s34
    %s36 = ssub.s32 %s23, %s30
    %s37 = sor.u32 %s35, %s36
    %p38 = scmp.eq.s32.totalorder %s37, 0
    %s40 = sadd.s32 %s39, 1
    %s41 = scalar_select %p38, %s39, %s40
    %p44 = pneg %p38
    %p45 = scmp.eq.s32.totalorder %s15, 1
    %p46 = por %p44, %p45
    %p47 = scmp.ne.s32.totalorder %s39, %s42
    %p48 = scmp.eq.s32.totalorder %s15, 0
    %p49 = por %p47, %p48
    %p50 = scmp.ne.s32.totalorder %s39, %s42
    %p51 = scmp.eq.s32.totalorder %s20, 1
    %p52 = por %p50, %p51
    %p53 = scmp.ne.s32.totalorder %s42, %s43
    %p54 = scmp.eq.s32.totalorder %s20, 0
    %p55 = por %p53, %p54
    %p56 = scmp.ne.s32.totalorder %s42, %s43
    %p57 = scmp.eq.s32.totalorder %s21, 1
    %p58 = por %p56, %p57
    %p60 = scmp.ne.s32.totalorder %s43, %s59
    %p61 = scmp.eq.s32.totalorder %s21, 0
    %p62 = por %p60, %p61
    %s64 = sadd.s32 %s63, 1
    %p67 = scmp.eq.s32.totalorder %s15, 1
    %p68 = scmp.ne.s32.totalorder %s63, %s65
    %p69 = scmp.eq.s32.totalorder %s15, 0
    %p70 = por %p68, %p69
    %p71 = scmp.ne.s32.totalorder %s63, %s65
    %p72 = scmp.eq.s32.totalorder %s20, 1
    %p73 = por %p71, %p72
    %p74 = scmp.ne.s32.totalorder %s65, %s66
    %p75 = scmp.eq.s32.totalorder %s20, 0
    %p76 = por %p74, %p75
    %p77 = scmp.ne.s32.totalorder %s65, %s66
    %p78 = scmp.eq.s32.totalorder %s21, 1
    %p79 = por %p77, %p78
    %p81 = scmp.ne.s32.totalorder %s66, %s80
    %p82 = scmp.eq.s32.totalorder %s21, 0
    %p83 = por %p81, %p82
    %s85 = sadd.s32 %s84, 1
    %p88 = scmp.eq.s32.totalorder %s15, 1
    %p89 = scmp.ne.s32.totalorder %s84, %s86
    %p90 = scmp.eq.s32.totalorder %s15, 0
    %p91 = por %p89, %p90
    %p92 = scmp.ne.s32.totalorder %s84, %s86
    %p93 = scmp.eq.s32.totalorder %s20, 1
    %p94 = por %p92, %p93
    %p95 = scmp.ne.s32.totalorder %s86, %s87
    %p96 = scmp.eq.s32.totalorder %s20, 0
    %p97 = por %p95, %p96
    %p98 = scmp.ne.s32.totalorder %s86, %s87
    %p99 = scmp.eq.s32.totalorder %s21, 1
    %p100 = por %p98, %p99
    %p102 = scmp.ne.s32.totalorder %s87, %s101
    %p103 = scmp.eq.s32.totalorder %s21, 0
    %p104 = por %p102, %p103
    %s106 = sadd.s32 %s105, 1
    %p109 = scmp.eq.s32.totalorder %s15, 1
    %p110 = scmp.ne.s32.totalorder %s105, %s107
    %p111 = scmp.eq.s32.totalorder %s15, 0
    %p112 = por %p110, %p111
    %p113 = scmp.ne.s32.totalorder %s105, %s107
    %p114 = scmp.eq.s32.totalorder %s20, 1
    %p115 = por %p113, %p114
    %p116 = scmp.ne.s32.totalorder %s107, %s108
    %p117 = scmp.eq.s32.totalorder %s20, 0
    %p118 = por %p116, %p117
    %p119 = scmp.ne.s32.totalorder %s107, %s108
    %p120 = scmp.eq.s32.totalorder %s21, 1
    %p121 = por %p119, %p120
    %p123 = scmp.ne.s32.totalorder %s108, %s122
    %p124 = scmp.eq.s32.totalorder %s21, 0
    %p125 = por %p123, %p124
    %s127 = sadd.s32 %s126, 1
    %p130 = scmp.eq.s32.totalorder %s15, 1
    %p131 = scmp.ne.s32.totalorder %s126, %s128
    %p132 = scmp.eq.s32.totalorder %s15, 0
    %p133 = por %p131, %p132
    %p134 = scmp.ne.s32.totalorder %s126, %s128
    %p135 = scmp.eq.s32.totalorder %s20, 1
    %p136 = por %p134, %p135
    %p137 = scmp.ne.s32.totalorder %s128, %s129
    %p138 = scmp.eq.s32.totalorder %s20, 0
    %p139 = por %p137, %p138
    %p140 = scmp.ne.s32.totalorder %s128, %s129
    %p141 = scmp.eq.s32.totalorder %s21, 1
    %p142 = por %p140, %p141
    %p144 = scmp.ne.s32.totalorder %s129, %s143
    %p145 = scmp.eq.s32.totalorder %s21, 0
    %p146 = por %p144, %p145
    %s148 = sadd.s32 %s147, 1
    %p151 = scmp.eq.s32.totalorder %s15, 1
    %p152 = scmp.ne.s32.totalorder %s147, %s149
    %p153 = scmp.eq.s32.totalorder %s15, 0
    %p154 = por %p152, %p153
    %p155 = scmp.ne.s32.totalorder %s147, %s149
    %p156 = scmp.eq.s32.totalorder %s20, 1
    %p157 = por %p155, %p156
    %p158 = scmp.ne.s32.totalorder %s149, %s150
    %p159 = scmp.eq.s32.totalorder %s20, 0
    %p160 = por %p158, %p159
    %p161 = scmp.ne.s32.totalorder %s149, %s150
    %p162 = scmp.eq.s32.totalorder %s21, 1
    %p163 = por %p161, %p162
    %p165 = scmp.ne.s32.totalorder %s150, %s164
    %p166 = scmp.eq.s32.totalorder %s21, 0
    %p167 = por %p165, %p166
    %s169 = sadd.s32 %s168, 1
    %p172 = scmp.eq.s32.totalorder %s15, 1
    %p173 = scmp.ne.s32.totalorder %s168, %s170
    %p174 = scmp.eq.s32.totalorder %s15, 0
    %p175 = por %p173, %p174
    %p176 = scmp.ne.s32.totalorder %s168, %s170
    %p177 = scmp.eq.s32.totalorder %s20, 1
    %p178 = por %p176, %p177
    %p179 = scmp.ne.s32.totalorder %s170, %s171
    %p180 = scmp.eq.s32.totalorder %s20, 0
    %p181 = por %p179, %p180
    %p182 = scmp.ne.s32.totalorder %s170, %s171
    %p183 = scmp.eq.s32.totalorder %s21, 1
    %p184 = por %p182, %p183
    %p186 = scmp.ne.s32.totalorder %s171, %s185
    %p187 = scmp.eq.s32.totalorder %s21, 0
    %p188 = por %p186, %p187
    %s190 = sadd.s32 %s189, 1
    %p193 = scmp.eq.s32.totalorder %s15, 1
    %p194 = scmp.ne.s32.totalorder %s189, %s191
    %p195 = scmp.eq.s32.totalorder %s15, 0
    %p196 = por %p194, %p195
    %p197 = scmp.ne.s32.totalorder %s189, %s191
    %p198 = scmp.eq.s32.totalorder %s20, 1
    %p199 = por %p197, %p198
    %p200 = scmp.ne.s32.totalorder %s191, %s192
    %p201 = scmp.eq.s32.totalorder %s20, 0
    %p202 = por %p200, %p201
    %p203 = scmp.ne.s32.totalorder %s191, %s192
    %p204 = scmp.eq.s32.totalorder %s21, 1
    %p205 = por %p203, %p204
    %p207 = scmp.ne.s32.totalorder %s192, %s206
    %p208 = scmp.eq.s32.totalorder %s21, 0
    %p209 = por %p207, %p208
    %s211 = sadd.s32 %s210, 1
    %p214 = scmp.eq.s32.totalorder %s15, 1
    %p215 = scmp.ne.s32.totalorder %s210, %s212
    %p216 = scmp.eq.s32.totalorder %s15, 0
    %p217 = por %p215, %p216
    %p218 = scmp.ne.s32.totalorder %s210, %s212
    %p219 = scmp.eq.s32.totalorder %s20, 1
    %p220 = por %p218, %p219
    %p221 = scmp.ne.s32.totalorder %s212, %s213
    %p222 = scmp.eq.s32.totalorder %s20, 0
    %p223 = por %p221, %p222
    %p224 = scmp.ne.s32.totalorder %s212, %s213
    %p225 = scmp.eq.s32.totalorder %s21, 1
    %p226 = por %p224, %p225
    %p228 = scmp.ne.s32.totalorder %s213, %s227
    %p229 = scmp.eq.s32.totalorder %s21, 0
    %p230 = por %p228, %p229
    %s231 = ssub.s32 %s22, %s34
    %s232 = ssub.s32 %s23, %s30
    %s233 = sor.u32 %s231, %s232
    %p234 = scmp.eq.s32.totalorder %s233, 0
    %s236 = sadd.s32 %s235, 1
    %s237 = scalar_select %p234, %s235, %s236
    %p240 = pneg %p234
    %p241 = scmp.eq.s32.totalorder %s15, 1
    %p242 = por %p240, %p241
    %p243 = scmp.ne.s32.totalorder %s235, %s238
    %p244 = scmp.eq.s32.totalorder %s15, 0
    %p245 = por %p243, %p244
    %p246 = scmp.ne.s32.totalorder %s235, %s238
    %p247 = scmp.eq.s32.totalorder %s20, 1
    %p248 = por %p246, %p247
    %p249 = scmp.ne.s32.totalorder %s238, %s239
    %p250 = scmp.eq.s32.totalorder %s20, 0
    %p251 = por %p249, %p250
    %p252 = scmp.ne.s32.totalorder %s238, %s239
    %p253 = scmp.eq.s32.totalorder %s21, 1
    %p254 = por %p252, %p253
    %p256 = scmp.ne.s32.totalorder %s239, %s255
    %p257 = scmp.eq.s32.totalorder %s21, 0
    %p258 = por %p256, %p257
    %p259 = scmp.le.s32.totalorder 1, %s15
    %p260 = scmp.lt.s32.totalorder %s15, 3
    %p261 = pnand %p259, %p260
    %p262 = pneg %p261
    // Predicated region
    $region9: #{fg_pixtransform_v1.1} parent=5 // pred_check
      _
    $region10: #{fg_pixtransform_v1.1} parent=5 // pred_check_branch
      %264 = sbr.rel (%p261) target = $region12
    $region11: #{fg_pixtransform_v1.1} parent=5 // pred_region
      %s265 = ssub.s32 %s15, 1
      // Predicated region
      $region13: #{fg_pixtransform_v1.1} parent=11 // pred_check
        %p266 = pneg %p76
      $region14: #{fg_pixtransform_v1.1} parent=11 // pred_check_branch
        %268 = sbr.rel (%p266) target = $region16
      $region15: #{fg_pixtransform_v1.1} parent=11 // pred_region
        _
      $region16: #{fg_pixtransform_v1.1} parent=11 // pred_fallthru
        _
      // Predicated region
      $region17: #{fg_pixtransform_v1.1} parent=11 // pred_check
        %p269 = pneg %p97
      $region18: #{fg_pixtransform_v1.1} parent=11 // pred_check_branch
        %271 = sbr.rel (%p269) target = $region20
      $region19: #{fg_pixtransform_v1.1} parent=11 // pred_region
        _
      $region20: #{fg_pixtransform_v1.1} parent=11 // pred_fallthru
        _
      // Predicated region
      $region21: #{fg_pixtransform_v1.1} parent=11 // pred_check
        %p272 = pneg %p118
      $region22: #{fg_pixtransform_v1.1} parent=11 // pred_check_branch
        %274 = sbr.rel (%p272) target = $region24
      $region23: #{fg_pixtransform_v1.1} parent=11 // pred_region
        _
      $region24: #{fg_pixtransform_v1.1} parent=11 // pred_fallthru
        _
      // Predicated region
      $region25: #{fg_pixtransform_v1.1} parent=11 // pred_check
        %p275 = pneg %p139
      $region26: #{fg_pixtransform_v1.1} parent=11 // pred_check_branch
        %277 = sbr.rel (%p275) target = $region28
      $region27: #{fg_pixtransform_v1.1} parent=11 // pred_region
        _
      $region28: #{fg_pixtransform_v1.1} parent=11 // pred_fallthru
        _
      // Predicated region
      $region29: #{fg_pixtransform_v1.1} parent=11 // pred_check
        %p278 = pneg %p160
      $region30: #{fg_pixtransform_v1.1} parent=11 // pred_check_branch
        %280 = sbr.rel (%p278) target = $region32
      $region31: #{fg_pixtransform_v1.1} parent=11 // pred_region
        _
      $region32: #{fg_pixtransform_v1.1} parent=11 // pred_fallthru
        _
      // Predicated region
      $region33: #{fg_pixtransform_v1.1} parent=11 // pred_check
        %p281 = pneg %p181
      $region34: #{fg_pixtransform_v1.1} parent=11 // pred_check_branch
        %283 = sbr.rel (%p281) target = $region36
      $region35: #{fg_pixtransform_v1.1} parent=11 // pred_region
        _
      $region36: #{fg_pixtransform_v1.1} parent=11 // pred_fallthru
        _
      // Predicated region
      $region37: #{fg_pixtransform_v1.1} parent=11 // pred_check
        %p284 = pneg %p202
      $region38: #{fg_pixtransform_v1.1} parent=11 // pred_check_branch
        %286 = sbr.rel (%p284) target = $region40
      $region39: #{fg_pixtransform_v1.1} parent=11 // pred_region
        _
      $region40: #{fg_pixtransform_v1.1} parent=11 // pred_fallthru
        _
      // Predicated region
      $region41: #{fg_pixtransform_v1.1} parent=11 // pred_check
        %p287 = pneg %p223
      $region42: #{fg_pixtransform_v1.1} parent=11 // pred_check_branch
        %289 = sbr.rel (%p287) target = $region44
      $region43: #{fg_pixtransform_v1.1} parent=11 // pred_region
        _
      $region44: #{fg_pixtransform_v1.1} parent=11 // pred_fallthru
        _
    $region12: #{fg_pixtransform_v1.1} parent=5 // pred_fallthru
      _
    %p290 = scmp.lt.s32.totalorder %s15, 2
    // Predicated region
    $region45: #{fg_pixtransform_v1.1} parent=5 // pred_check
      %p291 = pneg %p290
    $region46: #{fg_pixtransform_v1.1} parent=5 // pred_check_branch
      %293 = sbr.rel (%p291) target = $region48
    $region47: #{fg_pixtransform_v1.1} parent=5 // pred_region
      // Predicated region
      $region49: #{fg_pixtransform_v1.1} parent=47 // pred_check
        %p294 = pneg %p49
      $region50: #{fg_pixtransform_v1.1} parent=47 // pred_check_branch
        %296 = sbr.rel (%p294) target = $region52
      $region51: #{fg_pixtransform_v1.1} parent=47 // pred_region
        %s297 = smul.u32 2, %s23
        %p298 = scmp.lt.s32.totalorder %s22, 1
        %s299 = scalar_select %p298, %s22, 1
        %p300 = scmp.lt.s32.totalorder %s297, 1
        %s301 = scalar_select %p300, %s297, 1
        %s302 = smul.addr %s299, 2
        %s303 = sadd.s32 %s301, %s302
        %s304 = smul.addr %s303, 8
        %s305 = scalar_lea.vmem %s0, %s304
        %s306 = smul.u32 2, %s23
      $region52: #{fg_pixtransform_v1.1} parent=47 // pred_fallthru
        _
    $region48: #{fg_pixtransform_v1.1} parent=5 // pred_fallthru
      _
    %p307 = scmp.le.s32.totalorder 1, %s15
    %p308 = scmp.lt.s32.totalorder %s15, 3
    %p309 = pnand %p307, %p308
    %p310 = pneg %p309
    // Predicated region
    $region53: #{fg_pixtransform_v1.1} parent=5 // pred_check
      _
    $region54: #{fg_pixtransform_v1.1} parent=5 // pred_check_branch
      %312 = sbr.rel (%p309) target = $region56
    $region55: #{fg_pixtransform_v1.1} parent=5 // pred_region
      %s313 = ssub.s32 %s15, 1
      %s314 = smul.u32 2, %s25
      %p315 = scmp.lt.s32.totalorder %s24, 1
      %s316 = scalar_select %p315, %s24, 1
      %p317 = scmp.lt.s32.totalorder %s314, 1
      %s318 = scalar_select %p317, %s314, 1
      %s319 = smul.addr %s316, 2
      %s320 = sadd.s32 %s318, %s319
      %s321 = smul.addr %s320, 8
      %s322 = scalar_lea.vmem %s0, %s321
      %p323 = pneg %p55
      %p324 = pneg %p52
      %p325 = pneg %p76
      %p326 = pneg %p73
      %p327 = pneg %p97
      %p328 = pneg %p94
      %p329 = pneg %p118
      %p330 = pneg %p115
      %p331 = pneg %p139
      %p332 = pneg %p136
      %p333 = pneg %p160
      %p334 = pneg %p157
      %p335 = pneg %p181
      %p336 = pneg %p178
      %p337 = pneg %p202
      %p338 = pneg %p199
      %p339 = pneg %p223
      %p340 = pneg %p220
      %p341 = pneg %p251
      %p342 = pneg %p248
      %s343 = smul.u32 2, %s25
      %p344 = scmp.lt.s32.totalorder %s24, 1
      %s345 = scalar_select %p344, %s24, 1
      %p346 = scmp.lt.s32.totalorder %s343, 1
      %s347 = scalar_select %p346, %s343, 1
      %s348 = smul.addr %s345, 2
      %s349 = sadd.s32 %s347, %s348
      %s350 = smul.addr %s349, 4
      %s351 = scalar_lea.vmem %s9, %s350
      %s352 = smul.u32 2, %s25
      %p353 = scmp.lt.s32.totalorder %s24, 1
      %s354 = scalar_select %p353, %s24, 1
      %p355 = scmp.lt.s32.totalorder %s352, 1
      %s356 = scalar_select %p355, %s352, 1
      %s357 = smul.addr %s354, 2
      %s358 = sadd.s32 %s356, %s357
      %s359 = smul.addr %s358, 8
      %s360 = scalar_lea.vmem %s0, %s359
      %s361 = smul.u32 2, %s25
      %s362 = smul.u32 2, %s25
      %p363 = scmp.lt.s32.totalorder %s24, 1
      %s364 = scalar_select %p363, %s24, 1
      %p365 = scmp.lt.s32.totalorder %s362, 1
      %s366 = scalar_select %p365, %s362, 1
      %s367 = smul.addr %s364, 2
      %s368 = sadd.s32 %s366, %s367
      %s369 = smul.addr %s368, 4
      %s370 = scalar_lea.vmem %s9, %s369
      %s371 = smul.u32 2, %s25
      %v373 = vld [vmem:[%s360] sm:$0x7f]
      %v374 = vld [vmem:[%s360 + $0x8] sm:$0x7f]
      %v375 = vpack.c.bf16 %v373, %v373
      %v376 = vpack.c.bf16 %v374, %v374
      %v377 = vld [vmem:[%s1] sm:$0xf]
      %v378 = vld [vmem:[%s1 + $0x4] sm:$0xf]
      %v379 = vld [vmem:[%s1 + $0x8] sm:$0xf]
      %v380 = vld [vmem:[%s1 + $0xc] sm:$0xf]
      %v381 = vld [vmem:[%s1 + $0x10] sm:$0xf]
      %v382 = vld [vmem:[%s1 + $0x14] sm:$0xf]
      %v383 = vld [vmem:[%s1 + $0x18] sm:$0xf]
      %v384 = vld [vmem:[%s1 + $0x1c] sm:$0xf]
      %v385 = vld [vmem:[%s1 + $0x20] sm:$0xf]
      %v386 = vld [vmem:[%s1 + $0x24] sm:$0xf]
      %v387 = vld [vmem:[%s1 + $0x28] sm:$0xf]
      %v388 = vld [vmem:[%s1 + $0x2c] sm:$0xf]
      %v389 = vld [vmem:[%s1 + $0x30] sm:$0xf]
      %v390 = vld [vmem:[%s1 + $0x34] sm:$0xf]
      %v391 = vld [vmem:[%s1 + $0x38] sm:$0xf]
      %v392 = vld [vmem:[%s1 + $0x3c] sm:$0xf]
      %v393 = vld [vmem:[%s1 + $0x40] sm:$0xf]
      %v394 = vld [vmem:[%s1 + $0x44] sm:$0xf]
      %v395 = vld [vmem:[%s1 + $0x48] sm:$0xf]
      %v396 = vld [vmem:[%s1 + $0x4c] sm:$0xf]
      %v397 = vld [vmem:[%s1 + $0x50] sm:$0xf]
      %v398 = vld [vmem:[%s1 + $0x54] sm:$0xf]
      %v399 = vld [vmem:[%s1 + $0x58] sm:$0xf]
      %v400 = vld [vmem:[%s1 + $0x5c] sm:$0xf]
      %v401 = vld [vmem:[%s1 + $0x60] sm:$0xf]
      %v402 = vld [vmem:[%s1 + $0x64] sm:$0xf]
      %v403 = vld [vmem:[%s1 + $0x68] sm:$0xf]
      %v404 = vld [vmem:[%s1 + $0x6c] sm:$0xf]
      %v405 = vld [vmem:[%s1 + $0x70] sm:$0xf]
      %v406 = vld [vmem:[%s1 + $0x74] sm:$0xf]
      %v407 = vld [vmem:[%s1 + $0x78] sm:$0xf]
      %v408 = vld [vmem:[%s1 + $0x7c] sm:$0xf]
      %v409 = vld [vmem:[%s2] sm:$0xff]
      %v410 = vld [vmem:[%s2 + $0x8] sm:$0xff]
      %v411 = vld [vmem:[%s2 + $0x10] sm:$0xff]
      %v412 = vld [vmem:[%s2 + $0x18] sm:$0xff]
      %v413 = vld [vmem:[%s2 + $0x20] sm:$0xff]
      %v414 = vld [vmem:[%s2 + $0x28] sm:$0xff]
      %v415 = vld [vmem:[%s2 + $0x30] sm:$0xff]
      %v416 = vld [vmem:[%s2 + $0x38] sm:$0xff]
      %v417 = vld [vmem:[%s2 + $0x40] sm:$0xff]
      %v418 = vld [vmem:[%s2 + $0x48] sm:$0xff]
      %v419 = vld [vmem:[%s2 + $0x50] sm:$0xff]
      %v420 = vld [vmem:[%s2 + $0x58] sm:$0xff]
      %v421 = vld [vmem:[%s2 + $0x60] sm:$0xff]
      %v422 = vld [vmem:[%s2 + $0x68] sm:$0xff]
      %v423 = vld [vmem:[%s2 + $0x70] sm:$0xff]
      %v424 = vld [vmem:[%s2 + $0x78] sm:$0xff]
      %v425 = vld [vmem:[%s2 + $0x80] sm:$0xff]
      %v426 = vld [vmem:[%s2 + $0x88] sm:$0xff]
      %v427 = vld [vmem:[%s2 + $0x90] sm:$0xff]
      %v428 = vld [vmem:[%s2 + $0x98] sm:$0xff]
      %v429 = vld [vmem:[%s2 + $0xa0] sm:$0xff]
      %v430 = vld [vmem:[%s2 + $0xa8] sm:$0xff]
      %v431 = vld [vmem:[%s2 + $0xb0] sm:$0xff]
      %v432 = vld [vmem:[%s2 + $0xb8] sm:$0xff]
      %v433 = vld [vmem:[%s2 + $0xc0] sm:$0xff]
      %v434 = vld [vmem:[%s2 + $0xc8] sm:$0xff]
      %v435 = vld [vmem:[%s2 + $0xd0] sm:$0xff]
      %v436 = vld [vmem:[%s2 + $0xd8] sm:$0xff]
      %v437 = vld [vmem:[%s2 + $0xe0] sm:$0xff]
      %v438 = vld [vmem:[%s2 + $0xe8] sm:$0xff]
      %v439 = vld [vmem:[%s2 + $0xf0] sm:$0xff]
      %v440 = vld [vmem:[%s2 + $0xf8] sm:$0xff]
      %442 = vset.pattern.permute.xlu0 0
      %443 = vperm.xlu0 %442, %v409
      %v444 = vpop.permute.xlu0 %443
      %447 = vset.pattern.permute.xlu0 0
      %448 = vperm.xlu0 %447, %v410
      %v449 = vpop.permute.xlu0 %448
      %452 = vset.pattern.permute.xlu0 0
      %453 = vperm.xlu0 %452, %v411
      %v454 = vpop.permute.xlu0 %453
      %457 = vset.pattern.permute.xlu0 0
      %458 = vperm.xlu0 %457, %v412
      %v459 = vpop.permute.xlu0 %458
      %462 = vset.pattern.permute.xlu0 0
      %463 = vperm.xlu0 %462, %v413
      %v464 = vpop.permute.xlu0 %463
      %467 = vset.pattern.permute.xlu0 0
      %468 = vperm.xlu0 %467, %v414
      %v469 = vpop.permute.xlu0 %468
      %472 = vset.pattern.permute.xlu0 0
      %473 = vperm.xlu0 %472, %v415
      %v474 = vpop.permute.xlu0 %473
      %477 = vset.pattern.permute.xlu0 0
      %478 = vperm.xlu0 %477, %v416
      %v479 = vpop.permute.xlu0 %478
      %482 = vset.pattern.permute.xlu0 0
      %483 = vperm.xlu0 %482, %v417
      %v484 = vpop.permute.xlu0 %483
      %487 = vset.pattern.permute.xlu0 0
      %488 = vperm.xlu0 %487, %v418
      %v489 = vpop.permute.xlu0 %488
      %492 = vset.pattern.permute.xlu0 0
      %493 = vperm.xlu0 %492, %v419
      %v494 = vpop.permute.xlu0 %493
      %497 = vset.pattern.permute.xlu0 0
      %498 = vperm.xlu0 %497, %v420
      %v499 = vpop.permute.xlu0 %498
      %502 = vset.pattern.permute.xlu0 0
      %503 = vperm.xlu0 %502, %v421
      %v504 = vpop.permute.xlu0 %503
      %507 = vset.pattern.permute.xlu0 0
      %508 = vperm.xlu0 %507, %v422
      %v509 = vpop.permute.xlu0 %508
      %512 = vset.pattern.permute.xlu0 0
      %513 = vperm.xlu0 %512, %v423
      %v514 = vpop.permute.xlu0 %513
      %517 = vset.pattern.permute.xlu0 0
      %518 = vperm.xlu0 %517, %v424
      %v519 = vpop.permute.xlu0 %518
      %522 = vset.pattern.permute.xlu0 0
      %523 = vperm.xlu0 %522, %v425
      %v524 = vpop.permute.xlu0 %523
      %527 = vset.pattern.permute.xlu0 0
      %528 = vperm.xlu0 %527, %v426
      %v529 = vpop.permute.xlu0 %528
      %532 = vset.pattern.permute.xlu0 0
      %533 = vperm.xlu0 %532, %v427
      %v534 = vpop.permute.xlu0 %533
      %537 = vset.pattern.permute.xlu0 0
      %538 = vperm.xlu0 %537, %v428
      %v539 = vpop.permute.xlu0 %538
      %542 = vset.pattern.permute.xlu0 0
      %543 = vperm.xlu0 %542, %v429
      %v544 = vpop.permute.xlu0 %543
      %547 = vset.pattern.permute.xlu0 0
      %548 = vperm.xlu0 %547, %v430
      %v549 = vpop.permute.xlu0 %548
      %552 = vset.pattern.permute.xlu0 0
      %553 = vperm.xlu0 %552, %v431
      %v554 = vpop.permute.xlu0 %553
      %557 = vset.pattern.permute.xlu0 0
      %558 = vperm.xlu0 %557, %v432
      %v559 = vpop.permute.xlu0 %558
      %562 = vset.pattern.permute.xlu0 0
      %563 = vperm.xlu0 %562, %v433
      %v564 = vpop.permute.xlu0 %563
      %567 = vset.pattern.permute.xlu0 0
      %568 = vperm.xlu0 %567, %v434
      %v569 = vpop.permute.xlu0 %568
      %572 = vset.pattern.permute.xlu0 0
      %573 = vperm.xlu0 %572, %v435
      %v574 = vpop.permute.xlu0 %573
      %577 = vset.pattern.permute.xlu0 0
      %578 = vperm.xlu0 %577, %v436
      %v579 = vpop.permute.xlu0 %578
      %582 = vset.pattern.permute.xlu0 0
      %583 = vperm.xlu0 %582, %v437
      %v584 = vpop.permute.xlu0 %583
      %587 = vset.pattern.permute.xlu0 0
      %588 = vperm.xlu0 %587, %v438
      %v589 = vpop.permute.xlu0 %588
      %592 = vset.pattern.permute.xlu0 0
      %593 = vperm.xlu0 %592, %v439
      %v594 = vpop.permute.xlu0 %593
      %597 = vset.pattern.permute.xlu0 0
      %598 = vperm.xlu0 %597, %v440
      %v599 = vpop.permute.xlu0 %598
      %v633 = vunpack.c.l.b16 %v377
      %v634 = vunpack.c.l.b16 %v378
      %v635 = vunpack.c.l.b16 %v379
      %v636 = vunpack.c.l.b16 %v380
      %v637 = vunpack.c.l.b16 %v381
      %v638 = vunpack.c.l.b16 %v382
      %v639 = vunpack.c.l.b16 %v383
      %v640 = vunpack.c.l.b16 %v384
      %v641 = vunpack.c.l.b16 %v385
      %v642 = vunpack.c.l.b16 %v386
      %v643 = vunpack.c.l.b16 %v387
      %v644 = vunpack.c.l.b16 %v388
      %v645 = vunpack.c.l.b16 %v389
      %v646 = vunpack.c.l.b16 %v390
      %v647 = vunpack.c.l.b16 %v391
      %v648 = vunpack.c.l.b16 %v392
      %v649 = vunpack.c.l.b16 %v393
      %v650 = vunpack.c.l.b16 %v394
      %v651 = vunpack.c.l.b16 %v395
      %v652 = vunpack.c.l.b16 %v396
      %v653 = vunpack.c.l.b16 %v397
      %v654 = vunpack.c.l.b16 %v398
      %v655 = vunpack.c.l.b16 %v399
      %v656 = vunpack.c.l.b16 %v400
      %v657 = vunpack.c.l.b16 %v401
      %v658 = vunpack.c.l.b16 %v402
      %v659 = vunpack.c.l.b16 %v403
      %v660 = vunpack.c.l.b16 %v404
      %v661 = vunpack.c.l.b16 %v405
      %v662 = vunpack.c.l.b16 %v406
      %v663 = vunpack.c.l.b16 %v407
      %v664 = vunpack.c.l.b16 %v408
      %v665 = vpack.c.b16 %v634, %v633
      %v666 = vpack.c.b16 %v636, %v635
      %v667 = vpack.c.b16 %v638, %v637
      %v668 = vpack.c.b16 %v640, %v639
      %v669 = vpack.c.b16 %v642, %v641
      %v670 = vpack.c.b16 %v644, %v643
      %v671 = vpack.c.b16 %v646, %v645
      %v672 = vpack.c.b16 %v648, %v647
      %v673 = vpack.c.b16 %v650, %v649
      %v674 = vpack.c.b16 %v652, %v651
      %v675 = vpack.c.b16 %v654, %v653
      %v676 = vpack.c.b16 %v656, %v655
      %v677 = vpack.c.b16 %v658, %v657
      %v678 = vpack.c.b16 %v660, %v659
      %v679 = vpack.c.b16 %v662, %v661
      %v680 = vpack.c.b16 %v664, %v663
      %vm681 = vcmask 56320
      %v683 = vsel %vm681, %v665, 0
      %v686 = vsel %vm681, %v666, 0
      %v689 = vsel %vm681, %v667, 0
      %v692 = vsel %vm681, %v668, 0
      %v695 = vsel %vm681, %v669, 0
      %v698 = vsel %vm681, %v670, 0
      %v701 = vsel %vm681, %v671, 0
      %v704 = vsel %vm681, %v672, 0
      %v707 = vsel %vm681, %v673, 0
      %v710 = vsel %vm681, %v674, 0
      %v713 = vsel %vm681, %v675, 0
      %v716 = vsel %vm681, %v676, 0
      %v719 = vsel %vm681, %v677, 0
      %v722 = vsel %vm681, %v678, 0
      %v725 = vsel %vm681, %v679, 0
      %v728 = vsel %vm681, %v680, 0
      %vm730 = vcmask 1042432
      %vm731 = vcmask 1043456
      %v732 = vsel %vm730, 4294967295, 65535
      %v733 = vsel %vm731, %v732, 0
      %v735 = vand.u32 %v375, %v733
      %v738 = vand.u32 %v376, %v733
      %740 = vmatprep.subr.bf16.mxu0 %v738
      %741 = vmatpush1.bf16.msra.mxu0 %v735
      %742 = vmatprep.subr.bf16.mxu0 0
      %743 = vmatpush1.bf16.msra.mxu0 0
      %744 = vmatprep.subr.bf16.mxu0 0
      %745 = vmatpush1.bf16.msra.mxu0 0
      %746 = vmatprep.subr.bf16.mxu0 0
      %747 = vmatpush1.bf16.msra.mxu0 0
      %748 = vmatprep.subr.bf16.mxu0 0
      %749 = vmatpush1.bf16.msra.mxu0 0
      %750 = vmatprep.subr.bf16.mxu0 0
      %751 = vmatpush1.bf16.msra.mxu0 0
      %752 = vmatprep.subr.bf16.mxu0 0
      %753 = vmatpush1.bf16.msra.mxu0 0
      %754 = vmatprep.subr.bf16.mxu0 0
      %755 = vmatpush1.bf16.msra.mxu0 0
      %756 = vmatprep.subr.bf16.mxu0 0
      %757 = vmatpush1.bf16.msra.mxu0 0
      %758 = vmatprep.subr.bf16.mxu0 0
      %759 = vmatpush1.bf16.msra.mxu0 0
      %760 = vmatprep.subr.bf16.mxu0 0
      %761 = vmatpush1.bf16.msra.mxu0 0
      %762 = vmatprep.subr.bf16.mxu0 0
      %763 = vmatpush1.bf16.msra.mxu0 0
      %764 = vmatprep.subr.bf16.mxu0 0
      %765 = vmatpush1.bf16.msra.mxu0 0
      %766 = vmatprep.subr.bf16.mxu0 0
      %767 = vmatpush1.bf16.msra.mxu0 0
      %768 = vmatprep.subr.bf16.mxu0 0
      %769 = vmatpush1.bf16.msra.mxu0 0
      %770 = vmatprep.subr.bf16.mxu0 0
      %771 = vmatpush1.bf16.msra.mxu0 0
      %772 = vmatprep.mubr.bf16.mxu0 0
      %773 = vmatmul.mubr.bf16.gmra.mrb[0].mxu0 %v683
      %v774 = vpop.f32.mrb[0].mxu0
      %v775 = vadd.f32 %v444, %v774
      %v776 = vpop.f32.mrb[0].mxu0
      %v777 = vadd.f32 %v444, %v776
      %v778 = vpop.f32.mrb[0].mxu0
      %v779 = vadd.f32 %v449, %v778
      %v780 = vpop.f32.mrb[0].mxu0
      %v781 = vadd.f32 %v449, %v780
      %782 = vmatprep.mubr.bf16.mxu0 0
      %783 = vmatmul.mubr.bf16.gmra.mrb[0].mxu0 %v686
      %v784 = vpop.f32.mrb[0].mxu0
      %v785 = vadd.f32 %v454, %v784
      %v786 = vpop.f32.mrb[0].mxu0
      %v787 = vadd.f32 %v454, %v786
      %v788 = vpop.f32.mrb[0].mxu0
      %v789 = vadd.f32 %v459, %v788
      %v790 = vpop.f32.mrb[0].mxu0
      %v791 = vadd.f32 %v459, %v790
      %792 = vmatprep.mubr.bf16.mxu0 0
      %793 = vmatmul.mubr.bf16.gmra.mrb[0].mxu0 %v689
      %v794 = vpop.f32.mrb[0].mxu0
      %v795 = vadd.f32 %v464, %v794
      %v796 = vpop.f32.mrb[0].mxu0
      %v797 = vadd.f32 %v464, %v796
      %v798 = vpop.f32.mrb[0].mxu0
      %v799 = vadd.f32 %v469, %v798
      %v800 = vpop.f32.mrb[0].mxu0
      %v801 = vadd.f32 %v469, %v800
      %802 = vmatprep.mubr.bf16.mxu0 0
      %803 = vmatmul.mubr.bf16.gmra.mrb[0].mxu0 %v692
      %v804 = vpop.f32.mrb[0].mxu0
      %v805 = vadd.f32 %v474, %v804
      %v806 = vpop.f32.mrb[0].mxu0
      %v807 = vadd.f32 %v474, %v806
      %v808 = vpop.f32.mrb[0].mxu0
      %v809 = vadd.f32 %v479, %v808
      %v810 = vpop.f32.mrb[0].mxu0
      %v811 = vadd.f32 %v479, %v810
      %812 = vmatprep.mubr.bf16.mxu0 0
      %813 = vmatmul.mubr.bf16.gmra.mrb[0].mxu0 %v695
      %v814 = vpop.f32.mrb[0].mxu0
      %v815 = vadd.f32 %v484, %v814
      %v816 = vpop.f32.mrb[0].mxu0
      %v817 = vadd.f32 %v484, %v816
      %v818 = vpop.f32.mrb[0].mxu0
      %v819 = vadd.f32 %v489, %v818
      %v820 = vpop.f32.mrb[0].mxu0
      %v821 = vadd.f32 %v489, %v820
      %822 = vmatprep.mubr.bf16.mxu0 0
      %823 = vmatmul.mubr.bf16.gmra.mrb[0].mxu0 %v698
      %v824 = vpop.f32.mrb[0].mxu0
      %v825 = vadd.f32 %v494, %v824
      %v826 = vpop.f32.mrb[0].mxu0
      %v827 = vadd.f32 %v494, %v826
      %v828 = vpop.f32.mrb[0].mxu0
      %v829 = vadd.f32 %v499, %v828
      %v830 = vpop.f32.mrb[0].mxu0
      %v831 = vadd.f32 %v499, %v830
      %832 = vmatprep.mubr.bf16.mxu0 0
      %833 = vmatmul.mubr.bf16.gmra.mrb[0].mxu0 %v701
      %v834 = vpop.f32.mrb[0].mxu0
      %v835 = vadd.f32 %v504, %v834
      %v836 = vpop.f32.mrb[0].mxu0
      %v837 = vadd.f32 %v504, %v836
      %v838 = vpop.f32.mrb[0].mxu0
      %v839 = vadd.f32 %v509, %v838
      %v840 = vpop.f32.mrb[0].mxu0
      %v841 = vadd.f32 %v509, %v840
      %842 = vmatprep.mubr.bf16.mxu0 0
      %843 = vmatmul.mubr.bf16.gmra.mrb[0].mxu0 %v704
      %v844 = vpop.f32.mrb[0].mxu0
      %v845 = vadd.f32 %v514, %v844
      %v846 = vpop.f32.mrb[0].mxu0
      %v847 = vadd.f32 %v514, %v846
      %v848 = vpop.f32.mrb[0].mxu0
      %v849 = vadd.f32 %v519, %v848
      %v850 = vpop.f32.mrb[0].mxu0
      %v851 = vadd.f32 %v519, %v850
      %852 = vmatprep.mubr.bf16.mxu0 0
      %853 = vmatmul.mubr.bf16.gmra.mrb[0].mxu0 %v707
      %v854 = vpop.f32.mrb[0].mxu0
      %v855 = vadd.f32 %v524, %v854
      %v856 = vpop.f32.mrb[0].mxu0
      %v857 = vadd.f32 %v524, %v856
      %v858 = vpop.f32.mrb[0].mxu0
      %v859 = vadd.f32 %v529, %v858
      %v860 = vpop.f32.mrb[0].mxu0
      %v861 = vadd.f32 %v529, %v860
      %862 = vmatprep.mubr.bf16.mxu0 0
      %863 = vmatmul.mubr.bf16.gmra.mrb[0].mxu0 %v710
      %v864 = vpop.f32.mrb[0].mxu0
      %v865 = vadd.f32 %v534, %v864
      %v866 = vpop.f32.mrb[0].mxu0
      %v867 = vadd.f32 %v534, %v866
      %v868 = vpop.f32.mrb[0].mxu0
      %v869 = vadd.f32 %v539, %v868
      %v870 = vpop.f32.mrb[0].mxu0
      %v871 = vadd.f32 %v539, %v870
      %872 = vmatprep.mubr.bf16.mxu0 0
      %873 = vmatmul.mubr.bf16.gmra.mrb[0].mxu0 %v713
      %v874 = vpop.f32.mrb[0].mxu0
      %v875 = vadd.f32 %v544, %v874
      %v876 = vpop.f32.mrb[0].mxu0
      %v877 = vadd.f32 %v544, %v876
      %v878 = vpop.f32.mrb[0].mxu0
      %v879 = vadd.f32 %v549, %v878
      %v880 = vpop.f32.mrb[0].mxu0
      %v881 = vadd.f32 %v549, %v880
      %882 = vmatprep.mubr.bf16.mxu0 0
      %883 = vmatmul.mubr.bf16.gmra.mrb[0].mxu0 %v716
      %v884 = vpop.f32.mrb[0].mxu0
      %v885 = vadd.f32 %v554, %v884
      %v886 = vpop.f32.mrb[0].mxu0
      %v887 = vadd.f32 %v554, %v886
      %v888 = vpop.f32.mrb[0].mxu0
      %v889 = vadd.f32 %v559, %v888
      %v890 = vpop.f32.mrb[0].mxu0
      %v891 = vadd.f32 %v559, %v890
      %892 = vmatprep.mubr.bf16.mxu0 0
      %893 = vmatmul.mubr.bf16.gmra.mrb[0].mxu0 %v719
      %v894 = vpop.f32.mrb[0].mxu0
      %v895 = vadd.f32 %v564, %v894
      %v896 = vpop.f32.mrb[0].mxu0
      %v897 = vadd.f32 %v564, %v896
      %v898 = vpop.f32.mrb[0].mxu0
      %v899 = vadd.f32 %v569, %v898
      %v900 = vpop.f32.mrb[0].mxu0
      %v901 = vadd.f32 %v569, %v900
      %902 = vmatprep.mubr.bf16.mxu0 0
      %903 = vmatmul.mubr.bf16.gmra.mrb[0].mxu0 %v722
      %v904 = vpop.f32.mrb[0].mxu0
      %v905 = vadd.f32 %v574, %v904
      %v906 = vpop.f32.mrb[0].mxu0
      %v907 = vadd.f32 %v574, %v906
      %v908 = vpop.f32.mrb[0].mxu0
      %v909 = vadd.f32 %v579, %v908
      %v910 = vpop.f32.mrb[0].mxu0
      %v911 = vadd.f32 %v579, %v910
      %912 = vmatprep.mubr.bf16.mxu0 0
      %913 = vmatmul.mubr.bf16.gmra.mrb[0].mxu0 %v725
      %v914 = vpop.f32.mrb[0].mxu0
      %v915 = vadd.f32 %v584, %v914
      %v916 = vpop.f32.mrb[0].mxu0
      %v917 = vadd.f32 %v584, %v916
      %v918 = vpop.f32.mrb[0].mxu0
      %v919 = vadd.f32 %v589, %v918
      %v920 = vpop.f32.mrb[0].mxu0
      %v921 = vadd.f32 %v589, %v920
      %922 = vmatprep.mubr.bf16.mxu0 0
      %923 = vmatmul.mubr.bf16.gmra.mrb[0].mxu0 %v728
      %v924 = vpop.f32.mrb[0].mxu0
      %v925 = vadd.f32 %v594, %v924
      %v926 = vpop.f32.mrb[0].mxu0
      %v927 = vadd.f32 %v594, %v926
      %v928 = vpop.f32.mrb[0].mxu0
      %v929 = vadd.f32 %v599, %v928
      %v930 = vpop.f32.mrb[0].mxu0
      %v931 = vadd.f32 %v599, %v930
      %932 = vdwg.mxu0
      %v933 = vld [vmem:[%s3] sm:$0xff]
      %v934 = vld [vmem:[%s3 + $0x8] sm:$0xff]
      %v935 = vld [vmem:[%s3 + $0x10] sm:$0xff]
      %v936 = vld [vmem:[%s3 + $0x18] sm:$0xff]
      %v937 = vld [vmem:[%s3 + $0x20] sm:$0xff]
      %v938 = vld [vmem:[%s3 + $0x28] sm:$0xff]
      %v939 = vld [vmem:[%s3 + $0x30] sm:$0xff]
      %v940 = vld [vmem:[%s3 + $0x38] sm:$0xff]
      %v941 = vld [vmem:[%s3 + $0x40] sm:$0xff]
      %v942 = vld [vmem:[%s3 + $0x48] sm:$0xff]
      %v943 = vld [vmem:[%s3 + $0x50] sm:$0xff]
      %v944 = vld [vmem:[%s3 + $0x58] sm:$0xff]
      %v945 = vld [vmem:[%s3 + $0x60] sm:$0xff]
      %v946 = vld [vmem:[%s3 + $0x68] sm:$0xff]
      %v947 = vld [vmem:[%s3 + $0x70] sm:$0xff]
      %v948 = vld [vmem:[%s3 + $0x78] sm:$0xff]
      %v949 = vld [vmem:[%s3 + $0x80] sm:$0xff]
      %v950 = vld [vmem:[%s3 + $0x88] sm:$0xff]
      %v951 = vld [vmem:[%s3 + $0x90] sm:$0xff]
      %v952 = vld [vmem:[%s3 + $0x98] sm:$0xff]
      %v953 = vld [vmem:[%s3 + $0xa0] sm:$0xff]
      %v954 = vld [vmem:[%s3 + $0xa8] sm:$0xff]
      %v955 = vld [vmem:[%s3 + $0xb0] sm:$0xff]
      %v956 = vld [vmem:[%s3 + $0xb8] sm:$0xff]
      %v957 = vld [vmem:[%s3 + $0xc0] sm:$0xff]
      %v958 = vld [vmem:[%s3 + $0xc8] sm:$0xff]
      %v959 = vld [vmem:[%s3 + $0xd0] sm:$0xff]
      %v960 = vld [vmem:[%s3 + $0xd8] sm:$0xff]
      %v961 = vld [vmem:[%s3 + $0xe0] sm:$0xff]
      %v962 = vld [vmem:[%s3 + $0xe8] sm:$0xff]
      %v963 = vld [vmem:[%s3 + $0xf0] sm:$0xff]
      %v964 = vld [vmem:[%s3 + $0xf8] sm:$0xff]
      %v965 = vpack.c.bf16 %v779, %v775
      %v966 = vpack.c.bf16 %v781, %v777
      %v967 = vpack.c.bf16 %v789, %v785
      %v968 = vpack.c.bf16 %v791, %v787
      %v969 = vpack.c.bf16 %v799, %v795
      %v970 = vpack.c.bf16 %v801, %v797
      %v971 = vpack.c.bf16 %v809, %v805
      %v972 = vpack.c.bf16 %v811, %v807
      %v973 = vpack.c.bf16 %v819, %v815
      %v974 = vpack.c.bf16 %v821, %v817
      %v975 = vpack.c.bf16 %v829, %v825
      %v976 = vpack.c.bf16 %v831, %v827
      %v977 = vpack.c.bf16 %v839, %v835
      %v978 = vpack.c.bf16 %v841, %v837
      %v979 = vpack.c.bf16 %v849, %v845
      %v980 = vpack.c.bf16 %v851, %v847
      %v981 = vpack.c.bf16 %v859, %v855
      %v982 = vpack.c.bf16 %v861, %v857
      %v983 = vpack.c.bf16 %v869, %v865
      %v984 = vpack.c.bf16 %v871, %v867
      %v985 = vpack.c.bf16 %v879, %v875
      %v986 = vpack.c.bf16 %v881, %v877
      %v987 = vpack.c.bf16 %v889, %v885
      %v988 = vpack.c.bf16 %v891, %v887
      %v989 = vpack.c.bf16 %v899, %v895
      %v990 = vpack.c.bf16 %v901, %v897
      %v991 = vpack.c.bf16 %v909, %v905
      %v992 = vpack.c.bf16 %v911, %v907
      %v993 = vpack.c.bf16 %v919, %v915
      %v994 = vpack.c.bf16 %v921, %v917
      %v995 = vpack.c.bf16 %v929, %v925
      %v996 = vpack.c.bf16 %v931, %v927
      %v997 = vld [vmem:[%s4] sm:$0xff]
      %v998 = vld [vmem:[%s4 + $0x8] sm:$0xff]
      %v999 = vld [vmem:[%s4 + $0x10] sm:$0xff]
      %v1000 = vld [vmem:[%s4 + $0x18] sm:$0xff]
      %v1001 = vld [vmem:[%s4 + $0x20] sm:$0xff]
      %v1002 = vld [vmem:[%s4 + $0x28] sm:$0xff]
      %v1003 = vld [vmem:[%s4 + $0x30] sm:$0xff]
      %v1004 = vld [vmem:[%s4 + $0x38] sm:$0xff]
      %v1005 = vld [vmem:[%s4 + $0x40] sm:$0xff]
      %v1006 = vld [vmem:[%s4 + $0x48] sm:$0xff]
      %v1007 = vld [vmem:[%s4 + $0x50] sm:$0xff]
      %v1008 = vld [vmem:[%s4 + $0x58] sm:$0xff]
      %v1009 = vld [vmem:[%s4 + $0x60] sm:$0xff]
      %v1010 = vld [vmem:[%s4 + $0x68] sm:$0xff]
      %v1011 = vld [vmem:[%s4 + $0x70] sm:$0xff]
      %v1012 = vld [vmem:[%s4 + $0x78] sm:$0xff]
      %v1013 = vld [vmem:[%s4 + $0x80] sm:$0xff]
      %v1014 = vld [vmem:[%s4 + $0x88] sm:$0xff]
      %v1015 = vld [vmem:[%s4 + $0x90] sm:$0xff]
      %v1016 = vld [vmem:[%s4 + $0x98] sm:$0xff]
      %v1017 = vld [vmem:[%s4 + $0xa0] sm:$0xff]
      %v1018 = vld [vmem:[%s4 + $0xa8] sm:$0xff]
      %v1019 = vld [vmem:[%s4 + $0xb0] sm:$0xff]
      %v1020 = vld [vmem:[%s4 + $0xb8] sm:$0xff]
      %v1021 = vld [vmem:[%s4 + $0xc0] sm:$0xff]
      %v1022 = vld [vmem:[%s4 + $0xc8] sm:$0xff]
      %v1023 = vld [vmem:[%s4 + $0xd0] sm:$0xff]
      %v1024 = vld [vmem:[%s4 + $0xd8] sm:$0xff]
      %v1025 = vld [vmem:[%s4 + $0xe0] sm:$0xff]
      %v1026 = vld [vmem:[%s4 + $0xe8] sm:$0xff]
      %v1027 = vld [vmem:[%s4 + $0xf0] sm:$0xff]
      %v1028 = vld [vmem:[%s4 + $0xf8] sm:$0xff]
      %1030 = vset.pattern.permute.xlu0 0
      %1031 = vperm.xlu0 %1030, %v997
      %v1032 = vpop.permute.xlu0 %1031
      %1035 = vset.pattern.permute.xlu0 0
      %1036 = vperm.xlu0 %1035, %v998
      %v1037 = vpop.permute.xlu0 %1036
      %1040 = vset.pattern.permute.xlu0 0
      %1041 = vperm.xlu0 %1040, %v999
      %v1042 = vpop.permute.xlu0 %1041
      %1045 = vset.pattern.permute.xlu0 0
      %1046 = vperm.xlu0 %1045, %v1000
      %v1047 = vpop.permute.xlu0 %1046
      %1050 = vset.pattern.permute.xlu0 0
      %1051 = vperm.xlu0 %1050, %v1001
      %v1052 = vpop.permute.xlu0 %1051
      %1055 = vset.pattern.permute.xlu0 0
      %1056 = vperm.xlu0 %1055, %v1002
      %v1057 = vpop.permute.xlu0 %1056
      %1060 = vset.pattern.permute.xlu0 0
      %1061 = vperm.xlu0 %1060, %v1003
      %v1062 = vpop.permute.xlu0 %1061
      %1065 = vset.pattern.permute.xlu0 0
      %1066 = vperm.xlu0 %1065, %v1004
      %v1067 = vpop.permute.xlu0 %1066
      %1070 = vset.pattern.permute.xlu0 0
      %1071 = vperm.xlu0 %1070, %v1005
      %v1072 = vpop.permute.xlu0 %1071
      %1075 = vset.pattern.permute.xlu0 0
      %1076 = vperm.xlu0 %1075, %v1006
      %v1077 = vpop.permute.xlu0 %1076
      %1080 = vset.pattern.permute.xlu0 0
      %1081 = vperm.xlu0 %1080, %v1007
      %v1082 = vpop.permute.xlu0 %1081
      %1085 = vset.pattern.permute.xlu0 0
      %1086 = vperm.xlu0 %1085, %v1008
      %v1087 = vpop.permute.xlu0 %1086
      %1090 = vset.pattern.permute.xlu0 0
      %1091 = vperm.xlu0 %1090, %v1009
      %v1092 = vpop.permute.xlu0 %1091
      %1095 = vset.pattern.permute.xlu0 0
      %1096 = vperm.xlu0 %1095, %v1010
      %v1097 = vpop.permute.xlu0 %1096
      %1100 = vset.pattern.permute.xlu0 0
      %1101 = vperm.xlu0 %1100, %v1011
      %v1102 = vpop.permute.xlu0 %1101
      %1105 = vset.pattern.permute.xlu0 0
      %1106 = vperm.xlu0 %1105, %v1012
      %v1107 = vpop.permute.xlu0 %1106
      %1110 = vset.pattern.permute.xlu0 0
      %1111 = vperm.xlu0 %1110, %v1013
      %v1112 = vpop.permute.xlu0 %1111
      %1115 = vset.pattern.permute.xlu0 0
      %1116 = vperm.xlu0 %1115, %v1014
      %v1117 = vpop.permute.xlu0 %1116
      %1120 = vset.pattern.permute.xlu0 0
      %1121 = vperm.xlu0 %1120, %v1015
      %v1122 = vpop.permute.xlu0 %1121
      %1125 = vset.pattern.permute.xlu0 0
      %1126 = vperm.xlu0 %1125, %v1016
      %v1127 = vpop.permute.xlu0 %1126
      %1130 = vset.pattern.permute.xlu0 0
      %1131 = vperm.xlu0 %1130, %v1017
      %v1132 = vpop.permute.xlu0 %1131
      %1135 = vset.pattern.permute.xlu0 0
      %1136 = vperm.xlu0 %1135, %v1018
      %v1137 = vpop.permute.xlu0 %1136
      %1140 = vset.pattern.permute.xlu0 0
      %1141 = vperm.xlu0 %1140, %v1019
      %v1142 = vpop.permute.xlu0 %1141
      %1145 = vset.pattern.permute.xlu0 0
      %1146 = vperm.xlu0 %1145, %v1020
      %v1147 = vpop.permute.xlu0 %1146
      %1150 = vset.pattern.permute.xlu0 0
      %1151 = vperm.xlu0 %1150, %v1021
      %v1152 = vpop.permute.xlu0 %1151
      %1155 = vset.pattern.permute.xlu0 0
      %1156 = vperm.xlu0 %1155, %v1022
      %v1157 = vpop.permute.xlu0 %1156
      %1160 = vset.pattern.permute.xlu0 0
      %1161 = vperm.xlu0 %1160, %v1023
      %v1162 = vpop.permute.xlu0 %1161
      %1165 = vset.pattern.permute.xlu0 0
      %1166 = vperm.xlu0 %1165, %v1024
      %v1167 = vpop.permute.xlu0 %1166
      %1170 = vset.pattern.permute.xlu0 0
      %1171 = vperm.xlu0 %1170, %v1025
      %v1172 = vpop.permute.xlu0 %1171
      %1175 = vset.pattern.permute.xlu0 0
      %1176 = vperm.xlu0 %1175, %v1026
      %v1177 = vpop.permute.xlu0 %1176
      %1180 = vset.pattern.permute.xlu0 0
      %1181 = vperm.xlu0 %1180, %v1027
      %v1182 = vpop.permute.xlu0 %1181
      %1185 = vset.pattern.permute.xlu0 0
      %1186 = vperm.xlu0 %1185, %v1028
      %v1187 = vpop.permute.xlu0 %1186
      %v1221 = vunpack.c.l.b16 %v933
      %v1222 = vunpack.c.h.b16 %v933
      %v1223 = vunpack.c.l.b16 %v934
      %v1224 = vunpack.c.h.b16 %v934
      %v1225 = vunpack.c.l.b16 %v935
      %v1226 = vunpack.c.h.b16 %v935
      %v1227 = vunpack.c.l.b16 %v936
      %v1228 = vunpack.c.h.b16 %v936
      %v1229 = vunpack.c.l.b16 %v937
      %v1230 = vunpack.c.h.b16 %v937
      %v1231 = vunpack.c.l.b16 %v938
      %v1232 = vunpack.c.h.b16 %v938
      %v1233 = vunpack.c.l.b16 %v939
      %v1234 = vunpack.c.h.b16 %v939
      %v1235 = vunpack.c.l.b16 %v940
      %v1236 = vunpack.c.h.b16 %v940
      %v1237 = vunpack.c.l.b16 %v941
      %v1238 = vunpack.c.h.b16 %v941
      %v1239 = vunpack.c.l.b16 %v942
      %v1240 = vunpack.c.h.b16 %v942
      %v1241 = vunpack.c.l.b16 %v943
      %v1242 = vunpack.c.h.b16 %v943
      %v1243 = vunpack.c.l.b16 %v944
      %v1244 = vunpack.c.h.b16 %v944
      %v1245 = vunpack.c.l.b16 %v945
      %v1246 = vunpack.c.h.b16 %v945
      %v1247 = vunpack.c.l.b16 %v946
      %v1248 = vunpack.c.h.b16 %v946
      %v1249 = vunpack.c.l.b16 %v947
      %v1250 = vunpack.c.h.b16 %v947
      %v1251 = vunpack.c.l.b16 %v948
      %v1252 = vunpack.c.h.b16 %v948
      %v1253 = vunpack.c.l.b16 %v949
      %v1254 = vunpack.c.h.b16 %v949
      %v1255 = vunpack.c.l.b16 %v950
      %v1256 = vunpack.c.h.b16 %v950
      %v1257 = vunpack.c.l.b16 %v951
      %v1258 = vunpack.c.h.b16 %v951
      %v1259 = vunpack.c.l.b16 %v952
      %v1260 = vunpack.c.h.b16 %v952
      %v1261 = vunpack.c.l.b16 %v953
      %v1262 = vunpack.c.h.b16 %v953
      %v1263 = vunpack.c.l.b16 %v954
      %v1264 = vunpack.c.h.b16 %v954
      %v1265 = vunpack.c.l.b16 %v955
      %v1266 = vunpack.c.h.b16 %v955
      %v1267 = vunpack.c.l.b16 %v956
      %v1268 = vunpack.c.h.b16 %v956
      %v1269 = vunpack.c.l.b16 %v957
      %v1270 = vunpack.c.h.b16 %v957
      %v1271 = vunpack.c.l.b16 %v958
      %v1272 = vunpack.c.h.b16 %v958
      %v1273 = vunpack.c.l.b16 %v959
      %v1274 = vunpack.c.h.b16 %v959
      %v1275 = vunpack.c.l.b16 %v960
      %v1276 = vunpack.c.h.b16 %v960
      %v1277 = vunpack.c.l.b16 %v961
      %v1278 = vunpack.c.h.b16 %v961
      %v1279 = vunpack.c.l.b16 %v962
      %v1280 = vunpack.c.h.b16 %v962
      %v1281 = vunpack.c.l.b16 %v963
      %v1282 = vunpack.c.h.b16 %v963
      %v1283 = vunpack.c.l.b16 %v964
      %v1284 = vunpack.c.h.b16 %v964
      %v1285 = vpack.c.b16 %v1223, %v1221
      %v1286 = vpack.c.b16 %v1224, %v1222
      %v1287 = vpack.c.b16 %v1227, %v1225
      %v1288 = vpack.c.b16 %v1228, %v1226
      %v1289 = vpack.c.b16 %v1231, %v1229
      %v1290 = vpack.c.b16 %v1232, %v1230
      %v1291 = vpack.c.b16 %v1235, %v1233
      %v1292 = vpack.c.b16 %v1236, %v1234
      %v1293 = vpack.c.b16 %v1239, %v1237
      %v1294 = vpack.c.b16 %v1240, %v1238
      %v1295 = vpack.c.b16 %v1243, %v1241
      %v1296 = vpack.c.b16 %v1244, %v1242
      %v1297 = vpack.c.b16 %v1247, %v1245
      %v1298 = vpack.c.b16 %v1248, %v1246
      %v1299 = vpack.c.b16 %v1251, %v1249
      %v1300 = vpack.c.b16 %v1252, %v1250
      %v1301 = vpack.c.b16 %v1255, %v1253
      %v1302 = vpack.c.b16 %v1256, %v1254
      %v1303 = vpack.c.b16 %v1259, %v1257
      %v1304 = vpack.c.b16 %v1260, %v1258
      %v1305 = vpack.c.b16 %v1263, %v1261
      %v1306 = vpack.c.b16 %v1264, %v1262
      %v1307 = vpack.c.b16 %v1267, %v1265
      %v1308 = vpack.c.b16 %v1268, %v1266
      %v1309 = vpack.c.b16 %v1271, %v1269
      %v1310 = vpack.c.b16 %v1272, %v1270
      %v1311 = vpack.c.b16 %v1275, %v1273
      %v1312 = vpack.c.b16 %v1276, %v1274
      %v1313 = vpack.c.b16 %v1279, %v1277
      %v1314 = vpack.c.b16 %v1280, %v1278
      %v1315 = vpack.c.b16 %v1283, %v1281
      %v1316 = vpack.c.b16 %v1284, %v1282
      %1349 = vmatprep.subr.bf16.mxu0 %v966
      %1350 = vmatpush1.bf16.msra.mxu0 %v965
      %1351 = vmatprep.subr.bf16.mxu0 %v968
      %1352 = vmatpush1.bf16.msra.mxu0 %v967
      %1353 = vmatprep.subr.bf16.mxu0 %v970
      %1354 = vmatpush1.bf16.msra.mxu0 %v969
      %1355 = vmatprep.subr.bf16.mxu0 %v972
      %1356 = vmatpush1.bf16.msra.mxu0 %v971
      %1357 = vmatprep.subr.bf16.mxu0 %v974
      %1358 = vmatpush1.bf16.msra.mxu0 %v973
      %1359 = vmatprep.subr.bf16.mxu0 %v976
      %1360 = vmatpush1.bf16.msra.mxu0 %v975
      %1361 = vmatprep.subr.bf16.mxu0 %v978
      %1362 = vmatpush1.bf16.msra.mxu0 %v977
      %1363 = vmatprep.subr.bf16.mxu0 %v980
      %1364 = vmatpush1.bf16.msra.mxu0 %v979
      %1365 = vmatprep.subr.bf16.mxu0 %v982
      %1366 = vmatpush1.bf16.msra.mxu0 %v981
      %1367 = vmatprep.subr.bf16.mxu0 %v984
      %1368 = vmatpush1.bf16.msra.mxu0 %v983
      %1369 = vmatprep.subr.bf16.mxu0 %v986
      %1370 = vmatpush1.bf16.msra.mxu0 %v985
      %1371 = vmatprep.subr.bf16.mxu0 %v988
      %1372 = vmatpush1.bf16.msra.mxu0 %v987
      %1373 = vmatprep.subr.bf16.mxu0 %v990
      %1374 = vmatpush1.bf16.msra.mxu0 %v989
      %1375 = vmatprep.subr.bf16.mxu0 %v992
      %1376 = vmatpush1.bf16.msra.mxu0 %v991
      %1377 = vmatprep.subr.bf16.mxu0 %v994
      %1378 = vmatpush1.bf16.msra.mxu0 %v993
      %1379 = vmatprep.subr.bf16.mxu0 %v996
      %1380 = vmatpush1.bf16.msra.mxu0 %v995
      %1381 = vmatprep.mubr.bf16.mxu0 %v1286
      %1382 = vmatmul.mubr.bf16.gmra.mrb[0].mxu0 %v1285
      %v1383 = vpop.f32.mrb[0].mxu0
      %v1384 = vadd.f32 %v1032, %v1383
      %v1385 = vpop.f32.mrb[0].mxu0
      %v1386 = vadd.f32 %v1032, %v1385
      %v1387 = vpop.f32.mrb[0].mxu0
      %v1388 = vadd.f32 %v1037, %v1387
      %v1389 = vpop.f32.mrb[0].mxu0
      %v1390 = vadd.f32 %v1037, %v1389
      %1391 = vmatprep.mubr.bf16.mxu0 %v1288
      %1392 = vmatmul.mubr.bf16.gmra.mrb[0].mxu0 %v1287
      %v1393 = vpop.f32.mrb[0].mxu0
      %v1394 = vadd.f32 %v1042, %v1393
      %v1395 = vpop.f32.mrb[0].mxu0
      %v1396 = vadd.f32 %v1042, %v1395
      %v1397 = vpop.f32.mrb[0].mxu0
      %v1398 = vadd.f32 %v1047, %v1397
      %v1399 = vpop.f32.mrb[0].mxu0
      %v1400 = vadd.f32 %v1047, %v1399
      %1401 = vmatprep.mubr.bf16.mxu0 %v1290
      %1402 = vmatmul.mubr.bf16.gmra.mrb[0].mxu0 %v1289
      %v1403 = vpop.f32.mrb[0].mxu0
      %v1404 = vadd.f32 %v1052, %v1403
      %v1405 = vpop.f32.mrb[0].mxu0
      %v1406 = vadd.f32 %v1052, %v1405
      %v1407 = vpop.f32.mrb[0].mxu0
      %v1408 = vadd.f32 %v1057, %v1407
      %v1409 = vpop.f32.mrb[0].mxu0
      %v1410 = vadd.f32 %v1057, %v1409
      %1411 = vmatprep.mubr.bf16.mxu0 %v1292
      %1412 = vmatmul.mubr.bf16.gmra.mrb[0].mxu0 %v1291
      %v1413 = vpop.f32.mrb[0].mxu0
      %v1414 = vadd.f32 %v1062, %v1413
      %v1415 = vpop.f32.mrb[0].mxu0
      %v1416 = vadd.f32 %v1062, %v1415
      %v1417 = vpop.f32.mrb[0].mxu0
      %v1418 = vadd.f32 %v1067, %v1417
      %v1419 = vpop.f32.mrb[0].mxu0
      %v1420 = vadd.f32 %v1067, %v1419
      %1421 = vmatprep.mubr.bf16.mxu0 %v1294
      %1422 = vmatmul.mubr.bf16.gmra.mrb[0].mxu0 %v1293
      %v1423 = vpop.f32.mrb[0].mxu0
      %v1424 = vadd.f32 %v1072, %v1423
      %v1425 = vpop.f32.mrb[0].mxu0
      %v1426 = vadd.f32 %v1072, %v1425
      %v1427 = vpop.f32.mrb[0].mxu0
      %v1428 = vadd.f32 %v1077, %v1427
      %v1429 = vpop.f32.mrb[0].mxu0
      %v1430 = vadd.f32 %v1077, %v1429
      %1431 = vmatprep.mubr.bf16.mxu0 %v1296
      %1432 = vmatmul.mubr.bf16.gmra.mrb[0].mxu0 %v1295
      %v1433 = vpop.f32.mrb[0].mxu0
      %v1434 = vadd.f32 %v1082, %v1433
      %v1435 = vpop.f32.mrb[0].mxu0
      %v1436 = vadd.f32 %v1082, %v1435
      %v1437 = vpop.f32.mrb[0].mxu0
      %v1438 = vadd.f32 %v1087, %v1437
      %v1439 = vpop.f32.mrb[0].mxu0
      %v1440 = vadd.f32 %v1087, %v1439
      %1441 = vmatprep.mubr.bf16.mxu0 %v1298
      %1442 = vmatmul.mubr.bf16.gmra.mrb[0].mxu0 %v1297
      %v1443 = vpop.f32.mrb[0].mxu0
      %v1444 = vadd.f32 %v1092, %v1443
      %v1445 = vpop.f32.mrb[0].mxu0
      %v1446 = vadd.f32 %v1092, %v1445
      %v1447 = vpop.f32.mrb[0].mxu0
      %v1448 = vadd.f32 %v1097, %v1447
      %v1449 = vpop.f32.mrb[0].mxu0
      %v1450 = vadd.f32 %v1097, %v1449
      %1451 = vmatprep.mubr.bf16.mxu0 %v1300
      %1452 = vmatmul.mubr.bf16.gmra.mrb[0].mxu0 %v1299
      %v1453 = vpop.f32.mrb[0].mxu0
      %v1454 = vadd.f32 %v1102, %v1453
      %v1455 = vpop.f32.mrb[0].mxu0
      %v1456 = vadd.f32 %v1102, %v1455
      %v1457 = vpop.f32.mrb[0].mxu0
      %v1458 = vadd.f32 %v1107, %v1457
      %v1459 = vpop.f32.mrb[0].mxu0
      %v1460 = vadd.f32 %v1107, %v1459
      %1461 = vmatprep.mubr.bf16.mxu0 %v1302
      %1462 = vmatmul.mubr.bf16.gmra.mrb[0].mxu0 %v1301
      %v1463 = vpop.f32.mrb[0].mxu0
      %v1464 = vadd.f32 %v1112, %v1463
      %v1465 = vpop.f32.mrb[0].mxu0
      %v1466 = vadd.f32 %v1112, %v1465
      %v1467 = vpop.f32.mrb[0].mxu0
      %v1468 = vadd.f32 %v1117, %v1467
      %v1469 = vpop.f32.mrb[0].mxu0
      %v1470 = vadd.f32 %v1117, %v1469
      %1471 = vmatprep.mubr.bf16.mxu0 %v1304
      %1472 = vmatmul.mubr.bf16.gmra.mrb[0].mxu0 %v1303
      %v1473 = vpop.f32.mrb[0].mxu0
      %v1474 = vadd.f32 %v1122, %v1473
      %v1475 = vpop.f32.mrb[0].mxu0
      %v1476 = vadd.f32 %v1122, %v1475
      %v1477 = vpop.f32.mrb[0].mxu0
      %v1478 = vadd.f32 %v1127, %v1477
      %v1479 = vpop.f32.mrb[0].mxu0
      %v1480 = vadd.f32 %v1127, %v1479
      %1481 = vmatprep.mubr.bf16.mxu0 %v1306
      %1482 = vmatmul.mubr.bf16.gmra.mrb[0].mxu0 %v1305
      %v1483 = vpop.f32.mrb[0].mxu0
      %v1484 = vadd.f32 %v1132, %v1483
      %v1485 = vpop.f32.mrb[0].mxu0
      %v1486 = vadd.f32 %v1132, %v1485
      %v1487 = vpop.f32.mrb[0].mxu0
      %v1488 = vadd.f32 %v1137, %v1487
      %v1489 = vpop.f32.mrb[0].mxu0
      %v1490 = vadd.f32 %v1137, %v1489
      %1491 = vmatprep.mubr.bf16.mxu0 %v1308
      %1492 = vmatmul.mubr.bf16.gmra.mrb[0].mxu0 %v1307
      %v1493 = vpop.f32.mrb[0].mxu0
      %v1494 = vadd.f32 %v1142, %v1493
      %v1495 = vpop.f32.mrb[0].mxu0
      %v1496 = vadd.f32 %v1142, %v1495
      %v1497 = vpop.f32.mrb[0].mxu0
      %v1498 = vadd.f32 %v1147, %v1497
      %v1499 = vpop.f32.mrb[0].mxu0
      %v1500 = vadd.f32 %v1147, %v1499
      %1501 = vmatprep.mubr.bf16.mxu0 %v1310
      %1502 = vmatmul.mubr.bf16.gmra.mrb[0].mxu0 %v1309
      %v1503 = vpop.f32.mrb[0].mxu0
      %v1504 = vadd.f32 %v1152, %v1503
      %v1505 = vpop.f32.mrb[0].mxu0
      %v1506 = vadd.f32 %v1152, %v1505
      %v1507 = vpop.f32.mrb[0].mxu0
      %v1508 = vadd.f32 %v1157, %v1507
      %v1509 = vpop.f32.mrb[0].mxu0
      %v1510 = vadd.f32 %v1157, %v1509
      %1511 = vmatprep.mubr.bf16.mxu0 %v1312
      %1512 = vmatmul.mubr.bf16.gmra.mrb[0].mxu0 %v1311
      %v1513 = vpop.f32.mrb[0].mxu0
      %v1514 = vadd.f32 %v1162, %v1513
      %v1515 = vpop.f32.mrb[0].mxu0
      %v1516 = vadd.f32 %v1162, %v1515
      %v1517 = vpop.f32.mrb[0].mxu0
      %v1518 = vadd.f32 %v1167, %v1517
      %v1519 = vpop.f32.mrb[0].mxu0
      %v1520 = vadd.f32 %v1167, %v1519
      %1521 = vmatprep.mubr.bf16.mxu0 %v1314
      %1522 = vmatmul.mubr.bf16.gmra.mrb[0].mxu0 %v1313
      %v1523 = vpop.f32.mrb[0].mxu0
      %v1524 = vadd.f32 %v1172, %v1523
      %v1525 = vpop.f32.mrb[0].mxu0
      %v1526 = vadd.f32 %v1172, %v1525
      %v1527 = vpop.f32.mrb[0].mxu0
      %v1528 = vadd.f32 %v1177, %v1527
      %v1529 = vpop.f32.mrb[0].mxu0
      %v1530 = vadd.f32 %v1177, %v1529
      %1531 = vmatprep.mubr.bf16.mxu0 %v1316
      %1532 = vmatmul.mubr.bf16.gmra.mrb[0].mxu0 %v1315
      %v1533 = vpop.f32.mrb[0].mxu0
      %v1534 = vadd.f32 %v1182, %v1533
      %v1535 = vpop.f32.mrb[0].mxu0
      %v1536 = vadd.f32 %v1182, %v1535
      %v1537 = vpop.f32.mrb[0].mxu0
      %v1538 = vadd.f32 %v1187, %v1537
      %v1539 = vpop.f32.mrb[0].mxu0
      %v1540 = vadd.f32 %v1187, %v1539
      %1541 = vdwg.mxu0
      %v1542 = vmul.f32 %v1384, 0.01
      %v1543 = vmul.f32 %v1386, 0.01
      %v1544 = vmul.f32 %v1388, 0.01
      %v1545 = vmul.f32 %v1390, 0.01
      %v1546 = vmul.f32 %v1394, 0.01
      %v1547 = vmul.f32 %v1396, 0.01
      %v1548 = vmul.f32 %v1398, 0.01
      %v1549 = vmul.f32 %v1400, 0.01
      %v1550 = vmul.f32 %v1404, 0.01
      %v1551 = vmul.f32 %v1406, 0.01
      %v1552 = vmul.f32 %v1408, 0.01
      %v1553 = vmul.f32 %v1410, 0.01
      %v1554 = vmul.f32 %v1414, 0.01
      %v1555 = vmul.f32 %v1416, 0.01
      %v1556 = vmul.f32 %v1418, 0.01
      %v1557 = vmul.f32 %v1420, 0.01
      %v1558 = vmul.f32 %v1424, 0.01
      %v1559 = vmul.f32 %v1426, 0.01
      %v1560 = vmul.f32 %v1428, 0.01
      %v1561 = vmul.f32 %v1430, 0.01
      %v1562 = vmul.f32 %v1434, 0.01
      %v1563 = vmul.f32 %v1436, 0.01
      %v1564 = vmul.f32 %v1438, 0.01
      %v1565 = vmul.f32 %v1440, 0.01
      %v1566 = vmul.f32 %v1444, 0.01
      %v1567 = vmul.f32 %v1446, 0.01
      %v1568 = vmul.f32 %v1448, 0.01
      %v1569 = vmul.f32 %v1450, 0.01
      %v1570 = vmul.f32 %v1454, 0.01
      %v1571 = vmul.f32 %v1456, 0.01
      %v1572 = vmul.f32 %v1458, 0.01
      %v1573 = vmul.f32 %v1460, 0.01
      %v1574 = vmul.f32 %v1464, 0.01
      %v1575 = vmul.f32 %v1466, 0.01
      %v1576 = vmul.f32 %v1468, 0.01
      %v1577 = vmul.f32 %v1470, 0.01
      %v1578 = vmul.f32 %v1474, 0.01
      %v1579 = vmul.f32 %v1476, 0.01
      %v1580 = vmul.f32 %v1478, 0.01
      %v1581 = vmul.f32 %v1480, 0.01
      %v1582 = vmul.f32 %v1484, 0.01
      %v1583 = vmul.f32 %v1486, 0.01
      %v1584 = vmul.f32 %v1488, 0.01
      %v1585 = vmul.f32 %v1490, 0.01
      %v1586 = vmul.f32 %v1494, 0.01
      %v1587 = vmul.f32 %v1496, 0.01
      %v1588 = vmul.f32 %v1498, 0.01
      %v1589 = vmul.f32 %v1500, 0.01
      %v1590 = vmul.f32 %v1504, 0.01
      %v1591 = vmul.f32 %v1506, 0.01
      %v1592 = vmul.f32 %v1508, 0.01
      %v1593 = vmul.f32 %v1510, 0.01
      %v1594 = vmul.f32 %v1514, 0.01
      %v1595 = vmul.f32 %v1516, 0.01
      %v1596 = vmul.f32 %v1518, 0.01
      %v1597 = vmul.f32 %v1520, 0.01
      %v1598 = vmul.f32 %v1524, 0.01
      %v1599 = vmul.f32 %v1526, 0.01
      %v1600 = vmul.f32 %v1528, 0.01
      %v1601 = vmul.f32 %v1530, 0.01
      %v1602 = vmul.f32 %v1534, 0.01
      %v1603 = vmul.f32 %v1536, 0.01
      %v1604 = vmul.f32 %v1538, 0.01
      %v1605 = vmul.f32 %v1540, 0.01
      %v1606 = vmax.f32 %v1384, %v1542
      %v1607 = vmax.f32 %v1386, %v1543
      %v1608 = vmax.f32 %v1388, %v1544
      %v1609 = vmax.f32 %v1390, %v1545
      %v1610 = vmax.f32 %v1394, %v1546
      %v1611 = vmax.f32 %v1396, %v1547
      %v1612 = vmax.f32 %v1398, %v1548
      %v1613 = vmax.f32 %v1400, %v1549
      %v1614 = vmax.f32 %v1404, %v1550
      %v1615 = vmax.f32 %v1406, %v1551
      %v1616 = vmax.f32 %v1408, %v1552
      %v1617 = vmax.f32 %v1410, %v1553
      %v1618 = vmax.f32 %v1414, %v1554
      %v1619 = vmax.f32 %v1416, %v1555
      %v1620 = vmax.f32 %v1418, %v1556
      %v1621 = vmax.f32 %v1420, %v1557
      %v1622 = vmax.f32 %v1424, %v1558
      %v1623 = vmax.f32 %v1426, %v1559
      %v1624 = vmax.f32 %v1428, %v1560
      %v1625 = vmax.f32 %v1430, %v1561
      %v1626 = vmax.f32 %v1434, %v1562
      %v1627 = vmax.f32 %v1436, %v1563
      %v1628 = vmax.f32 %v1438, %v1564
      %v1629 = vmax.f32 %v1440, %v1565
      %v1630 = vmax.f32 %v1444, %v1566
      %v1631 = vmax.f32 %v1446, %v1567
      %v1632 = vmax.f32 %v1448, %v1568
      %v1633 = vmax.f32 %v1450, %v1569
      %v1634 = vmax.f32 %v1454, %v1570
      %v1635 = vmax.f32 %v1456, %v1571
      %v1636 = vmax.f32 %v1458, %v1572
      %v1637 = vmax.f32 %v1460, %v1573
      %v1638 = vmax.f32 %v1464, %v1574
      %v1639 = vmax.f32 %v1466, %v1575
      %v1640 = vmax.f32 %v1468, %v1576
      %v1641 = vmax.f32 %v1470, %v1577
      %v1642 = vmax.f32 %v1474, %v1578
      %v1643 = vmax.f32 %v1476, %v1579
      %v1644 = vmax.f32 %v1478, %v1580
      %v1645 = vmax.f32 %v1480, %v1581
      %v1646 = vmax.f32 %v1484, %v1582
      %v1647 = vmax.f32 %v1486, %v1583
      %v1648 = vmax.f32 %v1488, %v1584
      %v1649 = vmax.f32 %v1490, %v1585
      %v1650 = vmax.f32 %v1494, %v1586
      %v1651 = vmax.f32 %v1496, %v1587
      %v1652 = vmax.f32 %v1498, %v1588
      %v1653 = vmax.f32 %v1500, %v1589
      %v1654 = vmax.f32 %v1504, %v1590
      %v1655 = vmax.f32 %v1506, %v1591
      %v1656 = vmax.f32 %v1508, %v1592
      %v1657 = vmax.f32 %v1510, %v1593
      %v1658 = vmax.f32 %v1514, %v1594
      %v1659 = vmax.f32 %v1516, %v1595
      %v1660 = vmax.f32 %v1518, %v1596
      %v1661 = vmax.f32 %v1520, %v1597
      %v1662 = vmax.f32 %v1524, %v1598
      %v1663 = vmax.f32 %v1526, %v1599
      %v1664 = vmax.f32 %v1528, %v1600
      %v1665 = vmax.f32 %v1530, %v1601
      %v1666 = vmax.f32 %v1534, %v1602
      %v1667 = vmax.f32 %v1536, %v1603
      %v1668 = vmax.f32 %v1538, %v1604
      %v1669 = vmax.f32 %v1540, %v1605
      %v1670 = vld [vmem:[%s5] sm:$0xff]
      %v1671 = vld [vmem:[%s5 + $0x8] sm:$0xff]
      %v1672 = vld [vmem:[%s5 + $0x10] sm:$0xff]
      %v1673 = vld [vmem:[%s5 + $0x18] sm:$0xff]
      %v1674 = vld [vmem:[%s5 + $0x20] sm:$0xff]
      %v1675 = vld [vmem:[%s5 + $0x28] sm:$0xff]
      %v1676 = vld [vmem:[%s5 + $0x30] sm:$0xff]
      %v1677 = vld [vmem:[%s5 + $0x38] sm:$0xff]
      %v1678 = vld [vmem:[%s5 + $0x40] sm:$0xff]
      %v1679 = vld [vmem:[%s5 + $0x48] sm:$0xff]
      %v1680 = vld [vmem:[%s5 + $0x50] sm:$0xff]
      %v1681 = vld [vmem:[%s5 + $0x58] sm:$0xff]
      %v1682 = vld [vmem:[%s5 + $0x60] sm:$0xff]
      %v1683 = vld [vmem:[%s5 + $0x68] sm:$0xff]
      %v1684 = vld [vmem:[%s5 + $0x70] sm:$0xff]
      %v1685 = vld [vmem:[%s5 + $0x78] sm:$0xff]
      %v1686 = vld [vmem:[%s5 + $0x80] sm:$0xff]
      %v1687 = vld [vmem:[%s5 + $0x88] sm:$0xff]
      %v1688 = vld [vmem:[%s5 + $0x90] sm:$0xff]
      %v1689 = vld [vmem:[%s5 + $0x98] sm:$0xff]
      %v1690 = vld [vmem:[%s5 + $0xa0] sm:$0xff]
      %v1691 = vld [vmem:[%s5 + $0xa8] sm:$0xff]
      %v1692 = vld [vmem:[%s5 + $0xb0] sm:$0xff]
      %v1693 = vld [vmem:[%s5 + $0xb8] sm:$0xff]
      %v1694 = vld [vmem:[%s5 + $0xc0] sm:$0xff]
      %v1695 = vld [vmem:[%s5 + $0xc8] sm:$0xff]
      %v1696 = vld [vmem:[%s5 + $0xd0] sm:$0xff]
      %v1697 = vld [vmem:[%s5 + $0xd8] sm:$0xff]
      %v1698 = vld [vmem:[%s5 + $0xe0] sm:$0xff]
      %v1699 = vld [vmem:[%s5 + $0xe8] sm:$0xff]
      %v1700 = vld [vmem:[%s5 + $0xf0] sm:$0xff]
      %v1701 = vld [vmem:[%s5 + $0xf8] sm:$0xff]
      %v1702 = vpack.c.bf16 %v1608, %v1606
      %v1703 = vpack.c.bf16 %v1609, %v1607
      %v1704 = vpack.c.bf16 %v1612, %v1610
      %v1705 = vpack.c.bf16 %v1613, %v1611
      %v1706 = vpack.c.bf16 %v1616, %v1614
      %v1707 = vpack.c.bf16 %v1617, %v1615
      %v1708 = vpack.c.bf16 %v1620, %v1618
      %v1709 = vpack.c.bf16 %v1621, %v1619
      %v1710 = vpack.c.bf16 %v1624, %v1622
      %v1711 = vpack.c.bf16 %v1625, %v1623
      %v1712 = vpack.c.bf16 %v1628, %v1626
      %v1713 = vpack.c.bf16 %v1629, %v1627
      %v1714 = vpack.c.bf16 %v1632, %v1630
      %v1715 = vpack.c.bf16 %v1633, %v1631
      %v1716 = vpack.c.bf16 %v1636, %v1634
      %v1717 = vpack.c.bf16 %v1637, %v1635
      %v1718 = vpack.c.bf16 %v1640, %v1638
      %v1719 = vpack.c.bf16 %v1641, %v1639
      %v1720 = vpack.c.bf16 %v1644, %v1642
      %v1721 = vpack.c.bf16 %v1645, %v1643
      %v1722 = vpack.c.bf16 %v1648, %v1646
      %v1723 = vpack.c.bf16 %v1649, %v1647
      %v1724 = vpack.c.bf16 %v1652, %v1650
      %v1725 = vpack.c.bf16 %v1653, %v1651
      %v1726 = vpack.c.bf16 %v1656, %v1654
      %v1727 = vpack.c.bf16 %v1657, %v1655
      %v1728 = vpack.c.bf16 %v1660, %v1658
      %v1729 = vpack.c.bf16 %v1661, %v1659
      %v1730 = vpack.c.bf16 %v1664, %v1662
      %v1731 = vpack.c.bf16 %v1665, %v1663
      %v1732 = vpack.c.bf16 %v1668, %v1666
      %v1733 = vpack.c.bf16 %v1669, %v1667
      %v1734 = vld [vmem:[%s6] sm:$0xff]
      %v1735 = vld [vmem:[%s6 + $0x8] sm:$0xff]
      %v1736 = vld [vmem:[%s6 + $0x10] sm:$0xff]
      %v1737 = vld [vmem:[%s6 + $0x18] sm:$0xff]
      %v1738 = vld [vmem:[%s6 + $0x20] sm:$0xff]
      %v1739 = vld [vmem:[%s6 + $0x28] sm:$0xff]
      %v1740 = vld [vmem:[%s6 + $0x30] sm:$0xff]
      %v1741 = vld [vmem:[%s6 + $0x38] sm:$0xff]
      %v1742 = vld [vmem:[%s6 + $0x40] sm:$0xff]
      %v1743 = vld [vmem:[%s6 + $0x48] sm:$0xff]
      %v1744 = vld [vmem:[%s6 + $0x50] sm:$0xff]
      %v1745 = vld [vmem:[%s6 + $0x58] sm:$0xff]
      %v1746 = vld [vmem:[%s6 + $0x60] sm:$0xff]
      %v1747 = vld [vmem:[%s6 + $0x68] sm:$0xff]
      %v1748 = vld [vmem:[%s6 + $0x70] sm:$0xff]
      %v1749 = vld [vmem:[%s6 + $0x78] sm:$0xff]
      %v1750 = vld [vmem:[%s6 + $0x80] sm:$0xff]
      %v1751 = vld [vmem:[%s6 + $0x88] sm:$0xff]
      %v1752 = vld [vmem:[%s6 + $0x90] sm:$0xff]
      %v1753 = vld [vmem:[%s6 + $0x98] sm:$0xff]
      %v1754 = vld [vmem:[%s6 + $0xa0] sm:$0xff]
      %v1755 = vld [vmem:[%s6 + $0xa8] sm:$0xff]
      %v1756 = vld [vmem:[%s6 + $0xb0] sm:$0xff]
      %v1757 = vld [vmem:[%s6 + $0xb8] sm:$0xff]
      %v1758 = vld [vmem:[%s6 + $0xc0] sm:$0xff]
      %v1759 = vld [vmem:[%s6 + $0xc8] sm:$0xff]
      %v1760 = vld [vmem:[%s6 + $0xd0] sm:$0xff]
      %v1761 = vld [vmem:[%s6 + $0xd8] sm:$0xff]
      %v1762 = vld [vmem:[%s6 + $0xe0] sm:$0xff]
      %v1763 = vld [vmem:[%s6 + $0xe8] sm:$0xff]
      %v1764 = vld [vmem:[%s6 + $0xf0] sm:$0xff]
      %v1765 = vld [vmem:[%s6 + $0xf8] sm:$0xff]
      %1767 = vset.pattern.permute.xlu0 0
      %1768 = vperm.xlu0 %1767, %v1734
      %v1769 = vpop.permute.xlu0 %1768
      %1772 = vset.pattern.permute.xlu0 0
      %1773 = vperm.xlu0 %1772, %v1735
      %v1774 = vpop.permute.xlu0 %1773
      %1777 = vset.pattern.permute.xlu0 0
      %1778 = vperm.xlu0 %1777, %v1736
      %v1779 = vpop.permute.xlu0 %1778
      %1782 = vset.pattern.permute.xlu0 0
      %1783 = vperm.xlu0 %1782, %v1737
      %v1784 = vpop.permute.xlu0 %1783
      %1787 = vset.pattern.permute.xlu0 0
      %1788 = vperm.xlu0 %1787, %v1738
      %v1789 = vpop.permute.xlu0 %1788
      %1792 = vset.pattern.permute.xlu0 0
      %1793 = vperm.xlu0 %1792, %v1739
      %v1794 = vpop.permute.xlu0 %1793
      %1797 = vset.pattern.permute.xlu0 0
      %1798 = vperm.xlu0 %1797, %v1740
      %v1799 = vpop.permute.xlu0 %1798
      %1802 = vset.pattern.permute.xlu0 0
      %1803 = vperm.xlu0 %1802, %v1741
      %v1804 = vpop.permute.xlu0 %1803
      %1807 = vset.pattern.permute.xlu0 0
      %1808 = vperm.xlu0 %1807, %v1742
      %v1809 = vpop.permute.xlu0 %1808
      %1812 = vset.pattern.permute.xlu0 0
      %1813 = vperm.xlu0 %1812, %v1743
      %v1814 = vpop.permute.xlu0 %1813
      %1817 = vset.pattern.permute.xlu0 0
      %1818 = vperm.xlu0 %1817, %v1744
      %v1819 = vpop.permute.xlu0 %1818
      %1822 = vset.pattern.permute.xlu0 0
      %1823 = vperm.xlu0 %1822, %v1745
      %v1824 = vpop.permute.xlu0 %1823
      %1827 = vset.pattern.permute.xlu0 0
      %1828 = vperm.xlu0 %1827, %v1746
      %v1829 = vpop.permute.xlu0 %1828
      %1832 = vset.pattern.permute.xlu0 0
      %1833 = vperm.xlu0 %1832, %v1747
      %v1834 = vpop.permute.xlu0 %1833
      %1837 = vset.pattern.permute.xlu0 0
      %1838 = vperm.xlu0 %1837, %v1748
      %v1839 = vpop.permute.xlu0 %1838
      %1842 = vset.pattern.permute.xlu0 0
      %1843 = vperm.xlu0 %1842, %v1749
      %v1844 = vpop.permute.xlu0 %1843
      %1847 = vset.pattern.permute.xlu0 0
      %1848 = vperm.xlu0 %1847, %v1750
      %v1849 = vpop.permute.xlu0 %1848
      %1852 = vset.pattern.permute.xlu0 0
      %1853 = vperm.xlu0 %1852, %v1751
      %v1854 = vpop.permute.xlu0 %1853
      %1857 = vset.pattern.permute.xlu0 0
      %1858 = vperm.xlu0 %1857, %v1752
      %v1859 = vpop.permute.xlu0 %1858
      %1862 = vset.pattern.permute.xlu0 0
      %1863 = vperm.xlu0 %1862, %v1753
      %v1864 = vpop.permute.xlu0 %1863
      %1867 = vset.pattern.permute.xlu0 0
      %1868 = vperm.xlu0 %1867, %v1754
      %v1869 = vpop.permute.xlu0 %1868
      %1872 = vset.pattern.permute.xlu0 0
      %1873 = vperm.xlu0 %1872, %v1755
      %v1874 = vpop.permute.xlu0 %1873
      %1877 = vset.pattern.permute.xlu0 0
      %1878 = vperm.xlu0 %1877, %v1756
      %v1879 = vpop.permute.xlu0 %1878
      %1882 = vset.pattern.permute.xlu0 0
      %1883 = vperm.xlu0 %1882, %v1757
      %v1884 = vpop.permute.xlu0 %1883
      %1887 = vset.pattern.permute.xlu0 0
      %1888 = vperm.xlu0 %1887, %v1758
      %v1889 = vpop.permute.xlu0 %1888
      %1892 = vset.pattern.permute.xlu0 0
      %1893 = vperm.xlu0 %1892, %v1759
      %v1894 = vpop.permute.xlu0 %1893
      %1897 = vset.pattern.permute.xlu0 0
      %1898 = vperm.xlu0 %1897, %v1760
      %v1899 = vpop.permute.xlu0 %1898
      %1902 = vset.pattern.permute.xlu0 0
      %1903 = vperm.xlu0 %1902, %v1761
      %v1904 = vpop.permute.xlu0 %1903
      %1907 = vset.pattern.permute.xlu0 0
      %1908 = vperm.xlu0 %1907, %v1762
      %v1909 = vpop.permute.xlu0 %1908
      %1912 = vset.pattern.permute.xlu0 0
      %1913 = vperm.xlu0 %1912, %v1763
      %v1914 = vpop.permute.xlu0 %1913
      %1917 = vset.pattern.permute.xlu0 0
      %1918 = vperm.xlu0 %1917, %v1764
      %v1919 = vpop.permute.xlu0 %1918
      %1922 = vset.pattern.permute.xlu0 0
      %1923 = vperm.xlu0 %1922, %v1765
      %v1924 = vpop.permute.xlu0 %1923
      %v1958 = vunpack.c.l.b16 %v1670
      %v1959 = vunpack.c.h.b16 %v1670
      %v1960 = vunpack.c.l.b16 %v1671
      %v1961 = vunpack.c.h.b16 %v1671
      %v1962 = vunpack.c.l.b16 %v1672
      %v1963 = vunpack.c.h.b16 %v1672
      %v1964 = vunpack.c.l.b16 %v1673
      %v1965 = vunpack.c.h.b16 %v1673
      %v1966 = vunpack.c.l.b16 %v1674
      %v1967 = vunpack.c.h.b16 %v1674
      %v1968 = vunpack.c.l.b16 %v1675
      %v1969 = vunpack.c.h.b16 %v1675
      %v1970 = vunpack.c.l.b16 %v1676
      %v1971 = vunpack.c.h.b16 %v1676
      %v1972 = vunpack.c.l.b16 %v1677
      %v1973 = vunpack.c.h.b16 %v1677
      %v1974 = vunpack.c.l.b16 %v1678
      %v1975 = vunpack.c.h.b16 %v1678
      %v1976 = vunpack.c.l.b16 %v1679
      %v1977 = vunpack.c.h.b16 %v1679
      %v1978 = vunpack.c.l.b16 %v1680
      %v1979 = vunpack.c.h.b16 %v1680
      %v1980 = vunpack.c.l.b16 %v1681
      %v1981 = vunpack.c.h.b16 %v1681
      %v1982 = vunpack.c.l.b16 %v1682
      %v1983 = vunpack.c.h.b16 %v1682
      %v1984 = vunpack.c.l.b16 %v1683
      %v1985 = vunpack.c.h.b16 %v1683
      %v1986 = vunpack.c.l.b16 %v1684
      %v1987 = vunpack.c.h.b16 %v1684
      %v1988 = vunpack.c.l.b16 %v1685
      %v1989 = vunpack.c.h.b16 %v1685
      %v1990 = vunpack.c.l.b16 %v1686
      %v1991 = vunpack.c.h.b16 %v1686
      %v1992 = vunpack.c.l.b16 %v1687
      %v1993 = vunpack.c.h.b16 %v1687
      %v1994 = vunpack.c.l.b16 %v1688
      %v1995 = vunpack.c.h.b16 %v1688
      %v1996 = vunpack.c.l.b16 %v1689
      %v1997 = vunpack.c.h.b16 %v1689
      %v1998 = vunpack.c.l.b16 %v1690
      %v1999 = vunpack.c.h.b16 %v1690
      %v2000 = vunpack.c.l.b16 %v1691
      %v2001 = vunpack.c.h.b16 %v1691
      %v2002 = vunpack.c.l.b16 %v1692
      %v2003 = vunpack.c.h.b16 %v1692
      %v2004 = vunpack.c.l.b16 %v1693
      %v2005 = vunpack.c.h.b16 %v1693
      %v2006 = vunpack.c.l.b16 %v1694
      %v2007 = vunpack.c.h.b16 %v1694
      %v2008 = vunpack.c.l.b16 %v1695
      %v2009 = vunpack.c.h.b16 %v1695
      %v2010 = vunpack.c.l.b16 %v1696
      %v2011 = vunpack.c.h.b16 %v1696
      %v2012 = vunpack.c.l.b16 %v1697
      %v2013 = vunpack.c.h.b16 %v1697
      %v2014 = vunpack.c.l.b16 %v1698
      %v2015 = vunpack.c.h.b16 %v1698
      %v2016 = vunpack.c.l.b16 %v1699
      %v2017 = vunpack.c.h.b16 %v1699
      %v2018 = vunpack.c.l.b16 %v1700
      %v2019 = vunpack.c.h.b16 %v1700
      %v2020 = vunpack.c.l.b16 %v1701
      %v2021 = vunpack.c.h.b16 %v1701
      %v2022 = vpack.c.b16 %v1960, %v1958
      %v2023 = vpack.c.b16 %v1961, %v1959
      %v2024 = vpack.c.b16 %v1964, %v1962
      %v2025 = vpack.c.b16 %v1965, %v1963
      %v2026 = vpack.c.b16 %v1968, %v1966
      %v2027 = vpack.c.b16 %v1969, %v1967
      %v2028 = vpack.c.b16 %v1972, %v1970
      %v2029 = vpack.c.b16 %v1973, %v1971
      %v2030 = vpack.c.b16 %v1976, %v1974
      %v2031 = vpack.c.b16 %v1977, %v1975
      %v2032 = vpack.c.b16 %v1980, %v1978
      %v2033 = vpack.c.b16 %v1981, %v1979
      %v2034 = vpack.c.b16 %v1984, %v1982
      %v2035 = vpack.c.b16 %v1985, %v1983
      %v2036 = vpack.c.b16 %v1988, %v1986
      %v2037 = vpack.c.b16 %v1989, %v1987
      %v2038 = vpack.c.b16 %v1992, %v1990
      %v2039 = vpack.c.b16 %v1993, %v1991
      %v2040 = vpack.c.b16 %v1996, %v1994
      %v2041 = vpack.c.b16 %v1997, %v1995
      %v2042 = vpack.c.b16 %v2000, %v1998
      %v2043 = vpack.c.b16 %v2001, %v1999
      %v2044 = vpack.c.b16 %v2004, %v2002
      %v2045 = vpack.c.b16 %v2005, %v2003
      %v2046 = vpack.c.b16 %v2008, %v2006
      %v2047 = vpack.c.b16 %v2009, %v2007
      %v2048 = vpack.c.b16 %v2012, %v2010
      %v2049 = vpack.c.b16 %v2013, %v2011
      %v2050 = vpack.c.b16 %v2016, %v2014
      %v2051 = vpack.c.b16 %v2017, %v2015
      %v2052 = vpack.c.b16 %v2020, %v2018
      %v2053 = vpack.c.b16 %v2021, %v2019
      %2086 = vmatprep.subr.bf16.mxu0 %v1703
      %2087 = vmatpush1.bf16.msra.mxu0 %v1702
      %2088 = vmatprep.subr.bf16.mxu0 %v1705
      %2089 = vmatpush1.bf16.msra.mxu0 %v1704
      %2090 = vmatprep.subr.bf16.mxu0 %v1707
      %2091 = vmatpush1.bf16.msra.mxu0 %v1706
      %2092 = vmatprep.subr.bf16.mxu0 %v1709
      %2093 = vmatpush1.bf16.msra.mxu0 %v1708
      %2094 = vmatprep.subr.bf16.mxu0 %v1711
      %2095 = vmatpush1.bf16.msra.mxu0 %v1710
      %2096 = vmatprep.subr.bf16.mxu0 %v1713
      %2097 = vmatpush1.bf16.msra.mxu0 %v1712
      %2098 = vmatprep.subr.bf16.mxu0 %v1715
      %2099 = vmatpush1.bf16.msra.mxu0 %v1714
      %2100 = vmatprep.subr.bf16.mxu0 %v1717
      %2101 = vmatpush1.bf16.msra.mxu0 %v1716
      %2102 = vmatprep.subr.bf16.mxu0 %v1719
      %2103 = vmatpush1.bf16.msra.mxu0 %v1718
      %2104 = vmatprep.subr.bf16.mxu0 %v1721
      %2105 = vmatpush1.bf16.msra.mxu0 %v1720
      %2106 = vmatprep.subr.bf16.mxu0 %v1723
      %2107 = vmatpush1.bf16.msra.mxu0 %v1722
      %2108 = vmatprep.subr.bf16.mxu0 %v1725
      %2109 = vmatpush1.bf16.msra.mxu0 %v1724
      %2110 = vmatprep.subr.bf16.mxu0 %v1727
      %2111 = vmatpush1.bf16.msra.mxu0 %v1726
      %2112 = vmatprep.subr.bf16.mxu0 %v1729
      %2113 = vmatpush1.bf16.msra.mxu0 %v1728
      %2114 = vmatprep.subr.bf16.mxu0 %v1731
      %2115 = vmatpush1.bf16.msra.mxu0 %v1730
      %2116 = vmatprep.subr.bf16.mxu0 %v1733
      %2117 = vmatpush1.bf16.msra.mxu0 %v1732
      %2118 = vmatprep.mubr.bf16.mxu0 %v2023
      %2119 = vmatmul.mubr.bf16.gmra.mrb[0].mxu0 %v2022
      %v2120 = vpop.f32.mrb[0].mxu0
      %v2121 = vadd.f32 %v1769, %v2120
      %v2122 = vpop.f32.mrb[0].mxu0
      %v2123 = vadd.f32 %v1769, %v2122
      %v2124 = vpop.f32.mrb[0].mxu0
      %v2125 = vadd.f32 %v1774, %v2124
      %v2126 = vpop.f32.mrb[0].mxu0
      %v2127 = vadd.f32 %v1774, %v2126
      %2128 = vmatprep.mubr.bf16.mxu0 %v2025
      %2129 = vmatmul.mubr.bf16.gmra.mrb[0].mxu0 %v2024
      %v2130 = vpop.f32.mrb[0].mxu0
      %v2131 = vadd.f32 %v1779, %v2130
      %v2132 = vpop.f32.mrb[0].mxu0
      %v2133 = vadd.f32 %v1779, %v2132
      %v2134 = vpop.f32.mrb[0].mxu0
      %v2135 = vadd.f32 %v1784, %v2134
      %v2136 = vpop.f32.mrb[0].mxu0
      %v2137 = vadd.f32 %v1784, %v2136
      %2138 = vmatprep.mubr.bf16.mxu0 %v2027
      %2139 = vmatmul.mubr.bf16.gmra.mrb[0].mxu0 %v2026
      %v2140 = vpop.f32.mrb[0].mxu0
      %v2141 = vadd.f32 %v1789, %v2140
      %v2142 = vpop.f32.mrb[0].mxu0
      %v2143 = vadd.f32 %v1789, %v2142
      %v2144 = vpop.f32.mrb[0].mxu0
      %v2145 = vadd.f32 %v1794, %v2144
      %v2146 = vpop.f32.mrb[0].mxu0
      %v2147 = vadd.f32 %v1794, %v2146
      %2148 = vmatprep.mubr.bf16.mxu0 %v2029
      %2149 = vmatmul.mubr.bf16.gmra.mrb[0].mxu0 %v2028
      %v2150 = vpop.f32.mrb[0].mxu0
      %v2151 = vadd.f32 %v1799, %v2150
      %v2152 = vpop.f32.mrb[0].mxu0
      %v2153 = vadd.f32 %v1799, %v2152
      %v2154 = vpop.f32.mrb[0].mxu0
      %v2155 = vadd.f32 %v1804, %v2154
      %v2156 = vpop.f32.mrb[0].mxu0
      %v2157 = vadd.f32 %v1804, %v2156
      %2158 = vmatprep.mubr.bf16.mxu0 %v2031
      %2159 = vmatmul.mubr.bf16.gmra.mrb[0].mxu0 %v2030
      %v2160 = vpop.f32.mrb[0].mxu0
      %v2161 = vadd.f32 %v1809, %v2160
      %v2162 = vpop.f32.mrb[0].mxu0
      %v2163 = vadd.f32 %v1809, %v2162
      %v2164 = vpop.f32.mrb[0].mxu0
      %v2165 = vadd.f32 %v1814, %v2164
      %v2166 = vpop.f32.mrb[0].mxu0
      %v2167 = vadd.f32 %v1814, %v2166
      %2168 = vmatprep.mubr.bf16.mxu0 %v2033
      %2169 = vmatmul.mubr.bf16.gmra.mrb[0].mxu0 %v2032
      %v2170 = vpop.f32.mrb[0].mxu0
      %v2171 = vadd.f32 %v1819, %v2170
      %v2172 = vpop.f32.mrb[0].mxu0
      %v2173 = vadd.f32 %v1819, %v2172
      %v2174 = vpop.f32.mrb[0].mxu0
      %v2175 = vadd.f32 %v1824, %v2174
      %v2176 = vpop.f32.mrb[0].mxu0
      %v2177 = vadd.f32 %v1824, %v2176
      %2178 = vmatprep.mubr.bf16.mxu0 %v2035
      %2179 = vmatmul.mubr.bf16.gmra.mrb[0].mxu0 %v2034
      %v2180 = vpop.f32.mrb[0].mxu0
      %v2181 = vadd.f32 %v1829, %v2180
      %v2182 = vpop.f32.mrb[0].mxu0
      %v2183 = vadd.f32 %v1829, %v2182
      %v2184 = vpop.f32.mrb[0].mxu0
      %v2185 = vadd.f32 %v1834, %v2184
      %v2186 = vpop.f32.mrb[0].mxu0
      %v2187 = vadd.f32 %v1834, %v2186
      %2188 = vmatprep.mubr.bf16.mxu0 %v2037
      %2189 = vmatmul.mubr.bf16.gmra.mrb[0].mxu0 %v2036
      %v2190 = vpop.f32.mrb[0].mxu0
      %v2191 = vadd.f32 %v1839, %v2190
      %v2192 = vpop.f32.mrb[0].mxu0
      %v2193 = vadd.f32 %v1839, %v2192
      %v2194 = vpop.f32.mrb[0].mxu0
      %v2195 = vadd.f32 %v1844, %v2194
      %v2196 = vpop.f32.mrb[0].mxu0
      %v2197 = vadd.f32 %v1844, %v2196
      %2198 = vmatprep.mubr.bf16.mxu0 %v2039
      %2199 = vmatmul.mubr.bf16.gmra.mrb[0].mxu0 %v2038
      %v2200 = vpop.f32.mrb[0].mxu0
      %v2201 = vadd.f32 %v1849, %v2200
      %v2202 = vpop.f32.mrb[0].mxu0
      %v2203 = vadd.f32 %v1849, %v2202
      %v2204 = vpop.f32.mrb[0].mxu0
      %v2205 = vadd.f32 %v1854, %v2204
      %v2206 = vpop.f32.mrb[0].mxu0
      %v2207 = vadd.f32 %v1854, %v2206
      %2208 = vmatprep.mubr.bf16.mxu0 %v2041
      %2209 = vmatmul.mubr.bf16.gmra.mrb[0].mxu0 %v2040
      %v2210 = vpop.f32.mrb[0].mxu0
      %v2211 = vadd.f32 %v1859, %v2210
      %v2212 = vpop.f32.mrb[0].mxu0
      %v2213 = vadd.f32 %v1859, %v2212
      %v2214 = vpop.f32.mrb[0].mxu0
      %v2215 = vadd.f32 %v1864, %v2214
      %v2216 = vpop.f32.mrb[0].mxu0
      %v2217 = vadd.f32 %v1864, %v2216
      %2218 = vmatprep.mubr.bf16.mxu0 %v2043
      %2219 = vmatmul.mubr.bf16.gmra.mrb[0].mxu0 %v2042
      %v2220 = vpop.f32.mrb[0].mxu0
      %v2221 = vadd.f32 %v1869, %v2220
      %v2222 = vpop.f32.mrb[0].mxu0
      %v2223 = vadd.f32 %v1869, %v2222
      %v2224 = vpop.f32.mrb[0].mxu0
      %v2225 = vadd.f32 %v1874, %v2224
      %v2226 = vpop.f32.mrb[0].mxu0
      %v2227 = vadd.f32 %v1874, %v2226
      %2228 = vmatprep.mubr.bf16.mxu0 %v2045
      %2229 = vmatmul.mubr.bf16.gmra.mrb[0].mxu0 %v2044
      %v2230 = vpop.f32.mrb[0].mxu0
      %v2231 = vadd.f32 %v1879, %v2230
      %v2232 = vpop.f32.mrb[0].mxu0
      %v2233 = vadd.f32 %v1879, %v2232
      %v2234 = vpop.f32.mrb[0].mxu0
      %v2235 = vadd.f32 %v1884, %v2234
      %v2236 = vpop.f32.mrb[0].mxu0
      %v2237 = vadd.f32 %v1884, %v2236
      %2238 = vmatprep.mubr.bf16.mxu0 %v2047
      %2239 = vmatmul.mubr.bf16.gmra.mrb[0].mxu0 %v2046
      %v2240 = vpop.f32.mrb[0].mxu0
      %v2241 = vadd.f32 %v1889, %v2240
      %v2242 = vpop.f32.mrb[0].mxu0
      %v2243 = vadd.f32 %v1889, %v2242
      %v2244 = vpop.f32.mrb[0].mxu0
      %v2245 = vadd.f32 %v1894, %v2244
      %v2246 = vpop.f32.mrb[0].mxu0
      %v2247 = vadd.f32 %v1894, %v2246
      %2248 = vmatprep.mubr.bf16.mxu0 %v2049
      %2249 = vmatmul.mubr.bf16.gmra.mrb[0].mxu0 %v2048
      %v2250 = vpop.f32.mrb[0].mxu0
      %v2251 = vadd.f32 %v1899, %v2250
      %v2252 = vpop.f32.mrb[0].mxu0
      %v2253 = vadd.f32 %v1899, %v2252
      %v2254 = vpop.f32.mrb[0].mxu0
      %v2255 = vadd.f32 %v1904, %v2254
      %v2256 = vpop.f32.mrb[0].mxu0
      %v2257 = vadd.f32 %v1904, %v2256
      %2258 = vmatprep.mubr.bf16.mxu0 %v2051
      %2259 = vmatmul.mubr.bf16.gmra.mrb[0].mxu0 %v2050
      %v2260 = vpop.f32.mrb[0].mxu0
      %v2261 = vadd.f32 %v1909, %v2260
      %v2262 = vpop.f32.mrb[0].mxu0
      %v2263 = vadd.f32 %v1909, %v2262
      %v2264 = vpop.f32.mrb[0].mxu0
      %v2265 = vadd.f32 %v1914, %v2264
      %v2266 = vpop.f32.mrb[0].mxu0
      %v2267 = vadd.f32 %v1914, %v2266
      %2268 = vmatprep.mubr.bf16.mxu0 %v2053
      %2269 = vmatmul.mubr.bf16.gmra.mrb[0].mxu0 %v2052
      %v2270 = vpop.f32.mrb[0].mxu0
      %v2271 = vadd.f32 %v1919, %v2270
      %v2272 = vpop.f32.mrb[0].mxu0
      %v2273 = vadd.f32 %v1919, %v2272
      %v2274 = vpop.f32.mrb[0].mxu0
      %v2275 = vadd.f32 %v1924, %v2274
      %v2276 = vpop.f32.mrb[0].mxu0
      %v2277 = vadd.f32 %v1924, %v2276
      %2278 = vdwg.mxu0
      %v2279 = vadd.f32 %v775, %v2121
      %v2280 = vadd.f32 %v777, %v2123
      %v2281 = vadd.f32 %v779, %v2125
      %v2282 = vadd.f32 %v781, %v2127
      %v2283 = vadd.f32 %v785, %v2131
      %v2284 = vadd.f32 %v787, %v2133
      %v2285 = vadd.f32 %v789, %v2135
      %v2286 = vadd.f32 %v791, %v2137
      %v2287 = vadd.f32 %v795, %v2141
      %v2288 = vadd.f32 %v797, %v2143
      %v2289 = vadd.f32 %v799, %v2145
      %v2290 = vadd.f32 %v801, %v2147
      %v2291 = vadd.f32 %v805, %v2151
      %v2292 = vadd.f32 %v807, %v2153
      %v2293 = vadd.f32 %v809, %v2155
      %v2294 = vadd.f32 %v811, %v2157
      %v2295 = vadd.f32 %v815, %v2161
      %v2296 = vadd.f32 %v817, %v2163
      %v2297 = vadd.f32 %v819, %v2165
      %v2298 = vadd.f32 %v821, %v2167
      %v2299 = vadd.f32 %v825, %v2171
      %v2300 = vadd.f32 %v827, %v2173
      %v2301 = vadd.f32 %v829, %v2175
      %v2302 = vadd.f32 %v831, %v2177
      %v2303 = vadd.f32 %v835, %v2181
      %v2304 = vadd.f32 %v837, %v2183
      %v2305 = vadd.f32 %v839, %v2185
      %v2306 = vadd.f32 %v841, %v2187
      %v2307 = vadd.f32 %v845, %v2191
      %v2308 = vadd.f32 %v847, %v2193
      %v2309 = vadd.f32 %v849, %v2195
      %v2310 = vadd.f32 %v851, %v2197
      %v2311 = vadd.f32 %v855, %v2201
      %v2312 = vadd.f32 %v857, %v2203
      %v2313 = vadd.f32 %v859, %v2205
      %v2314 = vadd.f32 %v861, %v2207
      %v2315 = vadd.f32 %v865, %v2211
      %v2316 = vadd.f32 %v867, %v2213
      %v2317 = vadd.f32 %v869, %v2215
      %v2318 = vadd.f32 %v871, %v2217
      %v2319 = vadd.f32 %v875, %v2221
      %v2320 = vadd.f32 %v877, %v2223
      %v2321 = vadd.f32 %v879, %v2225
      %v2322 = vadd.f32 %v881, %v2227
      %v2323 = vadd.f32 %v885, %v2231
      %v2324 = vadd.f32 %v887, %v2233
      %v2325 = vadd.f32 %v889, %v2235
      %v2326 = vadd.f32 %v891, %v2237
      %v2327 = vadd.f32 %v895, %v2241
      %v2328 = vadd.f32 %v897, %v2243
      %v2329 = vadd.f32 %v899, %v2245
      %v2330 = vadd.f32 %v901, %v2247
      %v2331 = vadd.f32 %v905, %v2251
      %v2332 = vadd.f32 %v907, %v2253
      %v2333 = vadd.f32 %v909, %v2255
      %v2334 = vadd.f32 %v911, %v2257
      %v2335 = vadd.f32 %v915, %v2261
      %v2336 = vadd.f32 %v917, %v2263
      %v2337 = vadd.f32 %v919, %v2265
      %v2338 = vadd.f32 %v921, %v2267
      %v2339 = vadd.f32 %v925, %v2271
      %v2340 = vadd.f32 %v927, %v2273
      %v2341 = vadd.f32 %v929, %v2275
      %v2342 = vadd.f32 %v931, %v2277
      %v2343 = vmul.f32 %v2279, 0.01
      %v2344 = vmul.f32 %v2280, 0.01
      %v2345 = vmul.f32 %v2281, 0.01
      %v2346 = vmul.f32 %v2282, 0.01
      %v2347 = vmul.f32 %v2283, 0.01
      %v2348 = vmul.f32 %v2284, 0.01
      %v2349 = vmul.f32 %v2285, 0.01
      %v2350 = vmul.f32 %v2286, 0.01
      %v2351 = vmul.f32 %v2287, 0.01
      %v2352 = vmul.f32 %v2288, 0.01
      %v2353 = vmul.f32 %v2289, 0.01
      %v2354 = vmul.f32 %v2290, 0.01
      %v2355 = vmul.f32 %v2291, 0.01
      %v2356 = vmul.f32 %v2292, 0.01
      %v2357 = vmul.f32 %v2293, 0.01
      %v2358 = vmul.f32 %v2294, 0.01
      %v2359 = vmul.f32 %v2295, 0.01
      %v2360 = vmul.f32 %v2296, 0.01
      %v2361 = vmul.f32 %v2297, 0.01
      %v2362 = vmul.f32 %v2298, 0.01
      %v2363 = vmul.f32 %v2299, 0.01
      %v2364 = vmul.f32 %v2300, 0.01
      %v2365 = vmul.f32 %v2301, 0.01
      %v2366 = vmul.f32 %v2302, 0.01
      %v2367 = vmul.f32 %v2303, 0.01
      %v2368 = vmul.f32 %v2304, 0.01
      %v2369 = vmul.f32 %v2305, 0.01
      %v2370 = vmul.f32 %v2306, 0.01
      %v2371 = vmul.f32 %v2307, 0.01
      %v2372 = vmul.f32 %v2308, 0.01
      %v2373 = vmul.f32 %v2309, 0.01
      %v2374 = vmul.f32 %v2310, 0.01
      %v2375 = vmul.f32 %v2311, 0.01
      %v2376 = vmul.f32 %v2312, 0.01
      %v2377 = vmul.f32 %v2313, 0.01
      %v2378 = vmul.f32 %v2314, 0.01
      %v2379 = vmul.f32 %v2315, 0.01
      %v2380 = vmul.f32 %v2316, 0.01
      %v2381 = vmul.f32 %v2317, 0.01
      %v2382 = vmul.f32 %v2318, 0.01
      %v2383 = vmul.f32 %v2319, 0.01
      %v2384 = vmul.f32 %v2320, 0.01
      %v2385 = vmul.f32 %v2321, 0.01
      %v2386 = vmul.f32 %v2322, 0.01
      %v2387 = vmul.f32 %v2323, 0.01
      %v2388 = vmul.f32 %v2324, 0.01
      %v2389 = vmul.f32 %v2325, 0.01
      %v2390 = vmul.f32 %v2326, 0.01
      %v2391 = vmul.f32 %v2327, 0.01
      %v2392 = vmul.f32 %v2328, 0.01
      %v2393 = vmul.f32 %v2329, 0.01
      %v2394 = vmul.f32 %v2330, 0.01
      %v2395 = vmul.f32 %v2331, 0.01
      %v2396 = vmul.f32 %v2332, 0.01
      %v2397 = vmul.f32 %v2333, 0.01
      %v2398 = vmul.f32 %v2334, 0.01
      %v2399 = vmul.f32 %v2335, 0.01
      %v2400 = vmul.f32 %v2336, 0.01
      %v2401 = vmul.f32 %v2337, 0.01
      %v2402 = vmul.f32 %v2338, 0.01
      %v2403 = vmul.f32 %v2339, 0.01
      %v2404 = vmul.f32 %v2340, 0.01
      %v2405 = vmul.f32 %v2341, 0.01
      %v2406 = vmul.f32 %v2342, 0.01
      %v2407 = vmax.f32 %v2279, %v2343
      %v2408 = vmax.f32 %v2280, %v2344
      %v2409 = vmax.f32 %v2281, %v2345
      %v2410 = vmax.f32 %v2282, %v2346
      %v2411 = vmax.f32 %v2283, %v2347
      %v2412 = vmax.f32 %v2284, %v2348
      %v2413 = vmax.f32 %v2285, %v2349
      %v2414 = vmax.f32 %v2286, %v2350
      %v2415 = vmax.f32 %v2287, %v2351
      %v2416 = vmax.f32 %v2288, %v2352
      %v2417 = vmax.f32 %v2289, %v2353
      %v2418 = vmax.f32 %v2290, %v2354
      %v2419 = vmax.f32 %v2291, %v2355
      %v2420 = vmax.f32 %v2292, %v2356
      %v2421 = vmax.f32 %v2293, %v2357
      %v2422 = vmax.f32 %v2294, %v2358
      %v2423 = vmax.f32 %v2295, %v2359
      %v2424 = vmax.f32 %v2296, %v2360
      %v2425 = vmax.f32 %v2297, %v2361
      %v2426 = vmax.f32 %v2298, %v2362
      %v2427 = vmax.f32 %v2299, %v2363
      %v2428 = vmax.f32 %v2300, %v2364
      %v2429 = vmax.f32 %v2301, %v2365
      %v2430 = vmax.f32 %v2302, %v2366
      %v2431 = vmax.f32 %v2303, %v2367
      %v2432 = vmax.f32 %v2304, %v2368
      %v2433 = vmax.f32 %v2305, %v2369
      %v2434 = vmax.f32 %v2306, %v2370
      %v2435 = vmax.f32 %v2307, %v2371
      %v2436 = vmax.f32 %v2308, %v2372
      %v2437 = vmax.f32 %v2309, %v2373
      %v2438 = vmax.f32 %v2310, %v2374
      %v2439 = vmax.f32 %v2311, %v2375
      %v2440 = vmax.f32 %v2312, %v2376
      %v2441 = vmax.f32 %v2313, %v2377
      %v2442 = vmax.f32 %v2314, %v2378
      %v2443 = vmax.f32 %v2315, %v2379
      %v2444 = vmax.f32 %v2316, %v2380
      %v2445 = vmax.f32 %v2317, %v2381
      %v2446 = vmax.f32 %v2318, %v2382
      %v2447 = vmax.f32 %v2319, %v2383
      %v2448 = vmax.f32 %v2320, %v2384
      %v2449 = vmax.f32 %v2321, %v2385
      %v2450 = vmax.f32 %v2322, %v2386
      %v2451 = vmax.f32 %v2323, %v2387
      %v2452 = vmax.f32 %v2324, %v2388
      %v2453 = vmax.f32 %v2325, %v2389
      %v2454 = vmax.f32 %v2326, %v2390
      %v2455 = vmax.f32 %v2327, %v2391
      %v2456 = vmax.f32 %v2328, %v2392
      %v2457 = vmax.f32 %v2329, %v2393
      %v2458 = vmax.f32 %v2330, %v2394
      %v2459 = vmax.f32 %v2331, %v2395
      %v2460 = vmax.f32 %v2332, %v2396
      %v2461 = vmax.f32 %v2333, %v2397
      %v2462 = vmax.f32 %v2334, %v2398
      %v2463 = vmax.f32 %v2335, %v2399
      %v2464 = vmax.f32 %v2336, %v2400
      %v2465 = vmax.f32 %v2337, %v2401
      %v2466 = vmax.f32 %v2338, %v2402
      %v2467 = vmax.f32 %v2339, %v2403
      %v2468 = vmax.f32 %v2340, %v2404
      %v2469 = vmax.f32 %v2341, %v2405
      %v2470 = vmax.f32 %v2342, %v2406
      %s2471 = scalar_lea.vmem %s3, 256
      %v2472 = vld [vmem:[%s2471] sm:$0xff]
      %v2473 = vld [vmem:[%s2471 + $0x8] sm:$0xff]
      %v2474 = vld [vmem:[%s2471 + $0x10] sm:$0xff]
      %v2475 = vld [vmem:[%s2471 + $0x18] sm:$0xff]
      %v2476 = vld [vmem:[%s2471 + $0x20] sm:$0xff]
      %v2477 = vld [vmem:[%s2471 + $0x28] sm:$0xff]
      %v2478 = vld [vmem:[%s2471 + $0x30] sm:$0xff]
      %v2479 = vld [vmem:[%s2471 + $0x38] sm:$0xff]
      %v2480 = vld [vmem:[%s2471 + $0x40] sm:$0xff]
      %v2481 = vld [vmem:[%s2471 + $0x48] sm:$0xff]
      %v2482 = vld [vmem:[%s2471 + $0x50] sm:$0xff]
      %v2483 = vld [vmem:[%s2471 + $0x58] sm:$0xff]
      %v2484 = vld [vmem:[%s2471 + $0x60] sm:$0xff]
      %v2485 = vld [vmem:[%s2471 + $0x68] sm:$0xff]
      %v2486 = vld [vmem:[%s2471 + $0x70] sm:$0xff]
      %v2487 = vld [vmem:[%s2471 + $0x78] sm:$0xff]
      %v2488 = vld [vmem:[%s2471 + $0x80] sm:$0xff]
      %v2489 = vld [vmem:[%s2471 + $0x88] sm:$0xff]
      %v2490 = vld [vmem:[%s2471 + $0x90] sm:$0xff]
      %v2491 = vld [vmem:[%s2471 + $0x98] sm:$0xff]
      %v2492 = vld [vmem:[%s2471 + $0xa0] sm:$0xff]
      %v2493 = vld [vmem:[%s2471 + $0xa8] sm:$0xff]
      %v2494 = vld [vmem:[%s2471 + $0xb0] sm:$0xff]
      %v2495 = vld [vmem:[%s2471 + $0xb8] sm:$0xff]
      %v2496 = vld [vmem:[%s2471 + $0xc0] sm:$0xff]
      %v2497 = vld [vmem:[%s2471 + $0xc8] sm:$0xff]
      %v2498 = vld [vmem:[%s2471 + $0xd0] sm:$0xff]
      %v2499 = vld [vmem:[%s2471 + $0xd8] sm:$0xff]
      %v2500 = vld [vmem:[%s2471 + $0xe0] sm:$0xff]
      %v2501 = vld [vmem:[%s2471 + $0xe8] sm:$0xff]
      %v2502 = vld [vmem:[%s2471 + $0xf0] sm:$0xff]
      %v2503 = vld [vmem:[%s2471 + $0xf8] sm:$0xff]
      %v2504 = vpack.c.bf16 %v2409, %v2407
      %v2505 = vpack.c.bf16 %v2410, %v2408
      %v2506 = vpack.c.bf16 %v2413, %v2411
      %v2507 = vpack.c.bf16 %v2414, %v2412
      %v2508 = vpack.c.bf16 %v2417, %v2415
      %v2509 = vpack.c.bf16 %v2418, %v2416
      %v2510 = vpack.c.bf16 %v2421, %v2419
      %v2511 = vpack.c.bf16 %v2422, %v2420
      %v2512 = vpack.c.bf16 %v2425, %v2423
      %v2513 = vpack.c.bf16 %v2426, %v2424
      %v2514 = vpack.c.bf16 %v2429, %v2427
      %v2515 = vpack.c.bf16 %v2430, %v2428
      %v2516 = vpack.c.bf16 %v2433, %v2431
      %v2517 = vpack.c.bf16 %v2434, %v2432
      %v2518 = vpack.c.bf16 %v2437, %v2435
      %v2519 = vpack.c.bf16 %v2438, %v2436
      %v2520 = vpack.c.bf16 %v2441, %v2439
      %v2521 = vpack.c.bf16 %v2442, %v2440
      %v2522 = vpack.c.bf16 %v2445, %v2443
      %v2523 = vpack.c.bf16 %v2446, %v2444
      %v2524 = vpack.c.bf16 %v2449, %v2447
      %v2525 = vpack.c.bf16 %v2450, %v2448
      %v2526 = vpack.c.bf16 %v2453, %v2451
      %v2527 = vpack.c.bf16 %v2454, %v2452
      %v2528 = vpack.c.bf16 %v2457, %v2455
      %v2529 = vpack.c.bf16 %v2458, %v2456
      %v2530 = vpack.c.bf16 %v2461, %v2459
      %v2531 = vpack.c.bf16 %v2462, %v2460
      %v2532 = vpack.c.bf16 %v2465, %v2463
      %v2533 = vpack.c.bf16 %v2466, %v2464
      %v2534 = vpack.c.bf16 %v2469, %v2467
      %v2535 = vpack.c.bf16 %v2470, %v2468
      %s2536 = scalar_lea.vmem %s4, 256
      %v2537 = vld [vmem:[%s2536] sm:$0xff]
      %v2538 = vld [vmem:[%s2536 + $0x8] sm:$0xff]
      %v2539 = vld [vmem:[%s2536 + $0x10] sm:$0xff]
      %v2540 = vld [vmem:[%s2536 + $0x18] sm:$0xff]
      %v2541 = vld [vmem:[%s2536 + $0x20] sm:$0xff]
      %v2542 = vld [vmem:[%s2536 + $0x28] sm:$0xff]
      %v2543 = vld [vmem:[%s2536 + $0x30] sm:$0xff]
      %v2544 = vld [vmem:[%s2536 + $0x38] sm:$0xff]
      %v2545 = vld [vmem:[%s2536 + $0x40] sm:$0xff]
      %v2546 = vld [vmem:[%s2536 + $0x48] sm:$0xff]
      %v2547 = vld [vmem:[%s2536 + $0x50] sm:$0xff]
      %v2548 = vld [vmem:[%s2536 + $0x58] sm:$0xff]
      %v2549 = vld [vmem:[%s2536 + $0x60] sm:$0xff]
      %v2550 = vld [vmem:[%s2536 + $0x68] sm:$0xff]
      %v2551 = vld [vmem:[%s2536 + $0x70] sm:$0xff]
      %v2552 = vld [vmem:[%s2536 + $0x78] sm:$0xff]
      %v2553 = vld [vmem:[%s2536 + $0x80] sm:$0xff]
      %v2554 = vld [vmem:[%s2536 + $0x88] sm:$0xff]
      %v2555 = vld [vmem:[%s2536 + $0x90] sm:$0xff]
      %v2556 = vld [vmem:[%s2536 + $0x98] sm:$0xff]
      %v2557 = vld [vmem:[%s2536 + $0xa0] sm:$0xff]
      %v2558 = vld [vmem:[%s2536 + $0xa8] sm:$0xff]
      %v2559 = vld [vmem:[%s2536 + $0xb0] sm:$0xff]
      %v2560 = vld [vmem:[%s2536 + $0xb8] sm:$0xff]
      %v2561 = vld [vmem:[%s2536 + $0xc0] sm:$0xff]
      %v2562 = vld [vmem:[%s2536 + $0xc8] sm:$0xff]
      %v2563 = vld [vmem:[%s2536 + $0xd0] sm:$0xff]
      %v2564 = vld [vmem:[%s2536 + $0xd8] sm:$0xff]
      %v2565 = vld [vmem:[%s2536 + $0xe0] sm:$0xff]
      %v2566 = vld [vmem:[%s2536 + $0xe8] sm:$0xff]
      %v2567 = vld [vmem:[%s2536 + $0xf0] sm:$0xff]
      %v2568 = vld [vmem:[%s2536 + $0xf8] sm:$0xff]
      %2570 = vset.pattern.permute.xlu0 0
      %2571 = vperm.xlu0 %2570, %v2537
      %v2572 = vpop.permute.xlu0 %2571
      %2575 = vset.pattern.permute.xlu0 0
      %2576 = vperm.xlu0 %2575, %v2538
      %v2577 = vpop.permute.xlu0 %2576
      %2580 = vset.pattern.permute.xlu0 0
      %2581 = vperm.xlu0 %2580, %v2539
      %v2582 = vpop.permute.xlu0 %2581
      %2585 = vset.pattern.permute.xlu0 0
      %2586 = vperm.xlu0 %2585, %v2540
      %v2587 = vpop.permute.xlu0 %2586
      %2590 = vset.pattern.permute.xlu0 0
      %2591 = vperm.xlu0 %2590, %v2541
      %v2592 = vpop.permute.xlu0 %2591
      %2595 = vset.pattern.permute.xlu0 0
      %2596 = vperm.xlu0 %2595, %v2542
      %v2597 = vpop.permute.xlu0 %2596
      %2600 = vset.pattern.permute.xlu0 0
      %2601 = vperm.xlu0 %2600, %v2543
      %v2602 = vpop.permute.xlu0 %2601
      %2605 = vset.pattern.permute.xlu0 0
      %2606 = vperm.xlu0 %2605, %v2544
      %v2607 = vpop.permute.xlu0 %2606
      %2610 = vset.pattern.permute.xlu0 0
      %2611 = vperm.xlu0 %2610, %v2545
      %v2612 = vpop.permute.xlu0 %2611
      %2615 = vset.pattern.permute.xlu0 0
      %2616 = vperm.xlu0 %2615, %v2546
      %v2617 = vpop.permute.xlu0 %2616
      %2620 = vset.pattern.permute.xlu0 0
      %2621 = vperm.xlu0 %2620, %v2547
      %v2622 = vpop.permute.xlu0 %2621
      %2625 = vset.pattern.permute.xlu0 0
      %2626 = vperm.xlu0 %2625, %v2548
      %v2627 = vpop.permute.xlu0 %2626
      %2630 = vset.pattern.permute.xlu0 0
      %2631 = vperm.xlu0 %2630, %v2549
      %v2632 = vpop.permute.xlu0 %2631
      %2635 = vset.pattern.permute.xlu0 0
      %2636 = vperm.xlu0 %2635, %v2550
      %v2637 = vpop.permute.xlu0 %2636
      %2640 = vset.pattern.permute.xlu0 0
      %2641 = vperm.xlu0 %2640, %v2551
      %v2642 = vpop.permute.xlu0 %2641
      %2645 = vset.pattern.permute.xlu0 0
      %2646 = vperm.xlu0 %2645, %v2552
      %v2647 = vpop.permute.xlu0 %2646
      %2650 = vset.pattern.permute.xlu0 0
      %2651 = vperm.xlu0 %2650, %v2553
      %v2652 = vpop.permute.xlu0 %2651
      %2655 = vset.pattern.permute.xlu0 0
      %2656 = vperm.xlu0 %2655, %v2554
      %v2657 = vpop.permute.xlu0 %2656
      %2660 = vset.pattern.permute.xlu0 0
      %2661 = vperm.xlu0 %2660, %v2555
      %v2662 = vpop.permute.xlu0 %2661
      %2665 = vset.pattern.permute.xlu0 0
      %2666 = vperm.xlu0 %2665, %v2556
      %v2667 = vpop.permute.xlu0 %2666
      %2670 = vset.pattern.permute.xlu0 0
      %2671 = vperm.xlu0 %2670, %v2557
      %v2672 = vpop.permute.xlu0 %2671
      %2675 = vset.pattern.permute.xlu0 0
      %2676 = vperm.xlu0 %2675, %v2558
      %v2677 = vpop.permute.xlu0 %2676
      %2680 = vset.pattern.permute.xlu0 0
      %2681 = vperm.xlu0 %2680, %v2559
      %v2682 = vpop.permute.xlu0 %2681
      %2685 = vset.pattern.permute.xlu0 0
      %2686 = vperm.xlu0 %2685, %v2560
      %v2687 = vpop.permute.xlu0 %2686
      %2690 = vset.pattern.permute.xlu0 0
      %2691 = vperm.xlu0 %2690, %v2561
      %v2692 = vpop.permute.xlu0 %2691
      %2695 = vset.pattern.permute.xlu0 0
      %2696 = vperm.xlu0 %2695, %v2562
      %v2697 = vpop.permute.xlu0 %2696
      %2700 = vset.pattern.permute.xlu0 0
      %2701 = vperm.xlu0 %2700, %v2563
      %v2702 = vpop.permute.xlu0 %2701
      %2705 = vset.pattern.permute.xlu0 0
      %2706 = vperm.xlu0 %2705, %v2564
      %v2707 = vpop.permute.xlu0 %2706
      %2710 = vset.pattern.permute.xlu0 0
      %2711 = vperm.xlu0 %2710, %v2565
      %v2712 = vpop.permute.xlu0 %2711
      %2715 = vset.pattern.permute.xlu0 0
      %2716 = vperm.xlu0 %2715, %v2566
      %v2717 = vpop.permute.xlu0 %2716
      %2720 = vset.pattern.permute.xlu0 0
      %2721 = vperm.xlu0 %2720, %v2567
      %v2722 = vpop.permute.xlu0 %2721
      %2725 = vset.pattern.permute.xlu0 0
      %2726 = vperm.xlu0 %2725, %v2568
      %v2727 = vpop.permute.xlu0 %2726
      %v2761 = vunpack.c.l.b16 %v2472
      %v2762 = vunpack.c.h.b16 %v2472
      %v2763 = vunpack.c.l.b16 %v2473
      %v2764 = vunpack.c.h.b16 %v2473
      %v2765 = vunpack.c.l.b16 %v2474
      %v2766 = vunpack.c.h.b16 %v2474
      %v2767 = vunpack.c.l.b16 %v2475
      %v2768 = vunpack.c.h.b16 %v2475
      %v2769 = vunpack.c.l.b16 %v2476
      %v2770 = vunpack.c.h.b16 %v2476
      %v2771 = vunpack.c.l.b16 %v2477
      %v2772 = vunpack.c.h.b16 %v2477
      %v2773 = vunpack.c.l.b16 %v2478
      %v2774 = vunpack.c.h.b16 %v2478
      %v2775 = vunpack.c.l.b16 %v2479
      %v2776 = vunpack.c.h.b16 %v2479
      %v2777 = vunpack.c.l.b16 %v2480
      %v2778 = vunpack.c.h.b16 %v2480
      %v2779 = vunpack.c.l.b16 %v2481
      %v2780 = vunpack.c.h.b16 %v2481
      %v2781 = vunpack.c.l.b16 %v2482
      %v2782 = vunpack.c.h.b16 %v2482
      %v2783 = vunpack.c.l.b16 %v2483
      %v2784 = vunpack.c.h.b16 %v2483
      %v2785 = vunpack.c.l.b16 %v2484
      %v2786 = vunpack.c.h.b16 %v2484
      %v2787 = vunpack.c.l.b16 %v2485
      %v2788 = vunpack.c.h.b16 %v2485
      %v2789 = vunpack.c.l.b16 %v2486
      %v2790 = vunpack.c.h.b16 %v2486
      %v2791 = vunpack.c.l.b16 %v2487
      %v2792 = vunpack.c.h.b16 %v2487
      %v2793 = vunpack.c.l.b16 %v2488
      %v2794 = vunpack.c.h.b16 %v2488
      %v2795 = vunpack.c.l.b16 %v2489
      %v2796 = vunpack.c.h.b16 %v2489
      %v2797 = vunpack.c.l.b16 %v2490
      %v2798 = vunpack.c.h.b16 %v2490
      %v2799 = vunpack.c.l.b16 %v2491
      %v2800 = vunpack.c.h.b16 %v2491
      %v2801 = vunpack.c.l.b16 %v2492
      %v2802 = vunpack.c.h.b16 %v2492
      %v2803 = vunpack.c.l.b16 %v2493
      %v2804 = vunpack.c.h.b16 %v2493
      %v2805 = vunpack.c.l.b16 %v2494
      %v2806 = vunpack.c.h.b16 %v2494
      %v2807 = vunpack.c.l.b16 %v2495
      %v2808 = vunpack.c.h.b16 %v2495
      %v2809 = vunpack.c.l.b16 %v2496
      %v2810 = vunpack.c.h.b16 %v2496
      %v2811 = vunpack.c.l.b16 %v2497
      %v2812 = vunpack.c.h.b16 %v2497
      %v2813 = vunpack.c.l.b16 %v2498
      %v2814 = vunpack.c.h.b16 %v2498
      %v2815 = vunpack.c.l.b16 %v2499
      %v2816 = vunpack.c.h.b16 %v2499
      %v2817 = vunpack.c.l.b16 %v2500
      %v2818 = vunpack.c.h.b16 %v2500
      %v2819 = vunpack.c.l.b16 %v2501
      %v2820 = vunpack.c.h.b16 %v2501
      %v2821 = vunpack.c.l.b16 %v2502
      %v2822 = vunpack.c.h.b16 %v2502
      %v2823 = vunpack.c.l.b16 %v2503
      %v2824 = vunpack.c.h.b16 %v2503
      %v2825 = vpack.c.b16 %v2763, %v2761
      %v2826 = vpack.c.b16 %v2764, %v2762
      %v2827 = vpack.c.b16 %v2767, %v2765
      %v2828 = vpack.c.b16 %v2768, %v2766
      %v2829 = vpack.c.b16 %v2771, %v2769
      %v2830 = vpack.c.b16 %v2772, %v2770
      %v2831 = vpack.c.b16 %v2775, %v2773
      %v2832 = vpack.c.b16 %v2776, %v2774
      %v2833 = vpack.c.b16 %v2779, %v2777
      %v2834 = vpack.c.b16 %v2780, %v2778
      %v2835 = vpack.c.b16 %v2783, %v2781
      %v2836 = vpack.c.b16 %v2784, %v2782
      %v2837 = vpack.c.b16 %v2787, %v2785
      %v2838 = vpack.c.b16 %v2788, %v2786
      %v2839 = vpack.c.b16 %v2791, %v2789
      %v2840 = vpack.c.b16 %v2792, %v2790
      %v2841 = vpack.c.b16 %v2795, %v2793
      %v2842 = vpack.c.b16 %v2796, %v2794
      %v2843 = vpack.c.b16 %v2799, %v2797
      %v2844 = vpack.c.b16 %v2800, %v2798
      %v2845 = vpack.c.b16 %v2803, %v2801
      %v2846 = vpack.c.b16 %v2804, %v2802
      %v2847 = vpack.c.b16 %v2807, %v2805
      %v2848 = vpack.c.b16 %v2808, %v2806
      %v2849 = vpack.c.b16 %v2811, %v2809
      %v2850 = vpack.c.b16 %v2812, %v2810
      %v2851 = vpack.c.b16 %v2815, %v2813
      %v2852 = vpack.c.b16 %v2816, %v2814
      %v2853 = vpack.c.b16 %v2819, %v2817
      %v2854 = vpack.c.b16 %v2820, %v2818
      %v2855 = vpack.c.b16 %v2823, %v2821
      %v2856 = vpack.c.b16 %v2824, %v2822
      %2889 = vmatprep.subr.bf16.mxu0 %v2505
      %2890 = vmatpush1.bf16.msra.mxu0 %v2504
      %2891 = vmatprep.subr.bf16.mxu0 %v2507
      %2892 = vmatpush1.bf16.msra.mxu0 %v2506
      %2893 = vmatprep.subr.bf16.mxu0 %v2509
      %2894 = vmatpush1.bf16.msra.mxu0 %v2508
      %2895 = vmatprep.subr.bf16.mxu0 %v2511
      %2896 = vmatpush1.bf16.msra.mxu0 %v2510
      %2897 = vmatprep.subr.bf16.mxu0 %v2513
      %2898 = vmatpush1.bf16.msra.mxu0 %v2512
      %2899 = vmatprep.subr.bf16.mxu0 %v2515
      %2900 = vmatpush1.bf16.msra.mxu0 %v2514
      %2901 = vmatprep.subr.bf16.mxu0 %v2517
      %2902 = vmatpush1.bf16.msra.mxu0 %v2516
      %2903 = vmatprep.subr.bf16.mxu0 %v2519
      %2904 = vmatpush1.bf16.msra.mxu0 %v2518
      %2905 = vmatprep.subr.bf16.mxu0 %v2521
      %2906 = vmatpush1.bf16.msra.mxu0 %v2520
      %2907 = vmatprep.subr.bf16.mxu0 %v2523
      %2908 = vmatpush1.bf16.msra.mxu0 %v2522
      %2909 = vmatprep.subr.bf16.mxu0 %v2525
      %2910 = vmatpush1.bf16.msra.mxu0 %v2524
      %2911 = vmatprep.subr.bf16.mxu0 %v2527
      %2912 = vmatpush1.bf16.msra.mxu0 %v2526
      %2913 = vmatprep.subr.bf16.mxu0 %v2529
      %2914 = vmatpush1.bf16.msra.mxu0 %v2528
      %2915 = vmatprep.subr.bf16.mxu0 %v2531
      %2916 = vmatpush1.bf16.msra.mxu0 %v2530
      %2917 = vmatprep.subr.bf16.mxu0 %v2533
      %2918 = vmatpush1.bf16.msra.mxu0 %v2532
      %2919 = vmatprep.subr.bf16.mxu0 %v2535
      %2920 = vmatpush1.bf16.msra.mxu0 %v2534
      %2921 = vmatprep.mubr.bf16.mxu0 %v2826
      %2922 = vmatmul.mubr.bf16.gmra.mrb[0].mxu0 %v2825
      %v2923 = vpop.f32.mrb[0].mxu0
      %v2924 = vadd.f32 %v2572, %v2923
      %v2925 = vpop.f32.mrb[0].mxu0
      %v2926 = vadd.f32 %v2572, %v2925
      %v2927 = vpop.f32.mrb[0].mxu0
      %v2928 = vadd.f32 %v2577, %v2927
      %v2929 = vpop.f32.mrb[0].mxu0
      %v2930 = vadd.f32 %v2577, %v2929
      %2931 = vmatprep.mubr.bf16.mxu0 %v2828
      %2932 = vmatmul.mubr.bf16.gmra.mrb[0].mxu0 %v2827
      %v2933 = vpop.f32.mrb[0].mxu0
      %v2934 = vadd.f32 %v2582, %v2933
      %v2935 = vpop.f32.mrb[0].mxu0
      %v2936 = vadd.f32 %v2582, %v2935
      %v2937 = vpop.f32.mrb[0].mxu0
      %v2938 = vadd.f32 %v2587, %v2937
      %v2939 = vpop.f32.mrb[0].mxu0
      %v2940 = vadd.f32 %v2587, %v2939
      %2941 = vmatprep.mubr.bf16.mxu0 %v2830
      %2942 = vmatmul.mubr.bf16.gmra.mrb[0].mxu0 %v2829
      %v2943 = vpop.f32.mrb[0].mxu0
      %v2944 = vadd.f32 %v2592, %v2943
      %v2945 = vpop.f32.mrb[0].mxu0
      %v2946 = vadd.f32 %v2592, %v2945
      %v2947 = vpop.f32.mrb[0].mxu0
      %v2948 = vadd.f32 %v2597, %v2947
      %v2949 = vpop.f32.mrb[0].mxu0
      %v2950 = vadd.f32 %v2597, %v2949
      %2951 = vmatprep.mubr.bf16.mxu0 %v2832
      %2952 = vmatmul.mubr.bf16.gmra.mrb[0].mxu0 %v2831
      %v2953 = vpop.f32.mrb[0].mxu0
      %v2954 = vadd.f32 %v2602, %v2953
      %v2955 = vpop.f32.mrb[0].mxu0
      %v2956 = vadd.f32 %v2602, %v2955
      %v2957 = vpop.f32.mrb[0].mxu0
      %v2958 = vadd.f32 %v2607, %v2957
      %v2959 = vpop.f32.mrb[0].mxu0
      %v2960 = vadd.f32 %v2607, %v2959
      %2961 = vmatprep.mubr.bf16.mxu0 %v2834
      %2962 = vmatmul.mubr.bf16.gmra.mrb[0].mxu0 %v2833
      %v2963 = vpop.f32.mrb[0].mxu0
      %v2964 = vadd.f32 %v2612, %v2963
      %v2965 = vpop.f32.mrb[0].mxu0
      %v2966 = vadd.f32 %v2612, %v2965
      %v2967 = vpop.f32.mrb[0].mxu0
      %v2968 = vadd.f32 %v2617, %v2967
      %v2969 = vpop.f32.mrb[0].mxu0
      %v2970 = vadd.f32 %v2617, %v2969
      %2971 = vmatprep.mubr.bf16.mxu0 %v2836
      %2972 = vmatmul.mubr.bf16.gmra.mrb[0].mxu0 %v2835
      %v2973 = vpop.f32.mrb[0].mxu0
      %v2974 = vadd.f32 %v2622, %v2973
      %v2975 = vpop.f32.mrb[0].mxu0
      %v2976 = vadd.f32 %v2622, %v2975
      %v2977 = vpop.f32.mrb[0].mxu0
      %v2978 = vadd.f32 %v2627, %v2977
      %v2979 = vpop.f32.mrb[0].mxu0
      %v2980 = vadd.f32 %v2627, %v2979
      %2981 = vmatprep.mubr.bf16.mxu0 %v2838
      %2982 = vmatmul.mubr.bf16.gmra.mrb[0].mxu0 %v2837
      %v2983 = vpop.f32.mrb[0].mxu0
      %v2984 = vadd.f32 %v2632, %v2983
      %v2985 = vpop.f32.mrb[0].mxu0
      %v2986 = vadd.f32 %v2632, %v2985
      %v2987 = vpop.f32.mrb[0].mxu0
      %v2988 = vadd.f32 %v2637, %v2987
      %v2989 = vpop.f32.mrb[0].mxu0
      %v2990 = vadd.f32 %v2637, %v2989
      %2991 = vmatprep.mubr.bf16.mxu0 %v2840
      %2992 = vmatmul.mubr.bf16.gmra.mrb[0].mxu0 %v2839
      %v2993 = vpop.f32.mrb[0].mxu0
      %v2994 = vadd.f32 %v2642, %v2993
      %v2995 = vpop.f32.mrb[0].mxu0
      %v2996 = vadd.f32 %v2642, %v2995
      %v2997 = vpop.f32.mrb[0].mxu0
      %v2998 = vadd.f32 %v2647, %v2997
      %v2999 = vpop.f32.mrb[0].mxu0
      %v3000 = vadd.f32 %v2647, %v2999
      %3001 = vmatprep.mubr.bf16.mxu0 %v2842
      %3002 = vmatmul.mubr.bf16.gmra.mrb[0].mxu0 %v2841
      %v3003 = vpop.f32.mrb[0].mxu0
      %v3004 = vadd.f32 %v2652, %v3003
      %v3005 = vpop.f32.mrb[0].mxu0
      %v3006 = vadd.f32 %v2652, %v3005
      %v3007 = vpop.f32.mrb[0].mxu0
      %v3008 = vadd.f32 %v2657, %v3007
      %v3009 = vpop.f32.mrb[0].mxu0
      %v3010 = vadd.f32 %v2657, %v3009
      %3011 = vmatprep.mubr.bf16.mxu0 %v2844
      %3012 = vmatmul.mubr.bf16.gmra.mrb[0].mxu0 %v2843
      %v3013 = vpop.f32.mrb[0].mxu0
      %v3014 = vadd.f32 %v2662, %v3013
      %v3015 = vpop.f32.mrb[0].mxu0
      %v3016 = vadd.f32 %v2662, %v3015
      %v3017 = vpop.f32.mrb[0].mxu0
      %v3018 = vadd.f32 %v2667, %v3017
      %v3019 = vpop.f32.mrb[0].mxu0
      %v3020 = vadd.f32 %v2667, %v3019
      %3021 = vmatprep.mubr.bf16.mxu0 %v2846
      %3022 = vmatmul.mubr.bf16.gmra.mrb[0].mxu0 %v2845
      %v3023 = vpop.f32.mrb[0].mxu0
      %v3024 = vadd.f32 %v2672, %v3023
      %v3025 = vpop.f32.mrb[0].mxu0
      %v3026 = vadd.f32 %v2672, %v3025
      %v3027 = vpop.f32.mrb[0].mxu0
      %v3028 = vadd.f32 %v2677, %v3027
      %v3029 = vpop.f32.mrb[0].mxu0
      %v3030 = vadd.f32 %v2677, %v3029
      %3031 = vmatprep.mubr.bf16.mxu0 %v2848
      %3032 = vmatmul.mubr.bf16.gmra.mrb[0].mxu0 %v2847
      %v3033 = vpop.f32.mrb[0].mxu0
      %v3034 = vadd.f32 %v2682, %v3033
      %v3035 = vpop.f32.mrb[0].mxu0
      %v3036 = vadd.f32 %v2682, %v3035
      %v3037 = vpop.f32.mrb[0].mxu0
      %v3038 = vadd.f32 %v2687, %v3037
      %v3039 = vpop.f32.mrb[0].mxu0
      %v3040 = vadd.f32 %v2687, %v3039
      %3041 = vmatprep.mubr.bf16.mxu0 %v2850
      %3042 = vmatmul.mubr.bf16.gmra.mrb[0].mxu0 %v2849
      %v3043 = vpop.f32.mrb[0].mxu0
      %v3044 = vadd.f32 %v2692, %v3043
      %v3045 = vpop.f32.mrb[0].mxu0
      %v3046 = vadd.f32 %v2692, %v3045
      %v3047 = vpop.f32.mrb[0].mxu0
      %v3048 = vadd.f32 %v2697, %v3047
      %v3049 = vpop.f32.mrb[0].mxu0
      %v3050 = vadd.f32 %v2697, %v3049
      %3051 = vmatprep.mubr.bf16.mxu0 %v2852
      %3052 = vmatmul.mubr.bf16.gmra.mrb[0].mxu0 %v2851
      %v3053 = vpop.f32.mrb[0].mxu0
      %v3054 = vadd.f32 %v2702, %v3053
      %v3055 = vpop.f32.mrb[0].mxu0
      %v3056 = vadd.f32 %v2702, %v3055
      %v3057 = vpop.f32.mrb[0].mxu0
      %v3058 = vadd.f32 %v2707, %v3057
      %v3059 = vpop.f32.mrb[0].mxu0
      %v3060 = vadd.f32 %v2707, %v3059
      %3061 = vmatprep.mubr.bf16.mxu0 %v2854
      %3062 = vmatmul.mubr.bf16.gmra.mrb[0].mxu0 %v2853
      %v3063 = vpop.f32.mrb[0].mxu0
      %v3064 = vadd.f32 %v2712, %v3063
      %v3065 = vpop.f32.mrb[0].mxu0
      %v3066 = vadd.f32 %v2712, %v3065
      %v3067 = vpop.f32.mrb[0].mxu0
      %v3068 = vadd.f32 %v2717, %v3067
      %v3069 = vpop.f32.mrb[0].mxu0
      %v3070 = vadd.f32 %v2717, %v3069
      %3071 = vmatprep.mubr.bf16.mxu0 %v2856
      %3072 = vmatmul.mubr.bf16.gmra.mrb[0].mxu0 %v2855
      %v3073 = vpop.f32.mrb[0].mxu0
      %v3074 = vadd.f32 %v2722, %v3073
      %v3075 = vpop.f32.mrb[0].mxu0
      %v3076 = vadd.f32 %v2722, %v3075
      %v3077 = vpop.f32.mrb[0].mxu0
      %v3078 = vadd.f32 %v2727, %v3077
      %v3079 = vpop.f32.mrb[0].mxu0
      %v3080 = vadd.f32 %v2727, %v3079
      %3081 = vdwg.mxu0
      %v3082 = vmul.f32 %v2924, 0.01
      %v3083 = vmul.f32 %v2926, 0.01
      %v3084 = vmul.f32 %v2928, 0.01
      %v3085 = vmul.f32 %v2930, 0.01
      %v3086 = vmul.f32 %v2934, 0.01
      %v3087 = vmul.f32 %v2936, 0.01
      %v3088 = vmul.f32 %v2938, 0.01
      %v3089 = vmul.f32 %v2940, 0.01
      %v3090 = vmul.f32 %v2944, 0.01
      %v3091 = vmul.f32 %v2946, 0.01
      %v3092 = vmul.f32 %v2948, 0.01
      %v3093 = vmul.f32 %v2950, 0.01
      %v3094 = vmul.f32 %v2954, 0.01
      %v3095 = vmul.f32 %v2956, 0.01
      %v3096 = vmul.f32 %v2958, 0.01
      %v3097 = vmul.f32 %v2960, 0.01
      %v3098 = vmul.f32 %v2964, 0.01
      %v3099 = vmul.f32 %v2966, 0.01
      %v3100 = vmul.f32 %v2968, 0.01
      %v3101 = vmul.f32 %v2970, 0.01
      %v3102 = vmul.f32 %v2974, 0.01
      %v3103 = vmul.f32 %v2976, 0.01
      %v3104 = vmul.f32 %v2978, 0.01
      %v3105 = vmul.f32 %v2980, 0.01
      %v3106 = vmul.f32 %v2984, 0.01
      %v3107 = vmul.f32 %v2986, 0.01
      %v3108 = vmul.f32 %v2988, 0.01
      %v3109 = vmul.f32 %v2990, 0.01
      %v3110 = vmul.f32 %v2994, 0.01
      %v3111 = vmul.f32 %v2996, 0.01
      %v3112 = vmul.f32 %v2998, 0.01
      %v3113 = vmul.f32 %v3000, 0.01
      %v3114 = vmul.f32 %v3004, 0.01
      %v3115 = vmul.f32 %v3006, 0.01
      %v3116 = vmul.f32 %v3008, 0.01
      %v3117 = vmul.f32 %v3010, 0.01
      %v3118 = vmul.f32 %v3014, 0.01
      %v3119 = vmul.f32 %v3016, 0.01
      %v3120 = vmul.f32 %v3018, 0.01
      %v3121 = vmul.f32 %v3020, 0.01
      %v3122 = vmul.f32 %v3024, 0.01
      %v3123 = vmul.f32 %v3026, 0.01
      %v3124 = vmul.f32 %v3028, 0.01
      %v3125 = vmul.f32 %v3030, 0.01
      %v3126 = vmul.f32 %v3034, 0.01
      %v3127 = vmul.f32 %v3036, 0.01
      %v3128 = vmul.f32 %v3038, 0.01
      %v3129 = vmul.f32 %v3040, 0.01
      %v3130 = vmul.f32 %v3044, 0.01
      %v3131 = vmul.f32 %v3046, 0.01
      %v3132 = vmul.f32 %v3048, 0.01
      %v3133 = vmul.f32 %v3050, 0.01
      %v3134 = vmul.f32 %v3054, 0.01
      %v3135 = vmul.f32 %v3056, 0.01
      %v3136 = vmul.f32 %v3058, 0.01
      %v3137 = vmul.f32 %v3060, 0.01
      %v3138 = vmul.f32 %v3064, 0.01
      %v3139 = vmul.f32 %v3066, 0.01
      %v3140 = vmul.f32 %v3068, 0.01
      %v3141 = vmul.f32 %v3070, 0.01
      %v3142 = vmul.f32 %v3074, 0.01
      %v3143 = vmul.f32 %v3076, 0.01
      %v3144 = vmul.f32 %v3078, 0.01
      %v3145 = vmul.f32 %v3080, 0.01
      %v3146 = vmax.f32 %v2924, %v3082
      %v3147 = vmax.f32 %v2926, %v3083
      %v3148 = vmax.f32 %v2928, %v3084
      %v3149 = vmax.f32 %v2930, %v3085
      %v3150 = vmax.f32 %v2934, %v3086
      %v3151 = vmax.f32 %v2936, %v3087
      %v3152 = vmax.f32 %v2938, %v3088
      %v3153 = vmax.f32 %v2940, %v3089
      %v3154 = vmax.f32 %v2944, %v3090
      %v3155 = vmax.f32 %v2946, %v3091
      %v3156 = vmax.f32 %v2948, %v3092
      %v3157 = vmax.f32 %v2950, %v3093
      %v3158 = vmax.f32 %v2954, %v3094
      %v3159 = vmax.f32 %v2956, %v3095
      %v3160 = vmax.f32 %v2958, %v3096
      %v3161 = vmax.f32 %v2960, %v3097
      %v3162 = vmax.f32 %v2964, %v3098
      %v3163 = vmax.f32 %v2966, %v3099
      %v3164 = vmax.f32 %v2968, %v3100
      %v3165 = vmax.f32 %v2970, %v3101
      %v3166 = vmax.f32 %v2974, %v3102
      %v3167 = vmax.f32 %v2976, %v3103
      %v3168 = vmax.f32 %v2978, %v3104
      %v3169 = vmax.f32 %v2980, %v3105
      %v3170 = vmax.f32 %v2984, %v3106
      %v3171 = vmax.f32 %v2986, %v3107
      %v3172 = vmax.f32 %v2988, %v3108
      %v3173 = vmax.f32 %v2990, %v3109
      %v3174 = vmax.f32 %v2994, %v3110
      %v3175 = vmax.f32 %v2996, %v3111
      %v3176 = vmax.f32 %v2998, %v3112
      %v3177 = vmax.f32 %v3000, %v3113
      %v3178 = vmax.f32 %v3004, %v3114
      %v3179 = vmax.f32 %v3006, %v3115
      %v3180 = vmax.f32 %v3008, %v3116
      %v3181 = vmax.f32 %v3010, %v3117
      %v3182 = vmax.f32 %v3014, %v3118
      %v3183 = vmax.f32 %v3016, %v3119
      %v3184 = vmax.f32 %v3018, %v3120
      %v3185 = vmax.f32 %v3020, %v3121
      %v3186 = vmax.f32 %v3024, %v3122
      %v3187 = vmax.f32 %v3026, %v3123
      %v3188 = vmax.f32 %v3028, %v3124
      %v3189 = vmax.f32 %v3030, %v3125
      %v3190 = vmax.f32 %v3034, %v3126
      %v3191 = vmax.f32 %v3036, %v3127
      %v3192 = vmax.f32 %v3038, %v3128
      %v3193 = vmax.f32 %v3040, %v3129
      %v3194 = vmax.f32 %v3044, %v3130
      %v3195 = vmax.f32 %v3046, %v3131
      %v3196 = vmax.f32 %v3048, %v3132
      %v3197 = vmax.f32 %v3050, %v3133
      %v3198 = vmax.f32 %v3054, %v3134
      %v3199 = vmax.f32 %v3056, %v3135
      %v3200 = vmax.f32 %v3058, %v3136
      %v3201 = vmax.f32 %v3060, %v3137
      %v3202 = vmax.f32 %v3064, %v3138
      %v3203 = vmax.f32 %v3066, %v3139
      %v3204 = vmax.f32 %v3068, %v3140
      %v3205 = vmax.f32 %v3070, %v3141
      %v3206 = vmax.f32 %v3074, %v3142
      %v3207 = vmax.f32 %v3076, %v3143
      %v3208 = vmax.f32 %v3078, %v3144
      %v3209 = vmax.f32 %v3080, %v3145
      %s3210 = scalar_lea.vmem %s5, 256
      %v3211 = vld [vmem:[%s3210] sm:$0xff]
      %v3212 = vld [vmem:[%s3210 + $0x8] sm:$0xff]
      %v3213 = vld [vmem:[%s3210 + $0x10] sm:$0xff]
      %v3214 = vld [vmem:[%s3210 + $0x18] sm:$0xff]
      %v3215 = vld [vmem:[%s3210 + $0x20] sm:$0xff]
      %v3216 = vld [vmem:[%s3210 + $0x28] sm:$0xff]
      %v3217 = vld [vmem:[%s3210 + $0x30] sm:$0xff]
      %v3218 = vld [vmem:[%s3210 + $0x38] sm:$0xff]
      %v3219 = vld [vmem:[%s3210 + $0x40] sm:$0xff]
      %v3220 = vld [vmem:[%s3210 + $0x48] sm:$0xff]
      %v3221 = vld [vmem:[%s3210 + $0x50] sm:$0xff]
      %v3222 = vld [vmem:[%s3210 + $0x58] sm:$0xff]
      %v3223 = vld [vmem:[%s3210 + $0x60] sm:$0xff]
      %v3224 = vld [vmem:[%s3210 + $0x68] sm:$0xff]
      %v3225 = vld [vmem:[%s3210 + $0x70] sm:$0xff]
      %v3226 = vld [vmem:[%s3210 + $0x78] sm:$0xff]
      %v3227 = vld [vmem:[%s3210 + $0x80] sm:$0xff]
      %v3228 = vld [vmem:[%s3210 + $0x88] sm:$0xff]
      %v3229 = vld [vmem:[%s3210 + $0x90] sm:$0xff]
      %v3230 = vld [vmem:[%s3210 + $0x98] sm:$0xff]
      %v3231 = vld [vmem:[%s3210 + $0xa0] sm:$0xff]
      %v3232 = vld [vmem:[%s3210 + $0xa8] sm:$0xff]
      %v3233 = vld [vmem:[%s3210 + $0xb0] sm:$0xff]
      %v3234 = vld [vmem:[%s3210 + $0xb8] sm:$0xff]
      %v3235 = vld [vmem:[%s3210 + $0xc0] sm:$0xff]
      %v3236 = vld [vmem:[%s3210 + $0xc8] sm:$0xff]
      %v3237 = vld [vmem:[%s3210 + $0xd0] sm:$0xff]
      %v3238 = vld [vmem:[%s3210 + $0xd8] sm:$0xff]
      %v3239 = vld [vmem:[%s3210 + $0xe0] sm:$0xff]
      %v3240 = vld [vmem:[%s3210 + $0xe8] sm:$0xff]
      %v3241 = vld [vmem:[%s3210 + $0xf0] sm:$0xff]
      %v3242 = vld [vmem:[%s3210 + $0xf8] sm:$0xff]
      %v3243 = vpack.c.bf16 %v3148, %v3146
      %v3244 = vpack.c.bf16 %v3149, %v3147
      %v3245 = vpack.c.bf16 %v3152, %v3150
      %v3246 = vpack.c.bf16 %v3153, %v3151
      %v3247 = vpack.c.bf16 %v3156, %v3154
      %v3248 = vpack.c.bf16 %v3157, %v3155
      %v3249 = vpack.c.bf16 %v3160, %v3158
      %v3250 = vpack.c.bf16 %v3161, %v3159
      %v3251 = vpack.c.bf16 %v3164, %v3162
      %v3252 = vpack.c.bf16 %v3165, %v3163
      %v3253 = vpack.c.bf16 %v3168, %v3166
      %v3254 = vpack.c.bf16 %v3169, %v3167
      %v3255 = vpack.c.bf16 %v3172, %v3170
      %v3256 = vpack.c.bf16 %v3173, %v3171
      %v3257 = vpack.c.bf16 %v3176, %v3174
      %v3258 = vpack.c.bf16 %v3177, %v3175
      %v3259 = vpack.c.bf16 %v3180, %v3178
      %v3260 = vpack.c.bf16 %v3181, %v3179
      %v3261 = vpack.c.bf16 %v3184, %v3182
      %v3262 = vpack.c.bf16 %v3185, %v3183
      %v3263 = vpack.c.bf16 %v3188, %v3186
      %v3264 = vpack.c.bf16 %v3189, %v3187
      %v3265 = vpack.c.bf16 %v3192, %v3190
      %v3266 = vpack.c.bf16 %v3193, %v3191
      %v3267 = vpack.c.bf16 %v3196, %v3194
      %v3268 = vpack.c.bf16 %v3197, %v3195
      %v3269 = vpack.c.bf16 %v3200, %v3198
      %v3270 = vpack.c.bf16 %v3201, %v3199
      %v3271 = vpack.c.bf16 %v3204, %v3202
      %v3272 = vpack.c.bf16 %v3205, %v3203
      %v3273 = vpack.c.bf16 %v3208, %v3206
      %v3274 = vpack.c.bf16 %v3209, %v3207
      %s3275 = scalar_lea.vmem %s6, 256
      %v3276 = vld [vmem:[%s3275] sm:$0xff]
      %v3277 = vld [vmem:[%s3275 + $0x8] sm:$0xff]
      %v3278 = vld [vmem:[%s3275 + $0x10] sm:$0xff]
      %v3279 = vld [vmem:[%s3275 + $0x18] sm:$0xff]
      %v3280 = vld [vmem:[%s3275 + $0x20] sm:$0xff]
      %v3281 = vld [vmem:[%s3275 + $0x28] sm:$0xff]
      %v3282 = vld [vmem:[%s3275 + $0x30] sm:$0xff]
      %v3283 = vld [vmem:[%s3275 + $0x38] sm:$0xff]
      %v3284 = vld [vmem:[%s3275 + $0x40] sm:$0xff]
      %v3285 = vld [vmem:[%s3275 + $0x48] sm:$0xff]
      %v3286 = vld [vmem:[%s3275 + $0x50] sm:$0xff]
      %v3287 = vld [vmem:[%s3275 + $0x58] sm:$0xff]
      %v3288 = vld [vmem:[%s3275 + $0x60] sm:$0xff]
      %v3289 = vld [vmem:[%s3275 + $0x68] sm:$0xff]
      %v3290 = vld [vmem:[%s3275 + $0x70] sm:$0xff]
      %v3291 = vld [vmem:[%s3275 + $0x78] sm:$0xff]
      %v3292 = vld [vmem:[%s3275 + $0x80] sm:$0xff]
      %v3293 = vld [vmem:[%s3275 + $0x88] sm:$0xff]
      %v3294 = vld [vmem:[%s3275 + $0x90] sm:$0xff]
      %v3295 = vld [vmem:[%s3275 + $0x98] sm:$0xff]
      %v3296 = vld [vmem:[%s3275 + $0xa0] sm:$0xff]
      %v3297 = vld [vmem:[%s3275 + $0xa8] sm:$0xff]
      %v3298 = vld [vmem:[%s3275 + $0xb0] sm:$0xff]
      %v3299 = vld [vmem:[%s3275 + $0xb8] sm:$0xff]
      %v3300 = vld [vmem:[%s3275 + $0xc0] sm:$0xff]
      %v3301 = vld [vmem:[%s3275 + $0xc8] sm:$0xff]
      %v3302 = vld [vmem:[%s3275 + $0xd0] sm:$0xff]
      %v3303 = vld [vmem:[%s3275 + $0xd8] sm:$0xff]
      %v3304 = vld [vmem:[%s3275 + $0xe0] sm:$0xff]
      %v3305 = vld [vmem:[%s3275 + $0xe8] sm:$0xff]
      %v3306 = vld [vmem:[%s3275 + $0xf0] sm:$0xff]
      %v3307 = vld [vmem:[%s3275 + $0xf8] sm:$0xff]
      %3309 = vset.pattern.permute.xlu0 0
      %3310 = vperm.xlu0 %3309, %v3276
      %v3311 = vpop.permute.xlu0 %3310
      %3314 = vset.pattern.permute.xlu0 0
      %3315 = vperm.xlu0 %3314, %v3277
      %v3316 = vpop.permute.xlu0 %3315
      %3319 = vset.pattern.permute.xlu0 0
      %3320 = vperm.xlu0 %3319, %v3278
      %v3321 = vpop.permute.xlu0 %3320
      %3324 = vset.pattern.permute.xlu0 0
      %3325 = vperm.xlu0 %3324, %v3279
      %v3326 = vpop.permute.xlu0 %3325
      %3329 = vset.pattern.permute.xlu0 0
      %3330 = vperm.xlu0 %3329, %v3280
      %v3331 = vpop.permute.xlu0 %3330
      %3334 = vset.pattern.permute.xlu0 0
      %3335 = vperm.xlu0 %3334, %v3281
      %v3336 = vpop.permute.xlu0 %3335
      %3339 = vset.pattern.permute.xlu0 0
      %3340 = vperm.xlu0 %3339, %v3282
      %v3341 = vpop.permute.xlu0 %3340
      %3344 = vset.pattern.permute.xlu0 0
      %3345 = vperm.xlu0 %3344, %v3283
      %v3346 = vpop.permute.xlu0 %3345
      %3349 = vset.pattern.permute.xlu0 0
      %3350 = vperm.xlu0 %3349, %v3284
      %v3351 = vpop.permute.xlu0 %3350
      %3354 = vset.pattern.permute.xlu0 0
      %3355 = vperm.xlu0 %3354, %v3285
      %v3356 = vpop.permute.xlu0 %3355
      %3359 = vset.pattern.permute.xlu0 0
      %3360 = vperm.xlu0 %3359, %v3286
      %v3361 = vpop.permute.xlu0 %3360
      %3364 = vset.pattern.permute.xlu0 0
      %3365 = vperm.xlu0 %3364, %v3287
      %v3366 = vpop.permute.xlu0 %3365
      %3369 = vset.pattern.permute.xlu0 0
      %3370 = vperm.xlu0 %3369, %v3288
      %v3371 = vpop.permute.xlu0 %3370
      %3374 = vset.pattern.permute.xlu0 0
      %3375 = vperm.xlu0 %3374, %v3289
      %v3376 = vpop.permute.xlu0 %3375
      %3379 = vset.pattern.permute.xlu0 0
      %3380 = vperm.xlu0 %3379, %v3290
      %v3381 = vpop.permute.xlu0 %3380
      %3384 = vset.pattern.permute.xlu0 0
      %3385 = vperm.xlu0 %3384, %v3291
      %v3386 = vpop.permute.xlu0 %3385
      %3389 = vset.pattern.permute.xlu0 0
      %3390 = vperm.xlu0 %3389, %v3292
      %v3391 = vpop.permute.xlu0 %3390
      %3394 = vset.pattern.permute.xlu0 0
      %3395 = vperm.xlu0 %3394, %v3293
      %v3396 = vpop.permute.xlu0 %3395
      %3399 = vset.pattern.permute.xlu0 0
      %3400 = vperm.xlu0 %3399, %v3294
      %v3401 = vpop.permute.xlu0 %3400
      %3404 = vset.pattern.permute.xlu0 0
      %3405 = vperm.xlu0 %3404, %v3295
      %v3406 = vpop.permute.xlu0 %3405
      %3409 = vset.pattern.permute.xlu0 0
      %3410 = vperm.xlu0 %3409, %v3296
      %v3411 = vpop.permute.xlu0 %3410
      %3414 = vset.pattern.permute.xlu0 0
      %3415 = vperm.xlu0 %3414, %v3297
      %v3416 = vpop.permute.xlu0 %3415
      %3419 = vset.pattern.permute.xlu0 0
      %3420 = vperm.xlu0 %3419, %v3298
      %v3421 = vpop.permute.xlu0 %3420
      %3424 = vset.pattern.permute.xlu0 0
      %3425 = vperm.xlu0 %3424, %v3299
      %v3426 = vpop.permute.xlu0 %3425
      %3429 = vset.pattern.permute.xlu0 0
      %3430 = vperm.xlu0 %3429, %v3300
      %v3431 = vpop.permute.xlu0 %3430
      %3434 = vset.pattern.permute.xlu0 0
      %3435 = vperm.xlu0 %3434, %v3301
      %v3436 = vpop.permute.xlu0 %3435
      %3439 = vset.pattern.permute.xlu0 0
      %3440 = vperm.xlu0 %3439, %v3302
      %v3441 = vpop.permute.xlu0 %3440
      %3444 = vset.pattern.permute.xlu0 0
      %3445 = vperm.xlu0 %3444, %v3303
      %v3446 = vpop.permute.xlu0 %3445
      %3449 = vset.pattern.permute.xlu0 0
      %3450 = vperm.xlu0 %3449, %v3304
      %v3451 = vpop.permute.xlu0 %3450
      %3454 = vset.pattern.permute.xlu0 0
      %3455 = vperm.xlu0 %3454, %v3305
      %v3456 = vpop.permute.xlu0 %3455
      %3459 = vset.pattern.permute.xlu0 0
      %3460 = vperm.xlu0 %3459, %v3306
      %v3461 = vpop.permute.xlu0 %3460
      %3464 = vset.pattern.permute.xlu0 0
      %3465 = vperm.xlu0 %3464, %v3307
      %v3466 = vpop.permute.xlu0 %3465
      %v3500 = vunpack.c.l.b16 %v3211
      %v3501 = vunpack.c.h.b16 %v3211
      %v3502 = vunpack.c.l.b16 %v3212
      %v3503 = vunpack.c.h.b16 %v3212
      %v3504 = vunpack.c.l.b16 %v3213
      %v3505 = vunpack.c.h.b16 %v3213
      %v3506 = vunpack.c.l.b16 %v3214
      %v3507 = vunpack.c.h.b16 %v3214
      %v3508 = vunpack.c.l.b16 %v3215
      %v3509 = vunpack.c.h.b16 %v3215
      %v3510 = vunpack.c.l.b16 %v3216
      %v3511 = vunpack.c.h.b16 %v3216
      %v3512 = vunpack.c.l.b16 %v3217
      %v3513 = vunpack.c.h.b16 %v3217
      %v3514 = vunpack.c.l.b16 %v3218
      %v3515 = vunpack.c.h.b16 %v3218
      %v3516 = vunpack.c.l.b16 %v3219
      %v3517 = vunpack.c.h.b16 %v3219
      %v3518 = vunpack.c.l.b16 %v3220
      %v3519 = vunpack.c.h.b16 %v3220
      %v3520 = vunpack.c.l.b16 %v3221
      %v3521 = vunpack.c.h.b16 %v3221
      %v3522 = vunpack.c.l.b16 %v3222
      %v3523 = vunpack.c.h.b16 %v3222
      %v3524 = vunpack.c.l.b16 %v3223
      %v3525 = vunpack.c.h.b16 %v3223
      %v3526 = vunpack.c.l.b16 %v3224
      %v3527 = vunpack.c.h.b16 %v3224
      %v3528 = vunpack.c.l.b16 %v3225
      %v3529 = vunpack.c.h.b16 %v3225
      %v3530 = vunpack.c.l.b16 %v3226
      %v3531 = vunpack.c.h.b16 %v3226
      %v3532 = vunpack.c.l.b16 %v3227
      %v3533 = vunpack.c.h.b16 %v3227
      %v3534 = vunpack.c.l.b16 %v3228
      %v3535 = vunpack.c.h.b16 %v3228
      %v3536 = vunpack.c.l.b16 %v3229
      %v3537 = vunpack.c.h.b16 %v3229
      %v3538 = vunpack.c.l.b16 %v3230
      %v3539 = vunpack.c.h.b16 %v3230
      %v3540 = vunpack.c.l.b16 %v3231
      %v3541 = vunpack.c.h.b16 %v3231
      %v3542 = vunpack.c.l.b16 %v3232
      %v3543 = vunpack.c.h.b16 %v3232
      %v3544 = vunpack.c.l.b16 %v3233
      %v3545 = vunpack.c.h.b16 %v3233
      %v3546 = vunpack.c.l.b16 %v3234
      %v3547 = vunpack.c.h.b16 %v3234
      %v3548 = vunpack.c.l.b16 %v3235
      %v3549 = vunpack.c.h.b16 %v3235
      %v3550 = vunpack.c.l.b16 %v3236
      %v3551 = vunpack.c.h.b16 %v3236
      %v3552 = vunpack.c.l.b16 %v3237
      %v3553 = vunpack.c.h.b16 %v3237
      %v3554 = vunpack.c.l.b16 %v3238
      %v3555 = vunpack.c.h.b16 %v3238
      %v3556 = vunpack.c.l.b16 %v3239
      %v3557 = vunpack.c.h.b16 %v3239
      %v3558 = vunpack.c.l.b16 %v3240
      %v3559 = vunpack.c.h.b16 %v3240
      %v3560 = vunpack.c.l.b16 %v3241
      %v3561 = vunpack.c.h.b16 %v3241
      %v3562 = vunpack.c.l.b16 %v3242
      %v3563 = vunpack.c.h.b16 %v3242
      %v3564 = vpack.c.b16 %v3502, %v3500
      %v3565 = vpack.c.b16 %v3503, %v3501
      %v3566 = vpack.c.b16 %v3506, %v3504
      %v3567 = vpack.c.b16 %v3507, %v3505
      %v3568 = vpack.c.b16 %v3510, %v3508
      %v3569 = vpack.c.b16 %v3511, %v3509
      %v3570 = vpack.c.b16 %v3514, %v3512
      %v3571 = vpack.c.b16 %v3515, %v3513
      %v3572 = vpack.c.b16 %v3518, %v3516
      %v3573 = vpack.c.b16 %v3519, %v3517
      %v3574 = vpack.c.b16 %v3522, %v3520
      %v3575 = vpack.c.b16 %v3523, %v3521
      %v3576 = vpack.c.b16 %v3526, %v3524
      %v3577 = vpack.c.b16 %v3527, %v3525
      %v3578 = vpack.c.b16 %v3530, %v3528
      %v3579 = vpack.c.b16 %v3531, %v3529
      %v3580 = vpack.c.b16 %v3534, %v3532
      %v3581 = vpack.c.b16 %v3535, %v3533
      %v3582 = vpack.c.b16 %v3538, %v3536
      %v3583 = vpack.c.b16 %v3539, %v3537
      %v3584 = vpack.c.b16 %v3542, %v3540
      %v3585 = vpack.c.b16 %v3543, %v3541
      %v3586 = vpack.c.b16 %v3546, %v3544
      %v3587 = vpack.c.b16 %v3547, %v3545
      %v3588 = vpack.c.b16 %v3550, %v3548
      %v3589 = vpack.c.b16 %v3551, %v3549
      %v3590 = vpack.c.b16 %v3554, %v3552
      %v3591 = vpack.c.b16 %v3555, %v3553
      %v3592 = vpack.c.b16 %v3558, %v3556
      %v3593 = vpack.c.b16 %v3559, %v3557
      %v3594 = vpack.c.b16 %v3562, %v3560
      %v3595 = vpack.c.b16 %v3563, %v3561
      %3628 = vmatprep.subr.bf16.mxu0 %v3244
      %3629 = vmatpush1.bf16.msra.mxu0 %v3243
      %3630 = vmatprep.subr.bf16.mxu0 %v3246
      %3631 = vmatpush1.bf16.msra.mxu0 %v3245
      %3632 = vmatprep.subr.bf16.mxu0 %v3248
      %3633 = vmatpush1.bf16.msra.mxu0 %v3247
      %3634 = vmatprep.subr.bf16.mxu0 %v3250
      %3635 = vmatpush1.bf16.msra.mxu0 %v3249
      %3636 = vmatprep.subr.bf16.mxu0 %v3252
      %3637 = vmatpush1.bf16.msra.mxu0 %v3251
      %3638 = vmatprep.subr.bf16.mxu0 %v3254
      %3639 = vmatpush1.bf16.msra.mxu0 %v3253
      %3640 = vmatprep.subr.bf16.mxu0 %v3256
      %3641 = vmatpush1.bf16.msra.mxu0 %v3255
      %3642 = vmatprep.subr.bf16.mxu0 %v3258
      %3643 = vmatpush1.bf16.msra.mxu0 %v3257
      %3644 = vmatprep.subr.bf16.mxu0 %v3260
      %3645 = vmatpush1.bf16.msra.mxu0 %v3259
      %3646 = vmatprep.subr.bf16.mxu0 %v3262
      %3647 = vmatpush1.bf16.msra.mxu0 %v3261
      %3648 = vmatprep.subr.bf16.mxu0 %v3264
      %3649 = vmatpush1.bf16.msra.mxu0 %v3263
      %3650 = vmatprep.subr.bf16.mxu0 %v3266
      %3651 = vmatpush1.bf16.msra.mxu0 %v3265
      %3652 = vmatprep.subr.bf16.mxu0 %v3268
      %3653 = vmatpush1.bf16.msra.mxu0 %v3267
      %3654 = vmatprep.subr.bf16.mxu0 %v3270
      %3655 = vmatpush1.bf16.msra.mxu0 %v3269
      %3656 = vmatprep.subr.bf16.mxu0 %v3272
      %3657 = vmatpush1.bf16.msra.mxu0 %v3271
      %3658 = vmatprep.subr.bf16.mxu0 %v3274
      %3659 = vmatpush1.bf16.msra.mxu0 %v3273
      %3660 = vmatprep.mubr.bf16.mxu0 %v3565
      %3661 = vmatmul.mubr.bf16.gmra.mrb[0].mxu0 %v3564
      %v3662 = vpop.f32.mrb[0].mxu0
      %v3663 = vadd.f32 %v3311, %v3662
      %v3664 = vpop.f32.mrb[0].mxu0
      %v3665 = vadd.f32 %v3311, %v3664
      %v3666 = vpop.f32.mrb[0].mxu0
      %v3667 = vadd.f32 %v3316, %v3666
      %v3668 = vpop.f32.mrb[0].mxu0
      %v3669 = vadd.f32 %v3316, %v3668
      %3670 = vmatprep.mubr.bf16.mxu0 %v3567
      %3671 = vmatmul.mubr.bf16.gmra.mrb[0].mxu0 %v3566
      %v3672 = vpop.f32.mrb[0].mxu0
      %v3673 = vadd.f32 %v3321, %v3672
      %v3674 = vpop.f32.mrb[0].mxu0
      %v3675 = vadd.f32 %v3321, %v3674
      %v3676 = vpop.f32.mrb[0].mxu0
      %v3677 = vadd.f32 %v3326, %v3676
      %v3678 = vpop.f32.mrb[0].mxu0
      %v3679 = vadd.f32 %v3326, %v3678
      %3680 = vmatprep.mubr.bf16.mxu0 %v3569
      %3681 = vmatmul.mubr.bf16.gmra.mrb[0].mxu0 %v3568
      %v3682 = vpop.f32.mrb[0].mxu0
      %v3683 = vadd.f32 %v3331, %v3682
      %v3684 = vpop.f32.mrb[0].mxu0
      %v3685 = vadd.f32 %v3331, %v3684
      %v3686 = vpop.f32.mrb[0].mxu0
      %v3687 = vadd.f32 %v3336, %v3686
      %v3688 = vpop.f32.mrb[0].mxu0
      %v3689 = vadd.f32 %v3336, %v3688
      %3690 = vmatprep.mubr.bf16.mxu0 %v3571
      %3691 = vmatmul.mubr.bf16.gmra.mrb[0].mxu0 %v3570
      %v3692 = vpop.f32.mrb[0].mxu0
      %v3693 = vadd.f32 %v3341, %v3692
      %v3694 = vpop.f32.mrb[0].mxu0
      %v3695 = vadd.f32 %v3341, %v3694
      %v3696 = vpop.f32.mrb[0].mxu0
      %v3697 = vadd.f32 %v3346, %v3696
      %v3698 = vpop.f32.mrb[0].mxu0
      %v3699 = vadd.f32 %v3346, %v3698
      %3700 = vmatprep.mubr.bf16.mxu0 %v3573
      %3701 = vmatmul.mubr.bf16.gmra.mrb[0].mxu0 %v3572
      %v3702 = vpop.f32.mrb[0].mxu0
      %v3703 = vadd.f32 %v3351, %v3702
      %v3704 = vpop.f32.mrb[0].mxu0
      %v3705 = vadd.f32 %v3351, %v3704
      %v3706 = vpop.f32.mrb[0].mxu0
      %v3707 = vadd.f32 %v3356, %v3706
      %v3708 = vpop.f32.mrb[0].mxu0
      %v3709 = vadd.f32 %v3356, %v3708
      %3710 = vmatprep.mubr.bf16.mxu0 %v3575
      %3711 = vmatmul.mubr.bf16.gmra.mrb[0].mxu0 %v3574
      %v3712 = vpop.f32.mrb[0].mxu0
      %v3713 = vadd.f32 %v3361, %v3712
      %v3714 = vpop.f32.mrb[0].mxu0
      %v3715 = vadd.f32 %v3361, %v3714
      %v3716 = vpop.f32.mrb[0].mxu0
      %v3717 = vadd.f32 %v3366, %v3716
      %v3718 = vpop.f32.mrb[0].mxu0
      %v3719 = vadd.f32 %v3366, %v3718
      %3720 = vmatprep.mubr.bf16.mxu0 %v3577
      %3721 = vmatmul.mubr.bf16.gmra.mrb[0].mxu0 %v3576
      %v3722 = vpop.f32.mrb[0].mxu0
      %v3723 = vadd.f32 %v3371, %v3722
      %v3724 = vpop.f32.mrb[0].mxu0
      %v3725 = vadd.f32 %v3371, %v3724
      %v3726 = vpop.f32.mrb[0].mxu0
      %v3727 = vadd.f32 %v3376, %v3726
      %v3728 = vpop.f32.mrb[0].mxu0
      %v3729 = vadd.f32 %v3376, %v3728
      %3730 = vmatprep.mubr.bf16.mxu0 %v3579
      %3731 = vmatmul.mubr.bf16.gmra.mrb[0].mxu0 %v3578
      %v3732 = vpop.f32.mrb[0].mxu0
      %v3733 = vadd.f32 %v3381, %v3732
      %v3734 = vpop.f32.mrb[0].mxu0
      %v3735 = vadd.f32 %v3381, %v3734
      %v3736 = vpop.f32.mrb[0].mxu0
      %v3737 = vadd.f32 %v3386, %v3736
      %v3738 = vpop.f32.mrb[0].mxu0
      %v3739 = vadd.f32 %v3386, %v3738
      %3740 = vmatprep.mubr.bf16.mxu0 %v3581
      %3741 = vmatmul.mubr.bf16.gmra.mrb[0].mxu0 %v3580
      %v3742 = vpop.f32.mrb[0].mxu0
      %v3743 = vadd.f32 %v3391, %v3742
      %v3744 = vpop.f32.mrb[0].mxu0
      %v3745 = vadd.f32 %v3391, %v3744
      %v3746 = vpop.f32.mrb[0].mxu0
      %v3747 = vadd.f32 %v3396, %v3746
      %v3748 = vpop.f32.mrb[0].mxu0
      %v3749 = vadd.f32 %v3396, %v3748
      %3750 = vmatprep.mubr.bf16.mxu0 %v3583
      %3751 = vmatmul.mubr.bf16.gmra.mrb[0].mxu0 %v3582
      %v3752 = vpop.f32.mrb[0].mxu0
      %v3753 = vadd.f32 %v3401, %v3752
      %v3754 = vpop.f32.mrb[0].mxu0
      %v3755 = vadd.f32 %v3401, %v3754
      %v3756 = vpop.f32.mrb[0].mxu0
      %v3757 = vadd.f32 %v3406, %v3756
      %v3758 = vpop.f32.mrb[0].mxu0
      %v3759 = vadd.f32 %v3406, %v3758
      %3760 = vmatprep.mubr.bf16.mxu0 %v3585
      %3761 = vmatmul.mubr.bf16.gmra.mrb[0].mxu0 %v3584
      %v3762 = vpop.f32.mrb[0].mxu0
      %v3763 = vadd.f32 %v3411, %v3762
      %v3764 = vpop.f32.mrb[0].mxu0
      %v3765 = vadd.f32 %v3411, %v3764
      %v3766 = vpop.f32.mrb[0].mxu0
      %v3767 = vadd.f32 %v3416, %v3766
      %v3768 = vpop.f32.mrb[0].mxu0
      %v3769 = vadd.f32 %v3416, %v3768
      %3770 = vmatprep.mubr.bf16.mxu0 %v3587
      %3771 = vmatmul.mubr.bf16.gmra.mrb[0].mxu0 %v3586
      %v3772 = vpop.f32.mrb[0].mxu0
      %v3773 = vadd.f32 %v3421, %v3772
      %v3774 = vpop.f32.mrb[0].mxu0
      %v3775 = vadd.f32 %v3421, %v3774
      %v3776 = vpop.f32.mrb[0].mxu0
      %v3777 = vadd.f32 %v3426, %v3776
      %v3778 = vpop.f32.mrb[0].mxu0
      %v3779 = vadd.f32 %v3426, %v3778
      %3780 = vmatprep.mubr.bf16.mxu0 %v3589
      %3781 = vmatmul.mubr.bf16.gmra.mrb[0].mxu0 %v3588
      %v3782 = vpop.f32.mrb[0].mxu0
      %v3783 = vadd.f32 %v3431, %v3782
      %v3784 = vpop.f32.mrb[0].mxu0
      %v3785 = vadd.f32 %v3431, %v3784
      %v3786 = vpop.f32.mrb[0].mxu0
      %v3787 = vadd.f32 %v3436, %v3786
      %v3788 = vpop.f32.mrb[0].mxu0
      %v3789 = vadd.f32 %v3436, %v3788
      %3790 = vmatprep.mubr.bf16.mxu0 %v3591
      %3791 = vmatmul.mubr.bf16.gmra.mrb[0].mxu0 %v3590
      %v3792 = vpop.f32.mrb[0].mxu0
      %v3793 = vadd.f32 %v3441, %v3792
      %v3794 = vpop.f32.mrb[0].mxu0
      %v3795 = vadd.f32 %v3441, %v3794
      %v3796 = vpop.f32.mrb[0].mxu0
      %v3797 = vadd.f32 %v3446, %v3796
      %v3798 = vpop.f32.mrb[0].mxu0
      %v3799 = vadd.f32 %v3446, %v3798
      %3800 = vmatprep.mubr.bf16.mxu0 %v3593
      %3801 = vmatmul.mubr.bf16.gmra.mrb[0].mxu0 %v3592
      %v3802 = vpop.f32.mrb[0].mxu0
      %v3803 = vadd.f32 %v3451, %v3802
      %v3804 = vpop.f32.mrb[0].mxu0
      %v3805 = vadd.f32 %v3451, %v3804
      %v3806 = vpop.f32.mrb[0].mxu0
      %v3807 = vadd.f32 %v3456, %v3806
      %v3808 = vpop.f32.mrb[0].mxu0
      %v3809 = vadd.f32 %v3456, %v3808
      %3810 = vmatprep.mubr.bf16.mxu0 %v3595
      %3811 = vmatmul.mubr.bf16.gmra.mrb[0].mxu0 %v3594
      %v3812 = vpop.f32.mrb[0].mxu0
      %v3813 = vadd.f32 %v3461, %v3812
      %v3814 = vpop.f32.mrb[0].mxu0
      %v3815 = vadd.f32 %v3461, %v3814
      %v3816 = vpop.f32.mrb[0].mxu0
      %v3817 = vadd.f32 %v3466, %v3816
      %v3818 = vpop.f32.mrb[0].mxu0
      %v3819 = vadd.f32 %v3466, %v3818
      %3820 = vdwg.mxu0
      %v3821 = vadd.f32 %v2407, %v3663
      %v3822 = vadd.f32 %v2408, %v3665
      %v3823 = vadd.f32 %v2409, %v3667
      %v3824 = vadd.f32 %v2410, %v3669
      %v3825 = vadd.f32 %v2411, %v3673
      %v3826 = vadd.f32 %v2412, %v3675
      %v3827 = vadd.f32 %v2413, %v3677
      %v3828 = vadd.f32 %v2414, %v3679
      %v3829 = vadd.f32 %v2415, %v3683
      %v3830 = vadd.f32 %v2416, %v3685
      %v3831 = vadd.f32 %v2417, %v3687
      %v3832 = vadd.f32 %v2418, %v3689
      %v3833 = vadd.f32 %v2419, %v3693
      %v3834 = vadd.f32 %v2420, %v3695
      %v3835 = vadd.f32 %v2421, %v3697
      %v3836 = vadd.f32 %v2422, %v3699
      %v3837 = vadd.f32 %v2423, %v3703
      %v3838 = vadd.f32 %v2424, %v3705
      %v3839 = vadd.f32 %v2425, %v3707
      %v3840 = vadd.f32 %v2426, %v3709
      %v3841 = vadd.f32 %v2427, %v3713
      %v3842 = vadd.f32 %v2428, %v3715
      %v3843 = vadd.f32 %v2429, %v3717
      %v3844 = vadd.f32 %v2430, %v3719
      %v3845 = vadd.f32 %v2431, %v3723
      %v3846 = vadd.f32 %v2432, %v3725
      %v3847 = vadd.f32 %v2433, %v3727
      %v3848 = vadd.f32 %v2434, %v3729
      %v3849 = vadd.f32 %v2435, %v3733
      %v3850 = vadd.f32 %v2436, %v3735
      %v3851 = vadd.f32 %v2437, %v3737
      %v3852 = vadd.f32 %v2438, %v3739
      %v3853 = vadd.f32 %v2439, %v3743
      %v3854 = vadd.f32 %v2440, %v3745
      %v3855 = vadd.f32 %v2441, %v3747
      %v3856 = vadd.f32 %v2442, %v3749
      %v3857 = vadd.f32 %v2443, %v3753
      %v3858 = vadd.f32 %v2444, %v3755
      %v3859 = vadd.f32 %v2445, %v3757
      %v3860 = vadd.f32 %v2446, %v3759
      %v3861 = vadd.f32 %v2447, %v3763
      %v3862 = vadd.f32 %v2448, %v3765
      %v3863 = vadd.f32 %v2449, %v3767
      %v3864 = vadd.f32 %v2450, %v3769
      %v3865 = vadd.f32 %v2451, %v3773
      %v3866 = vadd.f32 %v2452, %v3775
      %v3867 = vadd.f32 %v2453, %v3777
      %v3868 = vadd.f32 %v2454, %v3779
      %v3869 = vadd.f32 %v2455, %v3783
      %v3870 = vadd.f32 %v2456, %v3785
      %v3871 = vadd.f32 %v2457, %v3787
      %v3872 = vadd.f32 %v2458, %v3789
      %v3873 = vadd.f32 %v2459, %v3793
      %v3874 = vadd.f32 %v2460, %v3795
      %v3875 = vadd.f32 %v2461, %v3797
      %v3876 = vadd.f32 %v2462, %v3799
      %v3877 = vadd.f32 %v2463, %v3803
      %v3878 = vadd.f32 %v2464, %v3805
      %v3879 = vadd.f32 %v2465, %v3807
      %v3880 = vadd.f32 %v2466, %v3809
      %v3881 = vadd.f32 %v2467, %v3813
      %v3882 = vadd.f32 %v2468, %v3815
      %v3883 = vadd.f32 %v2469, %v3817
      %v3884 = vadd.f32 %v2470, %v3819
      %v3885 = vmul.f32 %v3821, 0.01
      %v3886 = vmul.f32 %v3822, 0.01
      %v3887 = vmul.f32 %v3823, 0.01
      %v3888 = vmul.f32 %v3824, 0.01
      %v3889 = vmul.f32 %v3825, 0.01
      %v3890 = vmul.f32 %v3826, 0.01
      %v3891 = vmul.f32 %v3827, 0.01
      %v3892 = vmul.f32 %v3828, 0.01
      %v3893 = vmul.f32 %v3829, 0.01
      %v3894 = vmul.f32 %v3830, 0.01
      %v3895 = vmul.f32 %v3831, 0.01
      %v3896 = vmul.f32 %v3832, 0.01
      %v3897 = vmul.f32 %v3833, 0.01
      %v3898 = vmul.f32 %v3834, 0.01
      %v3899 = vmul.f32 %v3835, 0.01
      %v3900 = vmul.f32 %v3836, 0.01
      %v3901 = vmul.f32 %v3837, 0.01
      %v3902 = vmul.f32 %v3838, 0.01
      %v3903 = vmul.f32 %v3839, 0.01
      %v3904 = vmul.f32 %v3840, 0.01
      %v3905 = vmul.f32 %v3841, 0.01
      %v3906 = vmul.f32 %v3842, 0.01
      %v3907 = vmul.f32 %v3843, 0.01
      %v3908 = vmul.f32 %v3844, 0.01
      %v3909 = vmul.f32 %v3845, 0.01
      %v3910 = vmul.f32 %v3846, 0.01
      %v3911 = vmul.f32 %v3847, 0.01
      %v3912 = vmul.f32 %v3848, 0.01
      %v3913 = vmul.f32 %v3849, 0.01
      %v3914 = vmul.f32 %v3850, 0.01
      %v3915 = vmul.f32 %v3851, 0.01
      %v3916 = vmul.f32 %v3852, 0.01
      %v3917 = vmul.f32 %v3853, 0.01
      %v3918 = vmul.f32 %v3854, 0.01
      %v3919 = vmul.f32 %v3855, 0.01
      %v3920 = vmul.f32 %v3856, 0.01
      %v3921 = vmul.f32 %v3857, 0.01
      %v3922 = vmul.f32 %v3858, 0.01
      %v3923 = vmul.f32 %v3859, 0.01
      %v3924 = vmul.f32 %v3860, 0.01
      %v3925 = vmul.f32 %v3861, 0.01
      %v3926 = vmul.f32 %v3862, 0.01
      %v3927 = vmul.f32 %v3863, 0.01
      %v3928 = vmul.f32 %v3864, 0.01
      %v3929 = vmul.f32 %v3865, 0.01
      %v3930 = vmul.f32 %v3866, 0.01
      %v3931 = vmul.f32 %v3867, 0.01
      %v3932 = vmul.f32 %v3868, 0.01
      %v3933 = vmul.f32 %v3869, 0.01
      %v3934 = vmul.f32 %v3870, 0.01
      %v3935 = vmul.f32 %v3871, 0.01
      %v3936 = vmul.f32 %v3872, 0.01
      %v3937 = vmul.f32 %v3873, 0.01
      %v3938 = vmul.f32 %v3874, 0.01
      %v3939 = vmul.f32 %v3875, 0.01
      %v3940 = vmul.f32 %v3876, 0.01
      %v3941 = vmul.f32 %v3877, 0.01
      %v3942 = vmul.f32 %v3878, 0.01
      %v3943 = vmul.f32 %v3879, 0.01
      %v3944 = vmul.f32 %v3880, 0.01
      %v3945 = vmul.f32 %v3881, 0.01
      %v3946 = vmul.f32 %v3882, 0.01
      %v3947 = vmul.f32 %v3883, 0.01
      %v3948 = vmul.f32 %v3884, 0.01
      %v3949 = vmax.f32 %v3821, %v3885
      %v3950 = vmax.f32 %v3822, %v3886
      %v3951 = vmax.f32 %v3823, %v3887
      %v3952 = vmax.f32 %v3824, %v3888
      %v3953 = vmax.f32 %v3825, %v3889
      %v3954 = vmax.f32 %v3826, %v3890
      %v3955 = vmax.f32 %v3827, %v3891
      %v3956 = vmax.f32 %v3828, %v3892
      %v3957 = vmax.f32 %v3829, %v3893
      %v3958 = vmax.f32 %v3830, %v3894
      %v3959 = vmax.f32 %v3831, %v3895
      %v3960 = vmax.f32 %v3832, %v3896
      %v3961 = vmax.f32 %v3833, %v3897
      %v3962 = vmax.f32 %v3834, %v3898
      %v3963 = vmax.f32 %v3835, %v3899
      %v3964 = vmax.f32 %v3836, %v3900
      %v3965 = vmax.f32 %v3837, %v3901
      %v3966 = vmax.f32 %v3838, %v3902
      %v3967 = vmax.f32 %v3839, %v3903
      %v3968 = vmax.f32 %v3840, %v3904
      %v3969 = vmax.f32 %v3841, %v3905
      %v3970 = vmax.f32 %v3842, %v3906
      %v3971 = vmax.f32 %v3843, %v3907
      %v3972 = vmax.f32 %v3844, %v3908
      %v3973 = vmax.f32 %v3845, %v3909
      %v3974 = vmax.f32 %v3846, %v3910
      %v3975 = vmax.f32 %v3847, %v3911
      %v3976 = vmax.f32 %v3848, %v3912
      %v3977 = vmax.f32 %v3849, %v3913
      %v3978 = vmax.f32 %v3850, %v3914
      %v3979 = vmax.f32 %v3851, %v3915
      %v3980 = vmax.f32 %v3852, %v3916
      %v3981 = vmax.f32 %v3853, %v3917
      %v3982 = vmax.f32 %v3854, %v3918
      %v3983 = vmax.f32 %v3855, %v3919
      %v3984 = vmax.f32 %v3856, %v3920
      %v3985 = vmax.f32 %v3857, %v3921
      %v3986 = vmax.f32 %v3858, %v3922
      %v3987 = vmax.f32 %v3859, %v3923
      %v3988 = vmax.f32 %v3860, %v3924
      %v3989 = vmax.f32 %v3861, %v3925
      %v3990 = vmax.f32 %v3862, %v3926
      %v3991 = vmax.f32 %v3863, %v3927
      %v3992 = vmax.f32 %v3864, %v3928
      %v3993 = vmax.f32 %v3865, %v3929
      %v3994 = vmax.f32 %v3866, %v3930
      %v3995 = vmax.f32 %v3867, %v3931
      %v3996 = vmax.f32 %v3868, %v3932
      %v3997 = vmax.f32 %v3869, %v3933
      %v3998 = vmax.f32 %v3870, %v3934
      %v3999 = vmax.f32 %v3871, %v3935
      %v4000 = vmax.f32 %v3872, %v3936
      %v4001 = vmax.f32 %v3873, %v3937
      %v4002 = vmax.f32 %v3874, %v3938
      %v4003 = vmax.f32 %v3875, %v3939
      %v4004 = vmax.f32 %v3876, %v3940
      %v4005 = vmax.f32 %v3877, %v3941
      %v4006 = vmax.f32 %v3878, %v3942
      %v4007 = vmax.f32 %v3879, %v3943
      %v4008 = vmax.f32 %v3880, %v3944
      %v4009 = vmax.f32 %v3881, %v3945
      %v4010 = vmax.f32 %v3882, %v3946
      %v4011 = vmax.f32 %v3883, %v3947
      %v4012 = vmax.f32 %v3884, %v3948
      %s4013 = scalar_lea.vmem %s3, 512
      %v4014 = vld [vmem:[%s4013] sm:$0xff]
      %v4015 = vld [vmem:[%s4013 + $0x8] sm:$0xff]
      %v4016 = vld [vmem:[%s4013 + $0x10] sm:$0xff]
      %v4017 = vld [vmem:[%s4013 + $0x18] sm:$0xff]
      %v4018 = vld [vmem:[%s4013 + $0x20] sm:$0xff]
      %v4019 = vld [vmem:[%s4013 + $0x28] sm:$0xff]
      %v4020 = vld [vmem:[%s4013 + $0x30] sm:$0xff]
      %v4021 = vld [vmem:[%s4013 + $0x38] sm:$0xff]
      %v4022 = vld [vmem:[%s4013 + $0x40] sm:$0xff]
      %v4023 = vld [vmem:[%s4013 + $0x48] sm:$0xff]
      %v4024 = vld [vmem:[%s4013 + $0x50] sm:$0xff]
      %v4025 = vld [vmem:[%s4013 + $0x58] sm:$0xff]
      %v4026 = vld [vmem:[%s4013 + $0x60] sm:$0xff]
      %v4027 = vld [vmem:[%s4013 + $0x68] sm:$0xff]
      %v4028 = vld [vmem:[%s4013 + $0x70] sm:$0xff]
      %v4029 = vld [vmem:[%s4013 + $0x78] sm:$0xff]
      %v4030 = vld [vmem:[%s4013 + $0x80] sm:$0xff]
      %v4031 = vld [vmem:[%s4013 + $0x88] sm:$0xff]
      %v4032 = vld [vmem:[%s4013 + $0x90] sm:$0xff]
      %v4033 = vld [vmem:[%s4013 + $0x98] sm:$0xff]
      %v4034 = vld [vmem:[%s4013 + $0xa0] sm:$0xff]
      %v4035 = vld [vmem:[%s4013 + $0xa8] sm:$0xff]
      %v4036 = vld [vmem:[%s4013 + $0xb0] sm:$0xff]
      %v4037 = vld [vmem:[%s4013 + $0xb8] sm:$0xff]
      %v4038 = vld [vmem:[%s4013 + $0xc0] sm:$0xff]
      %v4039 = vld [vmem:[%s4013 + $0xc8] sm:$0xff]
      %v4040 = vld [vmem:[%s4013 + $0xd0] sm:$0xff]
      %v4041 = vld [vmem:[%s4013 + $0xd8] sm:$0xff]
      %v4042 = vld [vmem:[%s4013 + $0xe0] sm:$0xff]
      %v4043 = vld [vmem:[%s4013 + $0xe8] sm:$0xff]
      %v4044 = vld [vmem:[%s4013 + $0xf0] sm:$0xff]
      %v4045 = vld [vmem:[%s4013 + $0xf8] sm:$0xff]
      %v4046 = vpack.c.bf16 %v3951, %v3949
      %v4047 = vpack.c.bf16 %v3952, %v3950
      %v4048 = vpack.c.bf16 %v3955, %v3953
      %v4049 = vpack.c.bf16 %v3956, %v3954
      %v4050 = vpack.c.bf16 %v3959, %v3957
      %v4051 = vpack.c.bf16 %v3960, %v3958
      %v4052 = vpack.c.bf16 %v3963, %v3961
      %v4053 = vpack.c.bf16 %v3964, %v3962
      %v4054 = vpack.c.bf16 %v3967, %v3965
      %v4055 = vpack.c.bf16 %v3968, %v3966
      %v4056 = vpack.c.bf16 %v3971, %v3969
      %v4057 = vpack.c.bf16 %v3972, %v3970
      %v4058 = vpack.c.bf16 %v3975, %v3973
      %v4059 = vpack.c.bf16 %v3976, %v3974
      %v4060 = vpack.c.bf16 %v3979, %v3977
      %v4061 = vpack.c.bf16 %v3980, %v3978
      %v4062 = vpack.c.bf16 %v3983, %v3981
      %v4063 = vpack.c.bf16 %v3984, %v3982
      %v4064 = vpack.c.bf16 %v3987, %v3985
      %v4065 = vpack.c.bf16 %v3988, %v3986
      %v4066 = vpack.c.bf16 %v3991, %v3989
      %v4067 = vpack.c.bf16 %v3992, %v3990
      %v4068 = vpack.c.bf16 %v3995, %v3993
      %v4069 = vpack.c.bf16 %v3996, %v3994
      %v4070 = vpack.c.bf16 %v3999, %v3997
      %v4071 = vpack.c.bf16 %v4000, %v3998
      %v4072 = vpack.c.bf16 %v4003, %v4001
      %v4073 = vpack.c.bf16 %v4004, %v4002
      %v4074 = vpack.c.bf16 %v4007, %v4005
      %v4075 = vpack.c.bf16 %v4008, %v4006
      %v4076 = vpack.c.bf16 %v4011, %v4009
      %v4077 = vpack.c.bf16 %v4012, %v4010
      %s4078 = scalar_lea.vmem %s4, 512
      %v4079 = vld [vmem:[%s4078] sm:$0xff]
      %v4080 = vld [vmem:[%s4078 + $0x8] sm:$0xff]
      %v4081 = vld [vmem:[%s4078 + $0x10] sm:$0xff]
      %v4082 = vld [vmem:[%s4078 + $0x18] sm:$0xff]
      %v4083 = vld [vmem:[%s4078 + $0x20] sm:$0xff]
      %v4084 = vld [vmem:[%s4078 + $0x28] sm:$0xff]
      %v4085 = vld [vmem:[%s4078 + $0x30] sm:$0xff]
      %v4086 = vld [vmem:[%s4078 + $0x38] sm:$0xff]
      %v4087 = vld [vmem:[%s4078 + $0x40] sm:$0xff]
      %v4088 = vld [vmem:[%s4078 + $0x48] sm:$0xff]
      %v4089 = vld [vmem:[%s4078 + $0x50] sm:$0xff]
      %v4090 = vld [vmem:[%s4078 + $0x58] sm:$0xff]
      %v4091 = vld [vmem:[%s4078 + $0x60] sm:$0xff]
      %v4092 = vld [vmem:[%s4078 + $0x68] sm:$0xff]
      %v4093 = vld [vmem:[%s4078 + $0x70] sm:$0xff]
      %v4094 = vld [vmem:[%s4078 + $0x78] sm:$0xff]
      %v4095 = vld [vmem:[%s4078 + $0x80] sm:$0xff]
      %v4096 = vld [vmem:[%s4078 + $0x88] sm:$0xff]
      %v4097 = vld [vmem:[%s4078 + $0x90] sm:$0xff]
      %v4098 = vld [vmem:[%s4078 + $0x98] sm:$0xff]
      %v4099 = vld [vmem:[%s4078 + $0xa0] sm:$0xff]
      %v4100 = vld [vmem:[%s4078 + $0xa8] sm:$0xff]
      %v4101 = vld [vmem:[%s4078 + $0xb0] sm:$0xff]
      %v4102 = vld [vmem:[%s4078 + $0xb8] sm:$0xff]
      %v4103 = vld [vmem:[%s4078 + $0xc0] sm:$0xff]
      %v4104 = vld [vmem:[%s4078 + $0xc8] sm:$0xff]
      %v4105 = vld [vmem:[%s4078 + $0xd0] sm:$0xff]
      %v4106 = vld [vmem:[%s4078 + $0xd8] sm:$0xff]
      %v4107 = vld [vmem:[%s4078 + $0xe0] sm:$0xff]
      %v4108 = vld [vmem:[%s4078 + $0xe8] sm:$0xff]
      %v4109 = vld [vmem:[%s4078 + $0xf0] sm:$0xff]
      %v4110 = vld [vmem:[%s4078 + $0xf8] sm:$0xff]
      %4112 = vset.pattern.permute.xlu0 0
      %4113 = vperm.xlu0 %4112, %v4079
      %v4114 = vpop.permute.xlu0 %4113
      %4117 = vset.pattern.permute.xlu0 0
      %4118 = vperm.xlu0 %4117, %v4080
      %v4119 = vpop.permute.xlu0 %4118
      %4122 = vset.pattern.permute.xlu0 0
      %4123 = vperm.xlu0 %4122, %v4081
      %v4124 = vpop.permute.xlu0 %4123
      %4127 = vset.pattern.permute.xlu0 0
      %4128 = vperm.xlu0 %4127, %v4082
      %v4129 = vpop.permute.xlu0 %4128
      %4132 = vset.pattern.permute.xlu0 0
      %4133 = vperm.xlu0 %4132, %v4083
      %v4134 = vpop.permute.xlu0 %4133
      %4137 = vset.pattern.permute.xlu0 0
      %4138 = vperm.xlu0 %4137, %v4084
      %v4139 = vpop.permute.xlu0 %4138
      %4142 = vset.pattern.permute.xlu0 0
      %4143 = vperm.xlu0 %4142, %v4085
      %v4144 = vpop.permute.xlu0 %4143
      %4147 = vset.pattern.permute.xlu0 0
      %4148 = vperm.xlu0 %4147, %v4086
      %v4149 = vpop.permute.xlu0 %4148
      %4152 = vset.pattern.permute.xlu0 0
      %4153 = vperm.xlu0 %4152, %v4087
      %v4154 = vpop.permute.xlu0 %4153
      %4157 = vset.pattern.permute.xlu0 0
      %4158 = vperm.xlu0 %4157, %v4088
      %v4159 = vpop.permute.xlu0 %4158
      %4162 = vset.pattern.permute.xlu0 0
      %4163 = vperm.xlu0 %4162, %v4089
      %v4164 = vpop.permute.xlu0 %4163
      %4167 = vset.pattern.permute.xlu0 0
      %4168 = vperm.xlu0 %4167, %v4090
      %v4169 = vpop.permute.xlu0 %4168
      %4172 = vset.pattern.permute.xlu0 0
      %4173 = vperm.xlu0 %4172, %v4091
      %v4174 = vpop.permute.xlu0 %4173
      %4177 = vset.pattern.permute.xlu0 0
      %4178 = vperm.xlu0 %4177, %v4092
      %v4179 = vpop.permute.xlu0 %4178
      %4182 = vset.pattern.permute.xlu0 0
      %4183 = vperm.xlu0 %4182, %v4093
      %v4184 = vpop.permute.xlu0 %4183
      %4187 = vset.pattern.permute.xlu0 0
      %4188 = vperm.xlu0 %4187, %v4094
      %v4189 = vpop.permute.xlu0 %4188
      %4192 = vset.pattern.permute.xlu0 0
      %4193 = vperm.xlu0 %4192, %v4095
      %v4194 = vpop.permute.xlu0 %4193
      %4197 = vset.pattern.permute.xlu0 0
      %4198 = vperm.xlu0 %4197, %v4096
      %v4199 = vpop.permute.xlu0 %4198
      %4202 = vset.pattern.permute.xlu0 0
      %4203 = vperm.xlu0 %4202, %v4097
      %v4204 = vpop.permute.xlu0 %4203
      %4207 = vset.pattern.permute.xlu0 0
      %4208 = vperm.xlu0 %4207, %v4098
      %v4209 = vpop.permute.xlu0 %4208
      %4212 = vset.pattern.permute.xlu0 0
      %4213 = vperm.xlu0 %4212, %v4099
      %v4214 = vpop.permute.xlu0 %4213
      %4217 = vset.pattern.permute.xlu0 0
      %4218 = vperm.xlu0 %4217, %v4100
      %v4219 = vpop.permute.xlu0 %4218
      %4222 = vset.pattern.permute.xlu0 0
      %4223 = vperm.xlu0 %4222, %v4101
      %v4224 = vpop.permute.xlu0 %4223
      %4227 = vset.pattern.permute.xlu0 0
      %4228 = vperm.xlu0 %4227, %v4102
      %v4229 = vpop.permute.xlu0 %4228
      %4232 = vset.pattern.permute.xlu0 0
      %4233 = vperm.xlu0 %4232, %v4103
      %v4234 = vpop.permute.xlu0 %4233
      %4237 = vset.pattern.permute.xlu0 0
      %4238 = vperm.xlu0 %4237, %v4104
      %v4239 = vpop.permute.xlu0 %4238
      %4242 = vset.pattern.permute.xlu0 0
      %4243 = vperm.xlu0 %4242, %v4105
      %v4244 = vpop.permute.xlu0 %4243
      %4247 = vset.pattern.permute.xlu0 0
      %4248 = vperm.xlu0 %4247, %v4106
      %v4249 = vpop.permute.xlu0 %4248
      %4252 = vset.pattern.permute.xlu0 0
      %4253 = vperm.xlu0 %4252, %v4107
      %v4254 = vpop.permute.xlu0 %4253
      %4257 = vset.pattern.permute.xlu0 0
      %4258 = vperm.xlu0 %4257, %v4108
      %v4259 = vpop.permute.xlu0 %4258
      %4262 = vset.pattern.permute.xlu0 0
      %4263 = vperm.xlu0 %4262, %v4109
      %v4264 = vpop.permute.xlu0 %4263
      %4267 = vset.pattern.permute.xlu0 0
      %4268 = vperm.xlu0 %4267, %v4110
      %v4269 = vpop.permute.xlu0 %4268
      %v4303 = vunpack.c.l.b16 %v4014
      %v4304 = vunpack.c.h.b16 %v4014
      %v4305 = vunpack.c.l.b16 %v4015
      %v4306 = vunpack.c.h.b16 %v4015
      %v4307 = vunpack.c.l.b16 %v4016
      %v4308 = vunpack.c.h.b16 %v4016
      %v4309 = vunpack.c.l.b16 %v4017
      %v4310 = vunpack.c.h.b16 %v4017
      %v4311 = vunpack.c.l.b16 %v4018
      %v4312 = vunpack.c.h.b16 %v4018
      %v4313 = vunpack.c.l.b16 %v4019
      %v4314 = vunpack.c.h.b16 %v4019
      %v4315 = vunpack.c.l.b16 %v4020
      %v4316 = vunpack.c.h.b16 %v4020
      %v4317 = vunpack.c.l.b16 %v4021
      %v4318 = vunpack.c.h.b16 %v4021
      %v4319 = vunpack.c.l.b16 %v4022
      %v4320 = vunpack.c.h.b16 %v4022
      %v4321 = vunpack.c.l.b16 %v4023
      %v4322 = vunpack.c.h.b16 %v4023
      %v4323 = vunpack.c.l.b16 %v4024
      %v4324 = vunpack.c.h.b16 %v4024
      %v4325 = vunpack.c.l.b16 %v4025
      %v4326 = vunpack.c.h.b16 %v4025
      %v4327 = vunpack.c.l.b16 %v4026
      %v4328 = vunpack.c.h.b16 %v4026
      %v4329 = vunpack.c.l.b16 %v4027
      %v4330 = vunpack.c.h.b16 %v4027
      %v4331 = vunpack.c.l.b16 %v4028
      %v4332 = vunpack.c.h.b16 %v4028
      %v4333 = vunpack.c.l.b16 %v4029
      %v4334 = vunpack.c.h.b16 %v4029
      %v4335 = vunpack.c.l.b16 %v4030
      %v4336 = vunpack.c.h.b16 %v4030
      %v4337 = vunpack.c.l.b16 %v4031
      %v4338 = vunpack.c.h.b16 %v4031
      %v4339 = vunpack.c.l.b16 %v4032
      %v4340 = vunpack.c.h.b16 %v4032
      %v4341 = vunpack.c.l.b16 %v4033
      %v4342 = vunpack.c.h.b16 %v4033
      %v4343 = vunpack.c.l.b16 %v4034
      %v4344 = vunpack.c.h.b16 %v4034
      %v4345 = vunpack.c.l.b16 %v4035
      %v4346 = vunpack.c.h.b16 %v4035
      %v4347 = vunpack.c.l.b16 %v4036
      %v4348 = vunpack.c.h.b16 %v4036
      %v4349 = vunpack.c.l.b16 %v4037
      %v4350 = vunpack.c.h.b16 %v4037
      %v4351 = vunpack.c.l.b16 %v4038
      %v4352 = vunpack.c.h.b16 %v4038
      %v4353 = vunpack.c.l.b16 %v4039
      %v4354 = vunpack.c.h.b16 %v4039
      %v4355 = vunpack.c.l.b16 %v4040
      %v4356 = vunpack.c.h.b16 %v4040
      %v4357 = vunpack.c.l.b16 %v4041
      %v4358 = vunpack.c.h.b16 %v4041
      %v4359 = vunpack.c.l.b16 %v4042
      %v4360 = vunpack.c.h.b16 %v4042
      %v4361 = vunpack.c.l.b16 %v4043
      %v4362 = vunpack.c.h.b16 %v4043
      %v4363 = vunpack.c.l.b16 %v4044
      %v4364 = vunpack.c.h.b16 %v4044
      %v4365 = vunpack.c.l.b16 %v4045
      %v4366 = vunpack.c.h.b16 %v4045
      %v4367 = vpack.c.b16 %v4305, %v4303
      %v4368 = vpack.c.b16 %v4306, %v4304
      %v4369 = vpack.c.b16 %v4309, %v4307
      %v4370 = vpack.c.b16 %v4310, %v4308
      %v4371 = vpack.c.b16 %v4313, %v4311
      %v4372 = vpack.c.b16 %v4314, %v4312
      %v4373 = vpack.c.b16 %v4317, %v4315
      %v4374 = vpack.c.b16 %v4318, %v4316
      %v4375 = vpack.c.b16 %v4321, %v4319
      %v4376 = vpack.c.b16 %v4322, %v4320
      %v4377 = vpack.c.b16 %v4325, %v4323
      %v4378 = vpack.c.b16 %v4326, %v4324
      %v4379 = vpack.c.b16 %v4329, %v4327
      %v4380 = vpack.c.b16 %v4330, %v4328
      %v4381 = vpack.c.b16 %v4333, %v4331
      %v4382 = vpack.c.b16 %v4334, %v4332
      %v4383 = vpack.c.b16 %v4337, %v4335
      %v4384 = vpack.c.b16 %v4338, %v4336
      %v4385 = vpack.c.b16 %v4341, %v4339
      %v4386 = vpack.c.b16 %v4342, %v4340
      %v4387 = vpack.c.b16 %v4345, %v4343
      %v4388 = vpack.c.b16 %v4346, %v4344
      %v4389 = vpack.c.b16 %v4349, %v4347
      %v4390 = vpack.c.b16 %v4350, %v4348
      %v4391 = vpack.c.b16 %v4353, %v4351
      %v4392 = vpack.c.b16 %v4354, %v4352
      %v4393 = vpack.c.b16 %v4357, %v4355
      %v4394 = vpack.c.b16 %v4358, %v4356
      %v4395 = vpack.c.b16 %v4361, %v4359
      %v4396 = vpack.c.b16 %v4362, %v4360
      %v4397 = vpack.c.b16 %v4365, %v4363
      %v4398 = vpack.c.b16 %v4366, %v4364
      %4431 = vmatprep.subr.bf16.mxu0 %v4047
      %4432 = vmatpush1.bf16.msra.mxu0 %v4046
      %4433 = vmatprep.subr.bf16.mxu0 %v4049
      %4434 = vmatpush1.bf16.msra.mxu0 %v4048
      %4435 = vmatprep.subr.bf16.mxu0 %v4051
      %4436 = vmatpush1.bf16.msra.mxu0 %v4050
      %4437 = vmatprep.subr.bf16.mxu0 %v4053
      %4438 = vmatpush1.bf16.msra.mxu0 %v4052
      %4439 = vmatprep.subr.bf16.mxu0 %v4055
      %4440 = vmatpush1.bf16.msra.mxu0 %v4054
      %4441 = vmatprep.subr.bf16.mxu0 %v4057
      %4442 = vmatpush1.bf16.msra.mxu0 %v4056
      %4443 = vmatprep.subr.bf16.mxu0 %v4059
      %4444 = vmatpush1.bf16.msra.mxu0 %v4058
      %4445 = vmatprep.subr.bf16.mxu0 %v4061
      %4446 = vmatpush1.bf16.msra.mxu0 %v4060
      %4447 = vmatprep.subr.bf16.mxu0 %v4063
      %4448 = vmatpush1.bf16.msra.mxu0 %v4062
      %4449 = vmatprep.subr.bf16.mxu0 %v4065
      %4450 = vmatpush1.bf16.msra.mxu0 %v4064
      %4451 = vmatprep.subr.bf16.mxu0 %v4067
      %4452 = vmatpush1.bf16.msra.mxu0 %v4066
      %4453 = vmatprep.subr.bf16.mxu0 %v4069
      %4454 = vmatpush1.bf16.msra.mxu0 %v4068
      %4455 = vmatprep.subr.bf16.mxu0 %v4071
      %4456 = vmatpush1.bf16.msra.mxu0 %v4070
      %4457 = vmatprep.subr.bf16.mxu0 %v4073
      %4458 = vmatpush1.bf16.msra.mxu0 %v4072
      %4459 = vmatprep.subr.bf16.mxu0 %v4075
      %4460 = vmatpush1.bf16.msra.mxu0 %v4074
      %4461 = vmatprep.subr.bf16.mxu0 %v4077
      %4462 = vmatpush1.bf16.msra.mxu0 %v4076
      %4463 = vmatprep.mubr.bf16.mxu0 %v4368
      %4464 = vmatmul.mubr.bf16.gmra.mrb[0].mxu0 %v4367
      %v4465 = vpop.f32.mrb[0].mxu0
      %v4466 = vadd.f32 %v4114, %v4465
      %v4467 = vpop.f32.mrb[0].mxu0
      %v4468 = vadd.f32 %v4114, %v4467
      %v4469 = vpop.f32.mrb[0].mxu0
      %v4470 = vadd.f32 %v4119, %v4469
      %v4471 = vpop.f32.mrb[0].mxu0
      %v4472 = vadd.f32 %v4119, %v4471
      %4473 = vmatprep.mubr.bf16.mxu0 %v4370
      %4474 = vmatmul.mubr.bf16.gmra.mrb[0].mxu0 %v4369
      %v4475 = vpop.f32.mrb[0].mxu0
      %v4476 = vadd.f32 %v4124, %v4475
      %v4477 = vpop.f32.mrb[0].mxu0
      %v4478 = vadd.f32 %v4124, %v4477
      %v4479 = vpop.f32.mrb[0].mxu0
      %v4480 = vadd.f32 %v4129, %v4479
      %v4481 = vpop.f32.mrb[0].mxu0
      %v4482 = vadd.f32 %v4129, %v4481
      %4483 = vmatprep.mubr.bf16.mxu0 %v4372
      %4484 = vmatmul.mubr.bf16.gmra.mrb[0].mxu0 %v4371
      %v4485 = vpop.f32.mrb[0].mxu0
      %v4486 = vadd.f32 %v4134, %v4485
      %v4487 = vpop.f32.mrb[0].mxu0
      %v4488 = vadd.f32 %v4134, %v4487
      %v4489 = vpop.f32.mrb[0].mxu0
      %v4490 = vadd.f32 %v4139, %v4489
      %v4491 = vpop.f32.mrb[0].mxu0
      %v4492 = vadd.f32 %v4139, %v4491
      %4493 = vmatprep.mubr.bf16.mxu0 %v4374
      %4494 = vmatmul.mubr.bf16.gmra.mrb[0].mxu0 %v4373
      %v4495 = vpop.f32.mrb[0].mxu0
      %v4496 = vadd.f32 %v4144, %v4495
      %v4497 = vpop.f32.mrb[0].mxu0
      %v4498 = vadd.f32 %v4144, %v4497
      %v4499 = vpop.f32.mrb[0].mxu0
      %v4500 = vadd.f32 %v4149, %v4499
      %v4501 = vpop.f32.mrb[0].mxu0
      %v4502 = vadd.f32 %v4149, %v4501
      %4503 = vmatprep.mubr.bf16.mxu0 %v4376
      %4504 = vmatmul.mubr.bf16.gmra.mrb[0].mxu0 %v4375
      %v4505 = vpop.f32.mrb[0].mxu0
      %v4506 = vadd.f32 %v4154, %v4505
      %v4507 = vpop.f32.mrb[0].mxu0
      %v4508 = vadd.f32 %v4154, %v4507
      %v4509 = vpop.f32.mrb[0].mxu0
      %v4510 = vadd.f32 %v4159, %v4509
      %v4511 = vpop.f32.mrb[0].mxu0
      %v4512 = vadd.f32 %v4159, %v4511
      %4513 = vmatprep.mubr.bf16.mxu0 %v4378
      %4514 = vmatmul.mubr.bf16.gmra.mrb[0].mxu0 %v4377
      %v4515 = vpop.f32.mrb[0].mxu0
      %v4516 = vadd.f32 %v4164, %v4515
      %v4517 = vpop.f32.mrb[0].mxu0
      %v4518 = vadd.f32 %v4164, %v4517
      %v4519 = vpop.f32.mrb[0].mxu0
      %v4520 = vadd.f32 %v4169, %v4519
      %v4521 = vpop.f32.mrb[0].mxu0
      %v4522 = vadd.f32 %v4169, %v4521
      %4523 = vmatprep.mubr.bf16.mxu0 %v4380
      %4524 = vmatmul.mubr.bf16.gmra.mrb[0].mxu0 %v4379
      %v4525 = vpop.f32.mrb[0].mxu0
      %v4526 = vadd.f32 %v4174, %v4525
      %v4527 = vpop.f32.mrb[0].mxu0
      %v4528 = vadd.f32 %v4174, %v4527
      %v4529 = vpop.f32.mrb[0].mxu0
      %v4530 = vadd.f32 %v4179, %v4529
      %v4531 = vpop.f32.mrb[0].mxu0
      %v4532 = vadd.f32 %v4179, %v4531
      %4533 = vmatprep.mubr.bf16.mxu0 %v4382
      %4534 = vmatmul.mubr.bf16.gmra.mrb[0].mxu0 %v4381
      %v4535 = vpop.f32.mrb[0].mxu0
      %v4536 = vadd.f32 %v4184, %v4535
      %v4537 = vpop.f32.mrb[0].mxu0
      %v4538 = vadd.f32 %v4184, %v4537
      %v4539 = vpop.f32.mrb[0].mxu0
      %v4540 = vadd.f32 %v4189, %v4539
      %v4541 = vpop.f32.mrb[0].mxu0
      %v4542 = vadd.f32 %v4189, %v4541
      %4543 = vmatprep.mubr.bf16.mxu0 %v4384
      %4544 = vmatmul.mubr.bf16.gmra.mrb[0].mxu0 %v4383
      %v4545 = vpop.f32.mrb[0].mxu0
      %v4546 = vadd.f32 %v4194, %v4545
      %v4547 = vpop.f32.mrb[0].mxu0
      %v4548 = vadd.f32 %v4194, %v4547
      %v4549 = vpop.f32.mrb[0].mxu0
      %v4550 = vadd.f32 %v4199, %v4549
      %v4551 = vpop.f32.mrb[0].mxu0
      %v4552 = vadd.f32 %v4199, %v4551
      %4553 = vmatprep.mubr.bf16.mxu0 %v4386
      %4554 = vmatmul.mubr.bf16.gmra.mrb[0].mxu0 %v4385
      %v4555 = vpop.f32.mrb[0].mxu0
      %v4556 = vadd.f32 %v4204, %v4555
      %v4557 = vpop.f32.mrb[0].mxu0
      %v4558 = vadd.f32 %v4204, %v4557
      %v4559 = vpop.f32.mrb[0].mxu0
      %v4560 = vadd.f32 %v4209, %v4559
      %v4561 = vpop.f32.mrb[0].mxu0
      %v4562 = vadd.f32 %v4209, %v4561
      %4563 = vmatprep.mubr.bf16.mxu0 %v4388
      %4564 = vmatmul.mubr.bf16.gmra.mrb[0].mxu0 %v4387
      %v4565 = vpop.f32.mrb[0].mxu0
      %v4566 = vadd.f32 %v4214, %v4565
      %v4567 = vpop.f32.mrb[0].mxu0
      %v4568 = vadd.f32 %v4214, %v4567
      %v4569 = vpop.f32.mrb[0].mxu0
      %v4570 = vadd.f32 %v4219, %v4569
      %v4571 = vpop.f32.mrb[0].mxu0
      %v4572 = vadd.f32 %v4219, %v4571
      %4573 = vmatprep.mubr.bf16.mxu0 %v4390
      %4574 = vmatmul.mubr.bf16.gmra.mrb[0].mxu0 %v4389
      %v4575 = vpop.f32.mrb[0].mxu0
      %v4576 = vadd.f32 %v4224, %v4575
      %v4577 = vpop.f32.mrb[0].mxu0
      %v4578 = vadd.f32 %v4224, %v4577
      %v4579 = vpop.f32.mrb[0].mxu0
      %v4580 = vadd.f32 %v4229, %v4579
      %v4581 = vpop.f32.mrb[0].mxu0
      %v4582 = vadd.f32 %v4229, %v4581
      %4583 = vmatprep.mubr.bf16.mxu0 %v4392
      %4584 = vmatmul.mubr.bf16.gmra.mrb[0].mxu0 %v4391
      %v4585 = vpop.f32.mrb[0].mxu0
      %v4586 = vadd.f32 %v4234, %v4585
      %v4587 = vpop.f32.mrb[0].mxu0
      %v4588 = vadd.f32 %v4234, %v4587
      %v4589 = vpop.f32.mrb[0].mxu0
      %v4590 = vadd.f32 %v4239, %v4589
      %v4591 = vpop.f32.mrb[0].mxu0
      %v4592 = vadd.f32 %v4239, %v4591
      %4593 = vmatprep.mubr.bf16.mxu0 %v4394
      %4594 = vmatmul.mubr.bf16.gmra.mrb[0].mxu0 %v4393
      %v4595 = vpop.f32.mrb[0].mxu0
      %v4596 = vadd.f32 %v4244, %v4595
      %v4597 = vpop.f32.mrb[0].mxu0
      %v4598 = vadd.f32 %v4244, %v4597
      %v4599 = vpop.f32.mrb[0].mxu0
      %v4600 = vadd.f32 %v4249, %v4599
      %v4601 = vpop.f32.mrb[0].mxu0
      %v4602 = vadd.f32 %v4249, %v4601
      %4603 = vmatprep.mubr.bf16.mxu0 %v4396
      %4604 = vmatmul.mubr.bf16.gmra.mrb[0].mxu0 %v4395
      %v4605 = vpop.f32.mrb[0].mxu0
      %v4606 = vadd.f32 %v4254, %v4605
      %v4607 = vpop.f32.mrb[0].mxu0
      %v4608 = vadd.f32 %v4254, %v4607
      %v4609 = vpop.f32.mrb[0].mxu0
      %v4610 = vadd.f32 %v4259, %v4609
      %v4611 = vpop.f32.mrb[0].mxu0
      %v4612 = vadd.f32 %v4259, %v4611
      %4613 = vmatprep.mubr.bf16.mxu0 %v4398
      %4614 = vmatmul.mubr.bf16.gmra.mrb[0].mxu0 %v4397
      %v4615 = vpop.f32.mrb[0].mxu0
      %v4616 = vadd.f32 %v4264, %v4615
      %v4617 = vpop.f32.mrb[0].mxu0
      %v4618 = vadd.f32 %v4264, %v4617
      %v4619 = vpop.f32.mrb[0].mxu0
      %v4620 = vadd.f32 %v4269, %v4619
      %v4621 = vpop.f32.mrb[0].mxu0
      %v4622 = vadd.f32 %v4269, %v4621
      %4623 = vdwg.mxu0
      %v4624 = vmul.f32 %v4466, 0.01
      %v4625 = vmul.f32 %v4468, 0.01
      %v4626 = vmul.f32 %v4470, 0.01
      %v4627 = vmul.f32 %v4472, 0.01
      %v4628 = vmul.f32 %v4476, 0.01
      %v4629 = vmul.f32 %v4478, 0.01
      %v4630 = vmul.f32 %v4480, 0.01
      %v4631 = vmul.f32 %v4482, 0.01
      %v4632 = vmul.f32 %v4486, 0.01
      %v4633 = vmul.f32 %v4488, 0.01
      %v4634 = vmul.f32 %v4490, 0.01
      %v4635 = vmul.f32 %v4492, 0.01
      %v4636 = vmul.f32 %v4496, 0.01
      %v4637 = vmul.f32 %v4498, 0.01
      %v4638 = vmul.f32 %v4500, 0.01
      %v4639 = vmul.f32 %v4502, 0.01
      %v4640 = vmul.f32 %v4506, 0.01
      %v4641 = vmul.f32 %v4508, 0.01
      %v4642 = vmul.f32 %v4510, 0.01
      %v4643 = vmul.f32 %v4512, 0.01
      %v4644 = vmul.f32 %v4516, 0.01
      %v4645 = vmul.f32 %v4518, 0.01
      %v4646 = vmul.f32 %v4520, 0.01
      %v4647 = vmul.f32 %v4522, 0.01
      %v4648 = vmul.f32 %v4526, 0.01
      %v4649 = vmul.f32 %v4528, 0.01
      %v4650 = vmul.f32 %v4530, 0.01
      %v4651 = vmul.f32 %v4532, 0.01
      %v4652 = vmul.f32 %v4536, 0.01
      %v4653 = vmul.f32 %v4538, 0.01
      %v4654 = vmul.f32 %v4540, 0.01
      %v4655 = vmul.f32 %v4542, 0.01
      %v4656 = vmul.f32 %v4546, 0.01
      %v4657 = vmul.f32 %v4548, 0.01
      %v4658 = vmul.f32 %v4550, 0.01
      %v4659 = vmul.f32 %v4552, 0.01
      %v4660 = vmul.f32 %v4556, 0.01
      %v4661 = vmul.f32 %v4558, 0.01
      %v4662 = vmul.f32 %v4560, 0.01
      %v4663 = vmul.f32 %v4562, 0.01
      %v4664 = vmul.f32 %v4566, 0.01
      %v4665 = vmul.f32 %v4568, 0.01
      %v4666 = vmul.f32 %v4570, 0.01
      %v4667 = vmul.f32 %v4572, 0.01
      %v4668 = vmul.f32 %v4576, 0.01
      %v4669 = vmul.f32 %v4578, 0.01
      %v4670 = vmul.f32 %v4580, 0.01
      %v4671 = vmul.f32 %v4582, 0.01
      %v4672 = vmul.f32 %v4586, 0.01
      %v4673 = vmul.f32 %v4588, 0.01
      %v4674 = vmul.f32 %v4590, 0.01
      %v4675 = vmul.f32 %v4592, 0.01
      %v4676 = vmul.f32 %v4596, 0.01
      %v4677 = vmul.f32 %v4598, 0.01
      %v4678 = vmul.f32 %v4600, 0.01
      %v4679 = vmul.f32 %v4602, 0.01
      %v4680 = vmul.f32 %v4606, 0.01
      %v4681 = vmul.f32 %v4608, 0.01
      %v4682 = vmul.f32 %v4610, 0.01
      %v4683 = vmul.f32 %v4612, 0.01
      %v4684 = vmul.f32 %v4616, 0.01
      %v4685 = vmul.f32 %v4618, 0.01
      %v4686 = vmul.f32 %v4620, 0.01
      %v4687 = vmul.f32 %v4622, 0.01
      %v4688 = vmax.f32 %v4466, %v4624
      %v4689 = vmax.f32 %v4468, %v4625
      %v4690 = vmax.f32 %v4470, %v4626
      %v4691 = vmax.f32 %v4472, %v4627
      %v4692 = vmax.f32 %v4476, %v4628
      %v4693 = vmax.f32 %v4478, %v4629
      %v4694 = vmax.f32 %v4480, %v4630
      %v4695 = vmax.f32 %v4482, %v4631
      %v4696 = vmax.f32 %v4486, %v4632
      %v4697 = vmax.f32 %v4488, %v4633
      %v4698 = vmax.f32 %v4490, %v4634
      %v4699 = vmax.f32 %v4492, %v4635
      %v4700 = vmax.f32 %v4496, %v4636
      %v4701 = vmax.f32 %v4498, %v4637
      %v4702 = vmax.f32 %v4500, %v4638
      %v4703 = vmax.f32 %v4502, %v4639
      %v4704 = vmax.f32 %v4506, %v4640
      %v4705 = vmax.f32 %v4508, %v4641
      %v4706 = vmax.f32 %v4510, %v4642
      %v4707 = vmax.f32 %v4512, %v4643
      %v4708 = vmax.f32 %v4516, %v4644
      %v4709 = vmax.f32 %v4518, %v4645
      %v4710 = vmax.f32 %v4520, %v4646
      %v4711 = vmax.f32 %v4522, %v4647
      %v4712 = vmax.f32 %v4526, %v4648
      %v4713 = vmax.f32 %v4528, %v4649
      %v4714 = vmax.f32 %v4530, %v4650
      %v4715 = vmax.f32 %v4532, %v4651
      %v4716 = vmax.f32 %v4536, %v4652
      %v4717 = vmax.f32 %v4538, %v4653
      %v4718 = vmax.f32 %v4540, %v4654
      %v4719 = vmax.f32 %v4542, %v4655
      %v4720 = vmax.f32 %v4546, %v4656
      %v4721 = vmax.f32 %v4548, %v4657
      %v4722 = vmax.f32 %v4550, %v4658
      %v4723 = vmax.f32 %v4552, %v4659
      %v4724 = vmax.f32 %v4556, %v4660
      %v4725 = vmax.f32 %v4558, %v4661
      %v4726 = vmax.f32 %v4560, %v4662
      %v4727 = vmax.f32 %v4562, %v4663
      %v4728 = vmax.f32 %v4566, %v4664
      %v4729 = vmax.f32 %v4568, %v4665
      %v4730 = vmax.f32 %v4570, %v4666
      %v4731 = vmax.f32 %v4572, %v4667
      %v4732 = vmax.f32 %v4576, %v4668
      %v4733 = vmax.f32 %v4578, %v4669
      %v4734 = vmax.f32 %v4580, %v4670
      %v4735 = vmax.f32 %v4582, %v4671
      %v4736 = vmax.f32 %v4586, %v4672
      %v4737 = vmax.f32 %v4588, %v4673
      %v4738 = vmax.f32 %v4590, %v4674
      %v4739 = vmax.f32 %v4592, %v4675
      %v4740 = vmax.f32 %v4596, %v4676
      %v4741 = vmax.f32 %v4598, %v4677
      %v4742 = vmax.f32 %v4600, %v4678
      %v4743 = vmax.f32 %v4602, %v4679
      %v4744 = vmax.f32 %v4606, %v4680
      %v4745 = vmax.f32 %v4608, %v4681
      %v4746 = vmax.f32 %v4610, %v4682
      %v4747 = vmax.f32 %v4612, %v4683
      %v4748 = vmax.f32 %v4616, %v4684
      %v4749 = vmax.f32 %v4618, %v4685
      %v4750 = vmax.f32 %v4620, %v4686
      %v4751 = vmax.f32 %v4622, %v4687
      %s4752 = scalar_lea.vmem %s5, 512
      %v4753 = vld [vmem:[%s4752] sm:$0xff]
      %v4754 = vld [vmem:[%s4752 + $0x8] sm:$0xff]
      %v4755 = vld [vmem:[%s4752 + $0x10] sm:$0xff]
      %v4756 = vld [vmem:[%s4752 + $0x18] sm:$0xff]
      %v4757 = vld [vmem:[%s4752 + $0x20] sm:$0xff]
      %v4758 = vld [vmem:[%s4752 + $0x28] sm:$0xff]
      %v4759 = vld [vmem:[%s4752 + $0x30] sm:$0xff]
      %v4760 = vld [vmem:[%s4752 + $0x38] sm:$0xff]
      %v4761 = vld [vmem:[%s4752 + $0x40] sm:$0xff]
      %v4762 = vld [vmem:[%s4752 + $0x48] sm:$0xff]
      %v4763 = vld [vmem:[%s4752 + $0x50] sm:$0xff]
      %v4764 = vld [vmem:[%s4752 + $0x58] sm:$0xff]
      %v4765 = vld [vmem:[%s4752 + $0x60] sm:$0xff]
      %v4766 = vld [vmem:[%s4752 + $0x68] sm:$0xff]
      %v4767 = vld [vmem:[%s4752 + $0x70] sm:$0xff]
      %v4768 = vld [vmem:[%s4752 + $0x78] sm:$0xff]
      %v4769 = vld [vmem:[%s4752 + $0x80] sm:$0xff]
      %v4770 = vld [vmem:[%s4752 + $0x88] sm:$0xff]
      %v4771 = vld [vmem:[%s4752 + $0x90] sm:$0xff]
      %v4772 = vld [vmem:[%s4752 + $0x98] sm:$0xff]
      %v4773 = vld [vmem:[%s4752 + $0xa0] sm:$0xff]
      %v4774 = vld [vmem:[%s4752 + $0xa8] sm:$0xff]
      %v4775 = vld [vmem:[%s4752 + $0xb0] sm:$0xff]
      %v4776 = vld [vmem:[%s4752 + $0xb8] sm:$0xff]
      %v4777 = vld [vmem:[%s4752 + $0xc0] sm:$0xff]
      %v4778 = vld [vmem:[%s4752 + $0xc8] sm:$0xff]
      %v4779 = vld [vmem:[%s4752 + $0xd0] sm:$0xff]
      %v4780 = vld [vmem:[%s4752 + $0xd8] sm:$0xff]
      %v4781 = vld [vmem:[%s4752 + $0xe0] sm:$0xff]
      %v4782 = vld [vmem:[%s4752 + $0xe8] sm:$0xff]
      %v4783 = vld [vmem:[%s4752 + $0xf0] sm:$0xff]
      %v4784 = vld [vmem:[%s4752 + $0xf8] sm:$0xff]
      %v4785 = vpack.c.bf16 %v4690, %v4688
      %v4786 = vpack.c.bf16 %v4691, %v4689
      %v4787 = vpack.c.bf16 %v4694, %v4692
      %v4788 = vpack.c.bf16 %v4695, %v4693
      %v4789 = vpack.c.bf16 %v4698, %v4696
      %v4790 = vpack.c.bf16 %v4699, %v4697
      %v4791 = vpack.c.bf16 %v4702, %v4700
      %v4792 = vpack.c.bf16 %v4703, %v4701
      %v4793 = vpack.c.bf16 %v4706, %v4704
      %v4794 = vpack.c.bf16 %v4707, %v4705
      %v4795 = vpack.c.bf16 %v4710, %v4708
      %v4796 = vpack.c.bf16 %v4711, %v4709
      %v4797 = vpack.c.bf16 %v4714, %v4712
      %v4798 = vpack.c.bf16 %v4715, %v4713
      %v4799 = vpack.c.bf16 %v4718, %v4716
      %v4800 = vpack.c.bf16 %v4719, %v4717
      %v4801 = vpack.c.bf16 %v4722, %v4720
      %v4802 = vpack.c.bf16 %v4723, %v4721
      %v4803 = vpack.c.bf16 %v4726, %v4724
      %v4804 = vpack.c.bf16 %v4727, %v4725
      %v4805 = vpack.c.bf16 %v4730, %v4728
      %v4806 = vpack.c.bf16 %v4731, %v4729
      %v4807 = vpack.c.bf16 %v4734, %v4732
      %v4808 = vpack.c.bf16 %v4735, %v4733
      %v4809 = vpack.c.bf16 %v4738, %v4736
      %v4810 = vpack.c.bf16 %v4739, %v4737
      %v4811 = vpack.c.bf16 %v4742, %v4740
      %v4812 = vpack.c.bf16 %v4743, %v4741
      %v4813 = vpack.c.bf16 %v4746, %v4744
      %v4814 = vpack.c.bf16 %v4747, %v4745
      %v4815 = vpack.c.bf16 %v4750, %v4748
      %v4816 = vpack.c.bf16 %v4751, %v4749
      %s4817 = scalar_lea.vmem %s6, 512
      %v4818 = vld [vmem:[%s4817] sm:$0xff]
      %v4819 = vld [vmem:[%s4817 + $0x8] sm:$0xff]
      %v4820 = vld [vmem:[%s4817 + $0x10] sm:$0xff]
      %v4821 = vld [vmem:[%s4817 + $0x18] sm:$0xff]
      %v4822 = vld [vmem:[%s4817 + $0x20] sm:$0xff]
      %v4823 = vld [vmem:[%s4817 + $0x28] sm:$0xff]
      %v4824 = vld [vmem:[%s4817 + $0x30] sm:$0xff]
      %v4825 = vld [vmem:[%s4817 + $0x38] sm:$0xff]
      %v4826 = vld [vmem:[%s4817 + $0x40] sm:$0xff]
      %v4827 = vld [vmem:[%s4817 + $0x48] sm:$0xff]
      %v4828 = vld [vmem:[%s4817 + $0x50] sm:$0xff]
      %v4829 = vld [vmem:[%s4817 + $0x58] sm:$0xff]
      %v4830 = vld [vmem:[%s4817 + $0x60] sm:$0xff]
      %v4831 = vld [vmem:[%s4817 + $0x68] sm:$0xff]
      %v4832 = vld [vmem:[%s4817 + $0x70] sm:$0xff]
      %v4833 = vld [vmem:[%s4817 + $0x78] sm:$0xff]
      %v4834 = vld [vmem:[%s4817 + $0x80] sm:$0xff]
      %v4835 = vld [vmem:[%s4817 + $0x88] sm:$0xff]
      %v4836 = vld [vmem:[%s4817 + $0x90] sm:$0xff]
      %v4837 = vld [vmem:[%s4817 + $0x98] sm:$0xff]
      %v4838 = vld [vmem:[%s4817 + $0xa0] sm:$0xff]
      %v4839 = vld [vmem:[%s4817 + $0xa8] sm:$0xff]
      %v4840 = vld [vmem:[%s4817 + $0xb0] sm:$0xff]
      %v4841 = vld [vmem:[%s4817 + $0xb8] sm:$0xff]
      %v4842 = vld [vmem:[%s4817 + $0xc0] sm:$0xff]
      %v4843 = vld [vmem:[%s4817 + $0xc8] sm:$0xff]
      %v4844 = vld [vmem:[%s4817 + $0xd0] sm:$0xff]
      %v4845 = vld [vmem:[%s4817 + $0xd8] sm:$0xff]
      %v4846 = vld [vmem:[%s4817 + $0xe0] sm:$0xff]
      %v4847 = vld [vmem:[%s4817 + $0xe8] sm:$0xff]
      %v4848 = vld [vmem:[%s4817 + $0xf0] sm:$0xff]
      %v4849 = vld [vmem:[%s4817 + $0xf8] sm:$0xff]
      %4851 = vset.pattern.permute.xlu0 0
      %4852 = vperm.xlu0 %4851, %v4818
      %v4853 = vpop.permute.xlu0 %4852
      %4856 = vset.pattern.permute.xlu0 0
      %4857 = vperm.xlu0 %4856, %v4819
      %v4858 = vpop.permute.xlu0 %4857
      %4861 = vset.pattern.permute.xlu0 0
      %4862 = vperm.xlu0 %4861, %v4820
      %v4863 = vpop.permute.xlu0 %4862
      %4866 = vset.pattern.permute.xlu0 0
      %4867 = vperm.xlu0 %4866, %v4821
      %v4868 = vpop.permute.xlu0 %4867
      %4871 = vset.pattern.permute.xlu0 0
      %4872 = vperm.xlu0 %4871, %v4822
      %v4873 = vpop.permute.xlu0 %4872
      %4876 = vset.pattern.permute.xlu0 0
      %4877 = vperm.xlu0 %4876, %v4823
      %v4878 = vpop.permute.xlu0 %4877
      %4881 = vset.pattern.permute.xlu0 0
      %4882 = vperm.xlu0 %4881, %v4824
      %v4883 = vpop.permute.xlu0 %4882
      %4886 = vset.pattern.permute.xlu0 0
      %4887 = vperm.xlu0 %4886, %v4825
      %v4888 = vpop.permute.xlu0 %4887
      %4891 = vset.pattern.permute.xlu0 0
      %4892 = vperm.xlu0 %4891, %v4826
      %v4893 = vpop.permute.xlu0 %4892
      %4896 = vset.pattern.permute.xlu0 0
      %4897 = vperm.xlu0 %4896, %v4827
      %v4898 = vpop.permute.xlu0 %4897
      %4901 = vset.pattern.permute.xlu0 0
      %4902 = vperm.xlu0 %4901, %v4828
      %v4903 = vpop.permute.xlu0 %4902
      %4906 = vset.pattern.permute.xlu0 0
      %4907 = vperm.xlu0 %4906, %v4829
      %v4908 = vpop.permute.xlu0 %4907
      %4911 = vset.pattern.permute.xlu0 0
      %4912 = vperm.xlu0 %4911, %v4830
      %v4913 = vpop.permute.xlu0 %4912
      %4916 = vset.pattern.permute.xlu0 0
      %4917 = vperm.xlu0 %4916, %v4831
      %v4918 = vpop.permute.xlu0 %4917
      %4921 = vset.pattern.permute.xlu0 0
      %4922 = vperm.xlu0 %4921, %v4832
      %v4923 = vpop.permute.xlu0 %4922
      %4926 = vset.pattern.permute.xlu0 0
      %4927 = vperm.xlu0 %4926, %v4833
      %v4928 = vpop.permute.xlu0 %4927
      %4931 = vset.pattern.permute.xlu0 0
      %4932 = vperm.xlu0 %4931, %v4834
      %v4933 = vpop.permute.xlu0 %4932
      %4936 = vset.pattern.permute.xlu0 0
      %4937 = vperm.xlu0 %4936, %v4835
      %v4938 = vpop.permute.xlu0 %4937
      %4941 = vset.pattern.permute.xlu0 0
      %4942 = vperm.xlu0 %4941, %v4836
      %v4943 = vpop.permute.xlu0 %4942
      %4946 = vset.pattern.permute.xlu0 0
      %4947 = vperm.xlu0 %4946, %v4837
      %v4948 = vpop.permute.xlu0 %4947
      %4951 = vset.pattern.permute.xlu0 0
      %4952 = vperm.xlu0 %4951, %v4838
      %v4953 = vpop.permute.xlu0 %4952
      %4956 = vset.pattern.permute.xlu0 0
      %4957 = vperm.xlu0 %4956, %v4839
      %v4958 = vpop.permute.xlu0 %4957
      %4961 = vset.pattern.permute.xlu0 0
      %4962 = vperm.xlu0 %4961, %v4840
      %v4963 = vpop.permute.xlu0 %4962
      %4966 = vset.pattern.permute.xlu0 0
      %4967 = vperm.xlu0 %4966, %v4841
      %v4968 = vpop.permute.xlu0 %4967
      %4971 = vset.pattern.permute.xlu0 0
      %4972 = vperm.xlu0 %4971, %v4842
      %v4973 = vpop.permute.xlu0 %4972
      %4976 = vset.pattern.permute.xlu0 0
      %4977 = vperm.xlu0 %4976, %v4843
      %v4978 = vpop.permute.xlu0 %4977
      %4981 = vset.pattern.permute.xlu0 0
      %4982 = vperm.xlu0 %4981, %v4844
      %v4983 = vpop.permute.xlu0 %4982
      %4986 = vset.pattern.permute.xlu0 0
      %4987 = vperm.xlu0 %4986, %v4845
      %v4988 = vpop.permute.xlu0 %4987
      %4991 = vset.pattern.permute.xlu0 0
      %4992 = vperm.xlu0 %4991, %v4846
      %v4993 = vpop.permute.xlu0 %4992
      %4996 = vset.pattern.permute.xlu0 0
      %4997 = vperm.xlu0 %4996, %v4847
      %v4998 = vpop.permute.xlu0 %4997
      %5001 = vset.pattern.permute.xlu0 0
      %5002 = vperm.xlu0 %5001, %v4848
      %v5003 = vpop.permute.xlu0 %5002
      %5006 = vset.pattern.permute.xlu0 0
      %5007 = vperm.xlu0 %5006, %v4849
      %v5008 = vpop.permute.xlu0 %5007
      %v5042 = vunpack.c.l.b16 %v4753
      %v5043 = vunpack.c.h.b16 %v4753
      %v5044 = vunpack.c.l.b16 %v4754
      %v5045 = vunpack.c.h.b16 %v4754
      %v5046 = vunpack.c.l.b16 %v4755
      %v5047 = vunpack.c.h.b16 %v4755
      %v5048 = vunpack.c.l.b16 %v4756
      %v5049 = vunpack.c.h.b16 %v4756
      %v5050 = vunpack.c.l.b16 %v4757
      %v5051 = vunpack.c.h.b16 %v4757
      %v5052 = vunpack.c.l.b16 %v4758
      %v5053 = vunpack.c.h.b16 %v4758
      %v5054 = vunpack.c.l.b16 %v4759
      %v5055 = vunpack.c.h.b16 %v4759
      %v5056 = vunpack.c.l.b16 %v4760
      %v5057 = vunpack.c.h.b16 %v4760
      %v5058 = vunpack.c.l.b16 %v4761
      %v5059 = vunpack.c.h.b16 %v4761
      %v5060 = vunpack.c.l.b16 %v4762
      %v5061 = vunpack.c.h.b16 %v4762
      %v5062 = vunpack.c.l.b16 %v4763
      %v5063 = vunpack.c.h.b16 %v4763
      %v5064 = vunpack.c.l.b16 %v4764
      %v5065 = vunpack.c.h.b16 %v4764
      %v5066 = vunpack.c.l.b16 %v4765
      %v5067 = vunpack.c.h.b16 %v4765
      %v5068 = vunpack.c.l.b16 %v4766
      %v5069 = vunpack.c.h.b16 %v4766
      %v5070 = vunpack.c.l.b16 %v4767
      %v5071 = vunpack.c.h.b16 %v4767
      %v5072 = vunpack.c.l.b16 %v4768
      %v5073 = vunpack.c.h.b16 %v4768
      %v5074 = vunpack.c.l.b16 %v4769
      %v5075 = vunpack.c.h.b16 %v4769
      %v5076 = vunpack.c.l.b16 %v4770
      %v5077 = vunpack.c.h.b16 %v4770
      %v5078 = vunpack.c.l.b16 %v4771
      %v5079 = vunpack.c.h.b16 %v4771
      %v5080 = vunpack.c.l.b16 %v4772
      %v5081 = vunpack.c.h.b16 %v4772
      %v5082 = vunpack.c.l.b16 %v4773
      %v5083 = vunpack.c.h.b16 %v4773
      %v5084 = vunpack.c.l.b16 %v4774
      %v5085 = vunpack.c.h.b16 %v4774
      %v5086 = vunpack.c.l.b16 %v4775
      %v5087 = vunpack.c.h.b16 %v4775
      %v5088 = vunpack.c.l.b16 %v4776
      %v5089 = vunpack.c.h.b16 %v4776
      %v5090 = vunpack.c.l.b16 %v4777
      %v5091 = vunpack.c.h.b16 %v4777
      %v5092 = vunpack.c.l.b16 %v4778
      %v5093 = vunpack.c.h.b16 %v4778
      %v5094 = vunpack.c.l.b16 %v4779
      %v5095 = vunpack.c.h.b16 %v4779
      %v5096 = vunpack.c.l.b16 %v4780
      %v5097 = vunpack.c.h.b16 %v4780
      %v5098 = vunpack.c.l.b16 %v4781
      %v5099 = vunpack.c.h.b16 %v4781
      %v5100 = vunpack.c.l.b16 %v4782
      %v5101 = vunpack.c.h.b16 %v4782
      %v5102 = vunpack.c.l.b16 %v4783
      %v5103 = vunpack.c.h.b16 %v4783
      %v5104 = vunpack.c.l.b16 %v4784
      %v5105 = vunpack.c.h.b16 %v4784
      %v5106 = vpack.c.b16 %v5044, %v5042
      %v5107 = vpack.c.b16 %v5045, %v5043
      %v5108 = vpack.c.b16 %v5048, %v5046
      %v5109 = vpack.c.b16 %v5049, %v5047
      %v5110 = vpack.c.b16 %v5052, %v5050
      %v5111 = vpack.c.b16 %v5053, %v5051
      %v5112 = vpack.c.b16 %v5056, %v5054
      %v5113 = vpack.c.b16 %v5057, %v5055
      %v5114 = vpack.c.b16 %v5060, %v5058
      %v5115 = vpack.c.b16 %v5061, %v5059
      %v5116 = vpack.c.b16 %v5064, %v5062
      %v5117 = vpack.c.b16 %v5065, %v5063
      %v5118 = vpack.c.b16 %v5068, %v5066
      %v5119 = vpack.c.b16 %v5069, %v5067
      %v5120 = vpack.c.b16 %v5072, %v5070
      %v5121 = vpack.c.b16 %v5073, %v5071
      %v5122 = vpack.c.b16 %v5076, %v5074
      %v5123 = vpack.c.b16 %v5077, %v5075
      %v5124 = vpack.c.b16 %v5080, %v5078
      %v5125 = vpack.c.b16 %v5081, %v5079
      %v5126 = vpack.c.b16 %v5084, %v5082
      %v5127 = vpack.c.b16 %v5085, %v5083
      %v5128 = vpack.c.b16 %v5088, %v5086
      %v5129 = vpack.c.b16 %v5089, %v5087
      %v5130 = vpack.c.b16 %v5092, %v5090
      %v5131 = vpack.c.b16 %v5093, %v5091
      %v5132 = vpack.c.b16 %v5096, %v5094
      %v5133 = vpack.c.b16 %v5097, %v5095
      %v5134 = vpack.c.b16 %v5100, %v5098
      %v5135 = vpack.c.b16 %v5101, %v5099
      %v5136 = vpack.c.b16 %v5104, %v5102
      %v5137 = vpack.c.b16 %v5105, %v5103
      %5170 = vmatprep.subr.bf16.mxu0 %v4786
      %5171 = vmatpush1.bf16.msra.mxu0 %v4785
      %5172 = vmatprep.subr.bf16.mxu0 %v4788
      %5173 = vmatpush1.bf16.msra.mxu0 %v4787
      %5174 = vmatprep.subr.bf16.mxu0 %v4790
      %5175 = vmatpush1.bf16.msra.mxu0 %v4789
      %5176 = vmatprep.subr.bf16.mxu0 %v4792
      %5177 = vmatpush1.bf16.msra.mxu0 %v4791
      %5178 = vmatprep.subr.bf16.mxu0 %v4794
      %5179 = vmatpush1.bf16.msra.mxu0 %v4793
      %5180 = vmatprep.subr.bf16.mxu0 %v4796
      %5181 = vmatpush1.bf16.msra.mxu0 %v4795
      %5182 = vmatprep.subr.bf16.mxu0 %v4798
      %5183 = vmatpush1.bf16.msra.mxu0 %v4797
      %5184 = vmatprep.subr.bf16.mxu0 %v4800
      %5185 = vmatpush1.bf16.msra.mxu0 %v4799
      %5186 = vmatprep.subr.bf16.mxu0 %v4802
      %5187 = vmatpush1.bf16.msra.mxu0 %v4801
      %5188 = vmatprep.subr.bf16.mxu0 %v4804
      %5189 = vmatpush1.bf16.msra.mxu0 %v4803
      %5190 = vmatprep.subr.bf16.mxu0 %v4806
      %5191 = vmatpush1.bf16.msra.mxu0 %v4805
      %5192 = vmatprep.subr.bf16.mxu0 %v4808
      %5193 = vmatpush1.bf16.msra.mxu0 %v4807
      %5194 = vmatprep.subr.bf16.mxu0 %v4810
      %5195 = vmatpush1.bf16.msra.mxu0 %v4809
      %5196 = vmatprep.subr.bf16.mxu0 %v4812
      %5197 = vmatpush1.bf16.msra.mxu0 %v4811
      %5198 = vmatprep.subr.bf16.mxu0 %v4814
      %5199 = vmatpush1.bf16.msra.mxu0 %v4813
      %5200 = vmatprep.subr.bf16.mxu0 %v4816
      %5201 = vmatpush1.bf16.msra.mxu0 %v4815
      %5202 = vmatprep.mubr.bf16.mxu0 %v5107
      %5203 = vmatmul.mubr.bf16.gmra.mrb[0].mxu0 %v5106
      %v5204 = vpop.f32.mrb[0].mxu0
      %v5205 = vadd.f32 %v4853, %v5204
      %v5206 = vpop.f32.mrb[0].mxu0
      %v5207 = vadd.f32 %v4853, %v5206
      %v5208 = vpop.f32.mrb[0].mxu0
      %v5209 = vadd.f32 %v4858, %v5208
      %v5210 = vpop.f32.mrb[0].mxu0
      %v5211 = vadd.f32 %v4858, %v5210
      %5212 = vmatprep.mubr.bf16.mxu0 %v5109
      %5213 = vmatmul.mubr.bf16.gmra.mrb[0].mxu0 %v5108
      %v5214 = vpop.f32.mrb[0].mxu0
      %v5215 = vadd.f32 %v4863, %v5214
      %v5216 = vpop.f32.mrb[0].mxu0
      %v5217 = vadd.f32 %v4863, %v5216
      %v5218 = vpop.f32.mrb[0].mxu0
      %v5219 = vadd.f32 %v4868, %v5218
      %v5220 = vpop.f32.mrb[0].mxu0
      %v5221 = vadd.f32 %v4868, %v5220
      %5222 = vmatprep.mubr.bf16.mxu0 %v5111
      %5223 = vmatmul.mubr.bf16.gmra.mrb[0].mxu0 %v5110
      %v5224 = vpop.f32.mrb[0].mxu0
      %v5225 = vadd.f32 %v4873, %v5224
      %v5226 = vpop.f32.mrb[0].mxu0
      %v5227 = vadd.f32 %v4873, %v5226
      %v5228 = vpop.f32.mrb[0].mxu0
      %v5229 = vadd.f32 %v4878, %v5228
      %v5230 = vpop.f32.mrb[0].mxu0
      %v5231 = vadd.f32 %v4878, %v5230
      %5232 = vmatprep.mubr.bf16.mxu0 %v5113
      %5233 = vmatmul.mubr.bf16.gmra.mrb[0].mxu0 %v5112
      %v5234 = vpop.f32.mrb[0].mxu0
      %v5235 = vadd.f32 %v4883, %v5234
      %v5236 = vpop.f32.mrb[0].mxu0
      %v5237 = vadd.f32 %v4883, %v5236
      %v5238 = vpop.f32.mrb[0].mxu0
      %v5239 = vadd.f32 %v4888, %v5238
      %v5240 = vpop.f32.mrb[0].mxu0
      %v5241 = vadd.f32 %v4888, %v5240
      %5242 = vmatprep.mubr.bf16.mxu0 %v5115
      %5243 = vmatmul.mubr.bf16.gmra.mrb[0].mxu0 %v5114
      %v5244 = vpop.f32.mrb[0].mxu0
      %v5245 = vadd.f32 %v4893, %v5244
      %v5246 = vpop.f32.mrb[0].mxu0
      %v5247 = vadd.f32 %v4893, %v5246
      %v5248 = vpop.f32.mrb[0].mxu0
      %v5249 = vadd.f32 %v4898, %v5248
      %v5250 = vpop.f32.mrb[0].mxu0
      %v5251 = vadd.f32 %v4898, %v5250
      %5252 = vmatprep.mubr.bf16.mxu0 %v5117
      %5253 = vmatmul.mubr.bf16.gmra.mrb[0].mxu0 %v5116
      %v5254 = vpop.f32.mrb[0].mxu0
      %v5255 = vadd.f32 %v4903, %v5254
      %v5256 = vpop.f32.mrb[0].mxu0
      %v5257 = vadd.f32 %v4903, %v5256
      %v5258 = vpop.f32.mrb[0].mxu0
      %v5259 = vadd.f32 %v4908, %v5258
      %v5260 = vpop.f32.mrb[0].mxu0
      %v5261 = vadd.f32 %v4908, %v5260
      %5262 = vmatprep.mubr.bf16.mxu0 %v5119
      %5263 = vmatmul.mubr.bf16.gmra.mrb[0].mxu0 %v5118
      %v5264 = vpop.f32.mrb[0].mxu0
      %v5265 = vadd.f32 %v4913, %v5264
      %v5266 = vpop.f32.mrb[0].mxu0
      %v5267 = vadd.f32 %v4913, %v5266
      %v5268 = vpop.f32.mrb[0].mxu0
      %v5269 = vadd.f32 %v4918, %v5268
      %v5270 = vpop.f32.mrb[0].mxu0
      %v5271 = vadd.f32 %v4918, %v5270
      %5272 = vmatprep.mubr.bf16.mxu0 %v5121
      %5273 = vmatmul.mubr.bf16.gmra.mrb[0].mxu0 %v5120
      %v5274 = vpop.f32.mrb[0].mxu0
      %v5275 = vadd.f32 %v4923, %v5274
      %v5276 = vpop.f32.mrb[0].mxu0
      %v5277 = vadd.f32 %v4923, %v5276
      %v5278 = vpop.f32.mrb[0].mxu0
      %v5279 = vadd.f32 %v4928, %v5278
      %v5280 = vpop.f32.mrb[0].mxu0
      %v5281 = vadd.f32 %v4928, %v5280
      %5282 = vmatprep.mubr.bf16.mxu0 %v5123
      %5283 = vmatmul.mubr.bf16.gmra.mrb[0].mxu0 %v5122
      %v5284 = vpop.f32.mrb[0].mxu0
      %v5285 = vadd.f32 %v4933, %v5284
      %v5286 = vpop.f32.mrb[0].mxu0
      %v5287 = vadd.f32 %v4933, %v5286
      %v5288 = vpop.f32.mrb[0].mxu0
      %v5289 = vadd.f32 %v4938, %v5288
      %v5290 = vpop.f32.mrb[0].mxu0
      %v5291 = vadd.f32 %v4938, %v5290
      %5292 = vmatprep.mubr.bf16.mxu0 %v5125
      %5293 = vmatmul.mubr.bf16.gmra.mrb[0].mxu0 %v5124
      %v5294 = vpop.f32.mrb[0].mxu0
      %v5295 = vadd.f32 %v4943, %v5294
      %v5296 = vpop.f32.mrb[0].mxu0
      %v5297 = vadd.f32 %v4943, %v5296
      %v5298 = vpop.f32.mrb[0].mxu0
      %v5299 = vadd.f32 %v4948, %v5298
      %v5300 = vpop.f32.mrb[0].mxu0
      %v5301 = vadd.f32 %v4948, %v5300
      %5302 = vmatprep.mubr.bf16.mxu0 %v5127
      %5303 = vmatmul.mubr.bf16.gmra.mrb[0].mxu0 %v5126
      %v5304 = vpop.f32.mrb[0].mxu0
      %v5305 = vadd.f32 %v4953, %v5304
      %v5306 = vpop.f32.mrb[0].mxu0
      %v5307 = vadd.f32 %v4953, %v5306
      %v5308 = vpop.f32.mrb[0].mxu0
      %v5309 = vadd.f32 %v4958, %v5308
      %v5310 = vpop.f32.mrb[0].mxu0
      %v5311 = vadd.f32 %v4958, %v5310
      %5312 = vmatprep.mubr.bf16.mxu0 %v5129
      %5313 = vmatmul.mubr.bf16.gmra.mrb[0].mxu0 %v5128
      %v5314 = vpop.f32.mrb[0].mxu0
      %v5315 = vadd.f32 %v4963, %v5314
      %v5316 = vpop.f32.mrb[0].mxu0
      %v5317 = vadd.f32 %v4963, %v5316
      %v5318 = vpop.f32.mrb[0].mxu0
      %v5319 = vadd.f32 %v4968, %v5318
      %v5320 = vpop.f32.mrb[0].mxu0
      %v5321 = vadd.f32 %v4968, %v5320
      %5322 = vmatprep.mubr.bf16.mxu0 %v5131
      %5323 = vmatmul.mubr.bf16.gmra.mrb[0].mxu0 %v5130
      %v5324 = vpop.f32.mrb[0].mxu0
      %v5325 = vadd.f32 %v4973, %v5324
      %v5326 = vpop.f32.mrb[0].mxu0
      %v5327 = vadd.f32 %v4973, %v5326
      %v5328 = vpop.f32.mrb[0].mxu0
      %v5329 = vadd.f32 %v4978, %v5328
      %v5330 = vpop.f32.mrb[0].mxu0
      %v5331 = vadd.f32 %v4978, %v5330
      %5332 = vmatprep.mubr.bf16.mxu0 %v5133
      %5333 = vmatmul.mubr.bf16.gmra.mrb[0].mxu0 %v5132
      %v5334 = vpop.f32.mrb[0].mxu0
      %v5335 = vadd.f32 %v4983, %v5334
      %v5336 = vpop.f32.mrb[0].mxu0
      %v5337 = vadd.f32 %v4983, %v5336
      %v5338 = vpop.f32.mrb[0].mxu0
      %v5339 = vadd.f32 %v4988, %v5338
      %v5340 = vpop.f32.mrb[0].mxu0
      %v5341 = vadd.f32 %v4988, %v5340
      %5342 = vmatprep.mubr.bf16.mxu0 %v5135
      %5343 = vmatmul.mubr.bf16.gmra.mrb[0].mxu0 %v5134
      %v5344 = vpop.f32.mrb[0].mxu0
      %v5345 = vadd.f32 %v4993, %v5344
      %v5346 = vpop.f32.mrb[0].mxu0
      %v5347 = vadd.f32 %v4993, %v5346
      %v5348 = vpop.f32.mrb[0].mxu0
      %v5349 = vadd.f32 %v4998, %v5348
      %v5350 = vpop.f32.mrb[0].mxu0
      %v5351 = vadd.f32 %v4998, %v5350
      %5352 = vmatprep.mubr.bf16.mxu0 %v5137
      %5353 = vmatmul.mubr.bf16.gmra.mrb[0].mxu0 %v5136
      %v5354 = vpop.f32.mrb[0].mxu0
      %v5355 = vadd.f32 %v5003, %v5354
      %v5356 = vpop.f32.mrb[0].mxu0
      %v5357 = vadd.f32 %v5003, %v5356
      %v5358 = vpop.f32.mrb[0].mxu0
      %v5359 = vadd.f32 %v5008, %v5358
      %v5360 = vpop.f32.mrb[0].mxu0
      %v5361 = vadd.f32 %v5008, %v5360
      %5362 = vdwg.mxu0
      %v5363 = vadd.f32 %v3949, %v5205
      %v5364 = vadd.f32 %v3950, %v5207
      %v5365 = vadd.f32 %v3951, %v5209
      %v5366 = vadd.f32 %v3952, %v5211
      %v5367 = vadd.f32 %v3953, %v5215
      %v5368 = vadd.f32 %v3954, %v5217
      %v5369 = vadd.f32 %v3955, %v5219
      %v5370 = vadd.f32 %v3956, %v5221
      %v5371 = vadd.f32 %v3957, %v5225
      %v5372 = vadd.f32 %v3958, %v5227
      %v5373 = vadd.f32 %v3959, %v5229
      %v5374 = vadd.f32 %v3960, %v5231
      %v5375 = vadd.f32 %v3961, %v5235
      %v5376 = vadd.f32 %v3962, %v5237
      %v5377 = vadd.f32 %v3963, %v5239
      %v5378 = vadd.f32 %v3964, %v5241
      %v5379 = vadd.f32 %v3965, %v5245
      %v5380 = vadd.f32 %v3966, %v5247
      %v5381 = vadd.f32 %v3967, %v5249
      %v5382 = vadd.f32 %v3968, %v5251
      %v5383 = vadd.f32 %v3969, %v5255
      %v5384 = vadd.f32 %v3970, %v5257
      %v5385 = vadd.f32 %v3971, %v5259
      %v5386 = vadd.f32 %v3972, %v5261
      %v5387 = vadd.f32 %v3973, %v5265
      %v5388 = vadd.f32 %v3974, %v5267
      %v5389 = vadd.f32 %v3975, %v5269
      %v5390 = vadd.f32 %v3976, %v5271
      %v5391 = vadd.f32 %v3977, %v5275
      %v5392 = vadd.f32 %v3978, %v5277
      %v5393 = vadd.f32 %v3979, %v5279
      %v5394 = vadd.f32 %v3980, %v5281
      %v5395 = vadd.f32 %v3981, %v5285
      %v5396 = vadd.f32 %v3982, %v5287
      %v5397 = vadd.f32 %v3983, %v5289
      %v5398 = vadd.f32 %v3984, %v5291
      %v5399 = vadd.f32 %v3985, %v5295
      %v5400 = vadd.f32 %v3986, %v5297
      %v5401 = vadd.f32 %v3987, %v5299
      %v5402 = vadd.f32 %v3988, %v5301
      %v5403 = vadd.f32 %v3989, %v5305
      %v5404 = vadd.f32 %v3990, %v5307
      %v5405 = vadd.f32 %v3991, %v5309
      %v5406 = vadd.f32 %v3992, %v5311
      %v5407 = vadd.f32 %v3993, %v5315
      %v5408 = vadd.f32 %v3994, %v5317
      %v5409 = vadd.f32 %v3995, %v5319
      %v5410 = vadd.f32 %v3996, %v5321
      %v5411 = vadd.f32 %v3997, %v5325
      %v5412 = vadd.f32 %v3998, %v5327
      %v5413 = vadd.f32 %v3999, %v5329
      %v5414 = vadd.f32 %v4000, %v5331
      %v5415 = vadd.f32 %v4001, %v5335
      %v5416 = vadd.f32 %v4002, %v5337
      %v5417 = vadd.f32 %v4003, %v5339
      %v5418 = vadd.f32 %v4004, %v5341
      %v5419 = vadd.f32 %v4005, %v5345
      %v5420 = vadd.f32 %v4006, %v5347
      %v5421 = vadd.f32 %v4007, %v5349
      %v5422 = vadd.f32 %v4008, %v5351
      %v5423 = vadd.f32 %v4009, %v5355
      %v5424 = vadd.f32 %v4010, %v5357
      %v5425 = vadd.f32 %v4011, %v5359
      %v5426 = vadd.f32 %v4012, %v5361
      %v5427 = vmul.f32 %v5363, 0.01
      %v5428 = vmul.f32 %v5364, 0.01
      %v5429 = vmul.f32 %v5365, 0.01
      %v5430 = vmul.f32 %v5366, 0.01
      %v5431 = vmul.f32 %v5367, 0.01
      %v5432 = vmul.f32 %v5368, 0.01
      %v5433 = vmul.f32 %v5369, 0.01
      %v5434 = vmul.f32 %v5370, 0.01
      %v5435 = vmul.f32 %v5371, 0.01
      %v5436 = vmul.f32 %v5372, 0.01
      %v5437 = vmul.f32 %v5373, 0.01
      %v5438 = vmul.f32 %v5374, 0.01
      %v5439 = vmul.f32 %v5375, 0.01
      %v5440 = vmul.f32 %v5376, 0.01
      %v5441 = vmul.f32 %v5377, 0.01
      %v5442 = vmul.f32 %v5378, 0.01
      %v5443 = vmul.f32 %v5379, 0.01
      %v5444 = vmul.f32 %v5380, 0.01
      %v5445 = vmul.f32 %v5381, 0.01
      %v5446 = vmul.f32 %v5382, 0.01
      %v5447 = vmul.f32 %v5383, 0.01
      %v5448 = vmul.f32 %v5384, 0.01
      %v5449 = vmul.f32 %v5385, 0.01
      %v5450 = vmul.f32 %v5386, 0.01
      %v5451 = vmul.f32 %v5387, 0.01
      %v5452 = vmul.f32 %v5388, 0.01
      %v5453 = vmul.f32 %v5389, 0.01
      %v5454 = vmul.f32 %v5390, 0.01
      %v5455 = vmul.f32 %v5391, 0.01
      %v5456 = vmul.f32 %v5392, 0.01
      %v5457 = vmul.f32 %v5393, 0.01
      %v5458 = vmul.f32 %v5394, 0.01
      %v5459 = vmul.f32 %v5395, 0.01
      %v5460 = vmul.f32 %v5396, 0.01
      %v5461 = vmul.f32 %v5397, 0.01
      %v5462 = vmul.f32 %v5398, 0.01
      %v5463 = vmul.f32 %v5399, 0.01
      %v5464 = vmul.f32 %v5400, 0.01
      %v5465 = vmul.f32 %v5401, 0.01
      %v5466 = vmul.f32 %v5402, 0.01
      %v5467 = vmul.f32 %v5403, 0.01
      %v5468 = vmul.f32 %v5404, 0.01
      %v5469 = vmul.f32 %v5405, 0.01
      %v5470 = vmul.f32 %v5406, 0.01
      %v5471 = vmul.f32 %v5407, 0.01
      %v5472 = vmul.f32 %v5408, 0.01
      %v5473 = vmul.f32 %v5409, 0.01
      %v5474 = vmul.f32 %v5410, 0.01
      %v5475 = vmul.f32 %v5411, 0.01
      %v5476 = vmul.f32 %v5412, 0.01
      %v5477 = vmul.f32 %v5413, 0.01
      %v5478 = vmul.f32 %v5414, 0.01
      %v5479 = vmul.f32 %v5415, 0.01
      %v5480 = vmul.f32 %v5416, 0.01
      %v5481 = vmul.f32 %v5417, 0.01
      %v5482 = vmul.f32 %v5418, 0.01
      %v5483 = vmul.f32 %v5419, 0.01
      %v5484 = vmul.f32 %v5420, 0.01
      %v5485 = vmul.f32 %v5421, 0.01
      %v5486 = vmul.f32 %v5422, 0.01
      %v5487 = vmul.f32 %v5423, 0.01
      %v5488 = vmul.f32 %v5424, 0.01
      %v5489 = vmul.f32 %v5425, 0.01
      %v5490 = vmul.f32 %v5426, 0.01
      %v5491 = vmax.f32 %v5363, %v5427
      %v5492 = vmax.f32 %v5364, %v5428
      %v5493 = vmax.f32 %v5365, %v5429
      %v5494 = vmax.f32 %v5366, %v5430
      %v5495 = vmax.f32 %v5367, %v5431
      %v5496 = vmax.f32 %v5368, %v5432
      %v5497 = vmax.f32 %v5369, %v5433
      %v5498 = vmax.f32 %v5370, %v5434
      %v5499 = vmax.f32 %v5371, %v5435
      %v5500 = vmax.f32 %v5372, %v5436
      %v5501 = vmax.f32 %v5373, %v5437
      %v5502 = vmax.f32 %v5374, %v5438
      %v5503 = vmax.f32 %v5375, %v5439
      %v5504 = vmax.f32 %v5376, %v5440
      %v5505 = vmax.f32 %v5377, %v5441
      %v5506 = vmax.f32 %v5378, %v5442
      %v5507 = vmax.f32 %v5379, %v5443
      %v5508 = vmax.f32 %v5380, %v5444
      %v5509 = vmax.f32 %v5381, %v5445
      %v5510 = vmax.f32 %v5382, %v5446
      %v5511 = vmax.f32 %v5383, %v5447
      %v5512 = vmax.f32 %v5384, %v5448
      %v5513 = vmax.f32 %v5385, %v5449
      %v5514 = vmax.f32 %v5386, %v5450
      %v5515 = vmax.f32 %v5387, %v5451
      %v5516 = vmax.f32 %v5388, %v5452
      %v5517 = vmax.f32 %v5389, %v5453
      %v5518 = vmax.f32 %v5390, %v5454
      %v5519 = vmax.f32 %v5391, %v5455
      %v5520 = vmax.f32 %v5392, %v5456
      %v5521 = vmax.f32 %v5393, %v5457
      %v5522 = vmax.f32 %v5394, %v5458
      %v5523 = vmax.f32 %v5395, %v5459
      %v5524 = vmax.f32 %v5396, %v5460
      %v5525 = vmax.f32 %v5397, %v5461
      %v5526 = vmax.f32 %v5398, %v5462
      %v5527 = vmax.f32 %v5399, %v5463
      %v5528 = vmax.f32 %v5400, %v5464
      %v5529 = vmax.f32 %v5401, %v5465
      %v5530 = vmax.f32 %v5402, %v5466
      %v5531 = vmax.f32 %v5403, %v5467
      %v5532 = vmax.f32 %v5404, %v5468
      %v5533 = vmax.f32 %v5405, %v5469
      %v5534 = vmax.f32 %v5406, %v5470
      %v5535 = vmax.f32 %v5407, %v5471
      %v5536 = vmax.f32 %v5408, %v5472
      %v5537 = vmax.f32 %v5409, %v5473
      %v5538 = vmax.f32 %v5410, %v5474
      %v5539 = vmax.f32 %v5411, %v5475
      %v5540 = vmax.f32 %v5412, %v5476
      %v5541 = vmax.f32 %v5413, %v5477
      %v5542 = vmax.f32 %v5414, %v5478
      %v5543 = vmax.f32 %v5415, %v5479
      %v5544 = vmax.f32 %v5416, %v5480
      %v5545 = vmax.f32 %v5417, %v5481
      %v5546 = vmax.f32 %v5418, %v5482
      %v5547 = vmax.f32 %v5419, %v5483
      %v5548 = vmax.f32 %v5420, %v5484
      %v5549 = vmax.f32 %v5421, %v5485
      %v5550 = vmax.f32 %v5422, %v5486
      %v5551 = vmax.f32 %v5423, %v5487
      %v5552 = vmax.f32 %v5424, %v5488
      %v5553 = vmax.f32 %v5425, %v5489
      %v5554 = vmax.f32 %v5426, %v5490
      %s5555 = scalar_lea.vmem %s3, 768
      %v5556 = vld [vmem:[%s5555] sm:$0xff]
      %v5557 = vld [vmem:[%s5555 + $0x8] sm:$0xff]
      %v5558 = vld [vmem:[%s5555 + $0x10] sm:$0xff]
      %v5559 = vld [vmem:[%s5555 + $0x18] sm:$0xff]
      %v5560 = vld [vmem:[%s5555 + $0x20] sm:$0xff]
      %v5561 = vld [vmem:[%s5555 + $0x28] sm:$0xff]
      %v5562 = vld [vmem:[%s5555 + $0x30] sm:$0xff]
      %v5563 = vld [vmem:[%s5555 + $0x38] sm:$0xff]
      %v5564 = vld [vmem:[%s5555 + $0x40] sm:$0xff]
      %v5565 = vld [vmem:[%s5555 + $0x48] sm:$0xff]
      %v5566 = vld [vmem:[%s5555 + $0x50] sm:$0xff]
      %v5567 = vld [vmem:[%s5555 + $0x58] sm:$0xff]
      %v5568 = vld [vmem:[%s5555 + $0x60] sm:$0xff]
      %v5569 = vld [vmem:[%s5555 + $0x68] sm:$0xff]
      %v5570 = vld [vmem:[%s5555 + $0x70] sm:$0xff]
      %v5571 = vld [vmem:[%s5555 + $0x78] sm:$0xff]
      %v5572 = vld [vmem:[%s5555 + $0x80] sm:$0xff]
      %v5573 = vld [vmem:[%s5555 + $0x88] sm:$0xff]
      %v5574 = vld [vmem:[%s5555 + $0x90] sm:$0xff]
      %v5575 = vld [vmem:[%s5555 + $0x98] sm:$0xff]
      %v5576 = vld [vmem:[%s5555 + $0xa0] sm:$0xff]
      %v5577 = vld [vmem:[%s5555 + $0xa8] sm:$0xff]
      %v5578 = vld [vmem:[%s5555 + $0xb0] sm:$0xff]
      %v5579 = vld [vmem:[%s5555 + $0xb8] sm:$0xff]
      %v5580 = vld [vmem:[%s5555 + $0xc0] sm:$0xff]
      %v5581 = vld [vmem:[%s5555 + $0xc8] sm:$0xff]
      %v5582 = vld [vmem:[%s5555 + $0xd0] sm:$0xff]
      %v5583 = vld [vmem:[%s5555 + $0xd8] sm:$0xff]
      %v5584 = vld [vmem:[%s5555 + $0xe0] sm:$0xff]
      %v5585 = vld [vmem:[%s5555 + $0xe8] sm:$0xff]
      %v5586 = vld [vmem:[%s5555 + $0xf0] sm:$0xff]
      %v5587 = vld [vmem:[%s5555 + $0xf8] sm:$0xff]
      %v5588 = vpack.c.bf16 %v5493, %v5491
      %v5589 = vpack.c.bf16 %v5494, %v5492
      %v5590 = vpack.c.bf16 %v5497, %v5495
      %v5591 = vpack.c.bf16 %v5498, %v5496
      %v5592 = vpack.c.bf16 %v5501, %v5499
      %v5593 = vpack.c.bf16 %v5502, %v5500
      %v5594 = vpack.c.bf16 %v5505, %v5503
      %v5595 = vpack.c.bf16 %v5506, %v5504
      %v5596 = vpack.c.bf16 %v5509, %v5507
      %v5597 = vpack.c.bf16 %v5510, %v5508
      %v5598 = vpack.c.bf16 %v5513, %v5511
      %v5599 = vpack.c.bf16 %v5514, %v5512
      %v5600 = vpack.c.bf16 %v5517, %v5515
      %v5601 = vpack.c.bf16 %v5518, %v5516
      %v5602 = vpack.c.bf16 %v5521, %v5519
      %v5603 = vpack.c.bf16 %v5522, %v5520
      %v5604 = vpack.c.bf16 %v5525, %v5523
      %v5605 = vpack.c.bf16 %v5526, %v5524
      %v5606 = vpack.c.bf16 %v5529, %v5527
      %v5607 = vpack.c.bf16 %v5530, %v5528
      %v5608 = vpack.c.bf16 %v5533, %v5531
      %v5609 = vpack.c.bf16 %v5534, %v5532
      %v5610 = vpack.c.bf16 %v5537, %v5535
      %v5611 = vpack.c.bf16 %v5538, %v5536
      %v5612 = vpack.c.bf16 %v5541, %v5539
      %v5613 = vpack.c.bf16 %v5542, %v5540
      %v5614 = vpack.c.bf16 %v5545, %v5543
      %v5615 = vpack.c.bf16 %v5546, %v5544
      %v5616 = vpack.c.bf16 %v5549, %v5547
      %v5617 = vpack.c.bf16 %v5550, %v5548
      %v5618 = vpack.c.bf16 %v5553, %v5551
      %v5619 = vpack.c.bf16 %v5554, %v5552
      %s5620 = scalar_lea.vmem %s4, 768
      %v5621 = vld [vmem:[%s5620] sm:$0xff]
      %v5622 = vld [vmem:[%s5620 + $0x8] sm:$0xff]
      %v5623 = vld [vmem:[%s5620 + $0x10] sm:$0xff]
      %v5624 = vld [vmem:[%s5620 + $0x18] sm:$0xff]
      %v5625 = vld [vmem:[%s5620 + $0x20] sm:$0xff]
      %v5626 = vld [vmem:[%s5620 + $0x28] sm:$0xff]
      %v5627 = vld [vmem:[%s5620 + $0x30] sm:$0xff]
      %v5628 = vld [vmem:[%s5620 + $0x38] sm:$0xff]
      %v5629 = vld [vmem:[%s5620 + $0x40] sm:$0xff]
      %v5630 = vld [vmem:[%s5620 + $0x48] sm:$0xff]
      %v5631 = vld [vmem:[%s5620 + $0x50] sm:$0xff]
      %v5632 = vld [vmem:[%s5620 + $0x58] sm:$0xff]
      %v5633 = vld [vmem:[%s5620 + $0x60] sm:$0xff]
      %v5634 = vld [vmem:[%s5620 + $0x68] sm:$0xff]
      %v5635 = vld [vmem:[%s5620 + $0x70] sm:$0xff]
      %v5636 = vld [vmem:[%s5620 + $0x78] sm:$0xff]
      %v5637 = vld [vmem:[%s5620 + $0x80] sm:$0xff]
      %v5638 = vld [vmem:[%s5620 + $0x88] sm:$0xff]
      %v5639 = vld [vmem:[%s5620 + $0x90] sm:$0xff]
      %v5640 = vld [vmem:[%s5620 + $0x98] sm:$0xff]
      %v5641 = vld [vmem:[%s5620 + $0xa0] sm:$0xff]
      %v5642 = vld [vmem:[%s5620 + $0xa8] sm:$0xff]
      %v5643 = vld [vmem:[%s5620 + $0xb0] sm:$0xff]
      %v5644 = vld [vmem:[%s5620 + $0xb8] sm:$0xff]
      %v5645 = vld [vmem:[%s5620 + $0xc0] sm:$0xff]
      %v5646 = vld [vmem:[%s5620 + $0xc8] sm:$0xff]
      %v5647 = vld [vmem:[%s5620 + $0xd0] sm:$0xff]
      %v5648 = vld [vmem:[%s5620 + $0xd8] sm:$0xff]
      %v5649 = vld [vmem:[%s5620 + $0xe0] sm:$0xff]
      %v5650 = vld [vmem:[%s5620 + $0xe8] sm:$0xff]
      %v5651 = vld [vmem:[%s5620 + $0xf0] sm:$0xff]
      %v5652 = vld [vmem:[%s5620 + $0xf8] sm:$0xff]
      %5654 = vset.pattern.permute.xlu0 0
      %5655 = vperm.xlu0 %5654, %v5621
      %v5656 = vpop.permute.xlu0 %5655
      %5659 = vset.pattern.permute.xlu0 0
      %5660 = vperm.xlu0 %5659, %v5622
      %v5661 = vpop.permute.xlu0 %5660
      %5664 = vset.pattern.permute.xlu0 0
      %5665 = vperm.xlu0 %5664, %v5623
      %v5666 = vpop.permute.xlu0 %5665
      %5669 = vset.pattern.permute.xlu0 0
      %5670 = vperm.xlu0 %5669, %v5624
      %v5671 = vpop.permute.xlu0 %5670
      %5674 = vset.pattern.permute.xlu0 0
      %5675 = vperm.xlu0 %5674, %v5625
      %v5676 = vpop.permute.xlu0 %5675
      %5679 = vset.pattern.permute.xlu0 0
      %5680 = vperm.xlu0 %5679, %v5626
      %v5681 = vpop.permute.xlu0 %5680
      %5684 = vset.pattern.permute.xlu0 0
      %5685 = vperm.xlu0 %5684, %v5627
      %v5686 = vpop.permute.xlu0 %5685
      %5689 = vset.pattern.permute.xlu0 0
      %5690 = vperm.xlu0 %5689, %v5628
      %v5691 = vpop.permute.xlu0 %5690
      %5694 = vset.pattern.permute.xlu0 0
      %5695 = vperm.xlu0 %5694, %v5629
      %v5696 = vpop.permute.xlu0 %5695
      %5699 = vset.pattern.permute.xlu0 0
      %5700 = vperm.xlu0 %5699, %v5630
      %v5701 = vpop.permute.xlu0 %5700
      %5704 = vset.pattern.permute.xlu0 0
      %5705 = vperm.xlu0 %5704, %v5631
      %v5706 = vpop.permute.xlu0 %5705
      %5709 = vset.pattern.permute.xlu0 0
      %5710 = vperm.xlu0 %5709, %v5632
      %v5711 = vpop.permute.xlu0 %5710
      %5714 = vset.pattern.permute.xlu0 0
      %5715 = vperm.xlu0 %5714, %v5633
      %v5716 = vpop.permute.xlu0 %5715
      %5719 = vset.pattern.permute.xlu0 0
      %5720 = vperm.xlu0 %5719, %v5634
      %v5721 = vpop.permute.xlu0 %5720
      %5724 = vset.pattern.permute.xlu0 0
      %5725 = vperm.xlu0 %5724, %v5635
      %v5726 = vpop.permute.xlu0 %5725
      %5729 = vset.pattern.permute.xlu0 0
      %5730 = vperm.xlu0 %5729, %v5636
      %v5731 = vpop.permute.xlu0 %5730
      %5734 = vset.pattern.permute.xlu0 0
      %5735 = vperm.xlu0 %5734, %v5637
      %v5736 = vpop.permute.xlu0 %5735
      %5739 = vset.pattern.permute.xlu0 0
      %5740 = vperm.xlu0 %5739, %v5638
      %v5741 = vpop.permute.xlu0 %5740
      %5744 = vset.pattern.permute.xlu0 0
      %5745 = vperm.xlu0 %5744, %v5639
      %v5746 = vpop.permute.xlu0 %5745
      %5749 = vset.pattern.permute.xlu0 0
      %5750 = vperm.xlu0 %5749, %v5640
      %v5751 = vpop.permute.xlu0 %5750
      %5754 = vset.pattern.permute.xlu0 0
      %5755 = vperm.xlu0 %5754, %v5641
      %v5756 = vpop.permute.xlu0 %5755
      %5759 = vset.pattern.permute.xlu0 0
      %5760 = vperm.xlu0 %5759, %v5642
      %v5761 = vpop.permute.xlu0 %5760
      %5764 = vset.pattern.permute.xlu0 0
      %5765 = vperm.xlu0 %5764, %v5643
      %v5766 = vpop.permute.xlu0 %5765
      %5769 = vset.pattern.permute.xlu0 0
      %5770 = vperm.xlu0 %5769, %v5644
      %v5771 = vpop.permute.xlu0 %5770
      %5774 = vset.pattern.permute.xlu0 0
      %5775 = vperm.xlu0 %5774, %v5645
      %v5776 = vpop.permute.xlu0 %5775
      %5779 = vset.pattern.permute.xlu0 0
      %5780 = vperm.xlu0 %5779, %v5646
      %v5781 = vpop.permute.xlu0 %5780
      %5784 = vset.pattern.permute.xlu0 0
      %5785 = vperm.xlu0 %5784, %v5647
      %v5786 = vpop.permute.xlu0 %5785
      %5789 = vset.pattern.permute.xlu0 0
      %5790 = vperm.xlu0 %5789, %v5648
      %v5791 = vpop.permute.xlu0 %5790
      %5794 = vset.pattern.permute.xlu0 0
      %5795 = vperm.xlu0 %5794, %v5649
      %v5796 = vpop.permute.xlu0 %5795
      %5799 = vset.pattern.permute.xlu0 0
      %5800 = vperm.xlu0 %5799, %v5650
      %v5801 = vpop.permute.xlu0 %5800
      %5804 = vset.pattern.permute.xlu0 0
      %5805 = vperm.xlu0 %5804, %v5651
      %v5806 = vpop.permute.xlu0 %5805
      %5809 = vset.pattern.permute.xlu0 0
      %5810 = vperm.xlu0 %5809, %v5652
      %v5811 = vpop.permute.xlu0 %5810
      %v5845 = vunpack.c.l.b16 %v5556
      %v5846 = vunpack.c.h.b16 %v5556
      %v5847 = vunpack.c.l.b16 %v5557
      %v5848 = vunpack.c.h.b16 %v5557
      %v5849 = vunpack.c.l.b16 %v5558
      %v5850 = vunpack.c.h.b16 %v5558
      %v5851 = vunpack.c.l.b16 %v5559
      %v5852 = vunpack.c.h.b16 %v5559
      %v5853 = vunpack.c.l.b16 %v5560
      %v5854 = vunpack.c.h.b16 %v5560
      %v5855 = vunpack.c.l.b16 %v5561
      %v5856 = vunpack.c.h.b16 %v5561
      %v5857 = vunpack.c.l.b16 %v5562
      %v5858 = vunpack.c.h.b16 %v5562
      %v5859 = vunpack.c.l.b16 %v5563
      %v5860 = vunpack.c.h.b16 %v5563
      %v5861 = vunpack.c.l.b16 %v5564
      %v5862 = vunpack.c.h.b16 %v5564
      %v5863 = vunpack.c.l.b16 %v5565
      %v5864 = vunpack.c.h.b16 %v5565
      %v5865 = vunpack.c.l.b16 %v5566
      %v5866 = vunpack.c.h.b16 %v5566
      %v5867 = vunpack.c.l.b16 %v5567
      %v5868 = vunpack.c.h.b16 %v5567
      %v5869 = vunpack.c.l.b16 %v5568
      %v5870 = vunpack.c.h.b16 %v5568
      %v5871 = vunpack.c.l.b16 %v5569
      %v5872 = vunpack.c.h.b16 %v5569
      %v5873 = vunpack.c.l.b16 %v5570
      %v5874 = vunpack.c.h.b16 %v5570
      %v5875 = vunpack.c.l.b16 %v5571
      %v5876 = vunpack.c.h.b16 %v5571
      %v5877 = vunpack.c.l.b16 %v5572
      %v5878 = vunpack.c.h.b16 %v5572
      %v5879 = vunpack.c.l.b16 %v5573
      %v5880 = vunpack.c.h.b16 %v5573
      %v5881 = vunpack.c.l.b16 %v5574
      %v5882 = vunpack.c.h.b16 %v5574
      %v5883 = vunpack.c.l.b16 %v5575
      %v5884 = vunpack.c.h.b16 %v5575
      %v5885 = vunpack.c.l.b16 %v5576
      %v5886 = vunpack.c.h.b16 %v5576
      %v5887 = vunpack.c.l.b16 %v5577
      %v5888 = vunpack.c.h.b16 %v5577
      %v5889 = vunpack.c.l.b16 %v5578
      %v5890 = vunpack.c.h.b16 %v5578
      %v5891 = vunpack.c.l.b16 %v5579
      %v5892 = vunpack.c.h.b16 %v5579
      %v5893 = vunpack.c.l.b16 %v5580
      %v5894 = vunpack.c.h.b16 %v5580
      %v5895 = vunpack.c.l.b16 %v5581
      %v5896 = vunpack.c.h.b16 %v5581
      %v5897 = vunpack.c.l.b16 %v5582
      %v5898 = vunpack.c.h.b16 %v5582
      %v5899 = vunpack.c.l.b16 %v5583
      %v5900 = vunpack.c.h.b16 %v5583
      %v5901 = vunpack.c.l.b16 %v5584
      %v5902 = vunpack.c.h.b16 %v5584
      %v5903 = vunpack.c.l.b16 %v5585
      %v5904 = vunpack.c.h.b16 %v5585
      %v5905 = vunpack.c.l.b16 %v5586
      %v5906 = vunpack.c.h.b16 %v5586
      %v5907 = vunpack.c.l.b16 %v5587
      %v5908 = vunpack.c.h.b16 %v5587
      %v5909 = vpack.c.b16 %v5847, %v5845
      %v5910 = vpack.c.b16 %v5848, %v5846
      %v5911 = vpack.c.b16 %v5851, %v5849
      %v5912 = vpack.c.b16 %v5852, %v5850
      %v5913 = vpack.c.b16 %v5855, %v5853
      %v5914 = vpack.c.b16 %v5856, %v5854
      %v5915 = vpack.c.b16 %v5859, %v5857
      %v5916 = vpack.c.b16 %v5860, %v5858
      %v5917 = vpack.c.b16 %v5863, %v5861
      %v5918 = vpack.c.b16 %v5864, %v5862
      %v5919 = vpack.c.b16 %v5867, %v5865
      %v5920 = vpack.c.b16 %v5868, %v5866
      %v5921 = vpack.c.b16 %v5871, %v5869
      %v5922 = vpack.c.b16 %v5872, %v5870
      %v5923 = vpack.c.b16 %v5875, %v5873
      %v5924 = vpack.c.b16 %v5876, %v5874
      %v5925 = vpack.c.b16 %v5879, %v5877
      %v5926 = vpack.c.b16 %v5880, %v5878
      %v5927 = vpack.c.b16 %v5883, %v5881
      %v5928 = vpack.c.b16 %v5884, %v5882
      %v5929 = vpack.c.b16 %v5887, %v5885
      %v5930 = vpack.c.b16 %v5888, %v5886
      %v5931 = vpack.c.b16 %v5891, %v5889
      %v5932 = vpack.c.b16 %v5892, %v5890
      %v5933 = vpack.c.b16 %v5895, %v5893
      %v5934 = vpack.c.b16 %v5896, %v5894
      %v5935 = vpack.c.b16 %v5899, %v5897
      %v5936 = vpack.c.b16 %v5900, %v5898
      %v5937 = vpack.c.b16 %v5903, %v5901
      %v5938 = vpack.c.b16 %v5904, %v5902
      %v5939 = vpack.c.b16 %v5907, %v5905
      %v5940 = vpack.c.b16 %v5908, %v5906
      %5973 = vmatprep.subr.bf16.mxu0 %v5589
      %5974 = vmatpush1.bf16.msra.mxu0 %v5588
      %5975 = vmatprep.subr.bf16.mxu0 %v5591
      %5976 = vmatpush1.bf16.msra.mxu0 %v5590
      %5977 = vmatprep.subr.bf16.mxu0 %v5593
      %5978 = vmatpush1.bf16.msra.mxu0 %v5592
      %5979 = vmatprep.subr.bf16.mxu0 %v5595
      %5980 = vmatpush1.bf16.msra.mxu0 %v5594
      %5981 = vmatprep.subr.bf16.mxu0 %v5597
      %5982 = vmatpush1.bf16.msra.mxu0 %v5596
      %5983 = vmatprep.subr.bf16.mxu0 %v5599
      %5984 = vmatpush1.bf16.msra.mxu0 %v5598
      %5985 = vmatprep.subr.bf16.mxu0 %v5601
      %5986 = vmatpush1.bf16.msra.mxu0 %v5600
      %5987 = vmatprep.subr.bf16.mxu0 %v5603
      %5988 = vmatpush1.bf16.msra.mxu0 %v5602
      %5989 = vmatprep.subr.bf16.mxu0 %v5605
      %5990 = vmatpush1.bf16.msra.mxu0 %v5604
      %5991 = vmatprep.subr.bf16.mxu0 %v5607
      %5992 = vmatpush1.bf16.msra.mxu0 %v5606
      %5993 = vmatprep.subr.bf16.mxu0 %v5609
      %5994 = vmatpush1.bf16.msra.mxu0 %v5608
      %5995 = vmatprep.subr.bf16.mxu0 %v5611
      %5996 = vmatpush1.bf16.msra.mxu0 %v5610
      %5997 = vmatprep.subr.bf16.mxu0 %v5613
      %5998 = vmatpush1.bf16.msra.mxu0 %v5612
      %5999 = vmatprep.subr.bf16.mxu0 %v5615
      %6000 = vmatpush1.bf16.msra.mxu0 %v5614
      %6001 = vmatprep.subr.bf16.mxu0 %v5617
      %6002 = vmatpush1.bf16.msra.mxu0 %v5616
      %6003 = vmatprep.subr.bf16.mxu0 %v5619
      %6004 = vmatpush1.bf16.msra.mxu0 %v5618
      %6005 = vmatprep.mubr.bf16.mxu0 %v5910
      %6006 = vmatmul.mubr.bf16.gmra.mrb[0].mxu0 %v5909
      %v6007 = vpop.f32.mrb[0].mxu0
      %v6008 = vadd.f32 %v5656, %v6007
      %v6009 = vpop.f32.mrb[0].mxu0
      %v6010 = vadd.f32 %v5656, %v6009
      %v6011 = vpop.f32.mrb[0].mxu0
      %v6012 = vadd.f32 %v5661, %v6011
      %v6013 = vpop.f32.mrb[0].mxu0
      %v6014 = vadd.f32 %v5661, %v6013
      %6015 = vmatprep.mubr.bf16.mxu0 %v5912
      %6016 = vmatmul.mubr.bf16.gmra.mrb[0].mxu0 %v5911
      %v6017 = vpop.f32.mrb[0].mxu0
      %v6018 = vadd.f32 %v5666, %v6017
      %v6019 = vpop.f32.mrb[0].mxu0
      %v6020 = vadd.f32 %v5666, %v6019
      %v6021 = vpop.f32.mrb[0].mxu0
      %v6022 = vadd.f32 %v5671, %v6021
      %v6023 = vpop.f32.mrb[0].mxu0
      %v6024 = vadd.f32 %v5671, %v6023
      %6025 = vmatprep.mubr.bf16.mxu0 %v5914
      %6026 = vmatmul.mubr.bf16.gmra.mrb[0].mxu0 %v5913
      %v6027 = vpop.f32.mrb[0].mxu0
      %v6028 = vadd.f32 %v5676, %v6027
      %v6029 = vpop.f32.mrb[0].mxu0
      %v6030 = vadd.f32 %v5676, %v6029
      %v6031 = vpop.f32.mrb[0].mxu0
      %v6032 = vadd.f32 %v5681, %v6031
      %v6033 = vpop.f32.mrb[0].mxu0
      %v6034 = vadd.f32 %v5681, %v6033
      %6035 = vmatprep.mubr.bf16.mxu0 %v5916
      %6036 = vmatmul.mubr.bf16.gmra.mrb[0].mxu0 %v5915
      %v6037 = vpop.f32.mrb[0].mxu0
      %v6038 = vadd.f32 %v5686, %v6037
      %v6039 = vpop.f32.mrb[0].mxu0
      %v6040 = vadd.f32 %v5686, %v6039
      %v6041 = vpop.f32.mrb[0].mxu0
      %v6042 = vadd.f32 %v5691, %v6041
      %v6043 = vpop.f32.mrb[0].mxu0
      %v6044 = vadd.f32 %v5691, %v6043
      %6045 = vmatprep.mubr.bf16.mxu0 %v5918
      %6046 = vmatmul.mubr.bf16.gmra.mrb[0].mxu0 %v5917
      %v6047 = vpop.f32.mrb[0].mxu0
      %v6048 = vadd.f32 %v5696, %v6047
      %v6049 = vpop.f32.mrb[0].mxu0
      %v6050 = vadd.f32 %v5696, %v6049
      %v6051 = vpop.f32.mrb[0].mxu0
      %v6052 = vadd.f32 %v5701, %v6051
      %v6053 = vpop.f32.mrb[0].mxu0
      %v6054 = vadd.f32 %v5701, %v6053
      %6055 = vmatprep.mubr.bf16.mxu0 %v5920
      %6056 = vmatmul.mubr.bf16.gmra.mrb[0].mxu0 %v5919
      %v6057 = vpop.f32.mrb[0].mxu0
      %v6058 = vadd.f32 %v5706, %v6057
      %v6059 = vpop.f32.mrb[0].mxu0
      %v6060 = vadd.f32 %v5706, %v6059
      %v6061 = vpop.f32.mrb[0].mxu0
      %v6062 = vadd.f32 %v5711, %v6061
      %v6063 = vpop.f32.mrb[0].mxu0
      %v6064 = vadd.f32 %v5711, %v6063
      %6065 = vmatprep.mubr.bf16.mxu0 %v5922
      %6066 = vmatmul.mubr.bf16.gmra.mrb[0].mxu0 %v5921
      %v6067 = vpop.f32.mrb[0].mxu0
      %v6068 = vadd.f32 %v5716, %v6067
      %v6069 = vpop.f32.mrb[0].mxu0
      %v6070 = vadd.f32 %v5716, %v6069
      %v6071 = vpop.f32.mrb[0].mxu0
      %v6072 = vadd.f32 %v5721, %v6071
      %v6073 = vpop.f32.mrb[0].mxu0
      %v6074 = vadd.f32 %v5721, %v6073
      %6075 = vmatprep.mubr.bf16.mxu0 %v5924
      %6076 = vmatmul.mubr.bf16.gmra.mrb[0].mxu0 %v5923
      %v6077 = vpop.f32.mrb[0].mxu0
      %v6078 = vadd.f32 %v5726, %v6077
      %v6079 = vpop.f32.mrb[0].mxu0
      %v6080 = vadd.f32 %v5726, %v6079
      %v6081 = vpop.f32.mrb[0].mxu0
      %v6082 = vadd.f32 %v5731, %v6081
      %v6083 = vpop.f32.mrb[0].mxu0
      %v6084 = vadd.f32 %v5731, %v6083
      %6085 = vmatprep.mubr.bf16.mxu0 %v5926
      %6086 = vmatmul.mubr.bf16.gmra.mrb[0].mxu0 %v5925
      %v6087 = vpop.f32.mrb[0].mxu0
      %v6088 = vadd.f32 %v5736, %v6087
      %v6089 = vpop.f32.mrb[0].mxu0
      %v6090 = vadd.f32 %v5736, %v6089
      %v6091 = vpop.f32.mrb[0].mxu0
      %v6092 = vadd.f32 %v5741, %v6091
      %v6093 = vpop.f32.mrb[0].mxu0
      %v6094 = vadd.f32 %v5741, %v6093
      %6095 = vmatprep.mubr.bf16.mxu0 %v5928
      %6096 = vmatmul.mubr.bf16.gmra.mrb[0].mxu0 %v5927
      %v6097 = vpop.f32.mrb[0].mxu0
      %v6098 = vadd.f32 %v5746, %v6097
      %v6099 = vpop.f32.mrb[0].mxu0
      %v6100 = vadd.f32 %v5746, %v6099
      %v6101 = vpop.f32.mrb[0].mxu0
      %v6102 = vadd.f32 %v5751, %v6101
      %v6103 = vpop.f32.mrb[0].mxu0
      %v6104 = vadd.f32 %v5751, %v6103
      %6105 = vmatprep.mubr.bf16.mxu0 %v5930
      %6106 = vmatmul.mubr.bf16.gmra.mrb[0].mxu0 %v5929
      %v6107 = vpop.f32.mrb[0].mxu0
      %v6108 = vadd.f32 %v5756, %v6107
      %v6109 = vpop.f32.mrb[0].mxu0
      %v6110 = vadd.f32 %v5756, %v6109
      %v6111 = vpop.f32.mrb[0].mxu0
      %v6112 = vadd.f32 %v5761, %v6111
      %v6113 = vpop.f32.mrb[0].mxu0
      %v6114 = vadd.f32 %v5761, %v6113
      %6115 = vmatprep.mubr.bf16.mxu0 %v5932
      %6116 = vmatmul.mubr.bf16.gmra.mrb[0].mxu0 %v5931
      %v6117 = vpop.f32.mrb[0].mxu0
      %v6118 = vadd.f32 %v5766, %v6117
      %v6119 = vpop.f32.mrb[0].mxu0
      %v6120 = vadd.f32 %v5766, %v6119
      %v6121 = vpop.f32.mrb[0].mxu0
      %v6122 = vadd.f32 %v5771, %v6121
      %v6123 = vpop.f32.mrb[0].mxu0
      %v6124 = vadd.f32 %v5771, %v6123
      %6125 = vmatprep.mubr.bf16.mxu0 %v5934
      %6126 = vmatmul.mubr.bf16.gmra.mrb[0].mxu0 %v5933
      %v6127 = vpop.f32.mrb[0].mxu0
      %v6128 = vadd.f32 %v5776, %v6127
      %v6129 = vpop.f32.mrb[0].mxu0
      %v6130 = vadd.f32 %v5776, %v6129
      %v6131 = vpop.f32.mrb[0].mxu0
      %v6132 = vadd.f32 %v5781, %v6131
      %v6133 = vpop.f32.mrb[0].mxu0
      %v6134 = vadd.f32 %v5781, %v6133
      %6135 = vmatprep.mubr.bf16.mxu0 %v5936
      %6136 = vmatmul.mubr.bf16.gmra.mrb[0].mxu0 %v5935
      %v6137 = vpop.f32.mrb[0].mxu0
      %v6138 = vadd.f32 %v5786, %v6137
      %v6139 = vpop.f32.mrb[0].mxu0
      %v6140 = vadd.f32 %v5786, %v6139
      %v6141 = vpop.f32.mrb[0].mxu0
      %v6142 = vadd.f32 %v5791, %v6141
      %v6143 = vpop.f32.mrb[0].mxu0
      %v6144 = vadd.f32 %v5791, %v6143
      %6145 = vmatprep.mubr.bf16.mxu0 %v5938
      %6146 = vmatmul.mubr.bf16.gmra.mrb[0].mxu0 %v5937
      %v6147 = vpop.f32.mrb[0].mxu0
      %v6148 = vadd.f32 %v5796, %v6147
      %v6149 = vpop.f32.mrb[0].mxu0
      %v6150 = vadd.f32 %v5796, %v6149
      %v6151 = vpop.f32.mrb[0].mxu0
      %v6152 = vadd.f32 %v5801, %v6151
      %v6153 = vpop.f32.mrb[0].mxu0
      %v6154 = vadd.f32 %v5801, %v6153
      %6155 = vmatprep.mubr.bf16.mxu0 %v5940
      %6156 = vmatmul.mubr.bf16.gmra.mrb[0].mxu0 %v5939
      %v6157 = vpop.f32.mrb[0].mxu0
      %v6158 = vadd.f32 %v5806, %v6157
      %v6159 = vpop.f32.mrb[0].mxu0
      %v6160 = vadd.f32 %v5806, %v6159
      %v6161 = vpop.f32.mrb[0].mxu0
      %v6162 = vadd.f32 %v5811, %v6161
      %v6163 = vpop.f32.mrb[0].mxu0
      %v6164 = vadd.f32 %v5811, %v6163
      %6165 = vdwg.mxu0
      %v6166 = vmul.f32 %v6008, 0.01
      %v6167 = vmul.f32 %v6010, 0.01
      %v6168 = vmul.f32 %v6012, 0.01
      %v6169 = vmul.f32 %v6014, 0.01
      %v6170 = vmul.f32 %v6018, 0.01
      %v6171 = vmul.f32 %v6020, 0.01
      %v6172 = vmul.f32 %v6022, 0.01
      %v6173 = vmul.f32 %v6024, 0.01
      %v6174 = vmul.f32 %v6028, 0.01
      %v6175 = vmul.f32 %v6030, 0.01
      %v6176 = vmul.f32 %v6032, 0.01
      %v6177 = vmul.f32 %v6034, 0.01
      %v6178 = vmul.f32 %v6038, 0.01
      %v6179 = vmul.f32 %v6040, 0.01
      %v6180 = vmul.f32 %v6042, 0.01
      %v6181 = vmul.f32 %v6044, 0.01
      %v6182 = vmul.f32 %v6048, 0.01
      %v6183 = vmul.f32 %v6050, 0.01
      %v6184 = vmul.f32 %v6052, 0.01
      %v6185 = vmul.f32 %v6054, 0.01
      %v6186 = vmul.f32 %v6058, 0.01
      %v6187 = vmul.f32 %v6060, 0.01
      %v6188 = vmul.f32 %v6062, 0.01
      %v6189 = vmul.f32 %v6064, 0.01
      %v6190 = vmul.f32 %v6068, 0.01
      %v6191 = vmul.f32 %v6070, 0.01
      %v6192 = vmul.f32 %v6072, 0.01
      %v6193 = vmul.f32 %v6074, 0.01
      %v6194 = vmul.f32 %v6078, 0.01
      %v6195 = vmul.f32 %v6080, 0.01
      %v6196 = vmul.f32 %v6082, 0.01
      %v6197 = vmul.f32 %v6084, 0.01
      %v6198 = vmul.f32 %v6088, 0.01
      %v6199 = vmul.f32 %v6090, 0.01
      %v6200 = vmul.f32 %v6092, 0.01
      %v6201 = vmul.f32 %v6094, 0.01
      %v6202 = vmul.f32 %v6098, 0.01
      %v6203 = vmul.f32 %v6100, 0.01
      %v6204 = vmul.f32 %v6102, 0.01
      %v6205 = vmul.f32 %v6104, 0.01
      %v6206 = vmul.f32 %v6108, 0.01
      %v6207 = vmul.f32 %v6110, 0.01
      %v6208 = vmul.f32 %v6112, 0.01
      %v6209 = vmul.f32 %v6114, 0.01
      %v6210 = vmul.f32 %v6118, 0.01
      %v6211 = vmul.f32 %v6120, 0.01
      %v6212 = vmul.f32 %v6122, 0.01
      %v6213 = vmul.f32 %v6124, 0.01
      %v6214 = vmul.f32 %v6128, 0.01
      %v6215 = vmul.f32 %v6130, 0.01
      %v6216 = vmul.f32 %v6132, 0.01
      %v6217 = vmul.f32 %v6134, 0.01
      %v6218 = vmul.f32 %v6138, 0.01
      %v6219 = vmul.f32 %v6140, 0.01
      %v6220 = vmul.f32 %v6142, 0.01
      %v6221 = vmul.f32 %v6144, 0.01
      %v6222 = vmul.f32 %v6148, 0.01
      %v6223 = vmul.f32 %v6150, 0.01
      %v6224 = vmul.f32 %v6152, 0.01
      %v6225 = vmul.f32 %v6154, 0.01
      %v6226 = vmul.f32 %v6158, 0.01
      %v6227 = vmul.f32 %v6160, 0.01
      %v6228 = vmul.f32 %v6162, 0.01
      %v6229 = vmul.f32 %v6164, 0.01
      %v6230 = vmax.f32 %v6008, %v6166
      %v6231 = vmax.f32 %v6010, %v6167
      %v6232 = vmax.f32 %v6012, %v6168
      %v6233 = vmax.f32 %v6014, %v6169
      %v6234 = vmax.f32 %v6018, %v6170
      %v6235 = vmax.f32 %v6020, %v6171
      %v6236 = vmax.f32 %v6022, %v6172
      %v6237 = vmax.f32 %v6024, %v6173
      %v6238 = vmax.f32 %v6028, %v6174
      %v6239 = vmax.f32 %v6030, %v6175
      %v6240 = vmax.f32 %v6032, %v6176
      %v6241 = vmax.f32 %v6034, %v6177
      %v6242 = vmax.f32 %v6038, %v6178
      %v6243 = vmax.f32 %v6040, %v6179
      %v6244 = vmax.f32 %v6042, %v6180
      %v6245 = vmax.f32 %v6044, %v6181
      %v6246 = vmax.f32 %v6048, %v6182
      %v6247 = vmax.f32 %v6050, %v6183
      %v6248 = vmax.f32 %v6052, %v6184
      %v6249 = vmax.f32 %v6054, %v6185
      %v6250 = vmax.f32 %v6058, %v6186
      %v6251 = vmax.f32 %v6060, %v6187
      %v6252 = vmax.f32 %v6062, %v6188
      %v6253 = vmax.f32 %v6064, %v6189
      %v6254 = vmax.f32 %v6068, %v6190
      %v6255 = vmax.f32 %v6070, %v6191
      %v6256 = vmax.f32 %v6072, %v6192
      %v6257 = vmax.f32 %v6074, %v6193
      %v6258 = vmax.f32 %v6078, %v6194
      %v6259 = vmax.f32 %v6080, %v6195
      %v6260 = vmax.f32 %v6082, %v6196
      %v6261 = vmax.f32 %v6084, %v6197
      %v6262 = vmax.f32 %v6088, %v6198
      %v6263 = vmax.f32 %v6090, %v6199
      %v6264 = vmax.f32 %v6092, %v6200
      %v6265 = vmax.f32 %v6094, %v6201
      %v6266 = vmax.f32 %v6098, %v6202
      %v6267 = vmax.f32 %v6100, %v6203
      %v6268 = vmax.f32 %v6102, %v6204
      %v6269 = vmax.f32 %v6104, %v6205
      %v6270 = vmax.f32 %v6108, %v6206
      %v6271 = vmax.f32 %v6110, %v6207
      %v6272 = vmax.f32 %v6112, %v6208
      %v6273 = vmax.f32 %v6114, %v6209
      %v6274 = vmax.f32 %v6118, %v6210
      %v6275 = vmax.f32 %v6120, %v6211
      %v6276 = vmax.f32 %v6122, %v6212
      %v6277 = vmax.f32 %v6124, %v6213
      %v6278 = vmax.f32 %v6128, %v6214
      %v6279 = vmax.f32 %v6130, %v6215
      %v6280 = vmax.f32 %v6132, %v6216
      %v6281 = vmax.f32 %v6134, %v6217
      %v6282 = vmax.f32 %v6138, %v6218
      %v6283 = vmax.f32 %v6140, %v6219
      %v6284 = vmax.f32 %v6142, %v6220
      %v6285 = vmax.f32 %v6144, %v6221
      %v6286 = vmax.f32 %v6148, %v6222
      %v6287 = vmax.f32 %v6150, %v6223
      %v6288 = vmax.f32 %v6152, %v6224
      %v6289 = vmax.f32 %v6154, %v6225
      %v6290 = vmax.f32 %v6158, %v6226
      %v6291 = vmax.f32 %v6160, %v6227
      %v6292 = vmax.f32 %v6162, %v6228
      %v6293 = vmax.f32 %v6164, %v6229
      %s6294 = scalar_lea.vmem %s5, 768
      %v6295 = vld [vmem:[%s6294] sm:$0xff]
      %v6296 = vld [vmem:[%s6294 + $0x8] sm:$0xff]
      %v6297 = vld [vmem:[%s6294 + $0x10] sm:$0xff]
      %v6298 = vld [vmem:[%s6294 + $0x18] sm:$0xff]
      %v6299 = vld [vmem:[%s6294 + $0x20] sm:$0xff]
      %v6300 = vld [vmem:[%s6294 + $0x28] sm:$0xff]
      %v6301 = vld [vmem:[%s6294 + $0x30] sm:$0xff]
      %v6302 = vld [vmem:[%s6294 + $0x38] sm:$0xff]
      %v6303 = vld [vmem:[%s6294 + $0x40] sm:$0xff]
      %v6304 = vld [vmem:[%s6294 + $0x48] sm:$0xff]
      %v6305 = vld [vmem:[%s6294 + $0x50] sm:$0xff]
      %v6306 = vld [vmem:[%s6294 + $0x58] sm:$0xff]
      %v6307 = vld [vmem:[%s6294 + $0x60] sm:$0xff]
      %v6308 = vld [vmem:[%s6294 + $0x68] sm:$0xff]
      %v6309 = vld [vmem:[%s6294 + $0x70] sm:$0xff]
      %v6310 = vld [vmem:[%s6294 + $0x78] sm:$0xff]
      %v6311 = vld [vmem:[%s6294 + $0x80] sm:$0xff]
      %v6312 = vld [vmem:[%s6294 + $0x88] sm:$0xff]
      %v6313 = vld [vmem:[%s6294 + $0x90] sm:$0xff]
      %v6314 = vld [vmem:[%s6294 + $0x98] sm:$0xff]
      %v6315 = vld [vmem:[%s6294 + $0xa0] sm:$0xff]
      %v6316 = vld [vmem:[%s6294 + $0xa8] sm:$0xff]
      %v6317 = vld [vmem:[%s6294 + $0xb0] sm:$0xff]
      %v6318 = vld [vmem:[%s6294 + $0xb8] sm:$0xff]
      %v6319 = vld [vmem:[%s6294 + $0xc0] sm:$0xff]
      %v6320 = vld [vmem:[%s6294 + $0xc8] sm:$0xff]
      %v6321 = vld [vmem:[%s6294 + $0xd0] sm:$0xff]
      %v6322 = vld [vmem:[%s6294 + $0xd8] sm:$0xff]
      %v6323 = vld [vmem:[%s6294 + $0xe0] sm:$0xff]
      %v6324 = vld [vmem:[%s6294 + $0xe8] sm:$0xff]
      %v6325 = vld [vmem:[%s6294 + $0xf0] sm:$0xff]
      %v6326 = vld [vmem:[%s6294 + $0xf8] sm:$0xff]
      %v6327 = vpack.c.bf16 %v6232, %v6230
      %v6328 = vpack.c.bf16 %v6233, %v6231
      %v6329 = vpack.c.bf16 %v6236, %v6234
      %v6330 = vpack.c.bf16 %v6237, %v6235
      %v6331 = vpack.c.bf16 %v6240, %v6238
      %v6332 = vpack.c.bf16 %v6241, %v6239
      %v6333 = vpack.c.bf16 %v6244, %v6242
      %v6334 = vpack.c.bf16 %v6245, %v6243
      %v6335 = vpack.c.bf16 %v6248, %v6246
      %v6336 = vpack.c.bf16 %v6249, %v6247
      %v6337 = vpack.c.bf16 %v6252, %v6250
      %v6338 = vpack.c.bf16 %v6253, %v6251
      %v6339 = vpack.c.bf16 %v6256, %v6254
      %v6340 = vpack.c.bf16 %v6257, %v6255
      %v6341 = vpack.c.bf16 %v6260, %v6258
      %v6342 = vpack.c.bf16 %v6261, %v6259
      %v6343 = vpack.c.bf16 %v6264, %v6262
      %v6344 = vpack.c.bf16 %v6265, %v6263
      %v6345 = vpack.c.bf16 %v6268, %v6266
      %v6346 = vpack.c.bf16 %v6269, %v6267
      %v6347 = vpack.c.bf16 %v6272, %v6270
      %v6348 = vpack.c.bf16 %v6273, %v6271
      %v6349 = vpack.c.bf16 %v6276, %v6274
      %v6350 = vpack.c.bf16 %v6277, %v6275
      %v6351 = vpack.c.bf16 %v6280, %v6278
      %v6352 = vpack.c.bf16 %v6281, %v6279
      %v6353 = vpack.c.bf16 %v6284, %v6282
      %v6354 = vpack.c.bf16 %v6285, %v6283
      %v6355 = vpack.c.bf16 %v6288, %v6286
      %v6356 = vpack.c.bf16 %v6289, %v6287
      %v6357 = vpack.c.bf16 %v6292, %v6290
      %v6358 = vpack.c.bf16 %v6293, %v6291
      %s6359 = scalar_lea.vmem %s6, 768
      %v6360 = vld [vmem:[%s6359] sm:$0xff]
      %v6361 = vld [vmem:[%s6359 + $0x8] sm:$0xff]
      %v6362 = vld [vmem:[%s6359 + $0x10] sm:$0xff]
      %v6363 = vld [vmem:[%s6359 + $0x18] sm:$0xff]
      %v6364 = vld [vmem:[%s6359 + $0x20] sm:$0xff]
      %v6365 = vld [vmem:[%s6359 + $0x28] sm:$0xff]
      %v6366 = vld [vmem:[%s6359 + $0x30] sm:$0xff]
      %v6367 = vld [vmem:[%s6359 + $0x38] sm:$0xff]
      %v6368 = vld [vmem:[%s6359 + $0x40] sm:$0xff]
      %v6369 = vld [vmem:[%s6359 + $0x48] sm:$0xff]
      %v6370 = vld [vmem:[%s6359 + $0x50] sm:$0xff]
      %v6371 = vld [vmem:[%s6359 + $0x58] sm:$0xff]
      %v6372 = vld [vmem:[%s6359 + $0x60] sm:$0xff]
      %v6373 = vld [vmem:[%s6359 + $0x68] sm:$0xff]
      %v6374 = vld [vmem:[%s6359 + $0x70] sm:$0xff]
      %v6375 = vld [vmem:[%s6359 + $0x78] sm:$0xff]
      %v6376 = vld [vmem:[%s6359 + $0x80] sm:$0xff]
      %v6377 = vld [vmem:[%s6359 + $0x88] sm:$0xff]
      %v6378 = vld [vmem:[%s6359 + $0x90] sm:$0xff]
      %v6379 = vld [vmem:[%s6359 + $0x98] sm:$0xff]
      %v6380 = vld [vmem:[%s6359 + $0xa0] sm:$0xff]
      %v6381 = vld [vmem:[%s6359 + $0xa8] sm:$0xff]
      %v6382 = vld [vmem:[%s6359 + $0xb0] sm:$0xff]
      %v6383 = vld [vmem:[%s6359 + $0xb8] sm:$0xff]
      %v6384 = vld [vmem:[%s6359 + $0xc0] sm:$0xff]
      %v6385 = vld [vmem:[%s6359 + $0xc8] sm:$0xff]
      %v6386 = vld [vmem:[%s6359 + $0xd0] sm:$0xff]
      %v6387 = vld [vmem:[%s6359 + $0xd8] sm:$0xff]
      %v6388 = vld [vmem:[%s6359 + $0xe0] sm:$0xff]
      %v6389 = vld [vmem:[%s6359 + $0xe8] sm:$0xff]
      %v6390 = vld [vmem:[%s6359 + $0xf0] sm:$0xff]
      %v6391 = vld [vmem:[%s6359 + $0xf8] sm:$0xff]
      %6393 = vset.pattern.permute.xlu0 0
      %6394 = vperm.xlu0 %6393, %v6360
      %v6395 = vpop.permute.xlu0 %6394
      %6398 = vset.pattern.permute.xlu0 0
      %6399 = vperm.xlu0 %6398, %v6361
      %v6400 = vpop.permute.xlu0 %6399
      %6403 = vset.pattern.permute.xlu0 0
      %6404 = vperm.xlu0 %6403, %v6362
      %v6405 = vpop.permute.xlu0 %6404
      %6408 = vset.pattern.permute.xlu0 0
      %6409 = vperm.xlu0 %6408, %v6363
      %v6410 = vpop.permute.xlu0 %6409
      %6413 = vset.pattern.permute.xlu0 0
      %6414 = vperm.xlu0 %6413, %v6364
      %v6415 = vpop.permute.xlu0 %6414
      %6418 = vset.pattern.permute.xlu0 0
      %6419 = vperm.xlu0 %6418, %v6365
      %v6420 = vpop.permute.xlu0 %6419
      %6423 = vset.pattern.permute.xlu0 0
      %6424 = vperm.xlu0 %6423, %v6366
      %v6425 = vpop.permute.xlu0 %6424
      %6428 = vset.pattern.permute.xlu0 0
      %6429 = vperm.xlu0 %6428, %v6367
      %v6430 = vpop.permute.xlu0 %6429
      %6433 = vset.pattern.permute.xlu0 0
      %6434 = vperm.xlu0 %6433, %v6368
      %v6435 = vpop.permute.xlu0 %6434
      %6438 = vset.pattern.permute.xlu0 0
      %6439 = vperm.xlu0 %6438, %v6369
      %v6440 = vpop.permute.xlu0 %6439
      %6443 = vset.pattern.permute.xlu0 0
      %6444 = vperm.xlu0 %6443, %v6370
      %v6445 = vpop.permute.xlu0 %6444
      %6448 = vset.pattern.permute.xlu0 0
      %6449 = vperm.xlu0 %6448, %v6371
      %v6450 = vpop.permute.xlu0 %6449
      %6453 = vset.pattern.permute.xlu0 0
      %6454 = vperm.xlu0 %6453, %v6372
      %v6455 = vpop.permute.xlu0 %6454
      %6458 = vset.pattern.permute.xlu0 0
      %6459 = vperm.xlu0 %6458, %v6373
      %v6460 = vpop.permute.xlu0 %6459
      %6463 = vset.pattern.permute.xlu0 0
      %6464 = vperm.xlu0 %6463, %v6374
      %v6465 = vpop.permute.xlu0 %6464
      %6468 = vset.pattern.permute.xlu0 0
      %6469 = vperm.xlu0 %6468, %v6375
      %v6470 = vpop.permute.xlu0 %6469
      %6473 = vset.pattern.permute.xlu0 0
      %6474 = vperm.xlu0 %6473, %v6376
      %v6475 = vpop.permute.xlu0 %6474
      %6478 = vset.pattern.permute.xlu0 0
      %6479 = vperm.xlu0 %6478, %v6377
      %v6480 = vpop.permute.xlu0 %6479
      %6483 = vset.pattern.permute.xlu0 0
      %6484 = vperm.xlu0 %6483, %v6378
      %v6485 = vpop.permute.xlu0 %6484
      %6488 = vset.pattern.permute.xlu0 0
      %6489 = vperm.xlu0 %6488, %v6379
      %v6490 = vpop.permute.xlu0 %6489
      %6493 = vset.pattern.permute.xlu0 0
      %6494 = vperm.xlu0 %6493, %v6380
      %v6495 = vpop.permute.xlu0 %6494
      %6498 = vset.pattern.permute.xlu0 0
      %6499 = vperm.xlu0 %6498, %v6381
      %v6500 = vpop.permute.xlu0 %6499
      %6503 = vset.pattern.permute.xlu0 0
      %6504 = vperm.xlu0 %6503, %v6382
      %v6505 = vpop.permute.xlu0 %6504
      %6508 = vset.pattern.permute.xlu0 0
      %6509 = vperm.xlu0 %6508, %v6383
      %v6510 = vpop.permute.xlu0 %6509
      %6513 = vset.pattern.permute.xlu0 0
      %6514 = vperm.xlu0 %6513, %v6384
      %v6515 = vpop.permute.xlu0 %6514
      %6518 = vset.pattern.permute.xlu0 0
      %6519 = vperm.xlu0 %6518, %v6385
      %v6520 = vpop.permute.xlu0 %6519
      %6523 = vset.pattern.permute.xlu0 0
      %6524 = vperm.xlu0 %6523, %v6386
      %v6525 = vpop.permute.xlu0 %6524
      %6528 = vset.pattern.permute.xlu0 0
      %6529 = vperm.xlu0 %6528, %v6387
      %v6530 = vpop.permute.xlu0 %6529
      %6533 = vset.pattern.permute.xlu0 0
      %6534 = vperm.xlu0 %6533, %v6388
      %v6535 = vpop.permute.xlu0 %6534
      %6538 = vset.pattern.permute.xlu0 0
      %6539 = vperm.xlu0 %6538, %v6389
      %v6540 = vpop.permute.xlu0 %6539
      %6543 = vset.pattern.permute.xlu0 0
      %6544 = vperm.xlu0 %6543, %v6390
      %v6545 = vpop.permute.xlu0 %6544
      %6548 = vset.pattern.permute.xlu0 0
      %6549 = vperm.xlu0 %6548, %v6391
      %v6550 = vpop.permute.xlu0 %6549
      %v6584 = vunpack.c.l.b16 %v6295
      %v6585 = vunpack.c.h.b16 %v6295
      %v6586 = vunpack.c.l.b16 %v6296
      %v6587 = vunpack.c.h.b16 %v6296
      %v6588 = vunpack.c.l.b16 %v6297
      %v6589 = vunpack.c.h.b16 %v6297
      %v6590 = vunpack.c.l.b16 %v6298
      %v6591 = vunpack.c.h.b16 %v6298
      %v6592 = vunpack.c.l.b16 %v6299
      %v6593 = vunpack.c.h.b16 %v6299
      %v6594 = vunpack.c.l.b16 %v6300
      %v6595 = vunpack.c.h.b16 %v6300
      %v6596 = vunpack.c.l.b16 %v6301
      %v6597 = vunpack.c.h.b16 %v6301
      %v6598 = vunpack.c.l.b16 %v6302
      %v6599 = vunpack.c.h.b16 %v6302
      %v6600 = vunpack.c.l.b16 %v6303
      %v6601 = vunpack.c.h.b16 %v6303
      %v6602 = vunpack.c.l.b16 %v6304
      %v6603 = vunpack.c.h.b16 %v6304
      %v6604 = vunpack.c.l.b16 %v6305
      %v6605 = vunpack.c.h.b16 %v6305
      %v6606 = vunpack.c.l.b16 %v6306
      %v6607 = vunpack.c.h.b16 %v6306
      %v6608 = vunpack.c.l.b16 %v6307
      %v6609 = vunpack.c.h.b16 %v6307
      %v6610 = vunpack.c.l.b16 %v6308
      %v6611 = vunpack.c.h.b16 %v6308
      %v6612 = vunpack.c.l.b16 %v6309
      %v6613 = vunpack.c.h.b16 %v6309
      %v6614 = vunpack.c.l.b16 %v6310
      %v6615 = vunpack.c.h.b16 %v6310
      %v6616 = vunpack.c.l.b16 %v6311
      %v6617 = vunpack.c.h.b16 %v6311
      %v6618 = vunpack.c.l.b16 %v6312
      %v6619 = vunpack.c.h.b16 %v6312
      %v6620 = vunpack.c.l.b16 %v6313
      %v6621 = vunpack.c.h.b16 %v6313
      %v6622 = vunpack.c.l.b16 %v6314
      %v6623 = vunpack.c.h.b16 %v6314
      %v6624 = vunpack.c.l.b16 %v6315
      %v6625 = vunpack.c.h.b16 %v6315
      %v6626 = vunpack.c.l.b16 %v6316
      %v6627 = vunpack.c.h.b16 %v6316
      %v6628 = vunpack.c.l.b16 %v6317
      %v6629 = vunpack.c.h.b16 %v6317
      %v6630 = vunpack.c.l.b16 %v6318
      %v6631 = vunpack.c.h.b16 %v6318
      %v6632 = vunpack.c.l.b16 %v6319
      %v6633 = vunpack.c.h.b16 %v6319
      %v6634 = vunpack.c.l.b16 %v6320
      %v6635 = vunpack.c.h.b16 %v6320
      %v6636 = vunpack.c.l.b16 %v6321
      %v6637 = vunpack.c.h.b16 %v6321
      %v6638 = vunpack.c.l.b16 %v6322
      %v6639 = vunpack.c.h.b16 %v6322
      %v6640 = vunpack.c.l.b16 %v6323
      %v6641 = vunpack.c.h.b16 %v6323
      %v6642 = vunpack.c.l.b16 %v6324
      %v6643 = vunpack.c.h.b16 %v6324
      %v6644 = vunpack.c.l.b16 %v6325
      %v6645 = vunpack.c.h.b16 %v6325
      %v6646 = vunpack.c.l.b16 %v6326
      %v6647 = vunpack.c.h.b16 %v6326
      %v6648 = vpack.c.b16 %v6586, %v6584
      %v6649 = vpack.c.b16 %v6587, %v6585
      %v6650 = vpack.c.b16 %v6590, %v6588
      %v6651 = vpack.c.b16 %v6591, %v6589
      %v6652 = vpack.c.b16 %v6594, %v6592
      %v6653 = vpack.c.b16 %v6595, %v6593
      %v6654 = vpack.c.b16 %v6598, %v6596
      %v6655 = vpack.c.b16 %v6599, %v6597
      %v6656 = vpack.c.b16 %v6602, %v6600
      %v6657 = vpack.c.b16 %v6603, %v6601
      %v6658 = vpack.c.b16 %v6606, %v6604
      %v6659 = vpack.c.b16 %v6607, %v6605
      %v6660 = vpack.c.b16 %v6610, %v6608
      %v6661 = vpack.c.b16 %v6611, %v6609
      %v6662 = vpack.c.b16 %v6614, %v6612
      %v6663 = vpack.c.b16 %v6615, %v6613
      %v6664 = vpack.c.b16 %v6618, %v6616
      %v6665 = vpack.c.b16 %v6619, %v6617
      %v6666 = vpack.c.b16 %v6622, %v6620
      %v6667 = vpack.c.b16 %v6623, %v6621
      %v6668 = vpack.c.b16 %v6626, %v6624
      %v6669 = vpack.c.b16 %v6627, %v6625
      %v6670 = vpack.c.b16 %v6630, %v6628
      %v6671 = vpack.c.b16 %v6631, %v6629
      %v6672 = vpack.c.b16 %v6634, %v6632
      %v6673 = vpack.c.b16 %v6635, %v6633
      %v6674 = vpack.c.b16 %v6638, %v6636
      %v6675 = vpack.c.b16 %v6639, %v6637
      %v6676 = vpack.c.b16 %v6642, %v6640
      %v6677 = vpack.c.b16 %v6643, %v6641
      %v6678 = vpack.c.b16 %v6646, %v6644
      %v6679 = vpack.c.b16 %v6647, %v6645
      %6712 = vmatprep.subr.bf16.mxu0 %v6328
      %6713 = vmatpush1.bf16.msra.mxu0 %v6327
      %6714 = vmatprep.subr.bf16.mxu0 %v6330
      %6715 = vmatpush1.bf16.msra.mxu0 %v6329
      %6716 = vmatprep.subr.bf16.mxu0 %v6332
      %6717 = vmatpush1.bf16.msra.mxu0 %v6331
      %6718 = vmatprep.subr.bf16.mxu0 %v6334
      %6719 = vmatpush1.bf16.msra.mxu0 %v6333
      %6720 = vmatprep.subr.bf16.mxu0 %v6336
      %6721 = vmatpush1.bf16.msra.mxu0 %v6335
      %6722 = vmatprep.subr.bf16.mxu0 %v6338
      %6723 = vmatpush1.bf16.msra.mxu0 %v6337
      %6724 = vmatprep.subr.bf16.mxu0 %v6340
      %6725 = vmatpush1.bf16.msra.mxu0 %v6339
      %6726 = vmatprep.subr.bf16.mxu0 %v6342
      %6727 = vmatpush1.bf16.msra.mxu0 %v6341
      %6728 = vmatprep.subr.bf16.mxu0 %v6344
      %6729 = vmatpush1.bf16.msra.mxu0 %v6343
      %6730 = vmatprep.subr.bf16.mxu0 %v6346
      %6731 = vmatpush1.bf16.msra.mxu0 %v6345
      %6732 = vmatprep.subr.bf16.mxu0 %v6348
      %6733 = vmatpush1.bf16.msra.mxu0 %v6347
      %6734 = vmatprep.subr.bf16.mxu0 %v6350
      %6735 = vmatpush1.bf16.msra.mxu0 %v6349
      %6736 = vmatprep.subr.bf16.mxu0 %v6352
      %6737 = vmatpush1.bf16.msra.mxu0 %v6351
      %6738 = vmatprep.subr.bf16.mxu0 %v6354
      %6739 = vmatpush1.bf16.msra.mxu0 %v6353
      %6740 = vmatprep.subr.bf16.mxu0 %v6356
      %6741 = vmatpush1.bf16.msra.mxu0 %v6355
      %6742 = vmatprep.subr.bf16.mxu0 %v6358
      %6743 = vmatpush1.bf16.msra.mxu0 %v6357
      %6744 = vmatprep.mubr.bf16.mxu0 %v6649
      %6745 = vmatmul.mubr.bf16.gmra.mrb[0].mxu0 %v6648
      %v6746 = vpop.f32.mrb[0].mxu0
      %v6747 = vadd.f32 %v6395, %v6746
      %v6748 = vpop.f32.mrb[0].mxu0
      %v6749 = vadd.f32 %v6395, %v6748
      %v6750 = vpop.f32.mrb[0].mxu0
      %v6751 = vadd.f32 %v6400, %v6750
      %v6752 = vpop.f32.mrb[0].mxu0
      %v6753 = vadd.f32 %v6400, %v6752
      %6754 = vmatprep.mubr.bf16.mxu0 %v6651
      %6755 = vmatmul.mubr.bf16.gmra.mrb[0].mxu0 %v6650
      %v6756 = vpop.f32.mrb[0].mxu0
      %v6757 = vadd.f32 %v6405, %v6756
      %v6758 = vpop.f32.mrb[0].mxu0
      %v6759 = vadd.f32 %v6405, %v6758
      %v6760 = vpop.f32.mrb[0].mxu0
      %v6761 = vadd.f32 %v6410, %v6760
      %v6762 = vpop.f32.mrb[0].mxu0
      %v6763 = vadd.f32 %v6410, %v6762
      %6764 = vmatprep.mubr.bf16.mxu0 %v6653
      %6765 = vmatmul.mubr.bf16.gmra.mrb[0].mxu0 %v6652
      %v6766 = vpop.f32.mrb[0].mxu0
      %v6767 = vadd.f32 %v6415, %v6766
      %v6768 = vpop.f32.mrb[0].mxu0
      %v6769 = vadd.f32 %v6415, %v6768
      %v6770 = vpop.f32.mrb[0].mxu0
      %v6771 = vadd.f32 %v6420, %v6770
      %v6772 = vpop.f32.mrb[0].mxu0
      %v6773 = vadd.f32 %v6420, %v6772
      %6774 = vmatprep.mubr.bf16.mxu0 %v6655
      %6775 = vmatmul.mubr.bf16.gmra.mrb[0].mxu0 %v6654
      %v6776 = vpop.f32.mrb[0].mxu0
      %v6777 = vadd.f32 %v6425, %v6776
      %v6778 = vpop.f32.mrb[0].mxu0
      %v6779 = vadd.f32 %v6425, %v6778
      %v6780 = vpop.f32.mrb[0].mxu0
      %v6781 = vadd.f32 %v6430, %v6780
      %v6782 = vpop.f32.mrb[0].mxu0
      %v6783 = vadd.f32 %v6430, %v6782
      %6784 = vmatprep.mubr.bf16.mxu0 %v6657
      %6785 = vmatmul.mubr.bf16.gmra.mrb[0].mxu0 %v6656
      %v6786 = vpop.f32.mrb[0].mxu0
      %v6787 = vadd.f32 %v6435, %v6786
      %v6788 = vpop.f32.mrb[0].mxu0
      %v6789 = vadd.f32 %v6435, %v6788
      %v6790 = vpop.f32.mrb[0].mxu0
      %v6791 = vadd.f32 %v6440, %v6790
      %v6792 = vpop.f32.mrb[0].mxu0
      %v6793 = vadd.f32 %v6440, %v6792
      %6794 = vmatprep.mubr.bf16.mxu0 %v6659
      %6795 = vmatmul.mubr.bf16.gmra.mrb[0].mxu0 %v6658
      %v6796 = vpop.f32.mrb[0].mxu0
      %v6797 = vadd.f32 %v6445, %v6796
      %v6798 = vpop.f32.mrb[0].mxu0
      %v6799 = vadd.f32 %v6445, %v6798
      %v6800 = vpop.f32.mrb[0].mxu0
      %v6801 = vadd.f32 %v6450, %v6800
      %v6802 = vpop.f32.mrb[0].mxu0
      %v6803 = vadd.f32 %v6450, %v6802
      %6804 = vmatprep.mubr.bf16.mxu0 %v6661
      %6805 = vmatmul.mubr.bf16.gmra.mrb[0].mxu0 %v6660
      %v6806 = vpop.f32.mrb[0].mxu0
      %v6807 = vadd.f32 %v6455, %v6806
      %v6808 = vpop.f32.mrb[0].mxu0
      %v6809 = vadd.f32 %v6455, %v6808
      %v6810 = vpop.f32.mrb[0].mxu0
      %v6811 = vadd.f32 %v6460, %v6810
      %v6812 = vpop.f32.mrb[0].mxu0
      %v6813 = vadd.f32 %v6460, %v6812
      %6814 = vmatprep.mubr.bf16.mxu0 %v6663
      %6815 = vmatmul.mubr.bf16.gmra.mrb[0].mxu0 %v6662
      %v6816 = vpop.f32.mrb[0].mxu0
      %v6817 = vadd.f32 %v6465, %v6816
      %v6818 = vpop.f32.mrb[0].mxu0
      %v6819 = vadd.f32 %v6465, %v6818
      %v6820 = vpop.f32.mrb[0].mxu0
      %v6821 = vadd.f32 %v6470, %v6820
      %v6822 = vpop.f32.mrb[0].mxu0
      %v6823 = vadd.f32 %v6470, %v6822
      %6824 = vmatprep.mubr.bf16.mxu0 %v6665
      %6825 = vmatmul.mubr.bf16.gmra.mrb[0].mxu0 %v6664
      %v6826 = vpop.f32.mrb[0].mxu0
      %v6827 = vadd.f32 %v6475, %v6826
      %v6828 = vpop.f32.mrb[0].mxu0
      %v6829 = vadd.f32 %v6475, %v6828
      %v6830 = vpop.f32.mrb[0].mxu0
      %v6831 = vadd.f32 %v6480, %v6830
      %v6832 = vpop.f32.mrb[0].mxu0
      %v6833 = vadd.f32 %v6480, %v6832
      %6834 = vmatprep.mubr.bf16.mxu0 %v6667
      %6835 = vmatmul.mubr.bf16.gmra.mrb[0].mxu0 %v6666
      %v6836 = vpop.f32.mrb[0].mxu0
      %v6837 = vadd.f32 %v6485, %v6836
      %v6838 = vpop.f32.mrb[0].mxu0
      %v6839 = vadd.f32 %v6485, %v6838
      %v6840 = vpop.f32.mrb[0].mxu0
      %v6841 = vadd.f32 %v6490, %v6840
      %v6842 = vpop.f32.mrb[0].mxu0
      %v6843 = vadd.f32 %v6490, %v6842
      %6844 = vmatprep.mubr.bf16.mxu0 %v6669
      %6845 = vmatmul.mubr.bf16.gmra.mrb[0].mxu0 %v6668
      %v6846 = vpop.f32.mrb[0].mxu0
      %v6847 = vadd.f32 %v6495, %v6846
      %v6848 = vpop.f32.mrb[0].mxu0
      %v6849 = vadd.f32 %v6495, %v6848
      %v6850 = vpop.f32.mrb[0].mxu0
      %v6851 = vadd.f32 %v6500, %v6850
      %v6852 = vpop.f32.mrb[0].mxu0
      %v6853 = vadd.f32 %v6500, %v6852
      %6854 = vmatprep.mubr.bf16.mxu0 %v6671
      %6855 = vmatmul.mubr.bf16.gmra.mrb[0].mxu0 %v6670
      %v6856 = vpop.f32.mrb[0].mxu0
      %v6857 = vadd.f32 %v6505, %v6856
      %v6858 = vpop.f32.mrb[0].mxu0
      %v6859 = vadd.f32 %v6505, %v6858
      %v6860 = vpop.f32.mrb[0].mxu0
      %v6861 = vadd.f32 %v6510, %v6860
      %v6862 = vpop.f32.mrb[0].mxu0
      %v6863 = vadd.f32 %v6510, %v6862
      %6864 = vmatprep.mubr.bf16.mxu0 %v6673
      %6865 = vmatmul.mubr.bf16.gmra.mrb[0].mxu0 %v6672
      %v6866 = vpop.f32.mrb[0].mxu0
      %v6867 = vadd.f32 %v6515, %v6866
      %v6868 = vpop.f32.mrb[0].mxu0
      %v6869 = vadd.f32 %v6515, %v6868
      %v6870 = vpop.f32.mrb[0].mxu0
      %v6871 = vadd.f32 %v6520, %v6870
      %v6872 = vpop.f32.mrb[0].mxu0
      %v6873 = vadd.f32 %v6520, %v6872
      %6874 = vmatprep.mubr.bf16.mxu0 %v6675
      %6875 = vmatmul.mubr.bf16.gmra.mrb[0].mxu0 %v6674
      %v6876 = vpop.f32.mrb[0].mxu0
      %v6877 = vadd.f32 %v6525, %v6876
      %v6878 = vpop.f32.mrb[0].mxu0
      %v6879 = vadd.f32 %v6525, %v6878
      %v6880 = vpop.f32.mrb[0].mxu0
      %v6881 = vadd.f32 %v6530, %v6880
      %v6882 = vpop.f32.mrb[0].mxu0
      %v6883 = vadd.f32 %v6530, %v6882
      %6884 = vmatprep.mubr.bf16.mxu0 %v6677
      %6885 = vmatmul.mubr.bf16.gmra.mrb[0].mxu0 %v6676
      %v6886 = vpop.f32.mrb[0].mxu0
      %v6887 = vadd.f32 %v6535, %v6886
      %v6888 = vpop.f32.mrb[0].mxu0
      %v6889 = vadd.f32 %v6535, %v6888
      %v6890 = vpop.f32.mrb[0].mxu0
      %v6891 = vadd.f32 %v6540, %v6890
      %v6892 = vpop.f32.mrb[0].mxu0
      %v6893 = vadd.f32 %v6540, %v6892
      %6894 = vmatprep.mubr.bf16.mxu0 %v6679
      %6895 = vmatmul.mubr.bf16.gmra.mrb[0].mxu0 %v6678
      %v6896 = vpop.f32.mrb[0].mxu0
      %v6897 = vadd.f32 %v6545, %v6896
      %v6898 = vpop.f32.mrb[0].mxu0
      %v6899 = vadd.f32 %v6545, %v6898
      %v6900 = vpop.f32.mrb[0].mxu0
      %v6901 = vadd.f32 %v6550, %v6900
      %v6902 = vpop.f32.mrb[0].mxu0
      %v6903 = vadd.f32 %v6550, %v6902
      %6904 = vdwg.mxu0
      %v6905 = vadd.f32 %v5491, %v6747
      %v6906 = vadd.f32 %v5492, %v6749
      %v6907 = vadd.f32 %v5493, %v6751
      %v6908 = vadd.f32 %v5494, %v6753
      %v6909 = vadd.f32 %v5495, %v6757
      %v6910 = vadd.f32 %v5496, %v6759
      %v6911 = vadd.f32 %v5497, %v6761
      %v6912 = vadd.f32 %v5498, %v6763
      %v6913 = vadd.f32 %v5499, %v6767
      %v6914 = vadd.f32 %v5500, %v6769
      %v6915 = vadd.f32 %v5501, %v6771
      %v6916 = vadd.f32 %v5502, %v6773
      %v6917 = vadd.f32 %v5503, %v6777
      %v6918 = vadd.f32 %v5504, %v6779
      %v6919 = vadd.f32 %v5505, %v6781
      %v6920 = vadd.f32 %v5506, %v6783
      %v6921 = vadd.f32 %v5507, %v6787
      %v6922 = vadd.f32 %v5508, %v6789
      %v6923 = vadd.f32 %v5509, %v6791
      %v6924 = vadd.f32 %v5510, %v6793
      %v6925 = vadd.f32 %v5511, %v6797
      %v6926 = vadd.f32 %v5512, %v6799
      %v6927 = vadd.f32 %v5513, %v6801
      %v6928 = vadd.f32 %v5514, %v6803
      %v6929 = vadd.f32 %v5515, %v6807
      %v6930 = vadd.f32 %v5516, %v6809
      %v6931 = vadd.f32 %v5517, %v6811
      %v6932 = vadd.f32 %v5518, %v6813
      %v6933 = vadd.f32 %v5519, %v6817
      %v6934 = vadd.f32 %v5520, %v6819
      %v6935 = vadd.f32 %v5521, %v6821
      %v6936 = vadd.f32 %v5522, %v6823
      %v6937 = vadd.f32 %v5523, %v6827
      %v6938 = vadd.f32 %v5524, %v6829
      %v6939 = vadd.f32 %v5525, %v6831
      %v6940 = vadd.f32 %v5526, %v6833
      %v6941 = vadd.f32 %v5527, %v6837
      %v6942 = vadd.f32 %v5528, %v6839
      %v6943 = vadd.f32 %v5529, %v6841
      %v6944 = vadd.f32 %v5530, %v6843
      %v6945 = vadd.f32 %v5531, %v6847
      %v6946 = vadd.f32 %v5532, %v6849
      %v6947 = vadd.f32 %v5533, %v6851
      %v6948 = vadd.f32 %v5534, %v6853
      %v6949 = vadd.f32 %v5535, %v6857
      %v6950 = vadd.f32 %v5536, %v6859
      %v6951 = vadd.f32 %v5537, %v6861
      %v6952 = vadd.f32 %v5538, %v6863
      %v6953 = vadd.f32 %v5539, %v6867
      %v6954 = vadd.f32 %v5540, %v6869
      %v6955 = vadd.f32 %v5541, %v6871
      %v6956 = vadd.f32 %v5542, %v6873
      %v6957 = vadd.f32 %v5543, %v6877
      %v6958 = vadd.f32 %v5544, %v6879
      %v6959 = vadd.f32 %v5545, %v6881
      %v6960 = vadd.f32 %v5546, %v6883
      %v6961 = vadd.f32 %v5547, %v6887
      %v6962 = vadd.f32 %v5548, %v6889
      %v6963 = vadd.f32 %v5549, %v6891
      %v6964 = vadd.f32 %v5550, %v6893
      %v6965 = vadd.f32 %v5551, %v6897
      %v6966 = vadd.f32 %v5552, %v6899
      %v6967 = vadd.f32 %v5553, %v6901
      %v6968 = vadd.f32 %v5554, %v6903
      %v6969 = vmul.f32 %v6905, 0.01
      %v6970 = vmul.f32 %v6906, 0.01
      %v6971 = vmul.f32 %v6907, 0.01
      %v6972 = vmul.f32 %v6908, 0.01
      %v6973 = vmul.f32 %v6909, 0.01
      %v6974 = vmul.f32 %v6910, 0.01
      %v6975 = vmul.f32 %v6911, 0.01
      %v6976 = vmul.f32 %v6912, 0.01
      %v6977 = vmul.f32 %v6913, 0.01
      %v6978 = vmul.f32 %v6914, 0.01
      %v6979 = vmul.f32 %v6915, 0.01
      %v6980 = vmul.f32 %v6916, 0.01
      %v6981 = vmul.f32 %v6917, 0.01
      %v6982 = vmul.f32 %v6918, 0.01
      %v6983 = vmul.f32 %v6919, 0.01
      %v6984 = vmul.f32 %v6920, 0.01
      %v6985 = vmul.f32 %v6921, 0.01
      %v6986 = vmul.f32 %v6922, 0.01
      %v6987 = vmul.f32 %v6923, 0.01
      %v6988 = vmul.f32 %v6924, 0.01
      %v6989 = vmul.f32 %v6925, 0.01
      %v6990 = vmul.f32 %v6926, 0.01
      %v6991 = vmul.f32 %v6927, 0.01
      %v6992 = vmul.f32 %v6928, 0.01
      %v6993 = vmul.f32 %v6929, 0.01
      %v6994 = vmul.f32 %v6930, 0.01
      %v6995 = vmul.f32 %v6931, 0.01
      %v6996 = vmul.f32 %v6932, 0.01
      %v6997 = vmul.f32 %v6933, 0.01
      %v6998 = vmul.f32 %v6934, 0.01
      %v6999 = vmul.f32 %v6935, 0.01
      %v7000 = vmul.f32 %v6936, 0.01
      %v7001 = vmul.f32 %v6937, 0.01
      %v7002 = vmul.f32 %v6938, 0.01
      %v7003 = vmul.f32 %v6939, 0.01
      %v7004 = vmul.f32 %v6940, 0.01
      %v7005 = vmul.f32 %v6941, 0.01
      %v7006 = vmul.f32 %v6942, 0.01
      %v7007 = vmul.f32 %v6943, 0.01
      %v7008 = vmul.f32 %v6944, 0.01
      %v7009 = vmul.f32 %v6945, 0.01
      %v7010 = vmul.f32 %v6946, 0.01
      %v7011 = vmul.f32 %v6947, 0.01
      %v7012 = vmul.f32 %v6948, 0.01
      %v7013 = vmul.f32 %v6949, 0.01
      %v7014 = vmul.f32 %v6950, 0.01
      %v7015 = vmul.f32 %v6951, 0.01
      %v7016 = vmul.f32 %v6952, 0.01
      %v7017 = vmul.f32 %v6953, 0.01
      %v7018 = vmul.f32 %v6954, 0.01
      %v7019 = vmul.f32 %v6955, 0.01
      %v7020 = vmul.f32 %v6956, 0.01
      %v7021 = vmul.f32 %v6957, 0.01
      %v7022 = vmul.f32 %v6958, 0.01
      %v7023 = vmul.f32 %v6959, 0.01
      %v7024 = vmul.f32 %v6960, 0.01
      %v7025 = vmul.f32 %v6961, 0.01
      %v7026 = vmul.f32 %v6962, 0.01
      %v7027 = vmul.f32 %v6963, 0.01
      %v7028 = vmul.f32 %v6964, 0.01
      %v7029 = vmul.f32 %v6965, 0.01
      %v7030 = vmul.f32 %v6966, 0.01
      %v7031 = vmul.f32 %v6967, 0.01
      %v7032 = vmul.f32 %v6968, 0.01
      %v7033 = vmax.f32 %v6905, %v6969
      %v7034 = vmax.f32 %v6906, %v6970
      %v7035 = vmax.f32 %v6907, %v6971
      %v7036 = vmax.f32 %v6908, %v6972
      %v7037 = vmax.f32 %v6909, %v6973
      %v7038 = vmax.f32 %v6910, %v6974
      %v7039 = vmax.f32 %v6911, %v6975
      %v7040 = vmax.f32 %v6912, %v6976
      %v7041 = vmax.f32 %v6913, %v6977
      %v7042 = vmax.f32 %v6914, %v6978
      %v7043 = vmax.f32 %v6915, %v6979
      %v7044 = vmax.f32 %v6916, %v6980
      %v7045 = vmax.f32 %v6917, %v6981
      %v7046 = vmax.f32 %v6918, %v6982
      %v7047 = vmax.f32 %v6919, %v6983
      %v7048 = vmax.f32 %v6920, %v6984
      %v7049 = vmax.f32 %v6921, %v6985
      %v7050 = vmax.f32 %v6922, %v6986
      %v7051 = vmax.f32 %v6923, %v6987
      %v7052 = vmax.f32 %v6924, %v6988
      %v7053 = vmax.f32 %v6925, %v6989
      %v7054 = vmax.f32 %v6926, %v6990
      %v7055 = vmax.f32 %v6927, %v6991
      %v7056 = vmax.f32 %v6928, %v6992
      %v7057 = vmax.f32 %v6929, %v6993
      %v7058 = vmax.f32 %v6930, %v6994
      %v7059 = vmax.f32 %v6931, %v6995
      %v7060 = vmax.f32 %v6932, %v6996
      %v7061 = vmax.f32 %v6933, %v6997
      %v7062 = vmax.f32 %v6934, %v6998
      %v7063 = vmax.f32 %v6935, %v6999
      %v7064 = vmax.f32 %v6936, %v7000
      %v7065 = vmax.f32 %v6937, %v7001
      %v7066 = vmax.f32 %v6938, %v7002
      %v7067 = vmax.f32 %v6939, %v7003
      %v7068 = vmax.f32 %v6940, %v7004
      %v7069 = vmax.f32 %v6941, %v7005
      %v7070 = vmax.f32 %v6942, %v7006
      %v7071 = vmax.f32 %v6943, %v7007
      %v7072 = vmax.f32 %v6944, %v7008
      %v7073 = vmax.f32 %v6945, %v7009
      %v7074 = vmax.f32 %v6946, %v7010
      %v7075 = vmax.f32 %v6947, %v7011
      %v7076 = vmax.f32 %v6948, %v7012
      %v7077 = vmax.f32 %v6949, %v7013
      %v7078 = vmax.f32 %v6950, %v7014
      %v7079 = vmax.f32 %v6951, %v7015
      %v7080 = vmax.f32 %v6952, %v7016
      %v7081 = vmax.f32 %v6953, %v7017
      %v7082 = vmax.f32 %v6954, %v7018
      %v7083 = vmax.f32 %v6955, %v7019
      %v7084 = vmax.f32 %v6956, %v7020
      %v7085 = vmax.f32 %v6957, %v7021
      %v7086 = vmax.f32 %v6958, %v7022
      %v7087 = vmax.f32 %v6959, %v7023
      %v7088 = vmax.f32 %v6960, %v7024
      %v7089 = vmax.f32 %v6961, %v7025
      %v7090 = vmax.f32 %v6962, %v7026
      %v7091 = vmax.f32 %v6963, %v7027
      %v7092 = vmax.f32 %v6964, %v7028
      %v7093 = vmax.f32 %v6965, %v7029
      %v7094 = vmax.f32 %v6966, %v7030
      %v7095 = vmax.f32 %v6967, %v7031
      %v7096 = vmax.f32 %v6968, %v7032
      %s7097 = scalar_lea.vmem %s3, 1024
      %v7098 = vld [vmem:[%s7097] sm:$0xff]
      %v7099 = vld [vmem:[%s7097 + $0x8] sm:$0xff]
      %v7100 = vld [vmem:[%s7097 + $0x10] sm:$0xff]
      %v7101 = vld [vmem:[%s7097 + $0x18] sm:$0xff]
      %v7102 = vld [vmem:[%s7097 + $0x20] sm:$0xff]
      %v7103 = vld [vmem:[%s7097 + $0x28] sm:$0xff]
      %v7104 = vld [vmem:[%s7097 + $0x30] sm:$0xff]
      %v7105 = vld [vmem:[%s7097 + $0x38] sm:$0xff]
      %v7106 = vld [vmem:[%s7097 + $0x40] sm:$0xff]
      %v7107 = vld [vmem:[%s7097 + $0x48] sm:$0xff]
      %v7108 = vld [vmem:[%s7097 + $0x50] sm:$0xff]
      %v7109 = vld [vmem:[%s7097 + $0x58] sm:$0xff]
      %v7110 = vld [vmem:[%s7097 + $0x60] sm:$0xff]
      %v7111 = vld [vmem:[%s7097 + $0x68] sm:$0xff]
      %v7112 = vld [vmem:[%s7097 + $0x70] sm:$0xff]
      %v7113 = vld [vmem:[%s7097 + $0x78] sm:$0xff]
      %v7114 = vld [vmem:[%s7097 + $0x80] sm:$0xff]
      %v7115 = vld [vmem:[%s7097 + $0x88] sm:$0xff]
      %v7116 = vld [vmem:[%s7097 + $0x90] sm:$0xff]
      %v7117 = vld [vmem:[%s7097 + $0x98] sm:$0xff]
      %v7118 = vld [vmem:[%s7097 + $0xa0] sm:$0xff]
      %v7119 = vld [vmem:[%s7097 + $0xa8] sm:$0xff]
      %v7120 = vld [vmem:[%s7097 + $0xb0] sm:$0xff]
      %v7121 = vld [vmem:[%s7097 + $0xb8] sm:$0xff]
      %v7122 = vld [vmem:[%s7097 + $0xc0] sm:$0xff]
      %v7123 = vld [vmem:[%s7097 + $0xc8] sm:$0xff]
      %v7124 = vld [vmem:[%s7097 + $0xd0] sm:$0xff]
      %v7125 = vld [vmem:[%s7097 + $0xd8] sm:$0xff]
      %v7126 = vld [vmem:[%s7097 + $0xe0] sm:$0xff]
      %v7127 = vld [vmem:[%s7097 + $0xe8] sm:$0xff]
      %v7128 = vld [vmem:[%s7097 + $0xf0] sm:$0xff]
      %v7129 = vld [vmem:[%s7097 + $0xf8] sm:$0xff]
      %v7130 = vpack.c.bf16 %v7035, %v7033
      %v7131 = vpack.c.bf16 %v7036, %v7034
      %v7132 = vpack.c.bf16 %v7039, %v7037
      %v7133 = vpack.c.bf16 %v7040, %v7038
      %v7134 = vpack.c.bf16 %v7043, %v7041
      %v7135 = vpack.c.bf16 %v7044, %v7042
      %v7136 = vpack.c.bf16 %v7047, %v7045
      %v7137 = vpack.c.bf16 %v7048, %v7046
      %v7138 = vpack.c.bf16 %v7051, %v7049
      %v7139 = vpack.c.bf16 %v7052, %v7050
      %v7140 = vpack.c.bf16 %v7055, %v7053
      %v7141 = vpack.c.bf16 %v7056, %v7054
      %v7142 = vpack.c.bf16 %v7059, %v7057
      %v7143 = vpack.c.bf16 %v7060, %v7058
      %v7144 = vpack.c.bf16 %v7063, %v7061
      %v7145 = vpack.c.bf16 %v7064, %v7062
      %v7146 = vpack.c.bf16 %v7067, %v7065
      %v7147 = vpack.c.bf16 %v7068, %v7066
      %v7148 = vpack.c.bf16 %v7071, %v7069
      %v7149 = vpack.c.bf16 %v7072, %v7070
      %v7150 = vpack.c.bf16 %v7075, %v7073
      %v7151 = vpack.c.bf16 %v7076, %v7074
      %v7152 = vpack.c.bf16 %v7079, %v7077
      %v7153 = vpack.c.bf16 %v7080, %v7078
      %v7154 = vpack.c.bf16 %v7083, %v7081
      %v7155 = vpack.c.bf16 %v7084, %v7082
      %v7156 = vpack.c.bf16 %v7087, %v7085
      %v7157 = vpack.c.bf16 %v7088, %v7086
      %v7158 = vpack.c.bf16 %v7091, %v7089
      %v7159 = vpack.c.bf16 %v7092, %v7090
      %v7160 = vpack.c.bf16 %v7095, %v7093
      %v7161 = vpack.c.bf16 %v7096, %v7094
      %s7162 = scalar_lea.vmem %s4, 1024
      %v7163 = vld [vmem:[%s7162] sm:$0xff]
      %v7164 = vld [vmem:[%s7162 + $0x8] sm:$0xff]
      %v7165 = vld [vmem:[%s7162 + $0x10] sm:$0xff]
      %v7166 = vld [vmem:[%s7162 + $0x18] sm:$0xff]
      %v7167 = vld [vmem:[%s7162 + $0x20] sm:$0xff]
      %v7168 = vld [vmem:[%s7162 + $0x28] sm:$0xff]
      %v7169 = vld [vmem:[%s7162 + $0x30] sm:$0xff]
      %v7170 = vld [vmem:[%s7162 + $0x38] sm:$0xff]
      %v7171 = vld [vmem:[%s7162 + $0x40] sm:$0xff]
      %v7172 = vld [vmem:[%s7162 + $0x48] sm:$0xff]
      %v7173 = vld [vmem:[%s7162 + $0x50] sm:$0xff]
      %v7174 = vld [vmem:[%s7162 + $0x58] sm:$0xff]
      %v7175 = vld [vmem:[%s7162 + $0x60] sm:$0xff]
      %v7176 = vld [vmem:[%s7162 + $0x68] sm:$0xff]
      %v7177 = vld [vmem:[%s7162 + $0x70] sm:$0xff]
      %v7178 = vld [vmem:[%s7162 + $0x78] sm:$0xff]
      %v7179 = vld [vmem:[%s7162 + $0x80] sm:$0xff]
      %v7180 = vld [vmem:[%s7162 + $0x88] sm:$0xff]
      %v7181 = vld [vmem:[%s7162 + $0x90] sm:$0xff]
      %v7182 = vld [vmem:[%s7162 + $0x98] sm:$0xff]
      %v7183 = vld [vmem:[%s7162 + $0xa0] sm:$0xff]
      %v7184 = vld [vmem:[%s7162 + $0xa8] sm:$0xff]
      %v7185 = vld [vmem:[%s7162 + $0xb0] sm:$0xff]
      %v7186 = vld [vmem:[%s7162 + $0xb8] sm:$0xff]
      %v7187 = vld [vmem:[%s7162 + $0xc0] sm:$0xff]
      %v7188 = vld [vmem:[%s7162 + $0xc8] sm:$0xff]
      %v7189 = vld [vmem:[%s7162 + $0xd0] sm:$0xff]
      %v7190 = vld [vmem:[%s7162 + $0xd8] sm:$0xff]
      %v7191 = vld [vmem:[%s7162 + $0xe0] sm:$0xff]
      %v7192 = vld [vmem:[%s7162 + $0xe8] sm:$0xff]
      %v7193 = vld [vmem:[%s7162 + $0xf0] sm:$0xff]
      %v7194 = vld [vmem:[%s7162 + $0xf8] sm:$0xff]
      %7196 = vset.pattern.permute.xlu0 0
      %7197 = vperm.xlu0 %7196, %v7163
      %v7198 = vpop.permute.xlu0 %7197
      %7201 = vset.pattern.permute.xlu0 0
      %7202 = vperm.xlu0 %7201, %v7164
      %v7203 = vpop.permute.xlu0 %7202
      %7206 = vset.pattern.permute.xlu0 0
      %7207 = vperm.xlu0 %7206, %v7165
      %v7208 = vpop.permute.xlu0 %7207
      %7211 = vset.pattern.permute.xlu0 0
      %7212 = vperm.xlu0 %7211, %v7166
      %v7213 = vpop.permute.xlu0 %7212
      %7216 = vset.pattern.permute.xlu0 0
      %7217 = vperm.xlu0 %7216, %v7167
      %v7218 = vpop.permute.xlu0 %7217
      %7221 = vset.pattern.permute.xlu0 0
      %7222 = vperm.xlu0 %7221, %v7168
      %v7223 = vpop.permute.xlu0 %7222
      %7226 = vset.pattern.permute.xlu0 0
      %7227 = vperm.xlu0 %7226, %v7169
      %v7228 = vpop.permute.xlu0 %7227
      %7231 = vset.pattern.permute.xlu0 0
      %7232 = vperm.xlu0 %7231, %v7170
      %v7233 = vpop.permute.xlu0 %7232
      %7236 = vset.pattern.permute.xlu0 0
      %7237 = vperm.xlu0 %7236, %v7171
      %v7238 = vpop.permute.xlu0 %7237
      %7241 = vset.pattern.permute.xlu0 0
      %7242 = vperm.xlu0 %7241, %v7172
      %v7243 = vpop.permute.xlu0 %7242
      %7246 = vset.pattern.permute.xlu0 0
      %7247 = vperm.xlu0 %7246, %v7173
      %v7248 = vpop.permute.xlu0 %7247
      %7251 = vset.pattern.permute.xlu0 0
      %7252 = vperm.xlu0 %7251, %v7174
      %v7253 = vpop.permute.xlu0 %7252
      %7256 = vset.pattern.permute.xlu0 0
      %7257 = vperm.xlu0 %7256, %v7175
      %v7258 = vpop.permute.xlu0 %7257
      %7261 = vset.pattern.permute.xlu0 0
      %7262 = vperm.xlu0 %7261, %v7176
      %v7263 = vpop.permute.xlu0 %7262
      %7266 = vset.pattern.permute.xlu0 0
      %7267 = vperm.xlu0 %7266, %v7177
      %v7268 = vpop.permute.xlu0 %7267
      %7271 = vset.pattern.permute.xlu0 0
      %7272 = vperm.xlu0 %7271, %v7178
      %v7273 = vpop.permute.xlu0 %7272
      %7276 = vset.pattern.permute.xlu0 0
      %7277 = vperm.xlu0 %7276, %v7179
      %v7278 = vpop.permute.xlu0 %7277
      %7281 = vset.pattern.permute.xlu0 0
      %7282 = vperm.xlu0 %7281, %v7180
      %v7283 = vpop.permute.xlu0 %7282
      %7286 = vset.pattern.permute.xlu0 0
      %7287 = vperm.xlu0 %7286, %v7181
      %v7288 = vpop.permute.xlu0 %7287
      %7291 = vset.pattern.permute.xlu0 0
      %7292 = vperm.xlu0 %7291, %v7182
      %v7293 = vpop.permute.xlu0 %7292
      %7296 = vset.pattern.permute.xlu0 0
      %7297 = vperm.xlu0 %7296, %v7183
      %v7298 = vpop.permute.xlu0 %7297
      %7301 = vset.pattern.permute.xlu0 0
      %7302 = vperm.xlu0 %7301, %v7184
      %v7303 = vpop.permute.xlu0 %7302
      %7306 = vset.pattern.permute.xlu0 0
      %7307 = vperm.xlu0 %7306, %v7185
      %v7308 = vpop.permute.xlu0 %7307
      %7311 = vset.pattern.permute.xlu0 0
      %7312 = vperm.xlu0 %7311, %v7186
      %v7313 = vpop.permute.xlu0 %7312
      %7316 = vset.pattern.permute.xlu0 0
      %7317 = vperm.xlu0 %7316, %v7187
      %v7318 = vpop.permute.xlu0 %7317
      %7321 = vset.pattern.permute.xlu0 0
      %7322 = vperm.xlu0 %7321, %v7188
      %v7323 = vpop.permute.xlu0 %7322
      %7326 = vset.pattern.permute.xlu0 0
      %7327 = vperm.xlu0 %7326, %v7189
      %v7328 = vpop.permute.xlu0 %7327
      %7331 = vset.pattern.permute.xlu0 0
      %7332 = vperm.xlu0 %7331, %v7190
      %v7333 = vpop.permute.xlu0 %7332
      %7336 = vset.pattern.permute.xlu0 0
      %7337 = vperm.xlu0 %7336, %v7191
      %v7338 = vpop.permute.xlu0 %7337
      %7341 = vset.pattern.permute.xlu0 0
      %7342 = vperm.xlu0 %7341, %v7192
      %v7343 = vpop.permute.xlu0 %7342
      %7346 = vset.pattern.permute.xlu0 0
      %7347 = vperm.xlu0 %7346, %v7193
      %v7348 = vpop.permute.xlu0 %7347
      %7351 = vset.pattern.permute.xlu0 0
      %7352 = vperm.xlu0 %7351, %v7194
      %v7353 = vpop.permute.xlu0 %7352
      %v7387 = vunpack.c.l.b16 %v7098
      %v7388 = vunpack.c.h.b16 %v7098
      %v7389 = vunpack.c.l.b16 %v7099
      %v7390 = vunpack.c.h.b16 %v7099
      %v7391 = vunpack.c.l.b16 %v7100
      %v7392 = vunpack.c.h.b16 %v7100
      %v7393 = vunpack.c.l.b16 %v7101
      %v7394 = vunpack.c.h.b16 %v7101
      %v7395 = vunpack.c.l.b16 %v7102
      %v7396 = vunpack.c.h.b16 %v7102
      %v7397 = vunpack.c.l.b16 %v7103
      %v7398 = vunpack.c.h.b16 %v7103
      %v7399 = vunpack.c.l.b16 %v7104
      %v7400 = vunpack.c.h.b16 %v7104
      %v7401 = vunpack.c.l.b16 %v7105
      %v7402 = vunpack.c.h.b16 %v7105
      %v7403 = vunpack.c.l.b16 %v7106
      %v7404 = vunpack.c.h.b16 %v7106
      %v7405 = vunpack.c.l.b16 %v7107
      %v7406 = vunpack.c.h.b16 %v7107
      %v7407 = vunpack.c.l.b16 %v7108
      %v7408 = vunpack.c.h.b16 %v7108
      %v7409 = vunpack.c.l.b16 %v7109
      %v7410 = vunpack.c.h.b16 %v7109
      %v7411 = vunpack.c.l.b16 %v7110
      %v7412 = vunpack.c.h.b16 %v7110
      %v7413 = vunpack.c.l.b16 %v7111
      %v7414 = vunpack.c.h.b16 %v7111
      %v7415 = vunpack.c.l.b16 %v7112
      %v7416 = vunpack.c.h.b16 %v7112
      %v7417 = vunpack.c.l.b16 %v7113
      %v7418 = vunpack.c.h.b16 %v7113
      %v7419 = vunpack.c.l.b16 %v7114
      %v7420 = vunpack.c.h.b16 %v7114
      %v7421 = vunpack.c.l.b16 %v7115
      %v7422 = vunpack.c.h.b16 %v7115
      %v7423 = vunpack.c.l.b16 %v7116
      %v7424 = vunpack.c.h.b16 %v7116
      %v7425 = vunpack.c.l.b16 %v7117
      %v7426 = vunpack.c.h.b16 %v7117
      %v7427 = vunpack.c.l.b16 %v7118
      %v7428 = vunpack.c.h.b16 %v7118
      %v7429 = vunpack.c.l.b16 %v7119
      %v7430 = vunpack.c.h.b16 %v7119
      %v7431 = vunpack.c.l.b16 %v7120
      %v7432 = vunpack.c.h.b16 %v7120
      %v7433 = vunpack.c.l.b16 %v7121
      %v7434 = vunpack.c.h.b16 %v7121
      %v7435 = vunpack.c.l.b16 %v7122
      %v7436 = vunpack.c.h.b16 %v7122
      %v7437 = vunpack.c.l.b16 %v7123
      %v7438 = vunpack.c.h.b16 %v7123
      %v7439 = vunpack.c.l.b16 %v7124
      %v7440 = vunpack.c.h.b16 %v7124
      %v7441 = vunpack.c.l.b16 %v7125
      %v7442 = vunpack.c.h.b16 %v7125
      %v7443 = vunpack.c.l.b16 %v7126
      %v7444 = vunpack.c.h.b16 %v7126
      %v7445 = vunpack.c.l.b16 %v7127
      %v7446 = vunpack.c.h.b16 %v7127
      %v7447 = vunpack.c.l.b16 %v7128
      %v7448 = vunpack.c.h.b16 %v7128
      %v7449 = vunpack.c.l.b16 %v7129
      %v7450 = vunpack.c.h.b16 %v7129
      %v7451 = vpack.c.b16 %v7389, %v7387
      %v7452 = vpack.c.b16 %v7390, %v7388
      %v7453 = vpack.c.b16 %v7393, %v7391
      %v7454 = vpack.c.b16 %v7394, %v7392
      %v7455 = vpack.c.b16 %v7397, %v7395
      %v7456 = vpack.c.b16 %v7398, %v7396
      %v7457 = vpack.c.b16 %v7401, %v7399
      %v7458 = vpack.c.b16 %v7402, %v7400
      %v7459 = vpack.c.b16 %v7405, %v7403
      %v7460 = vpack.c.b16 %v7406, %v7404
      %v7461 = vpack.c.b16 %v7409, %v7407
      %v7462 = vpack.c.b16 %v7410, %v7408
      %v7463 = vpack.c.b16 %v7413, %v7411
      %v7464 = vpack.c.b16 %v7414, %v7412
      %v7465 = vpack.c.b16 %v7417, %v7415
      %v7466 = vpack.c.b16 %v7418, %v7416
      %v7467 = vpack.c.b16 %v7421, %v7419
      %v7468 = vpack.c.b16 %v7422, %v7420
      %v7469 = vpack.c.b16 %v7425, %v7423
      %v7470 = vpack.c.b16 %v7426, %v7424
      %v7471 = vpack.c.b16 %v7429, %v7427
      %v7472 = vpack.c.b16 %v7430, %v7428
      %v7473 = vpack.c.b16 %v7433, %v7431
      %v7474 = vpack.c.b16 %v7434, %v7432
      %v7475 = vpack.c.b16 %v7437, %v7435
      %v7476 = vpack.c.b16 %v7438, %v7436
      %v7477 = vpack.c.b16 %v7441, %v7439
      %v7478 = vpack.c.b16 %v7442, %v7440
      %v7479 = vpack.c.b16 %v7445, %v7443
      %v7480 = vpack.c.b16 %v7446, %v7444
      %v7481 = vpack.c.b16 %v7449, %v7447
      %v7482 = vpack.c.b16 %v7450, %v7448
      %7515 = vmatprep.subr.bf16.mxu0 %v7131
      %7516 = vmatpush1.bf16.msra.mxu0 %v7130
      %7517 = vmatprep.subr.bf16.mxu0 %v7133
      %7518 = vmatpush1.bf16.msra.mxu0 %v7132
      %7519 = vmatprep.subr.bf16.mxu0 %v7135
      %7520 = vmatpush1.bf16.msra.mxu0 %v7134
      %7521 = vmatprep.subr.bf16.mxu0 %v7137
      %7522 = vmatpush1.bf16.msra.mxu0 %v7136
      %7523 = vmatprep.subr.bf16.mxu0 %v7139
      %7524 = vmatpush1.bf16.msra.mxu0 %v7138
      %7525 = vmatprep.subr.bf16.mxu0 %v7141
      %7526 = vmatpush1.bf16.msra.mxu0 %v7140
      %7527 = vmatprep.subr.bf16.mxu0 %v7143
      %7528 = vmatpush1.bf16.msra.mxu0 %v7142
      %7529 = vmatprep.subr.bf16.mxu0 %v7145
      %7530 = vmatpush1.bf16.msra.mxu0 %v7144
      %7531 = vmatprep.subr.bf16.mxu0 %v7147
      %7532 = vmatpush1.bf16.msra.mxu0 %v7146
      %7533 = vmatprep.subr.bf16.mxu0 %v7149
      %7534 = vmatpush1.bf16.msra.mxu0 %v7148
      %7535 = vmatprep.subr.bf16.mxu0 %v7151
      %7536 = vmatpush1.bf16.msra.mxu0 %v7150
      %7537 = vmatprep.subr.bf16.mxu0 %v7153
      %7538 = vmatpush1.bf16.msra.mxu0 %v7152
      %7539 = vmatprep.subr.bf16.mxu0 %v7155
      %7540 = vmatpush1.bf16.msra.mxu0 %v7154
      %7541 = vmatprep.subr.bf16.mxu0 %v7157
      %7542 = vmatpush1.bf16.msra.mxu0 %v7156
      %7543 = vmatprep.subr.bf16.mxu0 %v7159
      %7544 = vmatpush1.bf16.msra.mxu0 %v7158
      %7545 = vmatprep.subr.bf16.mxu0 %v7161
      %7546 = vmatpush1.bf16.msra.mxu0 %v7160
      %7547 = vmatprep.mubr.bf16.mxu0 %v7452
      %7548 = vmatmul.mubr.bf16.gmra.mrb[0].mxu0 %v7451
      %v7549 = vpop.f32.mrb[0].mxu0
      %v7550 = vadd.f32 %v7198, %v7549
      %v7551 = vpop.f32.mrb[0].mxu0
      %v7552 = vadd.f32 %v7198, %v7551
      %v7553 = vpop.f32.mrb[0].mxu0
      %v7554 = vadd.f32 %v7203, %v7553
      %v7555 = vpop.f32.mrb[0].mxu0
      %v7556 = vadd.f32 %v7203, %v7555
      %7557 = vmatprep.mubr.bf16.mxu0 %v7454
      %7558 = vmatmul.mubr.bf16.gmra.mrb[0].mxu0 %v7453
      %v7559 = vpop.f32.mrb[0].mxu0
      %v7560 = vadd.f32 %v7208, %v7559
      %v7561 = vpop.f32.mrb[0].mxu0
      %v7562 = vadd.f32 %v7208, %v7561
      %v7563 = vpop.f32.mrb[0].mxu0
      %v7564 = vadd.f32 %v7213, %v7563
      %v7565 = vpop.f32.mrb[0].mxu0
      %v7566 = vadd.f32 %v7213, %v7565
      %7567 = vmatprep.mubr.bf16.mxu0 %v7456
      %7568 = vmatmul.mubr.bf16.gmra.mrb[0].mxu0 %v7455
      %v7569 = vpop.f32.mrb[0].mxu0
      %v7570 = vadd.f32 %v7218, %v7569
      %v7571 = vpop.f32.mrb[0].mxu0
      %v7572 = vadd.f32 %v7218, %v7571
      %v7573 = vpop.f32.mrb[0].mxu0
      %v7574 = vadd.f32 %v7223, %v7573
      %v7575 = vpop.f32.mrb[0].mxu0
      %v7576 = vadd.f32 %v7223, %v7575
      %7577 = vmatprep.mubr.bf16.mxu0 %v7458
      %7578 = vmatmul.mubr.bf16.gmra.mrb[0].mxu0 %v7457
      %v7579 = vpop.f32.mrb[0].mxu0
      %v7580 = vadd.f32 %v7228, %v7579
      %v7581 = vpop.f32.mrb[0].mxu0
      %v7582 = vadd.f32 %v7228, %v7581
      %v7583 = vpop.f32.mrb[0].mxu0
      %v7584 = vadd.f32 %v7233, %v7583
      %v7585 = vpop.f32.mrb[0].mxu0
      %v7586 = vadd.f32 %v7233, %v7585
      %7587 = vmatprep.mubr.bf16.mxu0 %v7460
      %7588 = vmatmul.mubr.bf16.gmra.mrb[0].mxu0 %v7459
      %v7589 = vpop.f32.mrb[0].mxu0
      %v7590 = vadd.f32 %v7238, %v7589
      %v7591 = vpop.f32.mrb[0].mxu0
      %v7592 = vadd.f32 %v7238, %v7591
      %v7593 = vpop.f32.mrb[0].mxu0
      %v7594 = vadd.f32 %v7243, %v7593
      %v7595 = vpop.f32.mrb[0].mxu0
      %v7596 = vadd.f32 %v7243, %v7595
      %7597 = vmatprep.mubr.bf16.mxu0 %v7462
      %7598 = vmatmul.mubr.bf16.gmra.mrb[0].mxu0 %v7461
      %v7599 = vpop.f32.mrb[0].mxu0
      %v7600 = vadd.f32 %v7248, %v7599
      %v7601 = vpop.f32.mrb[0].mxu0
      %v7602 = vadd.f32 %v7248, %v7601
      %v7603 = vpop.f32.mrb[0].mxu0
      %v7604 = vadd.f32 %v7253, %v7603
      %v7605 = vpop.f32.mrb[0].mxu0
      %v7606 = vadd.f32 %v7253, %v7605
      %7607 = vmatprep.mubr.bf16.mxu0 %v7464
      %7608 = vmatmul.mubr.bf16.gmra.mrb[0].mxu0 %v7463
      %v7609 = vpop.f32.mrb[0].mxu0
      %v7610 = vadd.f32 %v7258, %v7609
      %v7611 = vpop.f32.mrb[0].mxu0
      %v7612 = vadd.f32 %v7258, %v7611
      %v7613 = vpop.f32.mrb[0].mxu0
      %v7614 = vadd.f32 %v7263, %v7613
      %v7615 = vpop.f32.mrb[0].mxu0
      %v7616 = vadd.f32 %v7263, %v7615
      %7617 = vmatprep.mubr.bf16.mxu0 %v7466
      %7618 = vmatmul.mubr.bf16.gmra.mrb[0].mxu0 %v7465
      %v7619 = vpop.f32.mrb[0].mxu0
      %v7620 = vadd.f32 %v7268, %v7619
      %v7621 = vpop.f32.mrb[0].mxu0
      %v7622 = vadd.f32 %v7268, %v7621
      %v7623 = vpop.f32.mrb[0].mxu0
      %v7624 = vadd.f32 %v7273, %v7623
      %v7625 = vpop.f32.mrb[0].mxu0
      %v7626 = vadd.f32 %v7273, %v7625
      %7627 = vmatprep.mubr.bf16.mxu0 %v7468
      %7628 = vmatmul.mubr.bf16.gmra.mrb[0].mxu0 %v7467
      %v7629 = vpop.f32.mrb[0].mxu0
      %v7630 = vadd.f32 %v7278, %v7629
      %v7631 = vpop.f32.mrb[0].mxu0
      %v7632 = vadd.f32 %v7278, %v7631
      %v7633 = vpop.f32.mrb[0].mxu0
      %v7634 = vadd.f32 %v7283, %v7633
      %v7635 = vpop.f32.mrb[0].mxu0
      %v7636 = vadd.f32 %v7283, %v7635
      %7637 = vmatprep.mubr.bf16.mxu0 %v7470
      %7638 = vmatmul.mubr.bf16.gmra.mrb[0].mxu0 %v7469
      %v7639 = vpop.f32.mrb[0].mxu0
      %v7640 = vadd.f32 %v7288, %v7639
      %v7641 = vpop.f32.mrb[0].mxu0
      %v7642 = vadd.f32 %v7288, %v7641
      %v7643 = vpop.f32.mrb[0].mxu0
      %v7644 = vadd.f32 %v7293, %v7643
      %v7645 = vpop.f32.mrb[0].mxu0
      %v7646 = vadd.f32 %v7293, %v7645
      %7647 = vmatprep.mubr.bf16.mxu0 %v7472
      %7648 = vmatmul.mubr.bf16.gmra.mrb[0].mxu0 %v7471
      %v7649 = vpop.f32.mrb[0].mxu0
      %v7650 = vadd.f32 %v7298, %v7649
      %v7651 = vpop.f32.mrb[0].mxu0
      %v7652 = vadd.f32 %v7298, %v7651
      %v7653 = vpop.f32.mrb[0].mxu0
      %v7654 = vadd.f32 %v7303, %v7653
      %v7655 = vpop.f32.mrb[0].mxu0
      %v7656 = vadd.f32 %v7303, %v7655
      %7657 = vmatprep.mubr.bf16.mxu0 %v7474
      %7658 = vmatmul.mubr.bf16.gmra.mrb[0].mxu0 %v7473
      %v7659 = vpop.f32.mrb[0].mxu0
      %v7660 = vadd.f32 %v7308, %v7659
      %v7661 = vpop.f32.mrb[0].mxu0
      %v7662 = vadd.f32 %v7308, %v7661
      %v7663 = vpop.f32.mrb[0].mxu0
      %v7664 = vadd.f32 %v7313, %v7663
      %v7665 = vpop.f32.mrb[0].mxu0
      %v7666 = vadd.f32 %v7313, %v7665
      %7667 = vmatprep.mubr.bf16.mxu0 %v7476
      %7668 = vmatmul.mubr.bf16.gmra.mrb[0].mxu0 %v7475
      %v7669 = vpop.f32.mrb[0].mxu0
      %v7670 = vadd.f32 %v7318, %v7669
      %v7671 = vpop.f32.mrb[0].mxu0
      %v7672 = vadd.f32 %v7318, %v7671
      %v7673 = vpop.f32.mrb[0].mxu0
      %v7674 = vadd.f32 %v7323, %v7673
      %v7675 = vpop.f32.mrb[0].mxu0
      %v7676 = vadd.f32 %v7323, %v7675
      %7677 = vmatprep.mubr.bf16.mxu0 %v7478
      %7678 = vmatmul.mubr.bf16.gmra.mrb[0].mxu0 %v7477
      %v7679 = vpop.f32.mrb[0].mxu0
      %v7680 = vadd.f32 %v7328, %v7679
      %v7681 = vpop.f32.mrb[0].mxu0
      %v7682 = vadd.f32 %v7328, %v7681
      %v7683 = vpop.f32.mrb[0].mxu0
      %v7684 = vadd.f32 %v7333, %v7683
      %v7685 = vpop.f32.mrb[0].mxu0
      %v7686 = vadd.f32 %v7333, %v7685
      %7687 = vmatprep.mubr.bf16.mxu0 %v7480
      %7688 = vmatmul.mubr.bf16.gmra.mrb[0].mxu0 %v7479
      %v7689 = vpop.f32.mrb[0].mxu0
      %v7690 = vadd.f32 %v7338, %v7689
      %v7691 = vpop.f32.mrb[0].mxu0
      %v7692 = vadd.f32 %v7338, %v7691
      %v7693 = vpop.f32.mrb[0].mxu0
      %v7694 = vadd.f32 %v7343, %v7693
      %v7695 = vpop.f32.mrb[0].mxu0
      %v7696 = vadd.f32 %v7343, %v7695
      %7697 = vmatprep.mubr.bf16.mxu0 %v7482
      %7698 = vmatmul.mubr.bf16.gmra.mrb[0].mxu0 %v7481
      %v7699 = vpop.f32.mrb[0].mxu0
      %v7700 = vadd.f32 %v7348, %v7699
      %v7701 = vpop.f32.mrb[0].mxu0
      %v7702 = vadd.f32 %v7348, %v7701
      %v7703 = vpop.f32.mrb[0].mxu0
      %v7704 = vadd.f32 %v7353, %v7703
      %v7705 = vpop.f32.mrb[0].mxu0
      %v7706 = vadd.f32 %v7353, %v7705
      %7707 = vdwg.mxu0
      %v7708 = vmul.f32 %v7550, 0.01
      %v7709 = vmul.f32 %v7552, 0.01
      %v7710 = vmul.f32 %v7554, 0.01
      %v7711 = vmul.f32 %v7556, 0.01
      %v7712 = vmul.f32 %v7560, 0.01
      %v7713 = vmul.f32 %v7562, 0.01
      %v7714 = vmul.f32 %v7564, 0.01
      %v7715 = vmul.f32 %v7566, 0.01
      %v7716 = vmul.f32 %v7570, 0.01
      %v7717 = vmul.f32 %v7572, 0.01
      %v7718 = vmul.f32 %v7574, 0.01
      %v7719 = vmul.f32 %v7576, 0.01
      %v7720 = vmul.f32 %v7580, 0.01
      %v7721 = vmul.f32 %v7582, 0.01
      %v7722 = vmul.f32 %v7584, 0.01
      %v7723 = vmul.f32 %v7586, 0.01
      %v7724 = vmul.f32 %v7590, 0.01
      %v7725 = vmul.f32 %v7592, 0.01
      %v7726 = vmul.f32 %v7594, 0.01
      %v7727 = vmul.f32 %v7596, 0.01
      %v7728 = vmul.f32 %v7600, 0.01
      %v7729 = vmul.f32 %v7602, 0.01
      %v7730 = vmul.f32 %v7604, 0.01
      %v7731 = vmul.f32 %v7606, 0.01
      %v7732 = vmul.f32 %v7610, 0.01
      %v7733 = vmul.f32 %v7612, 0.01
      %v7734 = vmul.f32 %v7614, 0.01
      %v7735 = vmul.f32 %v7616, 0.01
      %v7736 = vmul.f32 %v7620, 0.01
      %v7737 = vmul.f32 %v7622, 0.01
      %v7738 = vmul.f32 %v7624, 0.01
      %v7739 = vmul.f32 %v7626, 0.01
      %v7740 = vmul.f32 %v7630, 0.01
      %v7741 = vmul.f32 %v7632, 0.01
      %v7742 = vmul.f32 %v7634, 0.01
      %v7743 = vmul.f32 %v7636, 0.01
      %v7744 = vmul.f32 %v7640, 0.01
      %v7745 = vmul.f32 %v7642, 0.01
      %v7746 = vmul.f32 %v7644, 0.01
      %v7747 = vmul.f32 %v7646, 0.01
      %v7748 = vmul.f32 %v7650, 0.01
      %v7749 = vmul.f32 %v7652, 0.01
      %v7750 = vmul.f32 %v7654, 0.01
      %v7751 = vmul.f32 %v7656, 0.01
      %v7752 = vmul.f32 %v7660, 0.01
      %v7753 = vmul.f32 %v7662, 0.01
      %v7754 = vmul.f32 %v7664, 0.01
      %v7755 = vmul.f32 %v7666, 0.01
      %v7756 = vmul.f32 %v7670, 0.01
      %v7757 = vmul.f32 %v7672, 0.01
      %v7758 = vmul.f32 %v7674, 0.01
      %v7759 = vmul.f32 %v7676, 0.01
      %v7760 = vmul.f32 %v7680, 0.01
      %v7761 = vmul.f32 %v7682, 0.01
      %v7762 = vmul.f32 %v7684, 0.01
      %v7763 = vmul.f32 %v7686, 0.01
      %v7764 = vmul.f32 %v7690, 0.01
      %v7765 = vmul.f32 %v7692, 0.01
      %v7766 = vmul.f32 %v7694, 0.01
      %v7767 = vmul.f32 %v7696, 0.01
      %v7768 = vmul.f32 %v7700, 0.01
      %v7769 = vmul.f32 %v7702, 0.01
      %v7770 = vmul.f32 %v7704, 0.01
      %v7771 = vmul.f32 %v7706, 0.01
      %v7772 = vmax.f32 %v7550, %v7708
      %v7773 = vmax.f32 %v7552, %v7709
      %v7774 = vmax.f32 %v7554, %v7710
      %v7775 = vmax.f32 %v7556, %v7711
      %v7776 = vmax.f32 %v7560, %v7712
      %v7777 = vmax.f32 %v7562, %v7713
      %v7778 = vmax.f32 %v7564, %v7714
      %v7779 = vmax.f32 %v7566, %v7715
      %v7780 = vmax.f32 %v7570, %v7716
      %v7781 = vmax.f32 %v7572, %v7717
      %v7782 = vmax.f32 %v7574, %v7718
      %v7783 = vmax.f32 %v7576, %v7719
      %v7784 = vmax.f32 %v7580, %v7720
      %v7785 = vmax.f32 %v7582, %v7721
      %v7786 = vmax.f32 %v7584, %v7722
      %v7787 = vmax.f32 %v7586, %v7723
      %v7788 = vmax.f32 %v7590, %v7724
      %v7789 = vmax.f32 %v7592, %v7725
      %v7790 = vmax.f32 %v7594, %v7726
      %v7791 = vmax.f32 %v7596, %v7727
      %v7792 = vmax.f32 %v7600, %v7728
      %v7793 = vmax.f32 %v7602, %v7729
      %v7794 = vmax.f32 %v7604, %v7730
      %v7795 = vmax.f32 %v7606, %v7731
      %v7796 = vmax.f32 %v7610, %v7732
      %v7797 = vmax.f32 %v7612, %v7733
      %v7798 = vmax.f32 %v7614, %v7734
      %v7799 = vmax.f32 %v7616, %v7735
      %v7800 = vmax.f32 %v7620, %v7736
      %v7801 = vmax.f32 %v7622, %v7737
      %v7802 = vmax.f32 %v7624, %v7738
      %v7803 = vmax.f32 %v7626, %v7739
      %v7804 = vmax.f32 %v7630, %v7740
      %v7805 = vmax.f32 %v7632, %v7741
      %v7806 = vmax.f32 %v7634, %v7742
      %v7807 = vmax.f32 %v7636, %v7743
      %v7808 = vmax.f32 %v7640, %v7744
      %v7809 = vmax.f32 %v7642, %v7745
      %v7810 = vmax.f32 %v7644, %v7746
      %v7811 = vmax.f32 %v7646, %v7747
      %v7812 = vmax.f32 %v7650, %v7748
      %v7813 = vmax.f32 %v7652, %v7749
      %v7814 = vmax.f32 %v7654, %v7750
      %v7815 = vmax.f32 %v7656, %v7751
      %v7816 = vmax.f32 %v7660, %v7752
      %v7817 = vmax.f32 %v7662, %v7753
      %v7818 = vmax.f32 %v7664, %v7754
      %v7819 = vmax.f32 %v7666, %v7755
      %v7820 = vmax.f32 %v7670, %v7756
      %v7821 = vmax.f32 %v7672, %v7757
      %v7822 = vmax.f32 %v7674, %v7758
      %v7823 = vmax.f32 %v7676, %v7759
      %v7824 = vmax.f32 %v7680, %v7760
      %v7825 = vmax.f32 %v7682, %v7761
      %v7826 = vmax.f32 %v7684, %v7762
      %v7827 = vmax.f32 %v7686, %v7763
      %v7828 = vmax.f32 %v7690, %v7764
      %v7829 = vmax.f32 %v7692, %v7765
      %v7830 = vmax.f32 %v7694, %v7766
      %v7831 = vmax.f32 %v7696, %v7767
      %v7832 = vmax.f32 %v7700, %v7768
      %v7833 = vmax.f32 %v7702, %v7769
      %v7834 = vmax.f32 %v7704, %v7770
      %v7835 = vmax.f32 %v7706, %v7771
      %s7836 = scalar_lea.vmem %s5, 1024
      %v7837 = vld [vmem:[%s7836] sm:$0xff]
      %v7838 = vld [vmem:[%s7836 + $0x8] sm:$0xff]
      %v7839 = vld [vmem:[%s7836 + $0x10] sm:$0xff]
      %v7840 = vld [vmem:[%s7836 + $0x18] sm:$0xff]
      %v7841 = vld [vmem:[%s7836 + $0x20] sm:$0xff]
      %v7842 = vld [vmem:[%s7836 + $0x28] sm:$0xff]
      %v7843 = vld [vmem:[%s7836 + $0x30] sm:$0xff]
      %v7844 = vld [vmem:[%s7836 + $0x38] sm:$0xff]
      %v7845 = vld [vmem:[%s7836 + $0x40] sm:$0xff]
      %v7846 = vld [vmem:[%s7836 + $0x48] sm:$0xff]
      %v7847 = vld [vmem:[%s7836 + $0x50] sm:$0xff]
      %v7848 = vld [vmem:[%s7836 + $0x58] sm:$0xff]
      %v7849 = vld [vmem:[%s7836 + $0x60] sm:$0xff]
      %v7850 = vld [vmem:[%s7836 + $0x68] sm:$0xff]
      %v7851 = vld [vmem:[%s7836 + $0x70] sm:$0xff]
      %v7852 = vld [vmem:[%s7836 + $0x78] sm:$0xff]
      %v7853 = vld [vmem:[%s7836 + $0x80] sm:$0xff]
      %v7854 = vld [vmem:[%s7836 + $0x88] sm:$0xff]
      %v7855 = vld [vmem:[%s7836 + $0x90] sm:$0xff]
      %v7856 = vld [vmem:[%s7836 + $0x98] sm:$0xff]
      %v7857 = vld [vmem:[%s7836 + $0xa0] sm:$0xff]
      %v7858 = vld [vmem:[%s7836 + $0xa8] sm:$0xff]
      %v7859 = vld [vmem:[%s7836 + $0xb0] sm:$0xff]
      %v7860 = vld [vmem:[%s7836 + $0xb8] sm:$0xff]
      %v7861 = vld [vmem:[%s7836 + $0xc0] sm:$0xff]
      %v7862 = vld [vmem:[%s7836 + $0xc8] sm:$0xff]
      %v7863 = vld [vmem:[%s7836 + $0xd0] sm:$0xff]
      %v7864 = vld [vmem:[%s7836 + $0xd8] sm:$0xff]
      %v7865 = vld [vmem:[%s7836 + $0xe0] sm:$0xff]
      %v7866 = vld [vmem:[%s7836 + $0xe8] sm:$0xff]
      %v7867 = vld [vmem:[%s7836 + $0xf0] sm:$0xff]
      %v7868 = vld [vmem:[%s7836 + $0xf8] sm:$0xff]
      %v7869 = vpack.c.bf16 %v7774, %v7772
      %v7870 = vpack.c.bf16 %v7775, %v7773
      %v7871 = vpack.c.bf16 %v7778, %v7776
      %v7872 = vpack.c.bf16 %v7779, %v7777
      %v7873 = vpack.c.bf16 %v7782, %v7780
      %v7874 = vpack.c.bf16 %v7783, %v7781
      %v7875 = vpack.c.bf16 %v7786, %v7784
      %v7876 = vpack.c.bf16 %v7787, %v7785
      %v7877 = vpack.c.bf16 %v7790, %v7788
      %v7878 = vpack.c.bf16 %v7791, %v7789
      %v7879 = vpack.c.bf16 %v7794, %v7792
      %v7880 = vpack.c.bf16 %v7795, %v7793
      %v7881 = vpack.c.bf16 %v7798, %v7796
      %v7882 = vpack.c.bf16 %v7799, %v7797
      %v7883 = vpack.c.bf16 %v7802, %v7800
      %v7884 = vpack.c.bf16 %v7803, %v7801
      %v7885 = vpack.c.bf16 %v7806, %v7804
      %v7886 = vpack.c.bf16 %v7807, %v7805
      %v7887 = vpack.c.bf16 %v7810, %v7808
      %v7888 = vpack.c.bf16 %v7811, %v7809
      %v7889 = vpack.c.bf16 %v7814, %v7812
      %v7890 = vpack.c.bf16 %v7815, %v7813
      %v7891 = vpack.c.bf16 %v7818, %v7816
      %v7892 = vpack.c.bf16 %v7819, %v7817
      %v7893 = vpack.c.bf16 %v7822, %v7820
      %v7894 = vpack.c.bf16 %v7823, %v7821
      %v7895 = vpack.c.bf16 %v7826, %v7824
      %v7896 = vpack.c.bf16 %v7827, %v7825
      %v7897 = vpack.c.bf16 %v7830, %v7828
      %v7898 = vpack.c.bf16 %v7831, %v7829
      %v7899 = vpack.c.bf16 %v7834, %v7832
      %v7900 = vpack.c.bf16 %v7835, %v7833
      %s7901 = scalar_lea.vmem %s6, 1024
      %v7902 = vld [vmem:[%s7901] sm:$0xff]
      %v7903 = vld [vmem:[%s7901 + $0x8] sm:$0xff]
      %v7904 = vld [vmem:[%s7901 + $0x10] sm:$0xff]
      %v7905 = vld [vmem:[%s7901 + $0x18] sm:$0xff]
      %v7906 = vld [vmem:[%s7901 + $0x20] sm:$0xff]
      %v7907 = vld [vmem:[%s7901 + $0x28] sm:$0xff]
      %v7908 = vld [vmem:[%s7901 + $0x30] sm:$0xff]
      %v7909 = vld [vmem:[%s7901 + $0x38] sm:$0xff]
      %v7910 = vld [vmem:[%s7901 + $0x40] sm:$0xff]
      %v7911 = vld [vmem:[%s7901 + $0x48] sm:$0xff]
      %v7912 = vld [vmem:[%s7901 + $0x50] sm:$0xff]
      %v7913 = vld [vmem:[%s7901 + $0x58] sm:$0xff]
      %v7914 = vld [vmem:[%s7901 + $0x60] sm:$0xff]
      %v7915 = vld [vmem:[%s7901 + $0x68] sm:$0xff]
      %v7916 = vld [vmem:[%s7901 + $0x70] sm:$0xff]
      %v7917 = vld [vmem:[%s7901 + $0x78] sm:$0xff]
      %v7918 = vld [vmem:[%s7901 + $0x80] sm:$0xff]
      %v7919 = vld [vmem:[%s7901 + $0x88] sm:$0xff]
      %v7920 = vld [vmem:[%s7901 + $0x90] sm:$0xff]
      %v7921 = vld [vmem:[%s7901 + $0x98] sm:$0xff]
      %v7922 = vld [vmem:[%s7901 + $0xa0] sm:$0xff]
      %v7923 = vld [vmem:[%s7901 + $0xa8] sm:$0xff]
      %v7924 = vld [vmem:[%s7901 + $0xb0] sm:$0xff]
      %v7925 = vld [vmem:[%s7901 + $0xb8] sm:$0xff]
      %v7926 = vld [vmem:[%s7901 + $0xc0] sm:$0xff]
      %v7927 = vld [vmem:[%s7901 + $0xc8] sm:$0xff]
      %v7928 = vld [vmem:[%s7901 + $0xd0] sm:$0xff]
      %v7929 = vld [vmem:[%s7901 + $0xd8] sm:$0xff]
      %v7930 = vld [vmem:[%s7901 + $0xe0] sm:$0xff]
      %v7931 = vld [vmem:[%s7901 + $0xe8] sm:$0xff]
      %v7932 = vld [vmem:[%s7901 + $0xf0] sm:$0xff]
      %v7933 = vld [vmem:[%s7901 + $0xf8] sm:$0xff]
      %7935 = vset.pattern.permute.xlu0 0
      %7936 = vperm.xlu0 %7935, %v7902
      %v7937 = vpop.permute.xlu0 %7936
      %7940 = vset.pattern.permute.xlu0 0
      %7941 = vperm.xlu0 %7940, %v7903
      %v7942 = vpop.permute.xlu0 %7941
      %7945 = vset.pattern.permute.xlu0 0
      %7946 = vperm.xlu0 %7945, %v7904
      %v7947 = vpop.permute.xlu0 %7946
      %7950 = vset.pattern.permute.xlu0 0
      %7951 = vperm.xlu0 %7950, %v7905
      %v7952 = vpop.permute.xlu0 %7951
      %7955 = vset.pattern.permute.xlu0 0
      %7956 = vperm.xlu0 %7955, %v7906
      %v7957 = vpop.permute.xlu0 %7956
      %7960 = vset.pattern.permute.xlu0 0
      %7961 = vperm.xlu0 %7960, %v7907
      %v7962 = vpop.permute.xlu0 %7961
      %7965 = vset.pattern.permute.xlu0 0
      %7966 = vperm.xlu0 %7965, %v7908
      %v7967 = vpop.permute.xlu0 %7966
      %7970 = vset.pattern.permute.xlu0 0
      %7971 = vperm.xlu0 %7970, %v7909
      %v7972 = vpop.permute.xlu0 %7971
      %7975 = vset.pattern.permute.xlu0 0
      %7976 = vperm.xlu0 %7975, %v7910
      %v7977 = vpop.permute.xlu0 %7976
      %7980 = vset.pattern.permute.xlu0 0
      %7981 = vperm.xlu0 %7980, %v7911
      %v7982 = vpop.permute.xlu0 %7981
      %7985 = vset.pattern.permute.xlu0 0
      %7986 = vperm.xlu0 %7985, %v7912
      %v7987 = vpop.permute.xlu0 %7986
      %7990 = vset.pattern.permute.xlu0 0
      %7991 = vperm.xlu0 %7990, %v7913
      %v7992 = vpop.permute.xlu0 %7991
      %7995 = vset.pattern.permute.xlu0 0
      %7996 = vperm.xlu0 %7995, %v7914
      %v7997 = vpop.permute.xlu0 %7996
      %8000 = vset.pattern.permute.xlu0 0
      %8001 = vperm.xlu0 %8000, %v7915
      %v8002 = vpop.permute.xlu0 %8001
      %8005 = vset.pattern.permute.xlu0 0
      %8006 = vperm.xlu0 %8005, %v7916
      %v8007 = vpop.permute.xlu0 %8006
      %8010 = vset.pattern.permute.xlu0 0
      %8011 = vperm.xlu0 %8010, %v7917
      %v8012 = vpop.permute.xlu0 %8011
      %8015 = vset.pattern.permute.xlu0 0
      %8016 = vperm.xlu0 %8015, %v7918
      %v8017 = vpop.permute.xlu0 %8016
      %8020 = vset.pattern.permute.xlu0 0
      %8021 = vperm.xlu0 %8020, %v7919
      %v8022 = vpop.permute.xlu0 %8021
      %8025 = vset.pattern.permute.xlu0 0
      %8026 = vperm.xlu0 %8025, %v7920
      %v8027 = vpop.permute.xlu0 %8026
      %8030 = vset.pattern.permute.xlu0 0
      %8031 = vperm.xlu0 %8030, %v7921
      %v8032 = vpop.permute.xlu0 %8031
      %8035 = vset.pattern.permute.xlu0 0
      %8036 = vperm.xlu0 %8035, %v7922
      %v8037 = vpop.permute.xlu0 %8036
      %8040 = vset.pattern.permute.xlu0 0
      %8041 = vperm.xlu0 %8040, %v7923
      %v8042 = vpop.permute.xlu0 %8041
      %8045 = vset.pattern.permute.xlu0 0
      %8046 = vperm.xlu0 %8045, %v7924
      %v8047 = vpop.permute.xlu0 %8046
      %8050 = vset.pattern.permute.xlu0 0
      %8051 = vperm.xlu0 %8050, %v7925
      %v8052 = vpop.permute.xlu0 %8051
      %8055 = vset.pattern.permute.xlu0 0
      %8056 = vperm.xlu0 %8055, %v7926
      %v8057 = vpop.permute.xlu0 %8056
      %8060 = vset.pattern.permute.xlu0 0
      %8061 = vperm.xlu0 %8060, %v7927
      %v8062 = vpop.permute.xlu0 %8061
      %8065 = vset.pattern.permute.xlu0 0
      %8066 = vperm.xlu0 %8065, %v7928
      %v8067 = vpop.permute.xlu0 %8066
      %8070 = vset.pattern.permute.xlu0 0
      %8071 = vperm.xlu0 %8070, %v7929
      %v8072 = vpop.permute.xlu0 %8071
      %8075 = vset.pattern.permute.xlu0 0
      %8076 = vperm.xlu0 %8075, %v7930
      %v8077 = vpop.permute.xlu0 %8076
      %8080 = vset.pattern.permute.xlu0 0
      %8081 = vperm.xlu0 %8080, %v7931
      %v8082 = vpop.permute.xlu0 %8081
      %8085 = vset.pattern.permute.xlu0 0
      %8086 = vperm.xlu0 %8085, %v7932
      %v8087 = vpop.permute.xlu0 %8086
      %8090 = vset.pattern.permute.xlu0 0
      %8091 = vperm.xlu0 %8090, %v7933
      %v8092 = vpop.permute.xlu0 %8091
      %v8126 = vunpack.c.l.b16 %v7837
      %v8127 = vunpack.c.h.b16 %v7837
      %v8128 = vunpack.c.l.b16 %v7838
      %v8129 = vunpack.c.h.b16 %v7838
      %v8130 = vunpack.c.l.b16 %v7839
      %v8131 = vunpack.c.h.b16 %v7839
      %v8132 = vunpack.c.l.b16 %v7840
      %v8133 = vunpack.c.h.b16 %v7840
      %v8134 = vunpack.c.l.b16 %v7841
      %v8135 = vunpack.c.h.b16 %v7841
      %v8136 = vunpack.c.l.b16 %v7842
      %v8137 = vunpack.c.h.b16 %v7842
      %v8138 = vunpack.c.l.b16 %v7843
      %v8139 = vunpack.c.h.b16 %v7843
      %v8140 = vunpack.c.l.b16 %v7844
      %v8141 = vunpack.c.h.b16 %v7844
      %v8142 = vunpack.c.l.b16 %v7845
      %v8143 = vunpack.c.h.b16 %v7845
      %v8144 = vunpack.c.l.b16 %v7846
      %v8145 = vunpack.c.h.b16 %v7846
      %v8146 = vunpack.c.l.b16 %v7847
      %v8147 = vunpack.c.h.b16 %v7847
      %v8148 = vunpack.c.l.b16 %v7848
      %v8149 = vunpack.c.h.b16 %v7848
      %v8150 = vunpack.c.l.b16 %v7849
      %v8151 = vunpack.c.h.b16 %v7849
      %v8152 = vunpack.c.l.b16 %v7850
      %v8153 = vunpack.c.h.b16 %v7850
      %v8154 = vunpack.c.l.b16 %v7851
      %v8155 = vunpack.c.h.b16 %v7851
      %v8156 = vunpack.c.l.b16 %v7852
      %v8157 = vunpack.c.h.b16 %v7852
      %v8158 = vunpack.c.l.b16 %v7853
      %v8159 = vunpack.c.h.b16 %v7853
      %v8160 = vunpack.c.l.b16 %v7854
      %v8161 = vunpack.c.h.b16 %v7854
      %v8162 = vunpack.c.l.b16 %v7855
      %v8163 = vunpack.c.h.b16 %v7855
      %v8164 = vunpack.c.l.b16 %v7856
      %v8165 = vunpack.c.h.b16 %v7856
      %v8166 = vunpack.c.l.b16 %v7857
      %v8167 = vunpack.c.h.b16 %v7857
      %v8168 = vunpack.c.l.b16 %v7858
      %v8169 = vunpack.c.h.b16 %v7858
      %v8170 = vunpack.c.l.b16 %v7859
      %v8171 = vunpack.c.h.b16 %v7859
      %v8172 = vunpack.c.l.b16 %v7860
      %v8173 = vunpack.c.h.b16 %v7860
      %v8174 = vunpack.c.l.b16 %v7861
      %v8175 = vunpack.c.h.b16 %v7861
      %v8176 = vunpack.c.l.b16 %v7862
      %v8177 = vunpack.c.h.b16 %v7862
      %v8178 = vunpack.c.l.b16 %v7863
      %v8179 = vunpack.c.h.b16 %v7863
      %v8180 = vunpack.c.l.b16 %v7864
      %v8181 = vunpack.c.h.b16 %v7864
      %v8182 = vunpack.c.l.b16 %v7865
      %v8183 = vunpack.c.h.b16 %v7865
      %v8184 = vunpack.c.l.b16 %v7866
      %v8185 = vunpack.c.h.b16 %v7866
      %v8186 = vunpack.c.l.b16 %v7867
      %v8187 = vunpack.c.h.b16 %v7867
      %v8188 = vunpack.c.l.b16 %v7868
      %v8189 = vunpack.c.h.b16 %v7868
      %v8190 = vpack.c.b16 %v8128, %v8126
      %v8191 = vpack.c.b16 %v8129, %v8127
      %v8192 = vpack.c.b16 %v8132, %v8130
      %v8193 = vpack.c.b16 %v8133, %v8131
      %v8194 = vpack.c.b16 %v8136, %v8134
      %v8195 = vpack.c.b16 %v8137, %v8135
      %v8196 = vpack.c.b16 %v8140, %v8138
      %v8197 = vpack.c.b16 %v8141, %v8139
      %v8198 = vpack.c.b16 %v8144, %v8142
      %v8199 = vpack.c.b16 %v8145, %v8143
      %v8200 = vpack.c.b16 %v8148, %v8146
      %v8201 = vpack.c.b16 %v8149, %v8147
      %v8202 = vpack.c.b16 %v8152, %v8150
      %v8203 = vpack.c.b16 %v8153, %v8151
      %v8204 = vpack.c.b16 %v8156, %v8154
      %v8205 = vpack.c.b16 %v8157, %v8155
      %v8206 = vpack.c.b16 %v8160, %v8158
      %v8207 = vpack.c.b16 %v8161, %v8159
      %v8208 = vpack.c.b16 %v8164, %v8162
      %v8209 = vpack.c.b16 %v8165, %v8163
      %v8210 = vpack.c.b16 %v8168, %v8166
      %v8211 = vpack.c.b16 %v8169, %v8167
      %v8212 = vpack.c.b16 %v8172, %v8170
      %v8213 = vpack.c.b16 %v8173, %v8171
      %v8214 = vpack.c.b16 %v8176, %v8174
      %v8215 = vpack.c.b16 %v8177, %v8175
      %v8216 = vpack.c.b16 %v8180, %v8178
      %v8217 = vpack.c.b16 %v8181, %v8179
      %v8218 = vpack.c.b16 %v8184, %v8182
      %v8219 = vpack.c.b16 %v8185, %v8183
      %v8220 = vpack.c.b16 %v8188, %v8186
      %v8221 = vpack.c.b16 %v8189, %v8187
      %8254 = vmatprep.subr.bf16.mxu0 %v7870
      %8255 = vmatpush1.bf16.msra.mxu0 %v7869
      %8256 = vmatprep.subr.bf16.mxu0 %v7872
      %8257 = vmatpush1.bf16.msra.mxu0 %v7871
      %8258 = vmatprep.subr.bf16.mxu0 %v7874
      %8259 = vmatpush1.bf16.msra.mxu0 %v7873
      %8260 = vmatprep.subr.bf16.mxu0 %v7876
      %8261 = vmatpush1.bf16.msra.mxu0 %v7875
      %8262 = vmatprep.subr.bf16.mxu0 %v7878
      %8263 = vmatpush1.bf16.msra.mxu0 %v7877
      %8264 = vmatprep.subr.bf16.mxu0 %v7880
      %8265 = vmatpush1.bf16.msra.mxu0 %v7879
      %8266 = vmatprep.subr.bf16.mxu0 %v7882
      %8267 = vmatpush1.bf16.msra.mxu0 %v7881
      %8268 = vmatprep.subr.bf16.mxu0 %v7884
      %8269 = vmatpush1.bf16.msra.mxu0 %v7883
      %8270 = vmatprep.subr.bf16.mxu0 %v7886
      %8271 = vmatpush1.bf16.msra.mxu0 %v7885
      %8272 = vmatprep.subr.bf16.mxu0 %v7888
      %8273 = vmatpush1.bf16.msra.mxu0 %v7887
      %8274 = vmatprep.subr.bf16.mxu0 %v7890
      %8275 = vmatpush1.bf16.msra.mxu0 %v7889
      %8276 = vmatprep.subr.bf16.mxu0 %v7892
      %8277 = vmatpush1.bf16.msra.mxu0 %v7891
      %8278 = vmatprep.subr.bf16.mxu0 %v7894
      %8279 = vmatpush1.bf16.msra.mxu0 %v7893
      %8280 = vmatprep.subr.bf16.mxu0 %v7896
      %8281 = vmatpush1.bf16.msra.mxu0 %v7895
      %8282 = vmatprep.subr.bf16.mxu0 %v7898
      %8283 = vmatpush1.bf16.msra.mxu0 %v7897
      %8284 = vmatprep.subr.bf16.mxu0 %v7900
      %8285 = vmatpush1.bf16.msra.mxu0 %v7899
      %8286 = vmatprep.mubr.bf16.mxu0 %v8191
      %8287 = vmatmul.mubr.bf16.gmra.mrb[0].mxu0 %v8190
      %v8288 = vpop.f32.mrb[0].mxu0
      %v8289 = vadd.f32 %v7937, %v8288
      %v8290 = vpop.f32.mrb[0].mxu0
      %v8291 = vadd.f32 %v7937, %v8290
      %v8292 = vpop.f32.mrb[0].mxu0
      %v8293 = vadd.f32 %v7942, %v8292
      %v8294 = vpop.f32.mrb[0].mxu0
      %v8295 = vadd.f32 %v7942, %v8294
      %8296 = vmatprep.mubr.bf16.mxu0 %v8193
      %8297 = vmatmul.mubr.bf16.gmra.mrb[0].mxu0 %v8192
      %v8298 = vpop.f32.mrb[0].mxu0
      %v8299 = vadd.f32 %v7947, %v8298
      %v8300 = vpop.f32.mrb[0].mxu0
      %v8301 = vadd.f32 %v7947, %v8300
      %v8302 = vpop.f32.mrb[0].mxu0
      %v8303 = vadd.f32 %v7952, %v8302
      %v8304 = vpop.f32.mrb[0].mxu0
      %v8305 = vadd.f32 %v7952, %v8304
      %8306 = vmatprep.mubr.bf16.mxu0 %v8195
      %8307 = vmatmul.mubr.bf16.gmra.mrb[0].mxu0 %v8194
      %v8308 = vpop.f32.mrb[0].mxu0
      %v8309 = vadd.f32 %v7957, %v8308
      %v8310 = vpop.f32.mrb[0].mxu0
      %v8311 = vadd.f32 %v7957, %v8310
      %v8312 = vpop.f32.mrb[0].mxu0
      %v8313 = vadd.f32 %v7962, %v8312
      %v8314 = vpop.f32.mrb[0].mxu0
      %v8315 = vadd.f32 %v7962, %v8314
      %8316 = vmatprep.mubr.bf16.mxu0 %v8197
      %8317 = vmatmul.mubr.bf16.gmra.mrb[0].mxu0 %v8196
      %v8318 = vpop.f32.mrb[0].mxu0
      %v8319 = vadd.f32 %v7967, %v8318
      %v8320 = vpop.f32.mrb[0].mxu0
      %v8321 = vadd.f32 %v7967, %v8320
      %v8322 = vpop.f32.mrb[0].mxu0
      %v8323 = vadd.f32 %v7972, %v8322
      %v8324 = vpop.f32.mrb[0].mxu0
      %v8325 = vadd.f32 %v7972, %v8324
      %8326 = vmatprep.mubr.bf16.mxu0 %v8199
      %8327 = vmatmul.mubr.bf16.gmra.mrb[0].mxu0 %v8198
      %v8328 = vpop.f32.mrb[0].mxu0
      %v8329 = vadd.f32 %v7977, %v8328
      %v8330 = vpop.f32.mrb[0].mxu0
      %v8331 = vadd.f32 %v7977, %v8330
      %v8332 = vpop.f32.mrb[0].mxu0
      %v8333 = vadd.f32 %v7982, %v8332
      %v8334 = vpop.f32.mrb[0].mxu0
      %v8335 = vadd.f32 %v7982, %v8334
      %8336 = vmatprep.mubr.bf16.mxu0 %v8201
      %8337 = vmatmul.mubr.bf16.gmra.mrb[0].mxu0 %v8200
      %v8338 = vpop.f32.mrb[0].mxu0
      %v8339 = vadd.f32 %v7987, %v8338
      %v8340 = vpop.f32.mrb[0].mxu0
      %v8341 = vadd.f32 %v7987, %v8340
      %v8342 = vpop.f32.mrb[0].mxu0
      %v8343 = vadd.f32 %v7992, %v8342
      %v8344 = vpop.f32.mrb[0].mxu0
      %v8345 = vadd.f32 %v7992, %v8344
      %8346 = vmatprep.mubr.bf16.mxu0 %v8203
      %8347 = vmatmul.mubr.bf16.gmra.mrb[0].mxu0 %v8202
      %v8348 = vpop.f32.mrb[0].mxu0
      %v8349 = vadd.f32 %v7997, %v8348
      %v8350 = vpop.f32.mrb[0].mxu0
      %v8351 = vadd.f32 %v7997, %v8350
      %v8352 = vpop.f32.mrb[0].mxu0
      %v8353 = vadd.f32 %v8002, %v8352
      %v8354 = vpop.f32.mrb[0].mxu0
      %v8355 = vadd.f32 %v8002, %v8354
      %8356 = vmatprep.mubr.bf16.mxu0 %v8205
      %8357 = vmatmul.mubr.bf16.gmra.mrb[0].mxu0 %v8204
      %v8358 = vpop.f32.mrb[0].mxu0
      %v8359 = vadd.f32 %v8007, %v8358
      %v8360 = vpop.f32.mrb[0].mxu0
      %v8361 = vadd.f32 %v8007, %v8360
      %v8362 = vpop.f32.mrb[0].mxu0
      %v8363 = vadd.f32 %v8012, %v8362
      %v8364 = vpop.f32.mrb[0].mxu0
      %v8365 = vadd.f32 %v8012, %v8364
      %8366 = vmatprep.mubr.bf16.mxu0 %v8207
      %8367 = vmatmul.mubr.bf16.gmra.mrb[0].mxu0 %v8206
      %v8368 = vpop.f32.mrb[0].mxu0
      %v8369 = vadd.f32 %v8017, %v8368
      %v8370 = vpop.f32.mrb[0].mxu0
      %v8371 = vadd.f32 %v8017, %v8370
      %v8372 = vpop.f32.mrb[0].mxu0
      %v8373 = vadd.f32 %v8022, %v8372
      %v8374 = vpop.f32.mrb[0].mxu0
      %v8375 = vadd.f32 %v8022, %v8374
      %8376 = vmatprep.mubr.bf16.mxu0 %v8209
      %8377 = vmatmul.mubr.bf16.gmra.mrb[0].mxu0 %v8208
      %v8378 = vpop.f32.mrb[0].mxu0
      %v8379 = vadd.f32 %v8027, %v8378
      %v8380 = vpop.f32.mrb[0].mxu0
      %v8381 = vadd.f32 %v8027, %v8380
      %v8382 = vpop.f32.mrb[0].mxu0
      %v8383 = vadd.f32 %v8032, %v8382
      %v8384 = vpop.f32.mrb[0].mxu0
      %v8385 = vadd.f32 %v8032, %v8384
      %8386 = vmatprep.mubr.bf16.mxu0 %v8211
      %8387 = vmatmul.mubr.bf16.gmra.mrb[0].mxu0 %v8210
      %v8388 = vpop.f32.mrb[0].mxu0
      %v8389 = vadd.f32 %v8037, %v8388
      %v8390 = vpop.f32.mrb[0].mxu0
      %v8391 = vadd.f32 %v8037, %v8390
      %v8392 = vpop.f32.mrb[0].mxu0
      %v8393 = vadd.f32 %v8042, %v8392
      %v8394 = vpop.f32.mrb[0].mxu0
      %v8395 = vadd.f32 %v8042, %v8394
      %8396 = vmatprep.mubr.bf16.mxu0 %v8213
      %8397 = vmatmul.mubr.bf16.gmra.mrb[0].mxu0 %v8212
      %v8398 = vpop.f32.mrb[0].mxu0
      %v8399 = vadd.f32 %v8047, %v8398
      %v8400 = vpop.f32.mrb[0].mxu0
      %v8401 = vadd.f32 %v8047, %v8400
      %v8402 = vpop.f32.mrb[0].mxu0
      %v8403 = vadd.f32 %v8052, %v8402
      %v8404 = vpop.f32.mrb[0].mxu0
      %v8405 = vadd.f32 %v8052, %v8404
      %8406 = vmatprep.mubr.bf16.mxu0 %v8215
      %8407 = vmatmul.mubr.bf16.gmra.mrb[0].mxu0 %v8214
      %v8408 = vpop.f32.mrb[0].mxu0
      %v8409 = vadd.f32 %v8057, %v8408
      %v8410 = vpop.f32.mrb[0].mxu0
      %v8411 = vadd.f32 %v8057, %v8410
      %v8412 = vpop.f32.mrb[0].mxu0
      %v8413 = vadd.f32 %v8062, %v8412
      %v8414 = vpop.f32.mrb[0].mxu0
      %v8415 = vadd.f32 %v8062, %v8414
      %8416 = vmatprep.mubr.bf16.mxu0 %v8217
      %8417 = vmatmul.mubr.bf16.gmra.mrb[0].mxu0 %v8216
      %v8418 = vpop.f32.mrb[0].mxu0
      %v8419 = vadd.f32 %v8067, %v8418
      %v8420 = vpop.f32.mrb[0].mxu0
      %v8421 = vadd.f32 %v8067, %v8420
      %v8422 = vpop.f32.mrb[0].mxu0
      %v8423 = vadd.f32 %v8072, %v8422
      %v8424 = vpop.f32.mrb[0].mxu0
      %v8425 = vadd.f32 %v8072, %v8424
      %8426 = vmatprep.mubr.bf16.mxu0 %v8219
      %8427 = vmatmul.mubr.bf16.gmra.mrb[0].mxu0 %v8218
      %v8428 = vpop.f32.mrb[0].mxu0
      %v8429 = vadd.f32 %v8077, %v8428
      %v8430 = vpop.f32.mrb[0].mxu0
      %v8431 = vadd.f32 %v8077, %v8430
      %v8432 = vpop.f32.mrb[0].mxu0
      %v8433 = vadd.f32 %v8082, %v8432
      %v8434 = vpop.f32.mrb[0].mxu0
      %v8435 = vadd.f32 %v8082, %v8434
      %8436 = vmatprep.mubr.bf16.mxu0 %v8221
      %8437 = vmatmul.mubr.bf16.gmra.mrb[0].mxu0 %v8220
      %v8438 = vpop.f32.mrb[0].mxu0
      %v8439 = vadd.f32 %v8087, %v8438
      %v8440 = vpop.f32.mrb[0].mxu0
      %v8441 = vadd.f32 %v8087, %v8440
      %v8442 = vpop.f32.mrb[0].mxu0
      %v8443 = vadd.f32 %v8092, %v8442
      %v8444 = vpop.f32.mrb[0].mxu0
      %v8445 = vadd.f32 %v8092, %v8444
      %8446 = vdwg.mxu0
      %v8447 = vadd.f32 %v7033, %v8289
      %v8448 = vadd.f32 %v7034, %v8291
      %v8449 = vadd.f32 %v7035, %v8293
      %v8450 = vadd.f32 %v7036, %v8295
      %v8451 = vadd.f32 %v7037, %v8299
      %v8452 = vadd.f32 %v7038, %v8301
      %v8453 = vadd.f32 %v7039, %v8303
      %v8454 = vadd.f32 %v7040, %v8305
      %v8455 = vadd.f32 %v7041, %v8309
      %v8456 = vadd.f32 %v7042, %v8311
      %v8457 = vadd.f32 %v7043, %v8313
      %v8458 = vadd.f32 %v7044, %v8315
      %v8459 = vadd.f32 %v7045, %v8319
      %v8460 = vadd.f32 %v7046, %v8321
      %v8461 = vadd.f32 %v7047, %v8323
      %v8462 = vadd.f32 %v7048, %v8325
      %v8463 = vadd.f32 %v7049, %v8329
      %v8464 = vadd.f32 %v7050, %v8331
      %v8465 = vadd.f32 %v7051, %v8333
      %v8466 = vadd.f32 %v7052, %v8335
      %v8467 = vadd.f32 %v7053, %v8339
      %v8468 = vadd.f32 %v7054, %v8341
      %v8469 = vadd.f32 %v7055, %v8343
      %v8470 = vadd.f32 %v7056, %v8345
      %v8471 = vadd.f32 %v7057, %v8349
      %v8472 = vadd.f32 %v7058, %v8351
      %v8473 = vadd.f32 %v7059, %v8353
      %v8474 = vadd.f32 %v7060, %v8355
      %v8475 = vadd.f32 %v7061, %v8359
      %v8476 = vadd.f32 %v7062, %v8361
      %v8477 = vadd.f32 %v7063, %v8363
      %v8478 = vadd.f32 %v7064, %v8365
      %v8479 = vadd.f32 %v7065, %v8369
      %v8480 = vadd.f32 %v7066, %v8371
      %v8481 = vadd.f32 %v7067, %v8373
      %v8482 = vadd.f32 %v7068, %v8375
      %v8483 = vadd.f32 %v7069, %v8379
      %v8484 = vadd.f32 %v7070, %v8381
      %v8485 = vadd.f32 %v7071, %v8383
      %v8486 = vadd.f32 %v7072, %v8385
      %v8487 = vadd.f32 %v7073, %v8389
      %v8488 = vadd.f32 %v7074, %v8391
      %v8489 = vadd.f32 %v7075, %v8393
      %v8490 = vadd.f32 %v7076, %v8395
      %v8491 = vadd.f32 %v7077, %v8399
      %v8492 = vadd.f32 %v7078, %v8401
      %v8493 = vadd.f32 %v7079, %v8403
      %v8494 = vadd.f32 %v7080, %v8405
      %v8495 = vadd.f32 %v7081, %v8409
      %v8496 = vadd.f32 %v7082, %v8411
      %v8497 = vadd.f32 %v7083, %v8413
      %v8498 = vadd.f32 %v7084, %v8415
      %v8499 = vadd.f32 %v7085, %v8419
      %v8500 = vadd.f32 %v7086, %v8421
      %v8501 = vadd.f32 %v7087, %v8423
      %v8502 = vadd.f32 %v7088, %v8425
      %v8503 = vadd.f32 %v7089, %v8429
      %v8504 = vadd.f32 %v7090, %v8431
      %v8505 = vadd.f32 %v7091, %v8433
      %v8506 = vadd.f32 %v7092, %v8435
      %v8507 = vadd.f32 %v7093, %v8439
      %v8508 = vadd.f32 %v7094, %v8441
      %v8509 = vadd.f32 %v7095, %v8443
      %v8510 = vadd.f32 %v7096, %v8445
      %v8511 = vmul.f32 %v8447, 0.01
      %v8512 = vmul.f32 %v8448, 0.01
      %v8513 = vmul.f32 %v8449, 0.01
      %v8514 = vmul.f32 %v8450, 0.01
      %v8515 = vmul.f32 %v8451, 0.01
      %v8516 = vmul.f32 %v8452, 0.01
      %v8517 = vmul.f32 %v8453, 0.01
      %v8518 = vmul.f32 %v8454, 0.01
      %v8519 = vmul.f32 %v8455, 0.01
      %v8520 = vmul.f32 %v8456, 0.01
      %v8521 = vmul.f32 %v8457, 0.01
      %v8522 = vmul.f32 %v8458, 0.01
      %v8523 = vmul.f32 %v8459, 0.01
      %v8524 = vmul.f32 %v8460, 0.01
      %v8525 = vmul.f32 %v8461, 0.01
      %v8526 = vmul.f32 %v8462, 0.01
      %v8527 = vmul.f32 %v8463, 0.01
      %v8528 = vmul.f32 %v8464, 0.01
      %v8529 = vmul.f32 %v8465, 0.01
      %v8530 = vmul.f32 %v8466, 0.01
      %v8531 = vmul.f32 %v8467, 0.01
      %v8532 = vmul.f32 %v8468, 0.01
      %v8533 = vmul.f32 %v8469, 0.01
      %v8534 = vmul.f32 %v8470, 0.01
      %v8535 = vmul.f32 %v8471, 0.01
      %v8536 = vmul.f32 %v8472, 0.01
      %v8537 = vmul.f32 %v8473, 0.01
      %v8538 = vmul.f32 %v8474, 0.01
      %v8539 = vmul.f32 %v8475, 0.01
      %v8540 = vmul.f32 %v8476, 0.01
      %v8541 = vmul.f32 %v8477, 0.01
      %v8542 = vmul.f32 %v8478, 0.01
      %v8543 = vmul.f32 %v8479, 0.01
      %v8544 = vmul.f32 %v8480, 0.01
      %v8545 = vmul.f32 %v8481, 0.01
      %v8546 = vmul.f32 %v8482, 0.01
      %v8547 = vmul.f32 %v8483, 0.01
      %v8548 = vmul.f32 %v8484, 0.01
      %v8549 = vmul.f32 %v8485, 0.01
      %v8550 = vmul.f32 %v8486, 0.01
      %v8551 = vmul.f32 %v8487, 0.01
      %v8552 = vmul.f32 %v8488, 0.01
      %v8553 = vmul.f32 %v8489, 0.01
      %v8554 = vmul.f32 %v8490, 0.01
      %v8555 = vmul.f32 %v8491, 0.01
      %v8556 = vmul.f32 %v8492, 0.01
      %v8557 = vmul.f32 %v8493, 0.01
      %v8558 = vmul.f32 %v8494, 0.01
      %v8559 = vmul.f32 %v8495, 0.01
      %v8560 = vmul.f32 %v8496, 0.01
      %v8561 = vmul.f32 %v8497, 0.01
      %v8562 = vmul.f32 %v8498, 0.01
      %v8563 = vmul.f32 %v8499, 0.01
      %v8564 = vmul.f32 %v8500, 0.01
      %v8565 = vmul.f32 %v8501, 0.01
      %v8566 = vmul.f32 %v8502, 0.01
      %v8567 = vmul.f32 %v8503, 0.01
      %v8568 = vmul.f32 %v8504, 0.01
      %v8569 = vmul.f32 %v8505, 0.01
      %v8570 = vmul.f32 %v8506, 0.01
      %v8571 = vmul.f32 %v8507, 0.01
      %v8572 = vmul.f32 %v8508, 0.01
      %v8573 = vmul.f32 %v8509, 0.01
      %v8574 = vmul.f32 %v8510, 0.01
      %v8575 = vmax.f32 %v8447, %v8511
      %v8576 = vmax.f32 %v8448, %v8512
      %v8577 = vmax.f32 %v8449, %v8513
      %v8578 = vmax.f32 %v8450, %v8514
      %v8579 = vmax.f32 %v8451, %v8515
      %v8580 = vmax.f32 %v8452, %v8516
      %v8581 = vmax.f32 %v8453, %v8517
      %v8582 = vmax.f32 %v8454, %v8518
      %v8583 = vmax.f32 %v8455, %v8519
      %v8584 = vmax.f32 %v8456, %v8520
      %v8585 = vmax.f32 %v8457, %v8521
      %v8586 = vmax.f32 %v8458, %v8522
      %v8587 = vmax.f32 %v8459, %v8523
      %v8588 = vmax.f32 %v8460, %v8524
      %v8589 = vmax.f32 %v8461, %v8525
      %v8590 = vmax.f32 %v8462, %v8526
      %v8591 = vmax.f32 %v8463, %v8527
      %v8592 = vmax.f32 %v8464, %v8528
      %v8593 = vmax.f32 %v8465, %v8529
      %v8594 = vmax.f32 %v8466, %v8530
      %v8595 = vmax.f32 %v8467, %v8531
      %v8596 = vmax.f32 %v8468, %v8532
      %v8597 = vmax.f32 %v8469, %v8533
      %v8598 = vmax.f32 %v8470, %v8534
      %v8599 = vmax.f32 %v8471, %v8535
      %v8600 = vmax.f32 %v8472, %v8536
      %v8601 = vmax.f32 %v8473, %v8537
      %v8602 = vmax.f32 %v8474, %v8538
      %v8603 = vmax.f32 %v8475, %v8539
      %v8604 = vmax.f32 %v8476, %v8540
      %v8605 = vmax.f32 %v8477, %v8541
      %v8606 = vmax.f32 %v8478, %v8542
      %v8607 = vmax.f32 %v8479, %v8543
      %v8608 = vmax.f32 %v8480, %v8544
      %v8609 = vmax.f32 %v8481, %v8545
      %v8610 = vmax.f32 %v8482, %v8546
      %v8611 = vmax.f32 %v8483, %v8547
      %v8612 = vmax.f32 %v8484, %v8548
      %v8613 = vmax.f32 %v8485, %v8549
      %v8614 = vmax.f32 %v8486, %v8550
      %v8615 = vmax.f32 %v8487, %v8551
      %v8616 = vmax.f32 %v8488, %v8552
      %v8617 = vmax.f32 %v8489, %v8553
      %v8618 = vmax.f32 %v8490, %v8554
      %v8619 = vmax.f32 %v8491, %v8555
      %v8620 = vmax.f32 %v8492, %v8556
      %v8621 = vmax.f32 %v8493, %v8557
      %v8622 = vmax.f32 %v8494, %v8558
      %v8623 = vmax.f32 %v8495, %v8559
      %v8624 = vmax.f32 %v8496, %v8560
      %v8625 = vmax.f32 %v8497, %v8561
      %v8626 = vmax.f32 %v8498, %v8562
      %v8627 = vmax.f32 %v8499, %v8563
      %v8628 = vmax.f32 %v8500, %v8564
      %v8629 = vmax.f32 %v8501, %v8565
      %v8630 = vmax.f32 %v8502, %v8566
      %v8631 = vmax.f32 %v8503, %v8567
      %v8632 = vmax.f32 %v8504, %v8568
      %v8633 = vmax.f32 %v8505, %v8569
      %v8634 = vmax.f32 %v8506, %v8570
      %v8635 = vmax.f32 %v8507, %v8571
      %v8636 = vmax.f32 %v8508, %v8572
      %v8637 = vmax.f32 %v8509, %v8573
      %v8638 = vmax.f32 %v8510, %v8574
      %v8639 = vld [vmem:[%s7] sm:$0xf]
      %v8640 = vpack.c.bf16 %v8577, %v8575
      %v8641 = vpack.c.bf16 %v8578, %v8576
      %v8642 = vpack.c.bf16 %v8581, %v8579
      %v8643 = vpack.c.bf16 %v8582, %v8580
      %v8644 = vpack.c.bf16 %v8585, %v8583
      %v8645 = vpack.c.bf16 %v8586, %v8584
      %v8646 = vpack.c.bf16 %v8589, %v8587
      %v8647 = vpack.c.bf16 %v8590, %v8588
      %v8648 = vpack.c.bf16 %v8593, %v8591
      %v8649 = vpack.c.bf16 %v8594, %v8592
      %v8650 = vpack.c.bf16 %v8597, %v8595
      %v8651 = vpack.c.bf16 %v8598, %v8596
      %v8652 = vpack.c.bf16 %v8601, %v8599
      %v8653 = vpack.c.bf16 %v8602, %v8600
      %v8654 = vpack.c.bf16 %v8605, %v8603
      %v8655 = vpack.c.bf16 %v8606, %v8604
      %v8656 = vpack.c.bf16 %v8609, %v8607
      %v8657 = vpack.c.bf16 %v8610, %v8608
      %v8658 = vpack.c.bf16 %v8613, %v8611
      %v8659 = vpack.c.bf16 %v8614, %v8612
      %v8660 = vpack.c.bf16 %v8617, %v8615
      %v8661 = vpack.c.bf16 %v8618, %v8616
      %v8662 = vpack.c.bf16 %v8621, %v8619
      %v8663 = vpack.c.bf16 %v8622, %v8620
      %v8664 = vpack.c.bf16 %v8625, %v8623
      %v8665 = vpack.c.bf16 %v8626, %v8624
      %v8666 = vpack.c.bf16 %v8629, %v8627
      %v8667 = vpack.c.bf16 %v8630, %v8628
      %v8668 = vpack.c.bf16 %v8633, %v8631
      %v8669 = vpack.c.bf16 %v8634, %v8632
      %v8670 = vpack.c.bf16 %v8637, %v8635
      %v8671 = vpack.c.bf16 %v8638, %v8636
      %v8672 = vld [vmem:[%s8] sm:$0x7]
      %8674 = vset.pattern.permute.xlu0 0
      %8675 = vperm.xlu0 %8674, %v8672
      %v8676 = vpop.permute.xlu0 %8675
      %v8680 = vunpack.c.l.s4 1983009808
      %v8681 = vunpack.c.0.s8 %v8680
      %v8682 = vlaneseq
      %v8683 = vshrl.u32 %v8682, 7
      %v8684 = vsub.s32 %v8681, %v8683
      %v8685 = vrot.slane %v8639, %v8684
      %v8686 = vcombine.high %v8685, %v8685
      %8689 = vmatprep.subr.bf16.mxu0 %v8641
      %8690 = vmatpush1.bf16.msra.mxu0 %v8640
      %8691 = vmatprep.subr.bf16.mxu0 %v8643
      %8692 = vmatpush1.bf16.msra.mxu0 %v8642
      %8693 = vmatprep.subr.bf16.mxu0 %v8645
      %8694 = vmatpush1.bf16.msra.mxu0 %v8644
      %8695 = vmatprep.subr.bf16.mxu0 %v8647
      %8696 = vmatpush1.bf16.msra.mxu0 %v8646
      %8697 = vmatprep.subr.bf16.mxu0 %v8649
      %8698 = vmatpush1.bf16.msra.mxu0 %v8648
      %8699 = vmatprep.subr.bf16.mxu0 %v8651
      %8700 = vmatpush1.bf16.msra.mxu0 %v8650
      %8701 = vmatprep.subr.bf16.mxu0 %v8653
      %8702 = vmatpush1.bf16.msra.mxu0 %v8652
      %8703 = vmatprep.subr.bf16.mxu0 %v8655
      %8704 = vmatpush1.bf16.msra.mxu0 %v8654
      %8705 = vmatprep.subr.bf16.mxu0 %v8657
      %8706 = vmatpush1.bf16.msra.mxu0 %v8656
      %8707 = vmatprep.subr.bf16.mxu0 %v8659
      %8708 = vmatpush1.bf16.msra.mxu0 %v8658
      %8709 = vmatprep.subr.bf16.mxu0 %v8661
      %8710 = vmatpush1.bf16.msra.mxu0 %v8660
      %8711 = vmatprep.subr.bf16.mxu0 %v8663
      %8712 = vmatpush1.bf16.msra.mxu0 %v8662
      %8713 = vmatprep.subr.bf16.mxu0 %v8665
      %8714 = vmatpush1.bf16.msra.mxu0 %v8664
      %8715 = vmatprep.subr.bf16.mxu0 %v8667
      %8716 = vmatpush1.bf16.msra.mxu0 %v8666
      %8717 = vmatprep.subr.bf16.mxu0 %v8669
      %8718 = vmatpush1.bf16.msra.mxu0 %v8668
      %8719 = vmatprep.subr.bf16.mxu0 %v8671
      %8720 = vmatpush1.bf16.msra.mxu0 %v8670
      %8721 = vmatprep.mubr.bf16.mxu0 %v8686
      %8722 = vmatmul.mubr.bf16.gmra.mrb[0].mxu0 %v8685
      %v8723 = vpop.f32.mrb[0].mxu0
      %v8724 = vadd.f32 %v8676, %v8723
      %v8725 = vpop.f32.mrb[0].mxu0
      %v8726 = vadd.f32 %v8676, %v8725
      %v8727 = vpop.f32.mrb[0].mxu0
      %v8728 = vpop.f32.mrb[0].mxu0
      %8729 = vdwg.mxu0
      %v8732 = vcombine.low %v8724, %v8726
      %8734 = vst [vmem:[%s370] sm:$0x77] %v8732
      %s8735 = smul.u32 2, %s25
      %p8736 = scmp.lt.s32.totalorder %s24, 1
      %s8737 = scalar_select %p8736, %s24, 1
      %p8738 = scmp.lt.s32.totalorder %s8735, 1
      %s8739 = scalar_select %p8738, %s8735, 1
      %s8740 = smul.addr %s8737, 2
      %s8741 = sadd.s32 %s8739, %s8740
      %s8742 = smul.addr %s8741, 4
      %s8743 = scalar_lea.vmem %s9, %s8742
      // Predicated region
      $region57: #{fg_pixtransform_v1.1} parent=55 // pred_check
        %p8744 = pneg %p248
      $region58: #{fg_pixtransform_v1.1} parent=55 // pred_check_branch
        %8746 = sbr.rel (%p8744) target = $region60
      $region59: #{fg_pixtransform_v1.1} parent=55 // pred_region
        %s8747 = smul.u32 2, %s25
      $region60: #{fg_pixtransform_v1.1} parent=55 // pred_fallthru
        _
    $region56: #{fg_pixtransform_v1.1} parent=5 // pred_fallthru
      _
    %p8748 = scmp.le.s32.totalorder 2, %s15
    // Predicated region
    $region61: #{fg_pixtransform_v1.1} parent=5 // pred_check
      %p8749 = pneg %p8748
    $region62: #{fg_pixtransform_v1.1} parent=5 // pred_check_branch
      %8751 = sbr.rel (%p8749) target = $region64
    $region63: #{fg_pixtransform_v1.1} parent=5 // pred_region
      %s8752 = ssub.s32 %s15, 2
      // Predicated region
      $region65: #{fg_pixtransform_v1.1} parent=63 // pred_check
        %p8753 = pneg %p254
      $region66: #{fg_pixtransform_v1.1} parent=63 // pred_check_branch
        %8755 = sbr.rel (%p8753) target = $region68
      $region67: #{fg_pixtransform_v1.1} parent=63 // pred_region
        %s8756 = smul.u32 2, %s27
        %p8757 = scmp.lt.s32.totalorder %s26, 1
        %s8758 = scalar_select %p8757, %s26, 1
        %p8759 = scmp.lt.s32.totalorder %s8756, 1
        %s8760 = scalar_select %p8759, %s8756, 1
        %s8761 = smul.addr %s8758, 2
        %s8762 = sadd.s32 %s8760, %s8761
        %s8763 = smul.addr %s8762, 4
        %s8764 = scalar_lea.vmem %s9, %s8763
      $region68: #{fg_pixtransform_v1.1} parent=63 // pred_fallthru
        _
    $region64: #{fg_pixtransform_v1.1} parent=5 // pred_fallthru
      _
  $region6: #{fg_pixtransform_v1.1} parent=0 // loop_footer
    %s19 = sadd.s32 1, %s15
  $region7: #{fg_pixtransform_v1.1} parent=0 // loop_footer_branch
    %14 = sbr.rel target = $region3
  $region8: #{fg_pixtransform_v1.1} parent=0 // loop_exit
    _

</llo_original>
